<compile_context>
chip_gen: v5e
topology: v5e:2x2
jax: 0.10.0
libtpu: 0.0.40
codegen_flags: <defaults>
</compile_context>

<pallas_src>
import jax
import jax.numpy as jnp
from jax.experimental import pallas as pl
from jax.experimental.pallas import tpu as pltpu

EPS = 1e-5
LANE = 128


# ------------------------------ small helpers ------------------------------ #

def _round_up(x, m):
    return (x + m - 1) // m * m


def _vmem_capacity_bytes():
    try:
        return max(int(pltpu.get_tpu_info().vmem_capacity_bytes), 32 * 1024 * 1024)
    except Exception:
        return 64 * 1024 * 1024          # conservative default (v7x physical VMEM)


def _choose_tile(m, per_row_bytes, fixed_bytes, budget):
    """Largest row tile whose (double-buffered) working set fits `budget`.

    Prefers tiles that divide m exactly; otherwise returns (tile, padded_m)
    so the caller pads with zero rows (exact for the BN partial statistics)."""
    avail = max(budget - 2 * fixed_bytes, 3 * 8 * per_row_bytes)
    cands = [2048, 1024, 512, 256, 128, 64, 32, 16, 8]
    fits = [t for t in cands if 3 * t * per_row_bytes <= avail] or [8]
    for t in fits:
        if m % t == 0:
            return t, m
    t = min(fits[0], _round_up(m, 8))
    return t, _round_up(m, t)


def _pick_row_batch(Ho, Wo, W, C, stride, itemsize, budget):
    """Largest output-row batch R (divisor of Ho) for the grouped-conv kernel."""
    best = 1
    for R in range(1, Ho + 1):
        if Ho % R:
            continue
        RS = R * stride
        vmem = ((RS + 2) * (W + 2) * C * itemsize       # padded band scratch
                + 2 * (RS + 2) * W * C * itemsize       # band + halo inputs (dbl buf)
                + 2 * R * Wo * C * itemsize             # output tile (dbl buf)
                + 4 * R * Wo * C * 4                    # f32 accumulator + tap temps
                + 2 * 9 * C * C * itemsize              # packed tap weights (dbl buf)
                + 2 * 8 * C * 4)                        # stats tile
        if R * Wo > 1024 or vmem > budget:
            break
        best = R
    return best


def _pad_last(a, target):
    pad = target - a.shape[-1]
    if pad == 0:
        return a
    cfg = [(0, 0)] * (a.ndim - 1) + [(0, pad)]
    return jnp.pad(a, cfg)


def _pad2(a, shape):
    return jnp.pad(a, ((0, shape[0] - a.shape[0]), (0, shape[1] - a.shape[1])))


def _fold_bn(stats8, count, gamma, beta):
    # stats8: (8, C); row 0 = sum, row 1 = sum of squares (f32 partials).
    # NOTE: E[x^2]-E[x]^2 in f32, clamped at 0; fine at these magnitudes.
    mean = stats8[0] / count
    var = jnp.maximum(stats8[1] / count - mean * mean, 0.0)
    scale = gamma * jax.lax.rsqrt(var + EPS)
    bias = beta - mean * scale
    return (scale.reshape(1, -1).astype(jnp.float32),
            bias.reshape(1, -1).astype(jnp.float32))


# ----------------------------- Pallas kernels ------------------------------ #

def _stack_stats(y):
    # (rows, C) f32 -> (8, C): row0 = sum, row1 = sum of squares, rest zeros.
    s = jnp.sum(y, axis=0, keepdims=True)
    q = jnp.sum(y * y, axis=0, keepdims=True)
    sel = jax.lax.broadcasted_iota(jnp.int32, (8, 1), 0)
    return jnp.where(sel == 0, s, jnp.where(sel == 1, q, 0.0))


def _conv1x1_stats_kernel(x_ref, w_ref, y_ref, st_ref):
    # 1x1 conv as a matmul + per-tile partial BN statistics (single (8,C) store).
    y = jnp.dot(x_ref[...], w_ref[...], preferred_element_type=jnp.float32)
    y_ref[...] = y.astype(y_ref.dtype)
    st_ref[0] = _stack_stats(y)


def _make_gconv_kernel(H, W, Wo, R, stride, band_mask):
    # Grouped 3x3 conv over a batch of R output rows.  Prologue: folded BN1
    # affine + ReLU on the raw conv_reduce output band (+ halo rows), assembled
    # zero-padded in a VMEM scratch.  Then 9 accumulating MXU matmuls (one per
    # tap, K = C) into an f32 accumulator; per-band BN statistics emitted once.
    RS = R * stride

    def kernel(top_ref, band_ref, bot_ref, s1_ref, b1_ref, w_ref,
               y_ref, st_ref, pad_sc):
        C = pad_sc.shape[-1]
        dt = pad_sc.dtype
        s1 = s1_ref[...]
        b1 = b1_ref[...]
        b = pl.program_id(1)

        def bn_relu(v):
            return jnp.maximum(v.astype(jnp.float32) * s1 + b1, 0.0)

        band = bn_relu(band_ref[0])                                   # (RS, W, C)
        if band_mask:
            rows = b * RS + jax.lax.broadcasted_iota(jnp.int32, (RS, 1, 1), 0)
            band = jnp.where(rows < H, band, 0.0)
        top = jnp.where(b > 0, bn_relu(top_ref[0, 0]), 0.0)           # (W, C)
        bot = jnp.where((b + 1) * RS < H, bn_relu(bot_ref[0, 0]), 0.0)

        # Zero-padded, activated input band assembled once in VMEM.
        zcol = jnp.zeros((RS + 2, 1, C), dt)
        pad_sc[:, 0:1, :] = zcol
        pad_sc[:, W + 1:W + 2, :] = zcol
        pad_sc[0, 1:W + 1, :] = top.astype(dt)
        pad_sc[1:1 + RS, 1:W + 1, :] = band.astype(dt)
        pad_sc[RS + 1, 1:W + 1, :] = bot.astype(dt)

        acc = jnp.zeros((R * Wo, C), jnp.float32)
        if stride == 1:
            for kh in range(3):
                for kw in range(3):
                    tap = pad_sc[kh:kh + R, kw:kw + Wo, :]
                    acc = acc + jnp.dot(tap.reshape(R * Wo, C),
                                        w_ref[kh * 3 + kw],
                                        preferred_element_type=jnp.float32)
        else:
            a = pad_sc[...]
            for kh in range(3):
                for kw in range(3):
                    tap = jax.lax.slice(
                        a, (kh, kw, 0),
                        (kh + (R - 1) * stride + 1,
                         kw + (Wo - 1) * stride + 1, C),
                        (stride, stride, 1))
                    acc = acc + jnp.dot(tap.reshape(R * Wo, C),
                                        w_ref[kh * 3 + kw],
                                        preferred_element_type=jnp.float32)

        y_ref[0] = acc.reshape(R, Wo, C).astype(y_ref.dtype)
        st_ref[0] = _stack_stats(acc)

    return kernel


def _make_expand_kernel(has_proj, tm, valid_rows):
    # Prologue: folded BN2 affine + ReLU on the raw grouped-conv output, then
    # the 1x1 expand conv (and the 1x1 projection shortcut conv), each with
    # per-tile partial BN statistics.  `valid_rows` masks zero-padded rows.
    def prologue(y2_ref, s2_ref, b2_ref):
        h2 = jnp.maximum(y2_ref[...].astype(jnp.float32) * s2_ref[...] + b2_ref[...], 0.0)
        if valid_rows is not None:
            rows = pl.program_id(0) * tm + jax.lax.broadcasted_iota(jnp.int32, (tm, 1), 0)
            h2 = jnp.where(rows < valid_rows, h2, 0.0)
        return h2

    if has_proj:
        def kernel(y2_ref, s2_ref, b2_ref, we_ref, xs_ref, ws_ref,
                   y3_ref, st3_ref, ys_ref, sts_ref):
            h2 = prologue(y2_ref, s2_ref, b2_ref)
            y3 = jnp.dot(h2.astype(we_ref.dtype), we_ref[...],
                         preferred_element_type=jnp.float32)
            ys = jnp.dot(xs_ref[...], ws_ref[...],
                         preferred_element_type=jnp.float32)
            y3_ref[...] = y3.astype(y3_ref.dtype)
            ys_ref[...] = ys.astype(ys_ref.dtype)
            st3_ref[0] = _stack_stats(y3)
            sts_ref[0] = _stack_stats(ys)
        return kernel

    def kernel(y2_ref, s2_ref, b2_ref, we_ref, y3_ref, st3_ref):
        h2 = prologue(y2_ref, s2_ref, b2_ref)
        y3 = jnp.dot(h2.astype(we_ref.dtype), we_ref[...],
                     preferred_element_type=jnp.float32)
        y3_ref[...] = y3.astype(y3_ref.dtype)
        st3_ref[0] = _stack_stats(y3)
    return kernel


def _residual_proj_kernel(y3_ref, s3_ref, b3_ref, ys_ref, ss_ref, bs_ref, o_ref):
    a = y3_ref[...].astype(jnp.float32) * s3_ref[...] + b3_ref[...]
    r = ys_ref[...].astype(jnp.float32) * ss_ref[...] + bs_ref[...]
    o_ref[...] = jnp.maximum(a + r, 0.0).astype(o_ref.dtype)


def _residual_id_kernel(y3_ref, s3_ref, b3_ref, r_ref, o_ref):
    a = y3_ref[...].astype(jnp.float32) * s3_ref[...] + b3_ref[...]
    o_ref[...] = jnp.maximum(a + r_ref[...].astype(jnp.float32), 0.0).astype(o_ref.dtype)


# ---------------------------- kernel call helpers --------------------------- #

def _grouped_conv3x3(y1_img, s1, b1, w9, *, H_true, Ho, Wo, R, stride,
                     out_dtype, vmem_limit, cg_true, d_true):
    N, Hpad, W, C = y1_img.shape
    RS = R * stride
    nb = Ho // R
    cdt = jnp.dtype(out_dtype)
    kernel = _make_gconv_kernel(H_true, W, Wo, R, stride, band_mask=(Hpad != H_true))

    flops = 2 * N * Ho * Wo * 9 * cg_true * d_true        # useful grouped work
    bytes_acc = int(N * Hpad * W * C * y1_img.dtype.itemsize * (RS + 2) / RS
                    + w9.size * w9.dtype.itemsize
                    + N * Ho * Wo * C * cdt.itemsize
                    + N * nb * 8 * C * 4)

    return pl.pallas_call(
        kernel,
        grid=(N, nb),
        in_specs=[
            pl.BlockSpec((1, 1, W, C),
                         lambda n, b: (n, jnp.maximum(b * RS - 1, 0), 0, 0)),
            pl.BlockSpec((1, RS, W, C), lambda n, b: (n, b, 0, 0)),
            pl.BlockSpec((1, 1, W, C),
                         lambda n, b: (n, jnp.minimum((b + 1) * RS, Hpad - 1), 0, 0)),
            pl.BlockSpec((1, C), lambda n, b: (0, 0)),
            pl.BlockSpec((1, C), lambda n, b: (0, 0)),
            pl.BlockSpec((9, C, C), lambda n, b: (0, 0, 0)),
        ],
        out_specs=[
            pl.BlockSpec((1, R, Wo, C), lambda n, b: (n, b, 0, 0)),
            pl.BlockSpec((1, 8, C), lambda n, b: (n * nb + b, 0, 0)),
        ],
        out_shape=[jax.ShapeDtypeStruct((N, Ho, Wo, C), cdt),
                   jax.ShapeDtypeStruct((N * nb, 8, C), jnp.float32)],
        scratch_shapes=[pltpu.VMEM((RS + 2, W + 2, C), cdt)],
        compiler_params=pltpu.CompilerParams(
            dimension_semantics=("parallel", "parallel"),
            vmem_limit_bytes=vmem_limit),
        cost_estimate=pl.CostEstimate(flops=int(flops), transcendentals=0,
                                      bytes_accessed=bytes_acc),
    )(y1_img, y1_img, y1_img, s1, b1, w9)


# ------------------------------- forward pass ------------------------------ #

def resnext_bottleneck_forward(x_nchw, params, stride, cardinality, *,
                               compute_dtype=jnp.bfloat16,
                               output_dtype=jnp.float32):
    cdt = jnp.dtype(compute_dtype)
    odt = jnp.dtype(output_dtype)
    cbytes = cdt.itemsize
    x = x_nchw.astype(jnp.float32)
    N, C_in, H, W = x.shape
    D = params['w_reduce'].shape[0]
    C_out = params['w_expand'].shape[0]
    Cg = D // cardinality

    Cp_in = _round_up(C_in, LANE)
    Dp = _round_up(D, LANE)
    Cp_out = _round_up(C_out, LANE)

    Ho = (H + 2 - 3) // stride + 1
    Wo = (W + 2 - 3) // stride + 1
    M1 = N * H * W
    M2 = N * Ho * Wo

    cap = _vmem_capacity_bytes()
    vmem_limit = int(min(cap * 3 // 4, 100 * 1024 * 1024))
    budget = vmem_limit // 2
    cp_rows = pltpu.CompilerParams(dimension_semantics=("parallel",),
                                   vmem_limit_bytes=vmem_limit)

    # ---------------- layout + parameter packing (one-time JAX glue) --------
    x_nhwc = jnp.transpose(x, (0, 2, 3, 1))                       # (N,H,W,Cin)
    x2d = _pad_last(x_nhwc, Cp_in).reshape(M1, Cp_in).astype(cdt)
    w1 = _pad2(params['w_reduce'].reshape(D, C_in).T, (Cp_in, Dp)).astype(cdt)

    # Grouped 3x3 weights: per-tap block-diagonal (in, out) matrices.
    wt = params['w_conv'].reshape(cardinality, Cg, Cg, 3, 3)      # (g,o,i,kh,kw)
    wt = jnp.transpose(wt, (3, 4, 0, 2, 1)).reshape(9, cardinality, Cg, Cg)
    w2 = jnp.zeros((9, Dp, Dp), jnp.float32)
    for g in range(cardinality):
        w2 = w2.at[:, g * Cg:(g + 1) * Cg, g * Cg:(g + 1) * Cg].set(wt[:, g])
    w2 = w2.astype(cdt)            # off-diagonal zeros stay exact in bf16

    w3 = _pad2(params['w_expand'].reshape(C_out, D).T, (Dp, Cp_out)).astype(cdt)

    g1 = _pad_last(params['g_reduce'], Dp);     b1 = _pad_last(params['b_reduce'], Dp)
    g2 = _pad_last(params['g_conv'], Dp);       b2 = _pad_last(params['b_conv'], Dp)
    g3 = _pad_last(params['g_expand'], Cp_out); b3 = _pad_last(params['b_expand'], Cp_out)

    # ---- stage 1: conv_reduce (1x1) + partial BN stats ----------------------
    t1, m1p = _choose_tile(M1, (Cp_in + Dp) * cbytes, Cp_in * Dp * cbytes, budget)
    x2d_p = x2d if m1p == M1 else jnp.pad(x2d, ((0, m1p - M1), (0, 0)))
    nt1 = m1p // t1
    y1, st1 = pl.pallas_call(
        _conv1x1_stats_kernel,
        grid=(nt1,),
        in_specs=[pl.BlockSpec((t1, Cp_in), lambda i: (i, 0)),
                  pl.BlockSpec((Cp_in, Dp), lambda i: (0, 0))],
        out_specs=[pl.BlockSpec((t1, Dp), lambda i: (i, 0)),
                   pl.BlockSpec((1, 8, Dp), lambda i: (i, 0, 0))],
        out_shape=[jax.ShapeDtypeStruct((m1p, Dp), cdt),
                   jax.ShapeDtypeStruct((nt1, 8, Dp), jnp.float32)],
        compiler_params=cp_rows,
        cost_estimate=pl.CostEstimate(
            flops=2 * m1p * Cp_in * Dp, transcendentals=0,
            bytes_accessed=int(m1p * (Cp_in + Dp) * cbytes
                               + Cp_in * Dp * cbytes + nt1 * 8 * Dp * 4)),
    )(x2d_p, w1)
    sc1, bi1 = _fold_bn(st1.sum(axis=0), M1, g1, b1)

    # ---- stage 2: grouped 3x3 conv, BN1+ReLU fused into its prologue --------
    y1_img = (y1 if m1p == M1 else y1[:M1]).reshape(N, H, W, Dp)
    Hpad = Ho * stride
    if Hpad > H:
        y1_img = jnp.pad(y1_img, ((0, 0), (0, Hpad - H), (0, 0), (0, 0)))
    R = _pick_row_batch(Ho, Wo, W, Dp, stride, cbytes, budget)
    y2, st2 = _grouped_conv3x3(y1_img, sc1, bi1, w2, H_true=H, Ho=Ho, Wo=Wo,
                               R=R, stride=stride, out_dtype=cdt,
                               vmem_limit=vmem_limit, cg_true=Cg, d_true=D)
    sc2, bi2 = _fold_bn(st2.sum(axis=0), M2, g2, b2)
    y2_2d = y2.reshape(M2, Dp)

    # ---- stage 3: BN2+ReLU prologue + conv_expand (+ projection shortcut) ---
    has_proj = 'w_short' in params
    per_row3 = (Dp + 2 * Cp_out + (Cp_in if has_proj else 0)) * cbytes
    fixed3 = (Dp + (Cp_in if has_proj else 0)) * Cp_out * cbytes
    t3, m2p = _choose_tile(M2, per_row3, fixed3, budget)
    nt3 = m2p // t3
    pad3 = m2p - M2
    valid_rows = None if pad3 == 0 else M2
    y2p = y2_2d if pad3 == 0 else jnp.pad(y2_2d, ((0, pad3), (0, 0)))
    kernel3 = _make_expand_kernel(has_proj, t3, valid_rows)
    per_row_res = (2 * cbytes + odt.itemsize) * Cp_out

    if has_proj:
        xs2d = _pad_last(x_nhwc[:, ::stride, ::stride, :], Cp_in)
        xs2d = xs2d.reshape(M2, Cp_in).astype(cdt)
        if pad3:
            xs2d = jnp.pad(xs2d, ((0, pad3), (0, 0)))
        ws = _pad2(params['w_short'].reshape(C_out, C_in).T, (Cp_in, Cp_out)).astype(cdt)
        gs = _pad_last(params['g_short'], Cp_out)
        bs = _pad_last(params['b_short'], Cp_out)

        y3, st3, ys, sts = pl.pallas_call(
            kernel3,
            grid=(nt3,),
            in_specs=[pl.BlockSpec((t3, Dp), lambda i: (i, 0)),
                      pl.BlockSpec((1, Dp), lambda i: (0, 0)),
                      pl.BlockSpec((1, Dp), lambda i: (0, 0)),
                      pl.BlockSpec((Dp, Cp_out), lambda i: (0, 0)),
                      pl.BlockSpec((t3, Cp_in), lambda i: (i, 0)),
                      pl.BlockSpec((Cp_in, Cp_out), lambda i: (0, 0))],
            out_specs=[pl.BlockSpec((t3, Cp_out), lambda i: (i, 0)),
                       pl.BlockSpec((1, 8, Cp_out), lambda i: (i, 0, 0)),
                       pl.BlockSpec((t3, Cp_out), lambda i: (i, 0)),
                       pl.BlockSpec((1, 8, Cp_out), lambda i: (i, 0, 0))],
            out_shape=[jax.ShapeDtypeStruct((m2p, Cp_out), cdt),
                       jax.ShapeDtypeStruct((nt3, 8, Cp_out), jnp.float32),
                       jax.ShapeDtypeStruct((m2p, Cp_out), cdt),
                       jax.ShapeDtypeStruct((nt3, 8, Cp_out), jnp.float32)],
            compiler_params=cp_rows,
            cost_estimate=pl.CostEstimate(
                flops=2 * m2p * (Dp + Cp_in) * Cp_out, transcendentals=0,
                bytes_accessed=int(m2p * (Dp + Cp_in + 2 * Cp_out) * cbytes
                                   + (Dp + Cp_in) * Cp_out * cbytes
                                   + 2 * nt3 * 8 * Cp_out * 4)),
        )(y2p, sc2, bi2, w3, xs2d, ws)

        sc3, bi3 = _fold_bn(st3.sum(axis=0), M2, g3, b3)
        scs, bis = _fold_bn(sts.sum(axis=0), M2, gs, bs)

        tr, _ = _choose_tile(m2p, per_row_res, 0, budget)
        out2d = pl.pallas_call(
            _residual_proj_kernel,
            grid=(m2p // tr,),
            in_specs=[pl.BlockSpec((tr, Cp_out), lambda i: (i, 0)),
                      pl.BlockSpec((1, Cp_out), lambda i: (0, 0)),
                      pl.BlockSpec((1, Cp_out), lambda i: (0, 0)),
                      pl.BlockSpec((tr, Cp_out), lambda i: (i, 0)),
                      pl.BlockSpec((1, Cp_out), lambda i: (0, 0)),
                      pl.BlockSpec((1, Cp_out), lambda i: (0, 0))],
            out_specs=pl.BlockSpec((tr, Cp_out), lambda i: (i, 0)),
            out_shape=jax.ShapeDtypeStruct((m2p, Cp_out), odt),
            compiler_params=cp_rows,
        )(y3, sc3, bi3, ys, scs, bis)
    else:
        y3, st3 = pl.pallas_call(
            kernel3,
            grid=(nt3,),
            in_specs=[pl.BlockSpec((t3, Dp), lambda i: (i, 0)),
                      pl.BlockSpec((1, Dp), lambda i: (0, 0)),
                      pl.BlockSpec((1, Dp), lambda i: (0, 0)),
                      pl.BlockSpec((Dp, Cp_out), lambda i: (0, 0))],
            out_specs=[pl.BlockSpec((t3, Cp_out), lambda i: (i, 0)),
                       pl.BlockSpec((1, 8, Cp_out), lambda i: (i, 0, 0))],
            out_shape=[jax.ShapeDtypeStruct((m2p, Cp_out), cdt),
                       jax.ShapeDtypeStruct((nt3, 8, Cp_out), jnp.float32)],
            compiler_params=cp_rows,
            cost_estimate=pl.CostEstimate(
                flops=2 * m2p * Dp * Cp_out, transcendentals=0,
                bytes_accessed=int(m2p * (Dp + Cp_out) * cbytes
                                   + Dp * Cp_out * cbytes + nt3 * 8 * Cp_out * 4)),
        )(y2p, sc2, bi2, w3)

        sc3, bi3 = _fold_bn(st3.sum(axis=0), M2, g3, b3)
        res2d = _pad_last(x_nhwc[:, ::stride, ::stride, :], Cp_out)
        res2d = res2d.reshape(M2, Cp_out).astype(cdt)
        if pad3:
            res2d = jnp.pad(res2d, ((0, pad3), (0, 0)))

        tr, _ = _choose_tile(m2p, per_row_res, 0, budget)
        out2d = pl.pallas_call(
            _residual_id_kernel,
            grid=(m2p // tr,),
            in_specs=[pl.BlockSpec((tr, Cp_out), lambda i: (i, 0)),
                      pl.BlockSpec((1, Cp_out), lambda i: (0, 0)),
                      pl.BlockSpec((1, Cp_out), lambda i: (0, 0)),
                      pl.BlockSpec((tr, Cp_out), lambda i: (i, 0))],
            out_specs=pl.BlockSpec((tr, Cp_out), lambda i: (i, 0)),
            out_shape=jax.ShapeDtypeStruct((m2p, Cp_out), odt),
            compiler_params=cp_rows,
        )(y3, sc3, bi3, res2d)

    out = out2d[:M2].reshape(N, Ho, Wo, Cp_out)[..., :C_out]
    return jnp.transpose(out, (0, 3, 1, 2)).astype(odt)


# --------------------------- pure-JAX reference ---------------------------- #

def _reference(x, params, stride, cardinality):
    def conv(x, w, stride=1, pad=0, groups=1):
        return jax.lax.conv_general_dilated(
            x, w, (stride, stride), [(pad, pad), (pad, pad)],
            dimension_numbers=('NCHW', 'OIHW', 'NCHW'),
            feature_group_count=groups)

    def bn(x, g, b):
        mean = x.mean(axis=(0, 2, 3), keepdims=True)
        var = ((x - mean) ** 2).mean(axis=(0, 2, 3), keepdims=True)
        return ((x - mean) / jnp.sqrt(var + EPS)) * g[None, :, None, None] + b[None, :, None, None]

    h = jax.nn.relu(bn(conv(x, params['w_reduce']), params['g_reduce'], params['b_reduce']))
    h = jax.nn.relu(bn(conv(h, params['w_conv'], stride=stride, pad=1, groups=cardinality),
                       params['g_conv'], params['b_conv']))
    h = bn(conv(h, params['w_expand']), params['g_expand'], params['b_expand'])
    if 'w_short' in params:
        r = bn(conv(x, params['w_short'], stride=stride), params['g_short'], params['b_short'])
    else:
        r = x[:, :, ::stride, ::stride]
    return jax.nn.relu(h + r)


if __name__ == "__main__":
    def make_params(key, in_ch, out_ch, cardinality, base_width, widen_factor):
        width_ratio = out_ch / (widen_factor * 64.0)
        D = cardinality * int(base_width * width_ratio)
        ks = jax.random.split(key, 13)
        p = {
            'w_reduce': 0.2 * jax.random.normal(ks[0], (D, in_ch, 1, 1), jnp.float32),
            'g_reduce': 1.0 + 0.1 * jax.random.normal(ks[1], (D,), jnp.float32),
            'b_reduce': 0.1 * jax.random.normal(ks[2], (D,), jnp.float32),
            'w_conv':   0.2 * jax.random.normal(ks[3], (D, D // cardinality, 3, 3), jnp.float32),
            'g_conv':   1.0 + 0.1 * jax.random.normal(ks[4], (D,), jnp.float32),
            'b_conv':   0.1 * jax.random.normal(ks[5], (D,), jnp.float32),
            'w_expand': 0.2 * jax.random.normal(ks[6], (out_ch, D, 1, 1), jnp.float32),
            'g_expand': 1.0 + 0.1 * jax.random.normal(ks[7], (out_ch,), jnp.float32),
            'b_expand': 0.1 * jax.random.normal(ks[8], (out_ch,), jnp.float32),
        }
        if in_ch != out_ch:  # projection shortcut, as in the PyTorch module
            p['w_short'] = 0.2 * jax.random.normal(ks[9], (out_ch, in_ch, 1, 1), jnp.float32)
            p['g_short'] = 1.0 + 0.1 * jax.random.normal(ks[10], (out_ch,), jnp.float32)
            p['b_short'] = 0.1 * jax.random.normal(ks[11], (out_ch,), jnp.float32)
        return p, ks[12]

    fwd = jax.jit(resnext_bottleneck_forward,
                  static_argnames=('stride', 'cardinality', 'compute_dtype', 'output_dtype'))

    key_a, key_b = jax.random.split(jax.random.PRNGKey(0))
    N, H, W = 2, 16, 16
    cardinality, base_width, widen_factor = 4, 8, 1

    # ---- test 1: projection shortcut (in_channels != out_channels), stride=1
    in_ch, out_ch, stride = 16, 64, 1
    params, kx = make_params(key_a, in_ch, out_ch, cardinality, base_width, widen_factor)
    x = jax.random.normal(kx, (N, in_ch, H, W), jnp.float32)
    ref = jax.block_until_ready(_reference(x, params, stride, cardinality))

    out_f32 = jax.block_until_ready(
        fwd(x, params, stride=stride, cardinality=cardinality, compute_dtype=jnp.float32))
    out_bf16 = jax.block_until_ready(
        fwd(x, params, stride=stride, cardinality=cardinality, compute_dtype=jnp.bfloat16))

    assert out_f32.shape == ref.shape, (out_f32.shape, ref.shape)
    err_f32 = float(jnp.max(jnp.abs(out_f32 - ref)))
    err_bf16 = float(jnp.max(jnp.abs(out_bf16 - ref)))
    assert err_f32 < 3e-3, f"proj f32 max abs err {err_f32}"
    assert err_bf16 < 2e-1, f"proj bf16 max abs err {err_bf16}"

    # ---- test 2: identity shortcut (in_channels == out_channels), stride=1
    params2, kx2 = make_params(key_b, 64, 64, cardinality, base_width, widen_factor)
    x2 = jax.random.normal(kx2, (N, 64, H, W), jnp.float32)
    ref2 = jax.block_until_ready(_reference(x2, params2, 1, cardinality))
    out2 = jax.block_until_ready(
        fwd(x2, params2, stride=1, cardinality=cardinality, compute_dtype=jnp.float32))
    err2 = float(jnp.max(jnp.abs(out2 - ref2)))
    assert err2 < 3e-3, f"identity f32 max abs err {err2}"

    print("KERNEL_OK")
</pallas_src>

<mosaic_0001>
module attributes {stable_mosaic.version = 11 : i64} {
  func.func @_conv1x1_stats_kernel(%arg0: i32, %arg1: memref<512x128xf32, #tpu.memory_space<vmem>>, %arg2: memref<128x128xf32, #tpu.memory_space<vmem>>, %arg3: memref<512x128xf32, #tpu.memory_space<vmem>>, %arg4: memref<1x8x128xf32, #tpu.memory_space<vmem>>) attributes {dimension_semantics = [#tpu.dimension_semantics<parallel>], iteration_bounds = array<i64: 1>, scalar_prefetch = 0 : i64, scratch_operands = 0 : i64, tpu.core_type = #tpu.core_type<tc>, window_params = [{transform_indices = @transform_0, window_bounds = array<i64: 512, 128>}, {pipeline_mode = #tpu.pipeline_mode<synchronous>, transform_indices = @transform_1, window_bounds = array<i64: 128, 128>}, {transform_indices = @transform_2, window_bounds = array<i64: 512, 128>}, {transform_indices = @transform_3, window_bounds = array<i64: 1, 8, 128>}]} {
    %c0 = arith.constant 0 : index
    %c0_0 = arith.constant 0 : index
    %0 = vector.load %arg1[%c0, %c0_0] : memref<512x128xf32, #tpu.memory_space<vmem>>, vector<512x128xf32>
    %c0_1 = arith.constant 0 : index
    %c0_2 = arith.constant 0 : index
    %1 = vector.load %arg2[%c0_1, %c0_2] : memref<128x128xf32, #tpu.memory_space<vmem>>, vector<128x128xf32>
    %cst = arith.constant dense<0.000000e+00> : vector<512x128xf32>
    %2 = tpu.matmul %0, %1, %cst {dimension_numbers = #tpu.dot_dimension_numbers<[1], [0], [0], [1], [0, 0, 1, 1], [], []>} : vector<512x128xf32>, vector<128x128xf32>, vector<512x128xf32> -> vector<512x128xf32>
    %c0_3 = arith.constant 0 : index
    %c0_4 = arith.constant 0 : index
    %3 = vector.load %arg3[%c0_3, %c0_4] : memref<512x128xf32, #tpu.memory_space<vmem>>, vector<512x128xf32>
    tpu.vector_store %arg3[%c0_3, %c0_4], %2 {strides = array<i32>} : memref<512x128xf32, #tpu.memory_space<vmem>>, vector<512x128xf32>,
    %cst_5 = arith.constant dense<0.000000e+00> : vector<128xf32>
    %4 = vector.multi_reduction <add>, %2, %cst_5 [0] : vector<512x128xf32> to vector<128xf32>
    %5 = vector.shape_cast %4 : vector<128xf32> to vector<1x128xf32>
    %6 = arith.mulf %2, %2 : vector<512x128xf32>
    %cst_6 = arith.constant dense<0.000000e+00> : vector<128xf32>
    %7 = vector.multi_reduction <add>, %6, %cst_6 [0] : vector<512x128xf32> to vector<128xf32>
    %8 = vector.shape_cast %7 : vector<128xf32> to vector<1x128xf32>
    %9 = tpu.iota {dimensions = array<i32: 0>} : vector<8x1xi32>
    %c0_i32 = arith.constant 0 : i32
    %10 = vector.broadcast %c0_i32 : i32 to vector<8x1xi32>
    %11 = arith.cmpi eq, %9, %10 : vector<8x1xi32>
    %c1_i32 = arith.constant 1 : i32
    %12 = vector.broadcast %c1_i32 : i32 to vector<8x1xi32>
    %13 = arith.cmpi eq, %9, %12 : vector<8x1xi32>
    %cst_7 = arith.constant 0.000000e+00 : f32
    %14 = vector.shape_cast %13 : vector<8x1xi1> to vector<8x1xi1>
    %15 = vector.broadcast %14 : vector<8x1xi1> to vector<8x128xi1>
    %16 = vector.shape_cast %8 : vector<1x128xf32> to vector<1x128xf32>
    %17 = vector.broadcast %16 : vector<1x128xf32> to vector<8x128xf32>
    %18 = vector.broadcast %cst_7 : f32 to vector<8x128xf32>
    %19 = arith.select %15, %17, %18 : vector<8x128xi1>, vector<8x128xf32>
    %20 = vector.shape_cast %11 : vector<8x1xi1> to vector<8x1xi1>
    %21 = vector.broadcast %20 : vector<8x1xi1> to vector<8x128xi1>
    %22 = vector.shape_cast %5 : vector<1x128xf32> to vector<1x128xf32>
    %23 = vector.broadcast %22 : vector<1x128xf32> to vector<8x128xf32>
    %24 = arith.select %21, %23, %19 : vector<8x128xi1>, vector<8x128xf32>
    %c0_8 = arith.constant 0 : index
    %c0_9 = arith.constant 0 : index
    %c0_10 = arith.constant 0 : index
    %25 = vector.load %arg4[%c0_8, %c0_9, %c0_10] : memref<1x8x128xf32, #tpu.memory_space<vmem>>, vector<1x8x128xf32>
    %26 = vector.shape_cast %25 : vector<1x8x128xf32> to vector<8x128xf32>
    %27 = vector.shape_cast %24 : vector<8x128xf32> to vector<1x8x128xf32>
    tpu.vector_store %arg4[%c0_8, %c0_9, %c0_10], %27 {strides = array<i32>} : memref<1x8x128xf32, #tpu.memory_space<vmem>>, vector<1x8x128xf32>,
    return
  }
  func.func @transform_0(%arg0: i32) -> (i32, i32) {
    %c0_i32 = arith.constant 0 : i32
    %c0_i32_0 = arith.constant 0 : i32
    return %arg0, %c0_i32 : i32, i32
  }
  func.func @transform_1(%arg0: i32) -> (i32, i32) {
    %c0_i32 = arith.constant 0 : i32
    %c0_i32_0 = arith.constant 0 : i32
    %c0_i32_1 = arith.constant 0 : i32
    return %c0_i32, %c0_i32_0 : i32, i32
  }
  func.func @transform_2(%arg0: i32) -> (i32, i32) {
    %c0_i32 = arith.constant 0 : i32
    %c0_i32_0 = arith.constant 0 : i32
    return %arg0, %c0_i32 : i32, i32
  }
  func.func @transform_3(%arg0: i32) -> (i32, i32, i32) {
    %c0_i32 = arith.constant 0 : i32
    %c0_i32_0 = arith.constant 0 : i32
    %c0_i32_1 = arith.constant 0 : i32
    return %arg0, %c0_i32, %c0_i32_0 : i32, i32, i32
  }
}

module attributes {stable_mosaic.version = 11 : i64} {
  func.func @kernel(%arg0: i32, %arg1: i32, %arg2: memref<1x1x16x128xf32, #tpu.memory_space<vmem>>, %arg3: memref<1x16x16x128xf32, #tpu.memory_space<vmem>>, %arg4: memref<1x1x16x128xf32, #tpu.memory_space<vmem>>, %arg5: memref<1x128xf32, #tpu.memory_space<vmem>>, %arg6: memref<1x128xf32, #tpu.memory_space<vmem>>, %arg7: memref<9x128x128xf32, #tpu.memory_space<vmem>>, %arg8: memref<1x16x16x128xf32, #tpu.memory_space<vmem>>, %arg9: memref<1x8x128xf32, #tpu.memory_space<vmem>>, %arg10: memref<18x18x128xf32, #tpu.memory_space<vmem>>) attributes {dimension_semantics = [#tpu.dimension_semantics<parallel>, #tpu.dimension_semantics<parallel>], iteration_bounds = array<i64: 2, 1>, scalar_prefetch = 0 : i64, scratch_operands = 1 : i64, tpu.core_type = #tpu.core_type<tc>, window_params = [{transform_indices = @transform_0, window_bounds = array<i64: 1, 1, 16, 128>}, {transform_indices = @transform_1, window_bounds = array<i64: 1, 16, 16, 128>}, {transform_indices = @transform_2, window_bounds = array<i64: 1, 1, 16, 128>}, {pipeline_mode = #tpu.pipeline_mode<synchronous>, transform_indices = @transform_3, window_bounds = array<i64: 1, 128>}, {pipeline_mode = #tpu.pipeline_mode<synchronous>, transform_indices = @transform_4, window_bounds = array<i64: 1, 128>}, {pipeline_mode = #tpu.pipeline_mode<synchronous>, transform_indices = @transform_5, window_bounds = array<i64: 9, 128, 128>}, {transform_indices = @transform_6, window_bounds = array<i64: 1, 16, 16, 128>}, {transform_indices = @transform_7, window_bounds = array<i64: 1, 8, 128>}]} {
    %c0 = arith.constant 0 : index
    %c0_0 = arith.constant 0 : index
    %0 = vector.load %arg5[%c0, %c0_0] : memref<1x128xf32, #tpu.memory_space<vmem>>, vector<1x128xf32>
    %c0_1 = arith.constant 0 : index
    %c0_2 = arith.constant 0 : index
    %1 = vector.load %arg6[%c0_1, %c0_2] : memref<1x128xf32, #tpu.memory_space<vmem>>, vector<1x128xf32>
    %c0_3 = arith.constant 0 : index
    %c0_4 = arith.constant 0 : index
    %c0_5 = arith.constant 0 : index
    %c0_6 = arith.constant 0 : index
    %2 = vector.load %arg3[%c0_3, %c0_4, %c0_5, %c0_6] : memref<1x16x16x128xf32, #tpu.memory_space<vmem>>, vector<1x16x16x128xf32>
    %3 = vector.shape_cast %2 : vector<1x16x16x128xf32> to vector<16x16x128xf32>
    %4 = vector.shape_cast %0 : vector<1x128xf32> to vector<1x1x128xf32>
    %5 = vector.broadcast %4 : vector<1x1x128xf32> to vector<16x16x128xf32>
    %6 = arith.mulf %3, %5 : vector<16x16x128xf32>
    %7 = vector.shape_cast %1 : vector<1x128xf32> to vector<1x1x128xf32>
    %8 = vector.broadcast %7 : vector<1x1x128xf32> to vector<16x16x128xf32>
    %9 = arith.addf %6, %8 : vector<16x16x128xf32>
    %cst = arith.constant 0.000000e+00 : f32
    %10 = vector.broadcast %cst : f32 to vector<16x16x128xf32>
    %11 = arith.maximumf %9, %10 : vector<16x16x128xf32>
    %c0_i32 = arith.constant 0 : i32
    %12 = arith.cmpi sgt, %arg1, %c0_i32 : i32
    %c0_7 = arith.constant 0 : index
    %c0_8 = arith.constant 0 : index
    %c0_9 = arith.constant 0 : index
    %c0_10 = arith.constant 0 : index
    %13 = vector.load %arg2[%c0_7, %c0_8, %c0_9, %c0_10] : memref<1x1x16x128xf32, #tpu.memory_space<vmem>>, vector<1x1x16x128xf32>
    %14 = vector.shape_cast %13 : vector<1x1x16x128xf32> to vector<16x128xf32>
    %15 = vector.broadcast %0 : vector<1x128xf32> to vector<16x128xf32>
    %16 = arith.mulf %14, %15 : vector<16x128xf32>
    %17 = vector.broadcast %1 : vector<1x128xf32> to vector<16x128xf32>
    %18 = arith.addf %16, %17 : vector<16x128xf32>
    %cst_11 = arith.constant 0.000000e+00 : f32
    %19 = vector.broadcast %cst_11 : f32 to vector<16x128xf32>
    %20 = arith.maximumf %18, %19 : vector<16x128xf32>
    %cst_12 = arith.constant 0.000000e+00 : f32
    %21 = vector.broadcast %cst_12 : f32 to vector<16x128xf32>
    %22 = arith.select %12, %20, %21 : vector<16x128xf32>
    %c1_i32 = arith.constant 1 : i32
    %23 = arith.addi %arg1, %c1_i32 : i32
    %c16_i32 = arith.constant 16 : i32
    %24 = arith.muli %23, %c16_i32 : i32
    %c16_i32_13 = arith.constant 16 : i32
    %25 = arith.cmpi slt, %24, %c16_i32_13 : i32
    %c0_14 = arith.constant 0 : index
    %c0_15 = arith.constant 0 : index
    %c0_16 = arith.constant 0 : index
    %c0_17 = arith.constant 0 : index
    %26 = vector.load %arg4[%c0_14, %c0_15, %c0_16, %c0_17] : memref<1x1x16x128xf32, #tpu.memory_space<vmem>>, vector<1x1x16x128xf32>
    %27 = vector.shape_cast %26 : vector<1x1x16x128xf32> to vector<16x128xf32>
    %28 = vector.broadcast %0 : vector<1x128xf32> to vector<16x128xf32>
    %29 = arith.mulf %27, %28 : vector<16x128xf32>
    %30 = vector.broadcast %1 : vector<1x128xf32> to vector<16x128xf32>
    %31 = arith.addf %29, %30 : vector<16x128xf32>
    %cst_18 = arith.constant 0.000000e+00 : f32
    %32 = vector.broadcast %cst_18 : f32 to vector<16x128xf32>
    %33 = arith.maximumf %31, %32 : vector<16x128xf32>
    %cst_19 = arith.constant 0.000000e+00 : f32
    %34 = vector.broadcast %cst_19 : f32 to vector<16x128xf32>
    %35 = arith.select %25, %33, %34 : vector<16x128xf32>
    %cst_20 = arith.constant 0.000000e+00 : f32
    %36 = vector.broadcast %cst_20 : f32 to vector<18x1x128xf32>
    %c0_21 = arith.constant 0 : index
    %c0_22 = arith.constant 0 : index
    %c0_23 = arith.constant 0 : index
    %37 = vector.load %arg10[%c0_21, %c0_22, %c0_23] : memref<18x18x128xf32, #tpu.memory_space<vmem>>, vector<18x1x128xf32>
    tpu.vector_store %arg10[%c0_21, %c0_22, %c0_23], %36 {strides = array<i32>} : memref<18x18x128xf32, #tpu.memory_space<vmem>>, vector<18x1x128xf32>,
    %c0_24 = arith.constant 0 : index
    %c17 = arith.constant 17 : index
    %c0_25 = arith.constant 0 : index
    %38 = vector.load %arg10[%c0_24, %c17, %c0_25] : memref<18x18x128xf32, #tpu.memory_space<vmem>>, vector<18x1x128xf32>
    tpu.vector_store %arg10[%c0_24, %c17, %c0_25], %36 {strides = array<i32>} : memref<18x18x128xf32, #tpu.memory_space<vmem>>, vector<18x1x128xf32>,
    %c0_26 = arith.constant 0 : index
    %c1 = arith.constant 1 : index
    %c0_27 = arith.constant 0 : index
    %39 = vector.load %arg10[%c0_26, %c1, %c0_27] : memref<18x18x128xf32, #tpu.memory_space<vmem>>, vector<1x16x128xf32>
    %40 = vector.shape_cast %39 : vector<1x16x128xf32> to vector<16x128xf32>
    %41 = vector.shape_cast %22 : vector<16x128xf32> to vector<1x16x128xf32>
    tpu.vector_store %arg10[%c0_26, %c1, %c0_27], %41 {strides = array<i32>} : memref<18x18x128xf32, #tpu.memory_space<vmem>>, vector<1x16x128xf32>,
    %c1_28 = arith.constant 1 : index
    %c1_29 = arith.constant 1 : index
    %c0_30 = arith.constant 0 : index
    %42 = vector.load %arg10[%c1_28, %c1_29, %c0_30] : memref<18x18x128xf32, #tpu.memory_space<vmem>>, vector<16x16x128xf32>
    tpu.vector_store %arg10[%c1_28, %c1_29, %c0_30], %11 {strides = array<i32>} : memref<18x18x128xf32, #tpu.memory_space<vmem>>, vector<16x16x128xf32>,
    %c17_31 = arith.constant 17 : index
    %c1_32 = arith.constant 1 : index
    %c0_33 = arith.constant 0 : index
    %43 = vector.load %arg10[%c17_31, %c1_32, %c0_33] : memref<18x18x128xf32, #tpu.memory_space<vmem>>, vector<1x16x128xf32>
    %44 = vector.shape_cast %43 : vector<1x16x128xf32> to vector<16x128xf32>
    %45 = vector.shape_cast %35 : vector<16x128xf32> to vector<1x16x128xf32>
    tpu.vector_store %arg10[%c17_31, %c1_32, %c0_33], %45 {strides = array<i32>} : memref<18x18x128xf32, #tpu.memory_space<vmem>>, vector<1x16x128xf32>,
    %cst_34 = arith.constant 0.000000e+00 : f32
    %46 = vector.broadcast %cst_34 : f32 to vector<256x128xf32>
    %c0_35 = arith.constant 0 : index
    %c0_36 = arith.constant 0 : index
    %c0_37 = arith.constant 0 : index
    %47 = vector.load %arg10[%c0_35, %c0_36, %c0_37] : memref<18x18x128xf32, #tpu.memory_space<vmem>>, vector<16x16x128xf32>
    %48 = vector.shape_cast %47 : vector<16x16x128xf32> to vector<256x128xf32>
    %c0_38 = arith.constant 0 : index
    %c0_39 = arith.constant 0 : index
    %c0_40 = arith.constant 0 : index
    %49 = vector.load %arg7[%c0_38, %c0_39, %c0_40] : memref<9x128x128xf32, #tpu.memory_space<vmem>>, vector<1x128x128xf32>
    %50 = vector.shape_cast %49 : vector<1x128x128xf32> to vector<128x128xf32>
    %cst_41 = arith.constant dense<0.000000e+00> : vector<256x128xf32>
    %51 = tpu.matmul %48, %50, %cst_41 {dimension_numbers = #tpu.dot_dimension_numbers<[1], [0], [0], [1], [0, 0, 1, 1], [], []>} : vector<256x128xf32>, vector<128x128xf32>, vector<256x128xf32> -> vector<256x128xf32>
    %52 = arith.addf %46, %51 : vector<256x128xf32>
    %c0_42 = arith.constant 0 : index
    %c1_43 = arith.constant 1 : index
    %c0_44 = arith.constant 0 : index
    %53 = vector.load %arg10[%c0_42, %c1_43, %c0_44] : memref<18x18x128xf32, #tpu.memory_space<vmem>>, vector<16x16x128xf32>
    %54 = vector.shape_cast %53 : vector<16x16x128xf32> to vector<256x128xf32>
    %c1_45 = arith.constant 1 : index
    %c0_46 = arith.constant 0 : index
    %c0_47 = arith.constant 0 : index
    %55 = vector.load %arg7[%c1_45, %c0_46, %c0_47] : memref<9x128x128xf32, #tpu.memory_space<vmem>>, vector<1x128x128xf32>
    %56 = vector.shape_cast %55 : vector<1x128x128xf32> to vector<128x128xf32>
    %cst_48 = arith.constant dense<0.000000e+00> : vector<256x128xf32>
    %57 = tpu.matmul %54, %56, %cst_48 {dimension_numbers = #tpu.dot_dimension_numbers<[1], [0], [0], [1], [0, 0, 1, 1], [], []>} : vector<256x128xf32>, vector<128x128xf32>, vector<256x128xf32> -> vector<256x128xf32>
    %58 = arith.addf %52, %57 : vector<256x128xf32>
    %c0_49 = arith.constant 0 : index
    %c2 = arith.constant 2 : index
    %c0_50 = arith.constant 0 : index
    %59 = vector.load %arg10[%c0_49, %c2, %c0_50] : memref<18x18x128xf32, #tpu.memory_space<vmem>>, vector<16x16x128xf32>
    %60 = vector.shape_cast %59 : vector<16x16x128xf32> to vector<256x128xf32>
    %c2_51 = arith.constant 2 : index
    %c0_52 = arith.constant 0 : index
    %c0_53 = arith.constant 0 : index
    %61 = vector.load %arg7[%c2_51, %c0_52, %c0_53] : memref<9x128x128xf32, #tpu.memory_space<vmem>>, vector<1x128x128xf32>
    %62 = vector.shape_cast %61 : vector<1x128x128xf32> to vector<128x128xf32>
    %cst_54 = arith.constant dense<0.000000e+00> : vector<256x128xf32>
    %63 = tpu.matmul %60, %62, %cst_54 {dimension_numbers = #tpu.dot_dimension_numbers<[1], [0], [0], [1], [0, 0, 1, 1], [], []>} : vector<256x128xf32>, vector<128x128xf32>, vector<256x128xf32> -> vector<256x128xf32>
    %64 = arith.addf %58, %63 : vector<256x128xf32>
    %c1_55 = arith.constant 1 : index
    %c0_56 = arith.constant 0 : index
    %c0_57 = arith.constant 0 : index
    %65 = vector.load %arg10[%c1_55, %c0_56, %c0_57] : memref<18x18x128xf32, #tpu.memory_space<vmem>>, vector<16x16x128xf32>
    %66 = vector.shape_cast %65 : vector<16x16x128xf32> to vector<256x128xf32>
    %c3 = arith.constant 3 : index
    %c0_58 = arith.constant 0 : index
    %c0_59 = arith.constant 0 : index
    %67 = vector.load %arg7[%c3, %c0_58, %c0_59] : memref<9x128x128xf32, #tpu.memory_space<vmem>>, vector<1x128x128xf32>
    %68 = vector.shape_cast %67 : vector<1x128x128xf32> to vector<128x128xf32>
    %cst_60 = arith.constant dense<0.000000e+00> : vector<256x128xf32>
    %69 = tpu.matmul %66, %68, %cst_60 {dimension_numbers = #tpu.dot_dimension_numbers<[1], [0], [0], [1], [0, 0, 1, 1], [], []>} : vector<256x128xf32>, vector<128x128xf32>, vector<256x128xf32> -> vector<256x128xf32>
    %70 = arith.addf %64, %69 : vector<256x128xf32>
    %c1_61 = arith.constant 1 : index
    %c1_62 = arith.constant 1 : index
    %c0_63 = arith.constant 0 : index
    %71 = vector.load %arg10[%c1_61, %c1_62, %c0_63] : memref<18x18x128xf32, #tpu.memory_space<vmem>>, vector<16x16x128xf32>
    %72 = vector.shape_cast %71 : vector<16x16x128xf32> to vector<256x128xf32>
    %c4 = arith.constant 4 : index
    %c0_64 = arith.constant 0 : index
    %c0_65 = arith.constant 0 : index
    %73 = vector.load %arg7[%c4, %c0_64, %c0_65] : memref<9x128x128xf32, #tpu.memory_space<vmem>>, vector<1x128x128xf32>
    %74 = vector.shape_cast %73 : vector<1x128x128xf32> to vector<128x128xf32>
    %cst_66 = arith.constant dense<0.000000e+00> : vector<256x128xf32>
    %75 = tpu.matmul %72, %74, %cst_66 {dimension_numbers = #tpu.dot_dimension_numbers<[1], [0], [0], [1], [0, 0, 1, 1], [], []>} : vector<256x128xf32>, vector<128x128xf32>, vector<256x128xf32> -> vector<256x128xf32>
    %76 = arith.addf %70, %75 : vector<256x128xf32>
    %c1_67 = arith.constant 1 : index
    %c2_68 = arith.constant 2 : index
    %c0_69 = arith.constant 0 : index
    %77 = vector.load %arg10[%c1_67, %c2_68, %c0_69] : memref<18x18x128xf32, #tpu.memory_space<vmem>>, vector<16x16x128xf32>
    %78 = vector.shape_cast %77 : vector<16x16x128xf32> to vector<256x128xf32>
    %c5 = arith.constant 5 : index
    %c0_70 = arith.constant 0 : index
    %c0_71 = arith.constant 0 : index
    %79 = vector.load %arg7[%c5, %c0_70, %c0_71] : memref<9x128x128xf32, #tpu.memory_space<vmem>>, vector<1x128x128xf32>
    %80 = vector.shape_cast %79 : vector<1x128x128xf32> to vector<128x128xf32>
    %cst_72 = arith.constant dense<0.000000e+00> : vector<256x128xf32>
    %81 = tpu.matmul %78, %80, %cst_72 {dimension_numbers = #tpu.dot_dimension_numbers<[1], [0], [0], [1], [0, 0, 1, 1], [], []>} : vector<256x128xf32>, vector<128x128xf32>, vector<256x128xf32> -> vector<256x128xf32>
    %82 = arith.addf %76, %81 : vector<256x128xf32>
    %c2_73 = arith.constant 2 : index
    %c0_74 = arith.constant 0 : index
    %c0_75 = arith.constant 0 : index
    %83 = vector.load %arg10[%c2_73, %c0_74, %c0_75] : memref<18x18x128xf32, #tpu.memory_space<vmem>>, vector<16x16x128xf32>
    %84 = vector.shape_cast %83 : vector<16x16x128xf32> to vector<256x128xf32>
    %c6 = arith.constant 6 : index
    %c0_76 = arith.constant 0 : index
    %c0_77 = arith.constant 0 : index
    %85 = vector.load %arg7[%c6, %c0_76, %c0_77] : memref<9x128x128xf32, #tpu.memory_space<vmem>>, vector<1x128x128xf32>
    %86 = vector.shape_cast %85 : vector<1x128x128xf32> to vector<128x128xf32>
    %cst_78 = arith.constant dense<0.000000e+00> : vector<256x128xf32>
    %87 = tpu.matmul %84, %86, %cst_78 {dimension_numbers = #tpu.dot_dimension_numbers<[1], [0], [0], [1], [0, 0, 1, 1], [], []>} : vector<256x128xf32>, vector<128x128xf32>, vector<256x128xf32> -> vector<256x128xf32>
    %88 = arith.addf %82, %87 : vector<256x128xf32>
    %c2_79 = arith.constant 2 : index
    %c1_80 = arith.constant 1 : index
    %c0_81 = arith.constant 0 : index
    %89 = vector.load %arg10[%c2_79, %c1_80, %c0_81] : memref<18x18x128xf32, #tpu.memory_space<vmem>>, vector<16x16x128xf32>
    %90 = vector.shape_cast %89 : vector<16x16x128xf32> to vector<256x128xf32>
    %c7 = arith.constant 7 : index
    %c0_82 = arith.constant 0 : index
    %c0_83 = arith.constant 0 : index
    %91 = vector.load %arg7[%c7, %c0_82, %c0_83] : memref<9x128x128xf32, #tpu.memory_space<vmem>>, vector<1x128x128xf32>
    %92 = vector.shape_cast %91 : vector<1x128x128xf32> to vector<128x128xf32>
    %cst_84 = arith.constant dense<0.000000e+00> : vector<256x128xf32>
    %93 = tpu.matmul %90, %92, %cst_84 {dimension_numbers = #tpu.dot_dimension_numbers<[1], [0], [0], [1], [0, 0, 1, 1], [], []>} : vector<256x128xf32>, vector<128x128xf32>, vector<256x128xf32> -> vector<256x128xf32>
    %94 = arith.addf %88, %93 : vector<256x128xf32>
    %c2_85 = arith.constant 2 : index
    %c2_86 = arith.constant 2 : index
    %c0_87 = arith.constant 0 : index
    %95 = vector.load %arg10[%c2_85, %c2_86, %c0_87] : memref<18x18x128xf32, #tpu.memory_space<vmem>>, vector<16x16x128xf32>
    %96 = vector.shape_cast %95 : vector<16x16x128xf32> to vector<256x128xf32>
    %c8 = arith.constant 8 : index
    %c0_88 = arith.constant 0 : index
    %c0_89 = arith.constant 0 : index
    %97 = vector.load %arg7[%c8, %c0_88, %c0_89] : memref<9x128x128xf32, #tpu.memory_space<vmem>>, vector<1x128x128xf32>
    %98 = vector.shape_cast %97 : vector<1x128x128xf32> to vector<128x128xf32>
    %cst_90 = arith.constant dense<0.000000e+00> : vector<256x128xf32>
    %99 = tpu.matmul %96, %98, %cst_90 {dimension_numbers = #tpu.dot_dimension_numbers<[1], [0], [0], [1], [0, 0, 1, 1], [], []>} : vector<256x128xf32>, vector<128x128xf32>, vector<256x128xf32> -> vector<256x128xf32>
    %100 = arith.addf %94, %99 : vector<256x128xf32>
    %101 = vector.shape_cast %100 : vector<256x128xf32> to vector<16x16x128xf32>
    %c0_91 = arith.constant 0 : index
    %c0_92 = arith.constant 0 : index
    %c0_93 = arith.constant 0 : index
    %c0_94 = arith.constant 0 : index
    %102 = vector.load %arg8[%c0_91, %c0_92, %c0_93, %c0_94] : memref<1x16x16x128xf32, #tpu.memory_space<vmem>>, vector<1x16x16x128xf32>
    %103 = vector.shape_cast %102 : vector<1x16x16x128xf32> to vector<16x16x128xf32>
    %104 = vector.shape_cast %101 : vector<16x16x128xf32> to vector<1x16x16x128xf32>
    tpu.vector_store %arg8[%c0_91, %c0_92, %c0_93, %c0_94], %104 {strides = array<i32>} : memref<1x16x16x128xf32, #tpu.memory_space<vmem>>, vector<1x16x16x128xf32>,
    %cst_95 = arith.constant dense<0.000000e+00> : vector<128xf32>
    %105 = vector.multi_reduction <add>, %100, %cst_95 [0] : vector<256x128xf32> to vector<128xf32>
    %106 = vector.shape_cast %105 : vector<128xf32> to vector<1x128xf32>
    %107 = arith.mulf %100, %100 : vector<256x128xf32>
    %cst_96 = arith.constant dense<0.000000e+00> : vector<128xf32>
    %108 = vector.multi_reduction <add>, %107, %cst_96 [0] : vector<256x128xf32> to vector<128xf32>
    %109 = vector.shape_cast %108 : vector<128xf32> to vector<1x128xf32>
    %110 = tpu.iota {dimensions = array<i32: 0>} : vector<8x1xi32>
    %c0_i32_97 = arith.constant 0 : i32
    %111 = vector.broadcast %c0_i32_97 : i32 to vector<8x1xi32>
    %112 = arith.cmpi eq, %110, %111 : vector<8x1xi32>
    %c1_i32_98 = arith.constant 1 : i32
    %113 = vector.broadcast %c1_i32_98 : i32 to vector<8x1xi32>
    %114 = arith.cmpi eq, %110, %113 : vector<8x1xi32>
    %cst_99 = arith.constant 0.000000e+00 : f32
    %115 = vector.shape_cast %114 : vector<8x1xi1> to vector<8x1xi1>
    %116 = vector.broadcast %115 : vector<8x1xi1> to vector<8x128xi1>
    %117 = vector.shape_cast %109 : vector<1x128xf32> to vector<1x128xf32>
    %118 = vector.broadcast %117 : vector<1x128xf32> to vector<8x128xf32>
    %119 = vector.broadcast %cst_99 : f32 to vector<8x128xf32>
    %120 = arith.select %116, %118, %119 : vector<8x128xi1>, vector<8x128xf32>
    %121 = vector.shape_cast %112 : vector<8x1xi1> to vector<8x1xi1>
    %122 = vector.broadcast %121 : vector<8x1xi1> to vector<8x128xi1>
    %123 = vector.shape_cast %106 : vector<1x128xf32> to vector<1x128xf32>
    %124 = vector.broadcast %123 : vector<1x128xf32> to vector<8x128xf32>
    %125 = arith.select %122, %124, %120 : vector<8x128xi1>, vector<8x128xf32>
    %c0_100 = arith.constant 0 : index
    %c0_101 = arith.constant 0 : index
    %c0_102 = arith.constant 0 : index
    %126 = vector.load %arg9[%c0_100, %c0_101, %c0_102] : memref<1x8x128xf32, #tpu.memory_space<vmem>>, vector<1x8x128xf32>
    %127 = vector.shape_cast %126 : vector<1x8x128xf32> to vector<8x128xf32>
    %128 = vector.shape_cast %125 : vector<8x128xf32> to vector<1x8x128xf32>
    tpu.vector_store %arg9[%c0_100, %c0_101, %c0_102], %128 {strides = array<i32>} : memref<1x8x128xf32, #tpu.memory_space<vmem>>, vector<1x8x128xf32>,
    return
  }
  func.func @transform_0(%arg0: i32, %arg1: i32) -> (i32, i32, i32, i32) {
    %c16_i32 = arith.constant 16 : i32
    %0 = arith.muli %arg1, %c16_i32 : i32
    %c1_i32 = arith.constant 1 : i32
    %1 = arith.subi %0, %c1_i32 : i32
    %c0_i32 = arith.constant 0 : i32
    %2 = arith.maxsi %1, %c0_i32 : i32
    %c0_i32_0 = arith.constant 0 : i32
    %c0_i32_1 = arith.constant 0 : i32
    %c0_i32_2 = arith.constant 0 : i32
    return %arg0, %2, %c0_i32_0, %c0_i32_1 : i32, i32, i32, i32
  }
  func.func @transform_1(%arg0: i32, %arg1: i32) -> (i32, i32, i32, i32) {
    %c0_i32 = arith.constant 0 : i32
    %c0_i32_0 = arith.constant 0 : i32
    %c0_i32_1 = arith.constant 0 : i32
    return %arg0, %arg1, %c0_i32, %c0_i32_0 : i32, i32, i32, i32
  }
  func.func @transform_2(%arg0: i32, %arg1: i32) -> (i32, i32, i32, i32) {
    %c1_i32 = arith.constant 1 : i32
    %0 = arith.addi %arg1, %c1_i32 : i32
    %c16_i32 = arith.constant 16 : i32
    %1 = arith.muli %0, %c16_i32 : i32
    %c15_i32 = arith.constant 15 : i32
    %2 = arith.minsi %1, %c15_i32 : i32
    %c0_i32 = arith.constant 0 : i32
    %c0_i32_0 = arith.constant 0 : i32
    %c0_i32_1 = arith.constant 0 : i32
    return %arg0, %2, %c0_i32, %c0_i32_0 : i32, i32, i32, i32
  }
  func.func @transform_3(%arg0: i32, %arg1: i32) -> (i32, i32) {
    %c0_i32 = arith.constant 0 : i32
    %c0_i32_0 = arith.constant 0 : i32
    %c0_i32_1 = arith.constant 0 : i32
    return %c0_i32, %c0_i32_0 : i32, i32
  }
  func.func @transform_4(%arg0: i32, %arg1: i32) -> (i32, i32) {
    %c0_i32 = arith.constant 0 : i32
    %c0_i32_0 = arith.constant 0 : i32
    %c0_i32_1 = arith.constant 0 : i32
    return %c0_i32, %c0_i32_0 : i32, i32
  }
  func.func @transform_5(%arg0: i32, %arg1: i32) -> (i32, i32, i32) {
    %c0_i32 = arith.constant 0 : i32
    %c0_i32_0 = arith.constant 0 : i32
    %c0_i32_1 = arith.constant 0 : i32
    %c0_i32_2 = arith.constant 0 : i32
    return %c0_i32, %c0_i32_0, %c0_i32_1 : i32, i32, i32
  }
  func.func @transform_6(%arg0: i32, %arg1: i32) -> (i32, i32, i32, i32) {
    %c0_i32 = arith.constant 0 : i32
    %c0_i32_0 = arith.constant 0 : i32
    %c0_i32_1 = arith.constant 0 : i32
    return %arg0, %arg1, %c0_i32, %c0_i32_0 : i32, i32, i32, i32
  }
  func.func @transform_7(%arg0: i32, %arg1: i32) -> (i32, i32, i32) {
    %c1_i32 = arith.constant 1 : i32
    %0 = arith.muli %arg0, %c1_i32 : i32
    %1 = arith.addi %0, %arg1 : i32
    %c0_i32 = arith.constant 0 : i32
    %c0_i32_0 = arith.constant 0 : i32
    %c0_i32_1 = arith.constant 0 : i32
    return %1, %c0_i32, %c0_i32_0 : i32, i32, i32
  }
}

module attributes {stable_mosaic.version = 11 : i64} {
  func.func @_residual_proj_kernel(%arg0: i32, %arg1: memref<512x128xf32, #tpu.memory_space<vmem>>, %arg2: memref<1x128xf32, #tpu.memory_space<vmem>>, %arg3: memref<1x128xf32, #tpu.memory_space<vmem>>, %arg4: memref<512x128xf32, #tpu.memory_space<vmem>>, %arg5: memref<1x128xf32, #tpu.memory_space<vmem>>, %arg6: memref<1x128xf32, #tpu.memory_space<vmem>>, %arg7: memref<512x128xf32, #tpu.memory_space<vmem>>) attributes {dimension_semantics = [#tpu.dimension_semantics<parallel>], iteration_bounds = array<i64: 1>, scalar_prefetch = 0 : i64, scratch_operands = 0 : i64, tpu.core_type = #tpu.core_type<tc>, window_params = [{transform_indices = @transform_0, window_bounds = array<i64: 512, 128>}, {pipeline_mode = #tpu.pipeline_mode<synchronous>, transform_indices = @transform_1, window_bounds = array<i64: 1, 128>}, {pipeline_mode = #tpu.pipeline_mode<synchronous>, transform_indices = @transform_2, window_bounds = array<i64: 1, 128>}, {transform_indices = @transform_3, window_bounds = array<i64: 512, 128>}, {pipeline_mode = #tpu.pipeline_mode<synchronous>, transform_indices = @transform_4, window_bounds = array<i64: 1, 128>}, {pipeline_mode = #tpu.pipeline_mode<synchronous>, transform_indices = @transform_5, window_bounds = array<i64: 1, 128>}, {transform_indices = @transform_6, window_bounds = array<i64: 512, 128>}]} {
    %c0 = arith.constant 0 : index
    %c0_0 = arith.constant 0 : index
    %0 = vector.load %arg1[%c0, %c0_0] : memref<512x128xf32, #tpu.memory_space<vmem>>, vector<512x128xf32>
    %c0_1 = arith.constant 0 : index
    %c0_2 = arith.constant 0 : index
    %1 = vector.load %arg2[%c0_1, %c0_2] : memref<1x128xf32, #tpu.memory_space<vmem>>, vector<1x128xf32>
    %2 = vector.broadcast %1 : vector<1x128xf32> to vector<512x128xf32>
    %3 = arith.mulf %0, %2 : vector<512x128xf32>
    %c0_3 = arith.constant 0 : index
    %c0_4 = arith.constant 0 : index
    %4 = vector.load %arg3[%c0_3, %c0_4] : memref<1x128xf32, #tpu.memory_space<vmem>>, vector<1x128xf32>
    %5 = vector.broadcast %4 : vector<1x128xf32> to vector<512x128xf32>
    %6 = arith.addf %3, %5 : vector<512x128xf32>
    %c0_5 = arith.constant 0 : index
    %c0_6 = arith.constant 0 : index
    %7 = vector.load %arg4[%c0_5, %c0_6] : memref<512x128xf32, #tpu.memory_space<vmem>>, vector<512x128xf32>
    %c0_7 = arith.constant 0 : index
    %c0_8 = arith.constant 0 : index
    %8 = vector.load %arg5[%c0_7, %c0_8] : memref<1x128xf32, #tpu.memory_space<vmem>>, vector<1x128xf32>
    %9 = vector.broadcast %8 : vector<1x128xf32> to vector<512x128xf32>
    %10 = arith.mulf %7, %9 : vector<512x128xf32>
    %c0_9 = arith.constant 0 : index
    %c0_10 = arith.constant 0 : index
    %11 = vector.load %arg6[%c0_9, %c0_10] : memref<1x128xf32, #tpu.memory_space<vmem>>, vector<1x128xf32>
    %12 = vector.broadcast %11 : vector<1x128xf32> to vector<512x128xf32>
    %13 = arith.addf %10, %12 : vector<512x128xf32>
    %14 = arith.addf %6, %13 : vector<512x128xf32>
    %cst = arith.constant 0.000000e+00 : f32
    %15 = vector.broadcast %cst : f32 to vector<512x128xf32>
    %16 = arith.maximumf %14, %15 : vector<512x128xf32>
    %c0_11 = arith.constant 0 : index
    %c0_12 = arith.constant 0 : index
    %17 = vector.load %arg7[%c0_11, %c0_12] : memref<512x128xf32, #tpu.memory_space<vmem>>, vector<512x128xf32>
    tpu.vector_store %arg7[%c0_11, %c0_12], %16 {strides = array<i32>} : memref<512x128xf32, #tpu.memory_space<vmem>>, vector<512x128xf32>,
    return
  }
  func.func @transform_0(%arg0: i32) -> (i32, i32) {
    %c0_i32 = arith.constant 0 : i32
    %c0_i32_0 = arith.constant 0 : i32
    return %arg0, %c0_i32 : i32, i32
  }
  func.func @transform_1(%arg0: i32) -> (i32, i32) {
    %c0_i32 = arith.constant 0 : i32
    %c0_i32_0 = arith.constant 0 : i32
    %c0_i32_1 = arith.constant 0 : i32
    return %c0_i32, %c0_i32_0 : i32, i32
  }
  func.func @transform_2(%arg0: i32) -> (i32, i32) {
    %c0_i32 = arith.constant 0 : i32
    %c0_i32_0 = arith.constant 0 : i32
    %c0_i32_1 = arith.constant 0 : i32
    return %c0_i32, %c0_i32_0 : i32, i32
  }
  func.func @transform_3(%arg0: i32) -> (i32, i32) {
    %c0_i32 = arith.constant 0 : i32
    %c0_i32_0 = arith.constant 0 : i32
    return %arg0, %c0_i32 : i32, i32
  }
  func.func @transform_4(%arg0: i32) -> (i32, i32) {
    %c0_i32 = arith.constant 0 : i32
    %c0_i32_0 = arith.constant 0 : i32
    %c0_i32_1 = arith.constant 0 : i32
    return %c0_i32, %c0_i32_0 : i32, i32
  }
  func.func @transform_5(%arg0: i32) -> (i32, i32) {
    %c0_i32 = arith.constant 0 : i32
    %c0_i32_0 = arith.constant 0 : i32
    %c0_i32_1 = arith.constant 0 : i32
    return %c0_i32, %c0_i32_0 : i32, i32
  }
  func.func @transform_6(%arg0: i32) -> (i32, i32) {
    %c0_i32 = arith.constant 0 : i32
    %c0_i32_0 = arith.constant 0 : i32
    return %arg0, %c0_i32 : i32, i32
  }
}

module attributes {stable_mosaic.version = 11 : i64} {
  func.func @kernel(%arg0: i32, %arg1: memref<512x128xf32, #tpu.memory_space<vmem>>, %arg2: memref<1x128xf32, #tpu.memory_space<vmem>>, %arg3: memref<1x128xf32, #tpu.memory_space<vmem>>, %arg4: memref<128x128xf32, #tpu.memory_space<vmem>>, %arg5: memref<512x128xf32, #tpu.memory_space<vmem>>, %arg6: memref<128x128xf32, #tpu.memory_space<vmem>>, %arg7: memref<512x128xf32, #tpu.memory_space<vmem>>, %arg8: memref<1x8x128xf32, #tpu.memory_space<vmem>>, %arg9: memref<512x128xf32, #tpu.memory_space<vmem>>, %arg10: memref<1x8x128xf32, #tpu.memory_space<vmem>>) attributes {dimension_semantics = [#tpu.dimension_semantics<parallel>], iteration_bounds = array<i64: 1>, scalar_prefetch = 0 : i64, scratch_operands = 0 : i64, tpu.core_type = #tpu.core_type<tc>, window_params = [{transform_indices = @transform_0, window_bounds = array<i64: 512, 128>}, {pipeline_mode = #tpu.pipeline_mode<synchronous>, transform_indices = @transform_1, window_bounds = array<i64: 1, 128>}, {pipeline_mode = #tpu.pipeline_mode<synchronous>, transform_indices = @transform_2, window_bounds = array<i64: 1, 128>}, {pipeline_mode = #tpu.pipeline_mode<synchronous>, transform_indices = @transform_3, window_bounds = array<i64: 128, 128>}, {transform_indices = @transform_4, window_bounds = array<i64: 512, 128>}, {pipeline_mode = #tpu.pipeline_mode<synchronous>, transform_indices = @transform_5, window_bounds = array<i64: 128, 128>}, {transform_indices = @transform_6, window_bounds = array<i64: 512, 128>}, {transform_indices = @transform_7, window_bounds = array<i64: 1, 8, 128>}, {transform_indices = @transform_8, window_bounds = array<i64: 512, 128>}, {transform_indices = @transform_9, window_bounds = array<i64: 1, 8, 128>}]} {
    %c0 = arith.constant 0 : index
    %c0_0 = arith.constant 0 : index
    %0 = vector.load %arg1[%c0, %c0_0] : memref<512x128xf32, #tpu.memory_space<vmem>>, vector<512x128xf32>
    %c0_1 = arith.constant 0 : index
    %c0_2 = arith.constant 0 : index
    %1 = vector.load %arg2[%c0_1, %c0_2] : memref<1x128xf32, #tpu.memory_space<vmem>>, vector<1x128xf32>
    %2 = vector.broadcast %1 : vector<1x128xf32> to vector<512x128xf32>
    %3 = arith.mulf %0, %2 : vector<512x128xf32>
    %c0_3 = arith.constant 0 : index
    %c0_4 = arith.constant 0 : index
    %4 = vector.load %arg3[%c0_3, %c0_4] : memref<1x128xf32, #tpu.memory_space<vmem>>, vector<1x128xf32>
    %5 = vector.broadcast %4 : vector<1x128xf32> to vector<512x128xf32>
    %6 = arith.addf %3, %5 : vector<512x128xf32>
    %cst = arith.constant 0.000000e+00 : f32
    %7 = vector.broadcast %cst : f32 to vector<512x128xf32>
    %8 = arith.maximumf %6, %7 : vector<512x128xf32>
    %c0_5 = arith.constant 0 : index
    %c0_6 = arith.constant 0 : index
    %9 = vector.load %arg4[%c0_5, %c0_6] : memref<128x128xf32, #tpu.memory_space<vmem>>, vector<128x128xf32>
    %cst_7 = arith.constant dense<0.000000e+00> : vector<512x128xf32>
    %10 = tpu.matmul %8, %9, %cst_7 {dimension_numbers = #tpu.dot_dimension_numbers<[1], [0], [0], [1], [0, 0, 1, 1], [], []>} : vector<512x128xf32>, vector<128x128xf32>, vector<512x128xf32> -> vector<512x128xf32>
    %c0_8 = arith.constant 0 : index
    %c0_9 = arith.constant 0 : index
    %11 = vector.load %arg5[%c0_8, %c0_9] : memref<512x128xf32, #tpu.memory_space<vmem>>, vector<512x128xf32>
    %c0_10 = arith.constant 0 : index
    %c0_11 = arith.constant 0 : index
    %12 = vector.load %arg6[%c0_10, %c0_11] : memref<128x128xf32, #tpu.memory_space<vmem>>, vector<128x128xf32>
    %cst_12 = arith.constant dense<0.000000e+00> : vector<512x128xf32>
    %13 = tpu.matmul %11, %12, %cst_12 {dimension_numbers = #tpu.dot_dimension_numbers<[1], [0], [0], [1], [0, 0, 1, 1], [], []>} : vector<512x128xf32>, vector<128x128xf32>, vector<512x128xf32> -> vector<512x128xf32>
    %c0_13 = arith.constant 0 : index
    %c0_14 = arith.constant 0 : index
    %14 = vector.load %arg7[%c0_13, %c0_14] : memref<512x128xf32, #tpu.memory_space<vmem>>, vector<512x128xf32>
    tpu.vector_store %arg7[%c0_13, %c0_14], %10 {strides = array<i32>} : memref<512x128xf32, #tpu.memory_space<vmem>>, vector<512x128xf32>,
    %c0_15 = arith.constant 0 : index
    %c0_16 = arith.constant 0 : index
    %15 = vector.load %arg9[%c0_15, %c0_16] : memref<512x128xf32, #tpu.memory_space<vmem>>, vector<512x128xf32>
    tpu.vector_store %arg9[%c0_15, %c0_16], %13 {strides = array<i32>} : memref<512x128xf32, #tpu.memory_space<vmem>>, vector<512x128xf32>,
    %cst_17 = arith.constant dense<0.000000e+00> : vector<128xf32>
    %16 = vector.multi_reduction <add>, %10, %cst_17 [0] : vector<512x128xf32> to vector<128xf32>
    %17 = vector.shape_cast %16 : vector<128xf32> to vector<1x128xf32>
    %18 = arith.mulf %10, %10 : vector<512x128xf32>
    %cst_18 = arith.constant dense<0.000000e+00> : vector<128xf32>
    %19 = vector.multi_reduction <add>, %18, %cst_18 [0] : vector<512x128xf32> to vector<128xf32>
    %20 = vector.shape_cast %19 : vector<128xf32> to vector<1x128xf32>
    %21 = tpu.iota {dimensions = array<i32: 0>} : vector<8x1xi32>
    %c0_i32 = arith.constant 0 : i32
    %22 = vector.broadcast %c0_i32 : i32 to vector<8x1xi32>
    %23 = arith.cmpi eq, %21, %22 : vector<8x1xi32>
    %c1_i32 = arith.constant 1 : i32
    %24 = vector.broadcast %c1_i32 : i32 to vector<8x1xi32>
    %25 = arith.cmpi eq, %21, %24 : vector<8x1xi32>
    %cst_19 = arith.constant 0.000000e+00 : f32
    %26 = vector.shape_cast %25 : vector<8x1xi1> to vector<8x1xi1>
    %27 = vector.broadcast %26 : vector<8x1xi1> to vector<8x128xi1>
    %28 = vector.shape_cast %20 : vector<1x128xf32> to vector<1x128xf32>
    %29 = vector.broadcast %28 : vector<1x128xf32> to vector<8x128xf32>
    %30 = vector.broadcast %cst_19 : f32 to vector<8x128xf32>
    %31 = arith.select %27, %29, %30 : vector<8x128xi1>, vector<8x128xf32>
    %32 = vector.shape_cast %23 : vector<8x1xi1> to vector<8x1xi1>
    %33 = vector.broadcast %32 : vector<8x1xi1> to vector<8x128xi1>
    %34 = vector.shape_cast %17 : vector<1x128xf32> to vector<1x128xf32>
    %35 = vector.broadcast %34 : vector<1x128xf32> to vector<8x128xf32>
    %36 = arith.select %33, %35, %31 : vector<8x128xi1>, vector<8x128xf32>
    %c0_20 = arith.constant 0 : index
    %c0_21 = arith.constant 0 : index
    %c0_22 = arith.constant 0 : index
    %37 = vector.load %arg8[%c0_20, %c0_21, %c0_22] : memref<1x8x128xf32, #tpu.memory_space<vmem>>, vector<1x8x128xf32>
    %38 = vector.shape_cast %37 : vector<1x8x128xf32> to vector<8x128xf32>
    %39 = vector.shape_cast %36 : vector<8x128xf32> to vector<1x8x128xf32>
    tpu.vector_store %arg8[%c0_20, %c0_21, %c0_22], %39 {strides = array<i32>} : memref<1x8x128xf32, #tpu.memory_space<vmem>>, vector<1x8x128xf32>,
    %cst_23 = arith.constant dense<0.000000e+00> : vector<128xf32>
    %40 = vector.multi_reduction <add>, %13, %cst_23 [0] : vector<512x128xf32> to vector<128xf32>
    %41 = vector.shape_cast %40 : vector<128xf32> to vector<1x128xf32>
    %42 = arith.mulf %13, %13 : vector<512x128xf32>
    %cst_24 = arith.constant dense<0.000000e+00> : vector<128xf32>
    %43 = vector.multi_reduction <add>, %42, %cst_24 [0] : vector<512x128xf32> to vector<128xf32>
    %44 = vector.shape_cast %43 : vector<128xf32> to vector<1x128xf32>
    %45 = tpu.iota {dimensions = array<i32: 0>} : vector<8x1xi32>
    %c0_i32_25 = arith.constant 0 : i32
    %46 = vector.broadcast %c0_i32_25 : i32 to vector<8x1xi32>
    %47 = arith.cmpi eq, %45, %46 : vector<8x1xi32>
    %c1_i32_26 = arith.constant 1 : i32
    %48 = vector.broadcast %c1_i32_26 : i32 to vector<8x1xi32>
    %49 = arith.cmpi eq, %45, %48 : vector<8x1xi32>
    %cst_27 = arith.constant 0.000000e+00 : f32
    %50 = vector.shape_cast %49 : vector<8x1xi1> to vector<8x1xi1>
    %51 = vector.broadcast %50 : vector<8x1xi1> to vector<8x128xi1>
    %52 = vector.shape_cast %44 : vector<1x128xf32> to vector<1x128xf32>
    %53 = vector.broadcast %52 : vector<1x128xf32> to vector<8x128xf32>
    %54 = vector.broadcast %cst_27 : f32 to vector<8x128xf32>
    %55 = arith.select %51, %53, %54 : vector<8x128xi1>, vector<8x128xf32>
    %56 = vector.shape_cast %47 : vector<8x1xi1> to vector<8x1xi1>
    %57 = vector.broadcast %56 : vector<8x1xi1> to vector<8x128xi1>
    %58 = vector.shape_cast %41 : vector<1x128xf32> to vector<1x128xf32>
    %59 = vector.broadcast %58 : vector<1x128xf32> to vector<8x128xf32>
    %60 = arith.select %57, %59, %55 : vector<8x128xi1>, vector<8x128xf32>
    %c0_28 = arith.constant 0 : index
    %c0_29 = arith.constant 0 : index
    %c0_30 = arith.constant 0 : index
    %61 = vector.load %arg10[%c0_28, %c0_29, %c0_30] : memref<1x8x128xf32, #tpu.memory_space<vmem>>, vector<1x8x128xf32>
    %62 = vector.shape_cast %61 : vector<1x8x128xf32> to vector<8x128xf32>
    %63 = vector.shape_cast %60 : vector<8x128xf32> to vector<1x8x128xf32>
    tpu.vector_store %arg10[%c0_28, %c0_29, %c0_30], %63 {strides = array<i32>} : memref<1x8x128xf32, #tpu.memory_space<vmem>>, vector<1x8x128xf32>,
    return
  }
  func.func @transform_0(%arg0: i32) -> (i32, i32) {
    %c0_i32 = arith.constant 0 : i32
    %c0_i32_0 = arith.constant 0 : i32
    return %arg0, %c0_i32 : i32, i32
  }
  func.func @transform_1(%arg0: i32) -> (i32, i32) {
    %c0_i32 = arith.constant 0 : i32
    %c0_i32_0 = arith.constant 0 : i32
    %c0_i32_1 = arith.constant 0 : i32
    return %c0_i32, %c0_i32_0 : i32, i32
  }
  func.func @transform_2(%arg0: i32) -> (i32, i32) {
    %c0_i32 = arith.constant 0 : i32
    %c0_i32_0 = arith.constant 0 : i32
    %c0_i32_1 = arith.constant 0 : i32
    return %c0_i32, %c0_i32_0 : i32, i32
  }
  func.func @transform_3(%arg0: i32) -> (i32, i32) {
    %c0_i32 = arith.constant 0 : i32
    %c0_i32_0 = arith.constant 0 : i32
    %c0_i32_1 = arith.constant 0 : i32
    return %c0_i32, %c0_i32_0 : i32, i32
  }
  func.func @transform_4(%arg0: i32) -> (i32, i32) {
    %c0_i32 = arith.constant 0 : i32
    %c0_i32_0 = arith.constant 0 : i32
    return %arg0, %c0_i32 : i32, i32
  }
  func.func @transform_5(%arg0: i32) -> (i32, i32) {
    %c0_i32 = arith.constant 0 : i32
    %c0_i32_0 = arith.constant 0 : i32
    %c0_i32_1 = arith.constant 0 : i32
    return %c0_i32, %c0_i32_0 : i32, i32
  }
  func.func @transform_6(%arg0: i32) -> (i32, i32) {
    %c0_i32 = arith.constant 0 : i32
    %c0_i32_0 = arith.constant 0 : i32
    return %arg0, %c0_i32 : i32, i32
  }
  func.func @transform_7(%arg0: i32) -> (i32, i32, i32) {
    %c0_i32 = arith.constant 0 : i32
    %c0_i32_0 = arith.constant 0 : i32
    %c0_i32_1 = arith.constant 0 : i32
    return %arg0, %c0_i32, %c0_i32_0 : i32, i32, i32
  }
  func.func @transform_8(%arg0: i32) -> (i32, i32) {
    %c0_i32 = arith.constant 0 : i32
    %c0_i32_0 = arith.constant 0 : i32
    return %arg0, %c0_i32 : i32, i32
  }
  func.func @transform_9(%arg0: i32) -> (i32, i32, i32) {
    %c0_i32 = arith.constant 0 : i32
    %c0_i32_0 = arith.constant 0 : i32
    %c0_i32_1 = arith.constant 0 : i32
    return %arg0, %c0_i32, %c0_i32_0 : i32, i32, i32
  }
}

</mosaic_0001>

<llo_original>
// kernel: resnext_bottleneck_forward.4
$region0: #{resnext_bottleneck_forward.4}
  #allocation0 [shape = 'u32[]', space=smem, size = 0x4, offset = 0x4, fixed_abs, tag = 'smem constant byte address 0x4 - core index']
  #allocation1 [shape = 'u32[72,128]{1,0:T(1,128)}', space=vmem, size = 0x9000, scoped, tag = 'internal scratch']
  %s0 = inlined_call_operand.vmem [shape: f32[512,128], index: 0, kind: input, shape index: {}]
  %s1 = inlined_call_operand.vmem [shape: f32[128,128], index: 1, kind: input, shape index: {}]
  %s2 = inlined_call_operand.vmem [shape: f32[512,128], index: 2, kind: output, shape index: {0}]
  %s3 = inlined_call_operand.vmem [shape: f32[1,8,128], index: 3, kind: output, shape index: {1}]
  %4 = xla_tuple %s2, %s3
  %s5 = sld [smem:[#allocation0]]
  $region26: #{resnext_bottleneck_forward.4} parent=0
    _
  %s7 = ssub.s32 1, %s5
  %s8 = scalar_select 0, %s7, %s5
  // Predicated region
  $region2: #{resnext_bottleneck_forward.4} parent=0 // pred_check
    _
  $region3: #{resnext_bottleneck_forward.4} parent=0 // pred_check_branch
    %10 = sbr.rel (0) target = $region5
  $region4: #{resnext_bottleneck_forward.4} parent=0 // pred_region
    _
  $region5: #{resnext_bottleneck_forward.4} parent=0 // pred_fallthru
    _
  // Predicated region
  $region6: #{resnext_bottleneck_forward.4} parent=0 // pred_check
    _
  $region7: #{resnext_bottleneck_forward.4} parent=0 // pred_check_branch
    %12 = sbr.rel (0) target = $region9
  $region8: #{resnext_bottleneck_forward.4} parent=0 // pred_region
    _
  $region9: #{resnext_bottleneck_forward.4} parent=0 // pred_fallthru
    _
  %v13 = vld [vmem:[%s0] sm:$0xff]
  %v14 = vld [vmem:[%s0 + $0x8] sm:$0xff]
  %v15 = vld [vmem:[%s0 + $0x10] sm:$0xff]
  %v16 = vld [vmem:[%s0 + $0x18] sm:$0xff]
  %v17 = vld [vmem:[%s0 + $0x20] sm:$0xff]
  %v18 = vld [vmem:[%s0 + $0x28] sm:$0xff]
  %v19 = vld [vmem:[%s0 + $0x30] sm:$0xff]
  %v20 = vld [vmem:[%s0 + $0x38] sm:$0xff]
  %v21 = vld [vmem:[%s0 + $0x40] sm:$0xff]
  %v22 = vld [vmem:[%s0 + $0x48] sm:$0xff]
  %v23 = vld [vmem:[%s0 + $0x50] sm:$0xff]
  %v24 = vld [vmem:[%s0 + $0x58] sm:$0xff]
  %v25 = vld [vmem:[%s0 + $0x60] sm:$0xff]
  %v26 = vld [vmem:[%s0 + $0x68] sm:$0xff]
  %v27 = vld [vmem:[%s0 + $0x70] sm:$0xff]
  %v28 = vld [vmem:[%s0 + $0x78] sm:$0xff]
  %v29 = vld [vmem:[%s0 + $0x80] sm:$0xff]
  %v30 = vld [vmem:[%s0 + $0x88] sm:$0xff]
  %v31 = vld [vmem:[%s0 + $0x90] sm:$0xff]
  %v32 = vld [vmem:[%s0 + $0x98] sm:$0xff]
  %v33 = vld [vmem:[%s0 + $0xa0] sm:$0xff]
  %v34 = vld [vmem:[%s0 + $0xa8] sm:$0xff]
  %v35 = vld [vmem:[%s0 + $0xb0] sm:$0xff]
  %v36 = vld [vmem:[%s0 + $0xb8] sm:$0xff]
  %v37 = vld [vmem:[%s0 + $0xc0] sm:$0xff]
  %v38 = vld [vmem:[%s0 + $0xc8] sm:$0xff]
  %v39 = vld [vmem:[%s0 + $0xd0] sm:$0xff]
  %v40 = vld [vmem:[%s0 + $0xd8] sm:$0xff]
  %v41 = vld [vmem:[%s0 + $0xe0] sm:$0xff]
  %v42 = vld [vmem:[%s0 + $0xe8] sm:$0xff]
  %v43 = vld [vmem:[%s0 + $0xf0] sm:$0xff]
  %v44 = vld [vmem:[%s0 + $0xf8] sm:$0xff]
  %v45 = vld [vmem:[%s0 + $0x100] sm:$0xff]
  %v46 = vld [vmem:[%s0 + $0x108] sm:$0xff]
  %v47 = vld [vmem:[%s0 + $0x110] sm:$0xff]
  %v48 = vld [vmem:[%s0 + $0x118] sm:$0xff]
  %v49 = vld [vmem:[%s0 + $0x120] sm:$0xff]
  %v50 = vld [vmem:[%s0 + $0x128] sm:$0xff]
  %v51 = vld [vmem:[%s0 + $0x130] sm:$0xff]
  %v52 = vld [vmem:[%s0 + $0x138] sm:$0xff]
  %v53 = vld [vmem:[%s0 + $0x140] sm:$0xff]
  %v54 = vld [vmem:[%s0 + $0x148] sm:$0xff]
  %v55 = vld [vmem:[%s0 + $0x150] sm:$0xff]
  %v56 = vld [vmem:[%s0 + $0x158] sm:$0xff]
  %v57 = vld [vmem:[%s0 + $0x160] sm:$0xff]
  %v58 = vld [vmem:[%s0 + $0x168] sm:$0xff]
  %v59 = vld [vmem:[%s0 + $0x170] sm:$0xff]
  %v60 = vld [vmem:[%s0 + $0x178] sm:$0xff]
  %v61 = vld [vmem:[%s0 + $0x180] sm:$0xff]
  %v62 = vld [vmem:[%s0 + $0x188] sm:$0xff]
  %v63 = vld [vmem:[%s0 + $0x190] sm:$0xff]
  %v64 = vld [vmem:[%s0 + $0x198] sm:$0xff]
  %v65 = vld [vmem:[%s0 + $0x1a0] sm:$0xff]
  %v66 = vld [vmem:[%s0 + $0x1a8] sm:$0xff]
  %v67 = vld [vmem:[%s0 + $0x1b0] sm:$0xff]
  %v68 = vld [vmem:[%s0 + $0x1b8] sm:$0xff]
  %v69 = vld [vmem:[%s0 + $0x1c0] sm:$0xff]
  %v70 = vld [vmem:[%s0 + $0x1c8] sm:$0xff]
  %v71 = vld [vmem:[%s0 + $0x1d0] sm:$0xff]
  %v72 = vld [vmem:[%s0 + $0x1d8] sm:$0xff]
  %v73 = vld [vmem:[%s0 + $0x1e0] sm:$0xff]
  %v74 = vld [vmem:[%s0 + $0x1e8] sm:$0xff]
  %v75 = vld [vmem:[%s0 + $0x1f0] sm:$0xff]
  %v76 = vld [vmem:[%s0 + $0x1f8] sm:$0xff]
  %v77 = vld [vmem:[%s1] sm:$0xff]
  %v78 = vld [vmem:[%s1 + $0x8] sm:$0xff]
  %v79 = vld [vmem:[%s1 + $0x10] sm:$0xff]
  %v80 = vld [vmem:[%s1 + $0x18] sm:$0xff]
  %v81 = vld [vmem:[%s1 + $0x20] sm:$0xff]
  %v82 = vld [vmem:[%s1 + $0x28] sm:$0xff]
  %v83 = vld [vmem:[%s1 + $0x30] sm:$0xff]
  %v84 = vld [vmem:[%s1 + $0x38] sm:$0xff]
  %v85 = vld [vmem:[%s1 + $0x40] sm:$0xff]
  %v86 = vld [vmem:[%s1 + $0x48] sm:$0xff]
  %v87 = vld [vmem:[%s1 + $0x50] sm:$0xff]
  %v88 = vld [vmem:[%s1 + $0x58] sm:$0xff]
  %v89 = vld [vmem:[%s1 + $0x60] sm:$0xff]
  %v90 = vld [vmem:[%s1 + $0x68] sm:$0xff]
  %v91 = vld [vmem:[%s1 + $0x70] sm:$0xff]
  %v92 = vld [vmem:[%s1 + $0x78] sm:$0xff]
  %93 = vmatpush.msra.mxu0 %v92
  %94 = vmatpush.msra.mxu0 %v91
  %95 = vmatpush.msra.mxu0 %v90
  %96 = vmatpush.msra.mxu0 %v89
  %97 = vmatpush.msra.mxu0 %v88
  %98 = vmatpush.msra.mxu0 %v87
  %99 = vmatpush.msra.mxu0 %v86
  %100 = vmatpush.msra.mxu0 %v85
  %101 = vmatpush.msra.mxu0 %v84
  %102 = vmatpush.msra.mxu0 %v83
  %103 = vmatpush.msra.mxu0 %v82
  %104 = vmatpush.msra.mxu0 %v81
  %105 = vmatpush.msra.mxu0 %v80
  %106 = vmatpush.msra.mxu0 %v79
  %107 = vmatpush.msra.mxu0 %v78
  %108 = vmatpush.msra.mxu0 %v77
  %109 = vmatmul.f32.gmra.mxu0 %v13
  %v110 = vpop.f32.mrf.mxu0
  %v111 = vadd.f32 0.0, %v110
  %112 = vmatmul.f32.gmra.mxu0 %v14
  %v113 = vpop.f32.mrf.mxu0
  %v114 = vadd.f32 0.0, %v113
  %115 = vmatmul.f32.gmra.mxu0 %v15
  %v116 = vpop.f32.mrf.mxu0
  %v117 = vadd.f32 0.0, %v116
  %118 = vmatmul.f32.gmra.mxu0 %v16
  %v119 = vpop.f32.mrf.mxu0
  %v120 = vadd.f32 0.0, %v119
  %121 = vmatmul.f32.gmra.mxu0 %v17
  %v122 = vpop.f32.mrf.mxu0
  %v123 = vadd.f32 0.0, %v122
  %124 = vmatmul.f32.gmra.mxu0 %v18
  %v125 = vpop.f32.mrf.mxu0
  %v126 = vadd.f32 0.0, %v125
  %127 = vmatmul.f32.gmra.mxu0 %v19
  %v128 = vpop.f32.mrf.mxu0
  %v129 = vadd.f32 0.0, %v128
  %130 = vmatmul.f32.gmra.mxu0 %v20
  %v131 = vpop.f32.mrf.mxu0
  %v132 = vadd.f32 0.0, %v131
  %133 = vmatmul.f32.gmra.mxu0 %v21
  %v134 = vpop.f32.mrf.mxu0
  %v135 = vadd.f32 0.0, %v134
  %136 = vmatmul.f32.gmra.mxu0 %v22
  %v137 = vpop.f32.mrf.mxu0
  %v138 = vadd.f32 0.0, %v137
  %139 = vmatmul.f32.gmra.mxu0 %v23
  %v140 = vpop.f32.mrf.mxu0
  %v141 = vadd.f32 0.0, %v140
  %142 = vmatmul.f32.gmra.mxu0 %v24
  %v143 = vpop.f32.mrf.mxu0
  %v144 = vadd.f32 0.0, %v143
  %145 = vmatmul.f32.gmra.mxu0 %v25
  %v146 = vpop.f32.mrf.mxu0
  %v147 = vadd.f32 0.0, %v146
  %148 = vmatmul.f32.gmra.mxu0 %v26
  %v149 = vpop.f32.mrf.mxu0
  %v150 = vadd.f32 0.0, %v149
  %151 = vmatmul.f32.gmra.mxu0 %v27
  %v152 = vpop.f32.mrf.mxu0
  %v153 = vadd.f32 0.0, %v152
  %154 = vmatmul.f32.gmra.mxu0 %v28
  %v155 = vpop.f32.mrf.mxu0
  %v156 = vadd.f32 0.0, %v155
  %157 = vmatmul.f32.gmra.mxu0 %v29
  %v158 = vpop.f32.mrf.mxu0
  %v159 = vadd.f32 0.0, %v158
  %160 = vmatmul.f32.gmra.mxu0 %v30
  %v161 = vpop.f32.mrf.mxu0
  %v162 = vadd.f32 0.0, %v161
  %163 = vmatmul.f32.gmra.mxu0 %v31
  %v164 = vpop.f32.mrf.mxu0
  %v165 = vadd.f32 0.0, %v164
  %166 = vmatmul.f32.gmra.mxu0 %v32
  %v167 = vpop.f32.mrf.mxu0
  %v168 = vadd.f32 0.0, %v167
  %169 = vmatmul.f32.gmra.mxu0 %v33
  %v170 = vpop.f32.mrf.mxu0
  %v171 = vadd.f32 0.0, %v170
  %172 = vmatmul.f32.gmra.mxu0 %v34
  %v173 = vpop.f32.mrf.mxu0
  %v174 = vadd.f32 0.0, %v173
  %175 = vmatmul.f32.gmra.mxu0 %v35
  %v176 = vpop.f32.mrf.mxu0
  %v177 = vadd.f32 0.0, %v176
  %178 = vmatmul.f32.gmra.mxu0 %v36
  %v179 = vpop.f32.mrf.mxu0
  %v180 = vadd.f32 0.0, %v179
  %181 = vmatmul.f32.gmra.mxu0 %v37
  %v182 = vpop.f32.mrf.mxu0
  %v183 = vadd.f32 0.0, %v182
  %184 = vmatmul.f32.gmra.mxu0 %v38
  %v185 = vpop.f32.mrf.mxu0
  %v186 = vadd.f32 0.0, %v185
  %187 = vmatmul.f32.gmra.mxu0 %v39
  %v188 = vpop.f32.mrf.mxu0
  %v189 = vadd.f32 0.0, %v188
  %190 = vmatmul.f32.gmra.mxu0 %v40
  %v191 = vpop.f32.mrf.mxu0
  %v192 = vadd.f32 0.0, %v191
  %193 = vmatmul.f32.gmra.mxu0 %v41
  %v194 = vpop.f32.mrf.mxu0
  %v195 = vadd.f32 0.0, %v194
  %196 = vmatmul.f32.gmra.mxu0 %v42
  %v197 = vpop.f32.mrf.mxu0
  %v198 = vadd.f32 0.0, %v197
  %199 = vmatmul.f32.gmra.mxu0 %v43
  %v200 = vpop.f32.mrf.mxu0
  %v201 = vadd.f32 0.0, %v200
  %202 = vmatmul.f32.gmra.mxu0 %v44
  %v203 = vpop.f32.mrf.mxu0
  %v204 = vadd.f32 0.0, %v203
  %205 = vmatmul.f32.gmra.mxu0 %v45
  %v206 = vpop.f32.mrf.mxu0
  %v207 = vadd.f32 0.0, %v206
  %208 = vmatmul.f32.gmra.mxu0 %v46
  %v209 = vpop.f32.mrf.mxu0
  %v210 = vadd.f32 0.0, %v209
  %211 = vmatmul.f32.gmra.mxu0 %v47
  %v212 = vpop.f32.mrf.mxu0
  %v213 = vadd.f32 0.0, %v212
  %214 = vmatmul.f32.gmra.mxu0 %v48
  %v215 = vpop.f32.mrf.mxu0
  %v216 = vadd.f32 0.0, %v215
  %217 = vmatmul.f32.gmra.mxu0 %v49
  %v218 = vpop.f32.mrf.mxu0
  %v219 = vadd.f32 0.0, %v218
  %220 = vmatmul.f32.gmra.mxu0 %v50
  %v221 = vpop.f32.mrf.mxu0
  %v222 = vadd.f32 0.0, %v221
  %223 = vmatmul.f32.gmra.mxu0 %v51
  %v224 = vpop.f32.mrf.mxu0
  %v225 = vadd.f32 0.0, %v224
  %226 = vmatmul.f32.gmra.mxu0 %v52
  %v227 = vpop.f32.mrf.mxu0
  %v228 = vadd.f32 0.0, %v227
  %229 = vmatmul.f32.gmra.mxu0 %v53
  %v230 = vpop.f32.mrf.mxu0
  %v231 = vadd.f32 0.0, %v230
  %232 = vmatmul.f32.gmra.mxu0 %v54
  %v233 = vpop.f32.mrf.mxu0
  %v234 = vadd.f32 0.0, %v233
  %235 = vmatmul.f32.gmra.mxu0 %v55
  %v236 = vpop.f32.mrf.mxu0
  %v237 = vadd.f32 0.0, %v236
  %238 = vmatmul.f32.gmra.mxu0 %v56
  %v239 = vpop.f32.mrf.mxu0
  %v240 = vadd.f32 0.0, %v239
  %241 = vmatmul.f32.gmra.mxu0 %v57
  %v242 = vpop.f32.mrf.mxu0
  %v243 = vadd.f32 0.0, %v242
  %244 = vmatmul.f32.gmra.mxu0 %v58
  %v245 = vpop.f32.mrf.mxu0
  %v246 = vadd.f32 0.0, %v245
  %247 = vmatmul.f32.gmra.mxu0 %v59
  %v248 = vpop.f32.mrf.mxu0
  %v249 = vadd.f32 0.0, %v248
  %250 = vmatmul.f32.gmra.mxu0 %v60
  %v251 = vpop.f32.mrf.mxu0
  %v252 = vadd.f32 0.0, %v251
  %253 = vmatmul.f32.gmra.mxu0 %v61
  %v254 = vpop.f32.mrf.mxu0
  %v255 = vadd.f32 0.0, %v254
  %256 = vmatmul.f32.gmra.mxu0 %v62
  %v257 = vpop.f32.mrf.mxu0
  %v258 = vadd.f32 0.0, %v257
  %259 = vmatmul.f32.gmra.mxu0 %v63
  %v260 = vpop.f32.mrf.mxu0
  %v261 = vadd.f32 0.0, %v260
  %262 = vmatmul.f32.gmra.mxu0 %v64
  %v263 = vpop.f32.mrf.mxu0
  %v264 = vadd.f32 0.0, %v263
  %265 = vmatmul.f32.gmra.mxu0 %v65
  %v266 = vpop.f32.mrf.mxu0
  %v267 = vadd.f32 0.0, %v266
  %268 = vmatmul.f32.gmra.mxu0 %v66
  %v269 = vpop.f32.mrf.mxu0
  %v270 = vadd.f32 0.0, %v269
  %271 = vmatmul.f32.gmra.mxu0 %v67
  %v272 = vpop.f32.mrf.mxu0
  %v273 = vadd.f32 0.0, %v272
  %274 = vmatmul.f32.gmra.mxu0 %v68
  %v275 = vpop.f32.mrf.mxu0
  %v276 = vadd.f32 0.0, %v275
  %277 = vmatmul.f32.gmra.mxu0 %v69
  %v278 = vpop.f32.mrf.mxu0
  %v279 = vadd.f32 0.0, %v278
  %280 = vmatmul.f32.gmra.mxu0 %v70
  %v281 = vpop.f32.mrf.mxu0
  %v282 = vadd.f32 0.0, %v281
  %283 = vmatmul.f32.gmra.mxu0 %v71
  %v284 = vpop.f32.mrf.mxu0
  %v285 = vadd.f32 0.0, %v284
  %286 = vmatmul.f32.gmra.mxu0 %v72
  %v287 = vpop.f32.mrf.mxu0
  %v288 = vadd.f32 0.0, %v287
  %289 = vmatmul.f32.gmra.mxu0 %v73
  %v290 = vpop.f32.mrf.mxu0
  %v291 = vadd.f32 0.0, %v290
  %292 = vmatmul.f32.gmra.mxu0 %v74
  %v293 = vpop.f32.mrf.mxu0
  %v294 = vadd.f32 0.0, %v293
  %295 = vmatmul.f32.gmra.mxu0 %v75
  %v296 = vpop.f32.mrf.mxu0
  %v297 = vadd.f32 0.0, %v296
  %298 = vmatmul.f32.gmra.mxu0 %v76
  %v299 = vpop.f32.mrf.mxu0
  %v300 = vadd.f32 0.0, %v299
  %301 = vdwg.mxu0
  %302 = vst [vmem:[%s2] sm:$0xff] %v111
  %303 = vst [vmem:[%s2 + $0x8] sm:$0xff] %v114
  %304 = vst [vmem:[%s2 + $0x10] sm:$0xff] %v117
  %305 = vst [vmem:[%s2 + $0x18] sm:$0xff] %v120
  %306 = vst [vmem:[%s2 + $0x20] sm:$0xff] %v123
  %307 = vst [vmem:[%s2 + $0x28] sm:$0xff] %v126
  %308 = vst [vmem:[%s2 + $0x30] sm:$0xff] %v129
  %309 = vst [vmem:[%s2 + $0x38] sm:$0xff] %v132
  %310 = vst [vmem:[%s2 + $0x40] sm:$0xff] %v135
  %311 = vst [vmem:[%s2 + $0x48] sm:$0xff] %v138
  %312 = vst [vmem:[%s2 + $0x50] sm:$0xff] %v141
  %313 = vst [vmem:[%s2 + $0x58] sm:$0xff] %v144
  %314 = vst [vmem:[%s2 + $0x60] sm:$0xff] %v147
  %315 = vst [vmem:[%s2 + $0x68] sm:$0xff] %v150
  %316 = vst [vmem:[%s2 + $0x70] sm:$0xff] %v153
  %317 = vst [vmem:[%s2 + $0x78] sm:$0xff] %v156
  %318 = vst [vmem:[%s2 + $0x80] sm:$0xff] %v159
  %319 = vst [vmem:[%s2 + $0x88] sm:$0xff] %v162
  %320 = vst [vmem:[%s2 + $0x90] sm:$0xff] %v165
  %321 = vst [vmem:[%s2 + $0x98] sm:$0xff] %v168
  %322 = vst [vmem:[%s2 + $0xa0] sm:$0xff] %v171
  %323 = vst [vmem:[%s2 + $0xa8] sm:$0xff] %v174
  %324 = vst [vmem:[%s2 + $0xb0] sm:$0xff] %v177
  %325 = vst [vmem:[%s2 + $0xb8] sm:$0xff] %v180
  %326 = vst [vmem:[%s2 + $0xc0] sm:$0xff] %v183
  %327 = vst [vmem:[%s2 + $0xc8] sm:$0xff] %v186
  %328 = vst [vmem:[%s2 + $0xd0] sm:$0xff] %v189
  %329 = vst [vmem:[%s2 + $0xd8] sm:$0xff] %v192
  %330 = vst [vmem:[%s2 + $0xe0] sm:$0xff] %v195
  %331 = vst [vmem:[%s2 + $0xe8] sm:$0xff] %v198
  %332 = vst [vmem:[%s2 + $0xf0] sm:$0xff] %v201
  %333 = vst [vmem:[%s2 + $0xf8] sm:$0xff] %v204
  %334 = vst [vmem:[%s2 + $0x100] sm:$0xff] %v207
  %335 = vst [vmem:[%s2 + $0x108] sm:$0xff] %v210
  %336 = vst [vmem:[%s2 + $0x110] sm:$0xff] %v213
  %337 = vst [vmem:[%s2 + $0x118] sm:$0xff] %v216
  %338 = vst [vmem:[%s2 + $0x120] sm:$0xff] %v219
  %339 = vst [vmem:[%s2 + $0x128] sm:$0xff] %v222
  %340 = vst [vmem:[%s2 + $0x130] sm:$0xff] %v225
  %341 = vst [vmem:[%s2 + $0x138] sm:$0xff] %v228
  %342 = vst [vmem:[%s2 + $0x140] sm:$0xff] %v231
  %343 = vst [vmem:[%s2 + $0x148] sm:$0xff] %v234
  %344 = vst [vmem:[%s2 + $0x150] sm:$0xff] %v237
  %345 = vst [vmem:[%s2 + $0x158] sm:$0xff] %v240
  %346 = vst [vmem:[%s2 + $0x160] sm:$0xff] %v243
  %347 = vst [vmem:[%s2 + $0x168] sm:$0xff] %v246
  %348 = vst [vmem:[%s2 + $0x170] sm:$0xff] %v249
  %349 = vst [vmem:[%s2 + $0x178] sm:$0xff] %v252
  %350 = vst [vmem:[%s2 + $0x180] sm:$0xff] %v255
  %351 = vst [vmem:[%s2 + $0x188] sm:$0xff] %v258
  %352 = vst [vmem:[%s2 + $0x190] sm:$0xff] %v261
  %353 = vst [vmem:[%s2 + $0x198] sm:$0xff] %v264
  %354 = vst [vmem:[%s2 + $0x1a0] sm:$0xff] %v267
  %355 = vst [vmem:[%s2 + $0x1a8] sm:$0xff] %v270
  %356 = vst [vmem:[%s2 + $0x1b0] sm:$0xff] %v273
  %357 = vst [vmem:[%s2 + $0x1b8] sm:$0xff] %v276
  %358 = vst [vmem:[%s2 + $0x1c0] sm:$0xff] %v279
  %359 = vst [vmem:[%s2 + $0x1c8] sm:$0xff] %v282
  %360 = vst [vmem:[%s2 + $0x1d0] sm:$0xff] %v285
  %361 = vst [vmem:[%s2 + $0x1d8] sm:$0xff] %v288
  %362 = vst [vmem:[%s2 + $0x1e0] sm:$0xff] %v291
  %363 = vst [vmem:[%s2 + $0x1e8] sm:$0xff] %v294
  %364 = vst [vmem:[%s2 + $0x1f0] sm:$0xff] %v297
  %365 = vst [vmem:[%s2 + $0x1f8] sm:$0xff] %v300
  %v366 = vadd.f32 %v111, %v114
  %v367 = vadd.f32 %v366, %v117
  %v368 = vadd.f32 %v367, %v120
  %v369 = vadd.f32 %v368, %v123
  %v370 = vadd.f32 %v369, %v126
  %v371 = vadd.f32 %v370, %v129
  %v372 = vadd.f32 %v371, %v132
  %v373 = vadd.f32 %v372, %v135
  %v374 = vadd.f32 %v373, %v138
  %v375 = vadd.f32 %v374, %v141
  %v376 = vadd.f32 %v375, %v144
  %v377 = vadd.f32 %v376, %v147
  %v378 = vadd.f32 %v377, %v150
  %v379 = vadd.f32 %v378, %v153
  %v380 = vadd.f32 %v379, %v156
  %v381 = vadd.f32 %v380, %v159
  %v382 = vadd.f32 %v381, %v162
  %v383 = vadd.f32 %v382, %v165
  %v384 = vadd.f32 %v383, %v168
  %v385 = vadd.f32 %v384, %v171
  %v386 = vadd.f32 %v385, %v174
  %v387 = vadd.f32 %v386, %v177
  %v388 = vadd.f32 %v387, %v180
  %v389 = vadd.f32 %v388, %v183
  %v390 = vadd.f32 %v389, %v186
  %v391 = vadd.f32 %v390, %v189
  %v392 = vadd.f32 %v391, %v192
  %v393 = vadd.f32 %v392, %v195
  %v394 = vadd.f32 %v393, %v198
  %v395 = vadd.f32 %v394, %v201
  %v396 = vadd.f32 %v395, %v204
  %v397 = vadd.f32 %v396, %v207
  %v398 = vadd.f32 %v397, %v210
  %v399 = vadd.f32 %v398, %v213
  %v400 = vadd.f32 %v399, %v216
  %v401 = vadd.f32 %v400, %v219
  %v402 = vadd.f32 %v401, %v222
  %v403 = vadd.f32 %v402, %v225
  %v404 = vadd.f32 %v403, %v228
  %v405 = vadd.f32 %v404, %v231
  %v406 = vadd.f32 %v405, %v234
  %v407 = vadd.f32 %v406, %v237
  %v408 = vadd.f32 %v407, %v240
  %v409 = vadd.f32 %v408, %v243
  %v410 = vadd.f32 %v409, %v246
  %v411 = vadd.f32 %v410, %v249
  %v412 = vadd.f32 %v411, %v252
  %v413 = vadd.f32 %v412, %v255
  %v414 = vadd.f32 %v413, %v258
  %v415 = vadd.f32 %v414, %v261
  %v416 = vadd.f32 %v415, %v264
  %v417 = vadd.f32 %v416, %v267
  %v418 = vadd.f32 %v417, %v270
  %v419 = vadd.f32 %v418, %v273
  %v420 = vadd.f32 %v419, %v276
  %v421 = vadd.f32 %v420, %v279
  %v422 = vadd.f32 %v421, %v282
  %v423 = vadd.f32 %v422, %v285
  %v424 = vadd.f32 %v423, %v288
  %v425 = vadd.f32 %v424, %v291
  %v426 = vadd.f32 %v425, %v294
  %v427 = vadd.f32 %v426, %v297
  %v428 = vadd.f32 %v427, %v300
  %v429 = vrot.slane %v428, 4
  %v430 = vadd.f32 %v428, %v429
  %v431 = vrot.slane %v430, 2
  %v432 = vadd.f32 %v430, %v431
  %v433 = vrot.slane %v432, 1
  %v434 = vadd.f32 %v432, %v433
  %v435 = vmul.f32 %v111, %v111
  %v436 = vmul.f32 %v114, %v114
  %v437 = vmul.f32 %v117, %v117
  %v438 = vmul.f32 %v120, %v120
  %v439 = vmul.f32 %v123, %v123
  %v440 = vmul.f32 %v126, %v126
  %v441 = vmul.f32 %v129, %v129
  %v442 = vmul.f32 %v132, %v132
  %v443 = vmul.f32 %v135, %v135
  %v444 = vmul.f32 %v138, %v138
  %v445 = vmul.f32 %v141, %v141
  %v446 = vmul.f32 %v144, %v144
  %v447 = vmul.f32 %v147, %v147
  %v448 = vmul.f32 %v150, %v150
  %v449 = vmul.f32 %v153, %v153
  %v450 = vmul.f32 %v156, %v156
  %v451 = vmul.f32 %v159, %v159
  %v452 = vmul.f32 %v162, %v162
  %v453 = vmul.f32 %v165, %v165
  %v454 = vmul.f32 %v168, %v168
  %v455 = vmul.f32 %v171, %v171
  %v456 = vmul.f32 %v174, %v174
  %v457 = vmul.f32 %v177, %v177
  %v458 = vmul.f32 %v180, %v180
  %v459 = vmul.f32 %v183, %v183
  %v460 = vmul.f32 %v186, %v186
  %v461 = vmul.f32 %v189, %v189
  %v462 = vmul.f32 %v192, %v192
  %v463 = vmul.f32 %v195, %v195
  %v464 = vmul.f32 %v198, %v198
  %v465 = vmul.f32 %v201, %v201
  %v466 = vmul.f32 %v204, %v204
  %v467 = vmul.f32 %v207, %v207
  %v468 = vmul.f32 %v210, %v210
  %v469 = vmul.f32 %v213, %v213
  %v470 = vmul.f32 %v216, %v216
  %v471 = vmul.f32 %v219, %v219
  %v472 = vmul.f32 %v222, %v222
  %v473 = vmul.f32 %v225, %v225
  %v474 = vmul.f32 %v228, %v228
  %v475 = vmul.f32 %v231, %v231
  %v476 = vmul.f32 %v234, %v234
  %v477 = vmul.f32 %v237, %v237
  %v478 = vmul.f32 %v240, %v240
  %v479 = vmul.f32 %v243, %v243
  %v480 = vmul.f32 %v246, %v246
  %v481 = vmul.f32 %v249, %v249
  %v482 = vmul.f32 %v252, %v252
  %v483 = vmul.f32 %v255, %v255
  %v484 = vmul.f32 %v258, %v258
  %v485 = vmul.f32 %v261, %v261
  %v486 = vmul.f32 %v264, %v264
  %v487 = vmul.f32 %v267, %v267
  %v488 = vmul.f32 %v270, %v270
  %v489 = vmul.f32 %v273, %v273
  %v490 = vmul.f32 %v276, %v276
  %v491 = vmul.f32 %v279, %v279
  %v492 = vmul.f32 %v282, %v282
  %v493 = vmul.f32 %v285, %v285
  %v494 = vmul.f32 %v288, %v288
  %v495 = vmul.f32 %v291, %v291
  %v496 = vmul.f32 %v294, %v294
  %v497 = vmul.f32 %v297, %v297
  %v498 = vmul.f32 %v300, %v300
  %v499 = vadd.f32 %v435, %v436
  %v500 = vadd.f32 %v499, %v437
  %v501 = vadd.f32 %v500, %v438
  %v502 = vadd.f32 %v501, %v439
  %v503 = vadd.f32 %v502, %v440
  %v504 = vadd.f32 %v503, %v441
  %v505 = vadd.f32 %v504, %v442
  %v506 = vadd.f32 %v505, %v443
  %v507 = vadd.f32 %v506, %v444
  %v508 = vadd.f32 %v507, %v445
  %v509 = vadd.f32 %v508, %v446
  %v510 = vadd.f32 %v509, %v447
  %v511 = vadd.f32 %v510, %v448
  %v512 = vadd.f32 %v511, %v449
  %v513 = vadd.f32 %v512, %v450
  %v514 = vadd.f32 %v513, %v451
  %v515 = vadd.f32 %v514, %v452
  %v516 = vadd.f32 %v515, %v453
  %v517 = vadd.f32 %v516, %v454
  %v518 = vadd.f32 %v517, %v455
  %v519 = vadd.f32 %v518, %v456
  %v520 = vadd.f32 %v519, %v457
  %v521 = vadd.f32 %v520, %v458
  %v522 = vadd.f32 %v521, %v459
  %v523 = vadd.f32 %v522, %v460
  %v524 = vadd.f32 %v523, %v461
  %v525 = vadd.f32 %v524, %v462
  %v526 = vadd.f32 %v525, %v463
  %v527 = vadd.f32 %v526, %v464
  %v528 = vadd.f32 %v527, %v465
  %v529 = vadd.f32 %v528, %v466
  %v530 = vadd.f32 %v529, %v467
  %v531 = vadd.f32 %v530, %v468
  %v532 = vadd.f32 %v531, %v469
  %v533 = vadd.f32 %v532, %v470
  %v534 = vadd.f32 %v533, %v471
  %v535 = vadd.f32 %v534, %v472
  %v536 = vadd.f32 %v535, %v473
  %v537 = vadd.f32 %v536, %v474
  %v538 = vadd.f32 %v537, %v475
  %v539 = vadd.f32 %v538, %v476
  %v540 = vadd.f32 %v539, %v477
  %v541 = vadd.f32 %v540, %v478
  %v542 = vadd.f32 %v541, %v479
  %v543 = vadd.f32 %v542, %v480
  %v544 = vadd.f32 %v543, %v481
  %v545 = vadd.f32 %v544, %v482
  %v546 = vadd.f32 %v545, %v483
  %v547 = vadd.f32 %v546, %v484
  %v548 = vadd.f32 %v547, %v485
  %v549 = vadd.f32 %v548, %v486
  %v550 = vadd.f32 %v549, %v487
  %v551 = vadd.f32 %v550, %v488
  %v552 = vadd.f32 %v551, %v489
  %v553 = vadd.f32 %v552, %v490
  %v554 = vadd.f32 %v553, %v491
  %v555 = vadd.f32 %v554, %v492
  %v556 = vadd.f32 %v555, %v493
  %v557 = vadd.f32 %v556, %v494
  %v558 = vadd.f32 %v557, %v495
  %v559 = vadd.f32 %v558, %v496
  %v560 = vadd.f32 %v559, %v497
  %v561 = vadd.f32 %v560, %v498
  %v562 = vrot.slane %v561, 4
  %v563 = vadd.f32 %v561, %v562
  %v564 = vrot.slane %v563, 2
  %v565 = vadd.f32 %v563, %v564
  %v566 = vrot.slane %v565, 1
  %v567 = vadd.f32 %v565, %v566
  %v568 = vlaneseq
  %v569 = vshrl.u32 %v568, 7
  %vm570 = vcmp.eq.s32.totalorder %v569, 0
  %vm571 = vcmp.eq.s32.totalorder %v569, 1
  %v572 = vsel %vm571, 1, 0
  %vm573 = vcmp.eq.s32.totalorder %v572, 1
  %v574 = vsel %vm573, %v567, 0.0
  %v575 = vsel %vm570, 1, 0
  %vm576 = vcmp.eq.s32.totalorder %v575, 1
  %v577 = vsel %vm576, %v434, %v574
  %578 = vst [vmem:[%s3] sm:$0xff] %v577
  // Predicated region
  $region10: #{resnext_bottleneck_forward.4} parent=0 // pred_check
    _
  $region11: #{resnext_bottleneck_forward.4} parent=0 // pred_check_branch
    %580 = sbr.rel (0) target = $region13
  $region12: #{resnext_bottleneck_forward.4} parent=0 // pred_region
    _
  $region13: #{resnext_bottleneck_forward.4} parent=0 // pred_fallthru
    _
  // Predicated region
  $region14: #{resnext_bottleneck_forward.4} parent=0 // pred_check
    _
  $region15: #{resnext_bottleneck_forward.4} parent=0 // pred_check_branch
    %582 = sbr.rel (0) target = $region17
  $region16: #{resnext_bottleneck_forward.4} parent=0 // pred_region
    _
  $region17: #{resnext_bottleneck_forward.4} parent=0 // pred_fallthru
    _
  // Predicated region
  $region18: #{resnext_bottleneck_forward.4} parent=0 // pred_check
    _
  $region19: #{resnext_bottleneck_forward.4} parent=0 // pred_check_branch
    %584 = sbr.rel (0) target = $region21
  $region20: #{resnext_bottleneck_forward.4} parent=0 // pred_region
    _
  $region21: #{resnext_bottleneck_forward.4} parent=0 // pred_fallthru
    _
  // Predicated region
  $region22: #{resnext_bottleneck_forward.4} parent=0 // pred_check
    _
  $region23: #{resnext_bottleneck_forward.4} parent=0 // pred_check_branch
    %586 = sbr.rel (0) target = $region25
  $region24: #{resnext_bottleneck_forward.4} parent=0 // pred_region
    _
  $region25: #{resnext_bottleneck_forward.4} parent=0 // pred_fallthru
    _

// kernel: resnext_bottleneck_forward.7
$region0: #{resnext_bottleneck_forward.7}
  #allocation0 [shape = 'u32[]', space=smem, size = 0x4, offset = 0x4, fixed_abs, tag = 'smem constant byte address 0x4 - core index']
  #allocation1 [shape = 'u32[72,128]{1,0:T(1,128)}', space=vmem, size = 0x9000, scoped, tag = 'internal scratch']
  %s0 = inlined_call_operand.vmem [shape: f32[512,128], index: 0, kind: input, shape index: {}]
  %s1 = inlined_call_operand.vmem [shape: f32[1,128], index: 1, kind: input, shape index: {}]
  %s2 = inlined_call_operand.vmem [shape: f32[1,128], index: 2, kind: input, shape index: {}]
  %s3 = inlined_call_operand.vmem [shape: f32[512,128], index: 3, kind: input, shape index: {}]
  %s4 = inlined_call_operand.vmem [shape: f32[1,128], index: 4, kind: input, shape index: {}]
  %s5 = inlined_call_operand.vmem [shape: f32[1,128], index: 5, kind: input, shape index: {}]
  %s6 = inlined_call_operand.vmem [shape: f32[512,128], index: 6, kind: output, shape index: {}]
  %s7 = sld [smem:[#allocation0]]
  $region34: #{resnext_bottleneck_forward.7} parent=0
    _
  %s9 = ssub.s32 1, %s7
  %s10 = scalar_select 0, %s9, %s7
  // Predicated region
  $region2: #{resnext_bottleneck_forward.7} parent=0 // pred_check
    _
  $region3: #{resnext_bottleneck_forward.7} parent=0 // pred_check_branch
    %12 = sbr.rel (0) target = $region5
  $region4: #{resnext_bottleneck_forward.7} parent=0 // pred_region
    _
  $region5: #{resnext_bottleneck_forward.7} parent=0 // pred_fallthru
    _
  // Predicated region
  $region6: #{resnext_bottleneck_forward.7} parent=0 // pred_check
    _
  $region7: #{resnext_bottleneck_forward.7} parent=0 // pred_check_branch
    %14 = sbr.rel (0) target = $region9
  $region8: #{resnext_bottleneck_forward.7} parent=0 // pred_region
    _
  $region9: #{resnext_bottleneck_forward.7} parent=0 // pred_fallthru
    _
  // Predicated region
  $region10: #{resnext_bottleneck_forward.7} parent=0 // pred_check
    _
  $region11: #{resnext_bottleneck_forward.7} parent=0 // pred_check_branch
    %16 = sbr.rel (0) target = $region13
  $region12: #{resnext_bottleneck_forward.7} parent=0 // pred_region
    _
  $region13: #{resnext_bottleneck_forward.7} parent=0 // pred_fallthru
    _
  // Predicated region
  $region14: #{resnext_bottleneck_forward.7} parent=0 // pred_check
    _
  $region15: #{resnext_bottleneck_forward.7} parent=0 // pred_check_branch
    %18 = sbr.rel (0) target = $region17
  $region16: #{resnext_bottleneck_forward.7} parent=0 // pred_region
    _
  $region17: #{resnext_bottleneck_forward.7} parent=0 // pred_fallthru
    _
  // Predicated region
  $region18: #{resnext_bottleneck_forward.7} parent=0 // pred_check
    _
  $region19: #{resnext_bottleneck_forward.7} parent=0 // pred_check_branch
    %20 = sbr.rel (0) target = $region21
  $region20: #{resnext_bottleneck_forward.7} parent=0 // pred_region
    _
  $region21: #{resnext_bottleneck_forward.7} parent=0 // pred_fallthru
    _
  // Predicated region
  $region22: #{resnext_bottleneck_forward.7} parent=0 // pred_check
    _
  $region23: #{resnext_bottleneck_forward.7} parent=0 // pred_check_branch
    %22 = sbr.rel (0) target = $region25
  $region24: #{resnext_bottleneck_forward.7} parent=0 // pred_region
    _
  $region25: #{resnext_bottleneck_forward.7} parent=0 // pred_fallthru
    _
  %v23 = vld [vmem:[%s0] sm:$0xff]
  %v24 = vld [vmem:[%s0 + $0x8] sm:$0xff]
  %v25 = vld [vmem:[%s0 + $0x10] sm:$0xff]
  %v26 = vld [vmem:[%s0 + $0x18] sm:$0xff]
  %v27 = vld [vmem:[%s0 + $0x20] sm:$0xff]
  %v28 = vld [vmem:[%s0 + $0x28] sm:$0xff]
  %v29 = vld [vmem:[%s0 + $0x30] sm:$0xff]
  %v30 = vld [vmem:[%s0 + $0x38] sm:$0xff]
  %v31 = vld [vmem:[%s0 + $0x40] sm:$0xff]
  %v32 = vld [vmem:[%s0 + $0x48] sm:$0xff]
  %v33 = vld [vmem:[%s0 + $0x50] sm:$0xff]
  %v34 = vld [vmem:[%s0 + $0x58] sm:$0xff]
  %v35 = vld [vmem:[%s0 + $0x60] sm:$0xff]
  %v36 = vld [vmem:[%s0 + $0x68] sm:$0xff]
  %v37 = vld [vmem:[%s0 + $0x70] sm:$0xff]
  %v38 = vld [vmem:[%s0 + $0x78] sm:$0xff]
  %v39 = vld [vmem:[%s0 + $0x80] sm:$0xff]
  %v40 = vld [vmem:[%s0 + $0x88] sm:$0xff]
  %v41 = vld [vmem:[%s0 + $0x90] sm:$0xff]
  %v42 = vld [vmem:[%s0 + $0x98] sm:$0xff]
  %v43 = vld [vmem:[%s0 + $0xa0] sm:$0xff]
  %v44 = vld [vmem:[%s0 + $0xa8] sm:$0xff]
  %v45 = vld [vmem:[%s0 + $0xb0] sm:$0xff]
  %v46 = vld [vmem:[%s0 + $0xb8] sm:$0xff]
  %v47 = vld [vmem:[%s0 + $0xc0] sm:$0xff]
  %v48 = vld [vmem:[%s0 + $0xc8] sm:$0xff]
  %v49 = vld [vmem:[%s0 + $0xd0] sm:$0xff]
  %v50 = vld [vmem:[%s0 + $0xd8] sm:$0xff]
  %v51 = vld [vmem:[%s0 + $0xe0] sm:$0xff]
  %v52 = vld [vmem:[%s0 + $0xe8] sm:$0xff]
  %v53 = vld [vmem:[%s0 + $0xf0] sm:$0xff]
  %v54 = vld [vmem:[%s0 + $0xf8] sm:$0xff]
  %v55 = vld [vmem:[%s0 + $0x100] sm:$0xff]
  %v56 = vld [vmem:[%s0 + $0x108] sm:$0xff]
  %v57 = vld [vmem:[%s0 + $0x110] sm:$0xff]
  %v58 = vld [vmem:[%s0 + $0x118] sm:$0xff]
  %v59 = vld [vmem:[%s0 + $0x120] sm:$0xff]
  %v60 = vld [vmem:[%s0 + $0x128] sm:$0xff]
  %v61 = vld [vmem:[%s0 + $0x130] sm:$0xff]
  %v62 = vld [vmem:[%s0 + $0x138] sm:$0xff]
  %v63 = vld [vmem:[%s0 + $0x140] sm:$0xff]
  %v64 = vld [vmem:[%s0 + $0x148] sm:$0xff]
  %v65 = vld [vmem:[%s0 + $0x150] sm:$0xff]
  %v66 = vld [vmem:[%s0 + $0x158] sm:$0xff]
  %v67 = vld [vmem:[%s0 + $0x160] sm:$0xff]
  %v68 = vld [vmem:[%s0 + $0x168] sm:$0xff]
  %v69 = vld [vmem:[%s0 + $0x170] sm:$0xff]
  %v70 = vld [vmem:[%s0 + $0x178] sm:$0xff]
  %v71 = vld [vmem:[%s0 + $0x180] sm:$0xff]
  %v72 = vld [vmem:[%s0 + $0x188] sm:$0xff]
  %v73 = vld [vmem:[%s0 + $0x190] sm:$0xff]
  %v74 = vld [vmem:[%s0 + $0x198] sm:$0xff]
  %v75 = vld [vmem:[%s0 + $0x1a0] sm:$0xff]
  %v76 = vld [vmem:[%s0 + $0x1a8] sm:$0xff]
  %v77 = vld [vmem:[%s0 + $0x1b0] sm:$0xff]
  %v78 = vld [vmem:[%s0 + $0x1b8] sm:$0xff]
  %v79 = vld [vmem:[%s0 + $0x1c0] sm:$0xff]
  %v80 = vld [vmem:[%s0 + $0x1c8] sm:$0xff]
  %v81 = vld [vmem:[%s0 + $0x1d0] sm:$0xff]
  %v82 = vld [vmem:[%s0 + $0x1d8] sm:$0xff]
  %v83 = vld [vmem:[%s0 + $0x1e0] sm:$0xff]
  %v84 = vld [vmem:[%s0 + $0x1e8] sm:$0xff]
  %v85 = vld [vmem:[%s0 + $0x1f0] sm:$0xff]
  %v86 = vld [vmem:[%s0 + $0x1f8] sm:$0xff]
  %v87 = vld [vmem:[%s1] sm:$0x1]
  %v89 = vperm.slane %v87, 0
  %v91 = vmul.f32 %v23, %v89
  %v92 = vmul.f32 %v24, %v89
  %v93 = vmul.f32 %v25, %v89
  %v94 = vmul.f32 %v26, %v89
  %v95 = vmul.f32 %v27, %v89
  %v96 = vmul.f32 %v28, %v89
  %v97 = vmul.f32 %v29, %v89
  %v98 = vmul.f32 %v30, %v89
  %v99 = vmul.f32 %v31, %v89
  %v100 = vmul.f32 %v32, %v89
  %v101 = vmul.f32 %v33, %v89
  %v102 = vmul.f32 %v34, %v89
  %v103 = vmul.f32 %v35, %v89
  %v104 = vmul.f32 %v36, %v89
  %v105 = vmul.f32 %v37, %v89
  %v106 = vmul.f32 %v38, %v89
  %v107 = vmul.f32 %v39, %v89
  %v108 = vmul.f32 %v40, %v89
  %v109 = vmul.f32 %v41, %v89
  %v110 = vmul.f32 %v42, %v89
  %v111 = vmul.f32 %v43, %v89
  %v112 = vmul.f32 %v44, %v89
  %v113 = vmul.f32 %v45, %v89
  %v114 = vmul.f32 %v46, %v89
  %v115 = vmul.f32 %v47, %v89
  %v116 = vmul.f32 %v48, %v89
  %v117 = vmul.f32 %v49, %v89
  %v118 = vmul.f32 %v50, %v89
  %v119 = vmul.f32 %v51, %v89
  %v120 = vmul.f32 %v52, %v89
  %v121 = vmul.f32 %v53, %v89
  %v122 = vmul.f32 %v54, %v89
  %v123 = vmul.f32 %v55, %v89
  %v124 = vmul.f32 %v56, %v89
  %v125 = vmul.f32 %v57, %v89
  %v126 = vmul.f32 %v58, %v89
  %v127 = vmul.f32 %v59, %v89
  %v128 = vmul.f32 %v60, %v89
  %v129 = vmul.f32 %v61, %v89
  %v130 = vmul.f32 %v62, %v89
  %v131 = vmul.f32 %v63, %v89
  %v132 = vmul.f32 %v64, %v89
  %v133 = vmul.f32 %v65, %v89
  %v134 = vmul.f32 %v66, %v89
  %v135 = vmul.f32 %v67, %v89
  %v136 = vmul.f32 %v68, %v89
  %v137 = vmul.f32 %v69, %v89
  %v138 = vmul.f32 %v70, %v89
  %v139 = vmul.f32 %v71, %v89
  %v140 = vmul.f32 %v72, %v89
  %v141 = vmul.f32 %v73, %v89
  %v142 = vmul.f32 %v74, %v89
  %v143 = vmul.f32 %v75, %v89
  %v144 = vmul.f32 %v76, %v89
  %v145 = vmul.f32 %v77, %v89
  %v146 = vmul.f32 %v78, %v89
  %v147 = vmul.f32 %v79, %v89
  %v148 = vmul.f32 %v80, %v89
  %v149 = vmul.f32 %v81, %v89
  %v150 = vmul.f32 %v82, %v89
  %v151 = vmul.f32 %v83, %v89
  %v152 = vmul.f32 %v84, %v89
  %v153 = vmul.f32 %v85, %v89
  %v154 = vmul.f32 %v86, %v89
  %v155 = vld [vmem:[%s2] sm:$0x1]
  %v157 = vperm.slane %v155, 0
  %v159 = vadd.f32 %v91, %v157
  %v160 = vadd.f32 %v92, %v157
  %v161 = vadd.f32 %v93, %v157
  %v162 = vadd.f32 %v94, %v157
  %v163 = vadd.f32 %v95, %v157
  %v164 = vadd.f32 %v96, %v157
  %v165 = vadd.f32 %v97, %v157
  %v166 = vadd.f32 %v98, %v157
  %v167 = vadd.f32 %v99, %v157
  %v168 = vadd.f32 %v100, %v157
  %v169 = vadd.f32 %v101, %v157
  %v170 = vadd.f32 %v102, %v157
  %v171 = vadd.f32 %v103, %v157
  %v172 = vadd.f32 %v104, %v157
  %v173 = vadd.f32 %v105, %v157
  %v174 = vadd.f32 %v106, %v157
  %v175 = vadd.f32 %v107, %v157
  %v176 = vadd.f32 %v108, %v157
  %v177 = vadd.f32 %v109, %v157
  %v178 = vadd.f32 %v110, %v157
  %v179 = vadd.f32 %v111, %v157
  %v180 = vadd.f32 %v112, %v157
  %v181 = vadd.f32 %v113, %v157
  %v182 = vadd.f32 %v114, %v157
  %v183 = vadd.f32 %v115, %v157
  %v184 = vadd.f32 %v116, %v157
  %v185 = vadd.f32 %v117, %v157
  %v186 = vadd.f32 %v118, %v157
  %v187 = vadd.f32 %v119, %v157
  %v188 = vadd.f32 %v120, %v157
  %v189 = vadd.f32 %v121, %v157
  %v190 = vadd.f32 %v122, %v157
  %v191 = vadd.f32 %v123, %v157
  %v192 = vadd.f32 %v124, %v157
  %v193 = vadd.f32 %v125, %v157
  %v194 = vadd.f32 %v126, %v157
  %v195 = vadd.f32 %v127, %v157
  %v196 = vadd.f32 %v128, %v157
  %v197 = vadd.f32 %v129, %v157
  %v198 = vadd.f32 %v130, %v157
  %v199 = vadd.f32 %v131, %v157
  %v200 = vadd.f32 %v132, %v157
  %v201 = vadd.f32 %v133, %v157
  %v202 = vadd.f32 %v134, %v157
  %v203 = vadd.f32 %v135, %v157
  %v204 = vadd.f32 %v136, %v157
  %v205 = vadd.f32 %v137, %v157
  %v206 = vadd.f32 %v138, %v157
  %v207 = vadd.f32 %v139, %v157
  %v208 = vadd.f32 %v140, %v157
  %v209 = vadd.f32 %v141, %v157
  %v210 = vadd.f32 %v142, %v157
  %v211 = vadd.f32 %v143, %v157
  %v212 = vadd.f32 %v144, %v157
  %v213 = vadd.f32 %v145, %v157
  %v214 = vadd.f32 %v146, %v157
  %v215 = vadd.f32 %v147, %v157
  %v216 = vadd.f32 %v148, %v157
  %v217 = vadd.f32 %v149, %v157
  %v218 = vadd.f32 %v150, %v157
  %v219 = vadd.f32 %v151, %v157
  %v220 = vadd.f32 %v152, %v157
  %v221 = vadd.f32 %v153, %v157
  %v222 = vadd.f32 %v154, %v157
  %v223 = vld [vmem:[%s3] sm:$0xff]
  %v224 = vld [vmem:[%s3 + $0x8] sm:$0xff]
  %v225 = vld [vmem:[%s3 + $0x10] sm:$0xff]
  %v226 = vld [vmem:[%s3 + $0x18] sm:$0xff]
  %v227 = vld [vmem:[%s3 + $0x20] sm:$0xff]
  %v228 = vld [vmem:[%s3 + $0x28] sm:$0xff]
  %v229 = vld [vmem:[%s3 + $0x30] sm:$0xff]
  %v230 = vld [vmem:[%s3 + $0x38] sm:$0xff]
  %v231 = vld [vmem:[%s3 + $0x40] sm:$0xff]
  %v232 = vld [vmem:[%s3 + $0x48] sm:$0xff]
  %v233 = vld [vmem:[%s3 + $0x50] sm:$0xff]
  %v234 = vld [vmem:[%s3 + $0x58] sm:$0xff]
  %v235 = vld [vmem:[%s3 + $0x60] sm:$0xff]
  %v236 = vld [vmem:[%s3 + $0x68] sm:$0xff]
  %v237 = vld [vmem:[%s3 + $0x70] sm:$0xff]
  %v238 = vld [vmem:[%s3 + $0x78] sm:$0xff]
  %v239 = vld [vmem:[%s3 + $0x80] sm:$0xff]
  %v240 = vld [vmem:[%s3 + $0x88] sm:$0xff]
  %v241 = vld [vmem:[%s3 + $0x90] sm:$0xff]
  %v242 = vld [vmem:[%s3 + $0x98] sm:$0xff]
  %v243 = vld [vmem:[%s3 + $0xa0] sm:$0xff]
  %v244 = vld [vmem:[%s3 + $0xa8] sm:$0xff]
  %v245 = vld [vmem:[%s3 + $0xb0] sm:$0xff]
  %v246 = vld [vmem:[%s3 + $0xb8] sm:$0xff]
  %v247 = vld [vmem:[%s3 + $0xc0] sm:$0xff]
  %v248 = vld [vmem:[%s3 + $0xc8] sm:$0xff]
  %v249 = vld [vmem:[%s3 + $0xd0] sm:$0xff]
  %v250 = vld [vmem:[%s3 + $0xd8] sm:$0xff]
  %v251 = vld [vmem:[%s3 + $0xe0] sm:$0xff]
  %v252 = vld [vmem:[%s3 + $0xe8] sm:$0xff]
  %v253 = vld [vmem:[%s3 + $0xf0] sm:$0xff]
  %v254 = vld [vmem:[%s3 + $0xf8] sm:$0xff]
  %v255 = vld [vmem:[%s3 + $0x100] sm:$0xff]
  %v256 = vld [vmem:[%s3 + $0x108] sm:$0xff]
  %v257 = vld [vmem:[%s3 + $0x110] sm:$0xff]
  %v258 = vld [vmem:[%s3 + $0x118] sm:$0xff]
  %v259 = vld [vmem:[%s3 + $0x120] sm:$0xff]
  %v260 = vld [vmem:[%s3 + $0x128] sm:$0xff]
  %v261 = vld [vmem:[%s3 + $0x130] sm:$0xff]
  %v262 = vld [vmem:[%s3 + $0x138] sm:$0xff]
  %v263 = vld [vmem:[%s3 + $0x140] sm:$0xff]
  %v264 = vld [vmem:[%s3 + $0x148] sm:$0xff]
  %v265 = vld [vmem:[%s3 + $0x150] sm:$0xff]
  %v266 = vld [vmem:[%s3 + $0x158] sm:$0xff]
  %v267 = vld [vmem:[%s3 + $0x160] sm:$0xff]
  %v268 = vld [vmem:[%s3 + $0x168] sm:$0xff]
  %v269 = vld [vmem:[%s3 + $0x170] sm:$0xff]
  %v270 = vld [vmem:[%s3 + $0x178] sm:$0xff]
  %v271 = vld [vmem:[%s3 + $0x180] sm:$0xff]
  %v272 = vld [vmem:[%s3 + $0x188] sm:$0xff]
  %v273 = vld [vmem:[%s3 + $0x190] sm:$0xff]
  %v274 = vld [vmem:[%s3 + $0x198] sm:$0xff]
  %v275 = vld [vmem:[%s3 + $0x1a0] sm:$0xff]
  %v276 = vld [vmem:[%s3 + $0x1a8] sm:$0xff]
  %v277 = vld [vmem:[%s3 + $0x1b0] sm:$0xff]
  %v278 = vld [vmem:[%s3 + $0x1b8] sm:$0xff]
  %v279 = vld [vmem:[%s3 + $0x1c0] sm:$0xff]
  %v280 = vld [vmem:[%s3 + $0x1c8] sm:$0xff]
  %v281 = vld [vmem:[%s3 + $0x1d0] sm:$0xff]
  %v282 = vld [vmem:[%s3 + $0x1d8] sm:$0xff]
  %v283 = vld [vmem:[%s3 + $0x1e0] sm:$0xff]
  %v284 = vld [vmem:[%s3 + $0x1e8] sm:$0xff]
  %v285 = vld [vmem:[%s3 + $0x1f0] sm:$0xff]
  %v286 = vld [vmem:[%s3 + $0x1f8] sm:$0xff]
  %v287 = vld [vmem:[%s4] sm:$0x1]
  %v289 = vperm.slane %v287, 0
  %v291 = vmul.f32 %v223, %v289
  %v292 = vmul.f32 %v224, %v289
  %v293 = vmul.f32 %v225, %v289
  %v294 = vmul.f32 %v226, %v289
  %v295 = vmul.f32 %v227, %v289
  %v296 = vmul.f32 %v228, %v289
  %v297 = vmul.f32 %v229, %v289
  %v298 = vmul.f32 %v230, %v289
  %v299 = vmul.f32 %v231, %v289
  %v300 = vmul.f32 %v232, %v289
  %v301 = vmul.f32 %v233, %v289
  %v302 = vmul.f32 %v234, %v289
  %v303 = vmul.f32 %v235, %v289
  %v304 = vmul.f32 %v236, %v289
  %v305 = vmul.f32 %v237, %v289
  %v306 = vmul.f32 %v238, %v289
  %v307 = vmul.f32 %v239, %v289
  %v308 = vmul.f32 %v240, %v289
  %v309 = vmul.f32 %v241, %v289
  %v310 = vmul.f32 %v242, %v289
  %v311 = vmul.f32 %v243, %v289
  %v312 = vmul.f32 %v244, %v289
  %v313 = vmul.f32 %v245, %v289
  %v314 = vmul.f32 %v246, %v289
  %v315 = vmul.f32 %v247, %v289
  %v316 = vmul.f32 %v248, %v289
  %v317 = vmul.f32 %v249, %v289
  %v318 = vmul.f32 %v250, %v289
  %v319 = vmul.f32 %v251, %v289
  %v320 = vmul.f32 %v252, %v289
  %v321 = vmul.f32 %v253, %v289
  %v322 = vmul.f32 %v254, %v289
  %v323 = vmul.f32 %v255, %v289
  %v324 = vmul.f32 %v256, %v289
  %v325 = vmul.f32 %v257, %v289
  %v326 = vmul.f32 %v258, %v289
  %v327 = vmul.f32 %v259, %v289
  %v328 = vmul.f32 %v260, %v289
  %v329 = vmul.f32 %v261, %v289
  %v330 = vmul.f32 %v262, %v289
  %v331 = vmul.f32 %v263, %v289
  %v332 = vmul.f32 %v264, %v289
  %v333 = vmul.f32 %v265, %v289
  %v334 = vmul.f32 %v266, %v289
  %v335 = vmul.f32 %v267, %v289
  %v336 = vmul.f32 %v268, %v289
  %v337 = vmul.f32 %v269, %v289
  %v338 = vmul.f32 %v270, %v289
  %v339 = vmul.f32 %v271, %v289
  %v340 = vmul.f32 %v272, %v289
  %v341 = vmul.f32 %v273, %v289
  %v342 = vmul.f32 %v274, %v289
  %v343 = vmul.f32 %v275, %v289
  %v344 = vmul.f32 %v276, %v289
  %v345 = vmul.f32 %v277, %v289
  %v346 = vmul.f32 %v278, %v289
  %v347 = vmul.f32 %v279, %v289
  %v348 = vmul.f32 %v280, %v289
  %v349 = vmul.f32 %v281, %v289
  %v350 = vmul.f32 %v282, %v289
  %v351 = vmul.f32 %v283, %v289
  %v352 = vmul.f32 %v284, %v289
  %v353 = vmul.f32 %v285, %v289
  %v354 = vmul.f32 %v286, %v289
  %v355 = vld [vmem:[%s5] sm:$0x1]
  %v357 = vperm.slane %v355, 0
  %v359 = vadd.f32 %v291, %v357
  %v360 = vadd.f32 %v292, %v357
  %v361 = vadd.f32 %v293, %v357
  %v362 = vadd.f32 %v294, %v357
  %v363 = vadd.f32 %v295, %v357
  %v364 = vadd.f32 %v296, %v357
  %v365 = vadd.f32 %v297, %v357
  %v366 = vadd.f32 %v298, %v357
  %v367 = vadd.f32 %v299, %v357
  %v368 = vadd.f32 %v300, %v357
  %v369 = vadd.f32 %v301, %v357
  %v370 = vadd.f32 %v302, %v357
  %v371 = vadd.f32 %v303, %v357
  %v372 = vadd.f32 %v304, %v357
  %v373 = vadd.f32 %v305, %v357
  %v374 = vadd.f32 %v306, %v357
  %v375 = vadd.f32 %v307, %v357
  %v376 = vadd.f32 %v308, %v357
  %v377 = vadd.f32 %v309, %v357
  %v378 = vadd.f32 %v310, %v357
  %v379 = vadd.f32 %v311, %v357
  %v380 = vadd.f32 %v312, %v357
  %v381 = vadd.f32 %v313, %v357
  %v382 = vadd.f32 %v314, %v357
  %v383 = vadd.f32 %v315, %v357
  %v384 = vadd.f32 %v316, %v357
  %v385 = vadd.f32 %v317, %v357
  %v386 = vadd.f32 %v318, %v357
  %v387 = vadd.f32 %v319, %v357
  %v388 = vadd.f32 %v320, %v357
  %v389 = vadd.f32 %v321, %v357
  %v390 = vadd.f32 %v322, %v357
  %v391 = vadd.f32 %v323, %v357
  %v392 = vadd.f32 %v324, %v357
  %v393 = vadd.f32 %v325, %v357
  %v394 = vadd.f32 %v326, %v357
  %v395 = vadd.f32 %v327, %v357
  %v396 = vadd.f32 %v328, %v357
  %v397 = vadd.f32 %v329, %v357
  %v398 = vadd.f32 %v330, %v357
  %v399 = vadd.f32 %v331, %v357
  %v400 = vadd.f32 %v332, %v357
  %v401 = vadd.f32 %v333, %v357
  %v402 = vadd.f32 %v334, %v357
  %v403 = vadd.f32 %v335, %v357
  %v404 = vadd.f32 %v336, %v357
  %v405 = vadd.f32 %v337, %v357
  %v406 = vadd.f32 %v338, %v357
  %v407 = vadd.f32 %v339, %v357
  %v408 = vadd.f32 %v340, %v357
  %v409 = vadd.f32 %v341, %v357
  %v410 = vadd.f32 %v342, %v357
  %v411 = vadd.f32 %v343, %v357
  %v412 = vadd.f32 %v344, %v357
  %v413 = vadd.f32 %v345, %v357
  %v414 = vadd.f32 %v346, %v357
  %v415 = vadd.f32 %v347, %v357
  %v416 = vadd.f32 %v348, %v357
  %v417 = vadd.f32 %v349, %v357
  %v418 = vadd.f32 %v350, %v357
  %v419 = vadd.f32 %v351, %v357
  %v420 = vadd.f32 %v352, %v357
  %v421 = vadd.f32 %v353, %v357
  %v422 = vadd.f32 %v354, %v357
  %v423 = vadd.f32 %v159, %v359
  %v424 = vadd.f32 %v160, %v360
  %v425 = vadd.f32 %v161, %v361
  %v426 = vadd.f32 %v162, %v362
  %v427 = vadd.f32 %v163, %v363
  %v428 = vadd.f32 %v164, %v364
  %v429 = vadd.f32 %v165, %v365
  %v430 = vadd.f32 %v166, %v366
  %v431 = vadd.f32 %v167, %v367
  %v432 = vadd.f32 %v168, %v368
  %v433 = vadd.f32 %v169, %v369
  %v434 = vadd.f32 %v170, %v370
  %v435 = vadd.f32 %v171, %v371
  %v436 = vadd.f32 %v172, %v372
  %v437 = vadd.f32 %v173, %v373
  %v438 = vadd.f32 %v174, %v374
  %v439 = vadd.f32 %v175, %v375
  %v440 = vadd.f32 %v176, %v376
  %v441 = vadd.f32 %v177, %v377
  %v442 = vadd.f32 %v178, %v378
  %v443 = vadd.f32 %v179, %v379
  %v444 = vadd.f32 %v180, %v380
  %v445 = vadd.f32 %v181, %v381
  %v446 = vadd.f32 %v182, %v382
  %v447 = vadd.f32 %v183, %v383
  %v448 = vadd.f32 %v184, %v384
  %v449 = vadd.f32 %v185, %v385
  %v450 = vadd.f32 %v186, %v386
  %v451 = vadd.f32 %v187, %v387
  %v452 = vadd.f32 %v188, %v388
  %v453 = vadd.f32 %v189, %v389
  %v454 = vadd.f32 %v190, %v390
  %v455 = vadd.f32 %v191, %v391
  %v456 = vadd.f32 %v192, %v392
  %v457 = vadd.f32 %v193, %v393
  %v458 = vadd.f32 %v194, %v394
  %v459 = vadd.f32 %v195, %v395
  %v460 = vadd.f32 %v196, %v396
  %v461 = vadd.f32 %v197, %v397
  %v462 = vadd.f32 %v198, %v398
  %v463 = vadd.f32 %v199, %v399
  %v464 = vadd.f32 %v200, %v400
  %v465 = vadd.f32 %v201, %v401
  %v466 = vadd.f32 %v202, %v402
  %v467 = vadd.f32 %v203, %v403
  %v468 = vadd.f32 %v204, %v404
  %v469 = vadd.f32 %v205, %v405
  %v470 = vadd.f32 %v206, %v406
  %v471 = vadd.f32 %v207, %v407
  %v472 = vadd.f32 %v208, %v408
  %v473 = vadd.f32 %v209, %v409
  %v474 = vadd.f32 %v210, %v410
  %v475 = vadd.f32 %v211, %v411
  %v476 = vadd.f32 %v212, %v412
  %v477 = vadd.f32 %v213, %v413
  %v478 = vadd.f32 %v214, %v414
  %v479 = vadd.f32 %v215, %v415
  %v480 = vadd.f32 %v216, %v416
  %v481 = vadd.f32 %v217, %v417
  %v482 = vadd.f32 %v218, %v418
  %v483 = vadd.f32 %v219, %v419
  %v484 = vadd.f32 %v220, %v420
  %v485 = vadd.f32 %v221, %v421
  %v486 = vadd.f32 %v222, %v422
  %v487 = vmax.f32 %v423, 0.0
  %v488 = vmax.f32 %v424, 0.0
  %v489 = vmax.f32 %v425, 0.0
  %v490 = vmax.f32 %v426, 0.0
  %v491 = vmax.f32 %v427, 0.0
  %v492 = vmax.f32 %v428, 0.0
  %v493 = vmax.f32 %v429, 0.0
  %v494 = vmax.f32 %v430, 0.0
  %v495 = vmax.f32 %v431, 0.0
  %v496 = vmax.f32 %v432, 0.0
  %v497 = vmax.f32 %v433, 0.0
  %v498 = vmax.f32 %v434, 0.0
  %v499 = vmax.f32 %v435, 0.0
  %v500 = vmax.f32 %v436, 0.0
  %v501 = vmax.f32 %v437, 0.0
  %v502 = vmax.f32 %v438, 0.0
  %v503 = vmax.f32 %v439, 0.0
  %v504 = vmax.f32 %v440, 0.0
  %v505 = vmax.f32 %v441, 0.0
  %v506 = vmax.f32 %v442, 0.0
  %v507 = vmax.f32 %v443, 0.0
  %v508 = vmax.f32 %v444, 0.0
  %v509 = vmax.f32 %v445, 0.0
  %v510 = vmax.f32 %v446, 0.0
  %v511 = vmax.f32 %v447, 0.0
  %v512 = vmax.f32 %v448, 0.0
  %v513 = vmax.f32 %v449, 0.0
  %v514 = vmax.f32 %v450, 0.0
  %v515 = vmax.f32 %v451, 0.0
  %v516 = vmax.f32 %v452, 0.0
  %v517 = vmax.f32 %v453, 0.0
  %v518 = vmax.f32 %v454, 0.0
  %v519 = vmax.f32 %v455, 0.0
  %v520 = vmax.f32 %v456, 0.0
  %v521 = vmax.f32 %v457, 0.0
  %v522 = vmax.f32 %v458, 0.0
  %v523 = vmax.f32 %v459, 0.0
  %v524 = vmax.f32 %v460, 0.0
  %v525 = vmax.f32 %v461, 0.0
  %v526 = vmax.f32 %v462, 0.0
  %v527 = vmax.f32 %v463, 0.0
  %v528 = vmax.f32 %v464, 0.0
  %v529 = vmax.f32 %v465, 0.0
  %v530 = vmax.f32 %v466, 0.0
  %v531 = vmax.f32 %v467, 0.0
  %v532 = vmax.f32 %v468, 0.0
  %v533 = vmax.f32 %v469, 0.0
  %v534 = vmax.f32 %v470, 0.0
  %v535 = vmax.f32 %v471, 0.0
  %v536 = vmax.f32 %v472, 0.0
  %v537 = vmax.f32 %v473, 0.0
  %v538 = vmax.f32 %v474, 0.0
  %v539 = vmax.f32 %v475, 0.0
  %v540 = vmax.f32 %v476, 0.0
  %v541 = vmax.f32 %v477, 0.0
  %v542 = vmax.f32 %v478, 0.0
  %v543 = vmax.f32 %v479, 0.0
  %v544 = vmax.f32 %v480, 0.0
  %v545 = vmax.f32 %v481, 0.0
  %v546 = vmax.f32 %v482, 0.0
  %v547 = vmax.f32 %v483, 0.0
  %v548 = vmax.f32 %v484, 0.0
  %v549 = vmax.f32 %v485, 0.0
  %v550 = vmax.f32 %v486, 0.0
  %551 = vst [vmem:[%s6] sm:$0xff] %v487
  %552 = vst [vmem:[%s6 + $0x8] sm:$0xff] %v488
  %553 = vst [vmem:[%s6 + $0x10] sm:$0xff] %v489
  %554 = vst [vmem:[%s6 + $0x18] sm:$0xff] %v490
  %555 = vst [vmem:[%s6 + $0x20] sm:$0xff] %v491
  %556 = vst [vmem:[%s6 + $0x28] sm:$0xff] %v492
  %557 = vst [vmem:[%s6 + $0x30] sm:$0xff] %v493
  %558 = vst [vmem:[%s6 + $0x38] sm:$0xff] %v494
  %559 = vst [vmem:[%s6 + $0x40] sm:$0xff] %v495
  %560 = vst [vmem:[%s6 + $0x48] sm:$0xff] %v496
  %561 = vst [vmem:[%s6 + $0x50] sm:$0xff] %v497
  %562 = vst [vmem:[%s6 + $0x58] sm:$0xff] %v498
  %563 = vst [vmem:[%s6 + $0x60] sm:$0xff] %v499
  %564 = vst [vmem:[%s6 + $0x68] sm:$0xff] %v500
  %565 = vst [vmem:[%s6 + $0x70] sm:$0xff] %v501
  %566 = vst [vmem:[%s6 + $0x78] sm:$0xff] %v502
  %567 = vst [vmem:[%s6 + $0x80] sm:$0xff] %v503
  %568 = vst [vmem:[%s6 + $0x88] sm:$0xff] %v504
  %569 = vst [vmem:[%s6 + $0x90] sm:$0xff] %v505
  %570 = vst [vmem:[%s6 + $0x98] sm:$0xff] %v506
  %571 = vst [vmem:[%s6 + $0xa0] sm:$0xff] %v507
  %572 = vst [vmem:[%s6 + $0xa8] sm:$0xff] %v508
  %573 = vst [vmem:[%s6 + $0xb0] sm:$0xff] %v509
  %574 = vst [vmem:[%s6 + $0xb8] sm:$0xff] %v510
  %575 = vst [vmem:[%s6 + $0xc0] sm:$0xff] %v511
  %576 = vst [vmem:[%s6 + $0xc8] sm:$0xff] %v512
  %577 = vst [vmem:[%s6 + $0xd0] sm:$0xff] %v513
  %578 = vst [vmem:[%s6 + $0xd8] sm:$0xff] %v514
  %579 = vst [vmem:[%s6 + $0xe0] sm:$0xff] %v515
  %580 = vst [vmem:[%s6 + $0xe8] sm:$0xff] %v516
  %581 = vst [vmem:[%s6 + $0xf0] sm:$0xff] %v517
  %582 = vst [vmem:[%s6 + $0xf8] sm:$0xff] %v518
  %583 = vst [vmem:[%s6 + $0x100] sm:$0xff] %v519
  %584 = vst [vmem:[%s6 + $0x108] sm:$0xff] %v520
  %585 = vst [vmem:[%s6 + $0x110] sm:$0xff] %v521
  %586 = vst [vmem:[%s6 + $0x118] sm:$0xff] %v522
  %587 = vst [vmem:[%s6 + $0x120] sm:$0xff] %v523
  %588 = vst [vmem:[%s6 + $0x128] sm:$0xff] %v524
  %589 = vst [vmem:[%s6 + $0x130] sm:$0xff] %v525
  %590 = vst [vmem:[%s6 + $0x138] sm:$0xff] %v526
  %591 = vst [vmem:[%s6 + $0x140] sm:$0xff] %v527
  %592 = vst [vmem:[%s6 + $0x148] sm:$0xff] %v528
  %593 = vst [vmem:[%s6 + $0x150] sm:$0xff] %v529
  %594 = vst [vmem:[%s6 + $0x158] sm:$0xff] %v530
  %595 = vst [vmem:[%s6 + $0x160] sm:$0xff] %v531
  %596 = vst [vmem:[%s6 + $0x168] sm:$0xff] %v532
  %597 = vst [vmem:[%s6 + $0x170] sm:$0xff] %v533
  %598 = vst [vmem:[%s6 + $0x178] sm:$0xff] %v534
  %599 = vst [vmem:[%s6 + $0x180] sm:$0xff] %v535
  %600 = vst [vmem:[%s6 + $0x188] sm:$0xff] %v536
  %601 = vst [vmem:[%s6 + $0x190] sm:$0xff] %v537
  %602 = vst [vmem:[%s6 + $0x198] sm:$0xff] %v538
  %603 = vst [vmem:[%s6 + $0x1a0] sm:$0xff] %v539
  %604 = vst [vmem:[%s6 + $0x1a8] sm:$0xff] %v540
  %605 = vst [vmem:[%s6 + $0x1b0] sm:$0xff] %v541
  %606 = vst [vmem:[%s6 + $0x1b8] sm:$0xff] %v542
  %607 = vst [vmem:[%s6 + $0x1c0] sm:$0xff] %v543
  %608 = vst [vmem:[%s6 + $0x1c8] sm:$0xff] %v544
  %609 = vst [vmem:[%s6 + $0x1d0] sm:$0xff] %v545
  %610 = vst [vmem:[%s6 + $0x1d8] sm:$0xff] %v546
  %611 = vst [vmem:[%s6 + $0x1e0] sm:$0xff] %v547
  %612 = vst [vmem:[%s6 + $0x1e8] sm:$0xff] %v548
  %613 = vst [vmem:[%s6 + $0x1f0] sm:$0xff] %v549
  %614 = vst [vmem:[%s6 + $0x1f8] sm:$0xff] %v550
  // Predicated region
  $region26: #{resnext_bottleneck_forward.7} parent=0 // pred_check
    _
  $region27: #{resnext_bottleneck_forward.7} parent=0 // pred_check_branch
    %616 = sbr.rel (0) target = $region29
  $region28: #{resnext_bottleneck_forward.7} parent=0 // pred_region
    _
  $region29: #{resnext_bottleneck_forward.7} parent=0 // pred_fallthru
    _
  // Predicated region
  $region30: #{resnext_bottleneck_forward.7} parent=0 // pred_check
    _
  $region31: #{resnext_bottleneck_forward.7} parent=0 // pred_check_branch
    %618 = sbr.rel (0) target = $region33
  $region32: #{resnext_bottleneck_forward.7} parent=0 // pred_region
    _
  $region33: #{resnext_bottleneck_forward.7} parent=0 // pred_fallthru
    _

// kernel: resnext_bottleneck_forward.6
$region0: #{resnext_bottleneck_forward.6}
  #allocation0 [shape = 'u32[]', space=smem, size = 0x4, offset = 0x4, fixed_abs, tag = 'smem constant byte address 0x4 - core index']
  #allocation1 [shape = 'u32[72,128]{1,0:T(1,128)}', space=vmem, size = 0x9000, scoped, tag = 'internal scratch']
  %s0 = inlined_call_operand.vmem [shape: f32[512,128], index: 0, kind: input, shape index: {}]
  %s1 = inlined_call_operand.vmem [shape: f32[1,128], index: 1, kind: input, shape index: {}]
  %s2 = inlined_call_operand.vmem [shape: f32[1,128], index: 2, kind: input, shape index: {}]
  %s3 = inlined_call_operand.vmem [shape: f32[128,128], index: 3, kind: input, shape index: {}]
  %s4 = inlined_call_operand.vmem [shape: f32[512,128], index: 4, kind: input, shape index: {}]
  %s5 = inlined_call_operand.vmem [shape: f32[128,128], index: 5, kind: input, shape index: {}]
  %s6 = inlined_call_operand.vmem [shape: f32[512,128], index: 6, kind: output, shape index: {0}]
  %s7 = inlined_call_operand.vmem [shape: f32[1,8,128], index: 7, kind: output, shape index: {1}]
  %s8 = inlined_call_operand.vmem [shape: f32[512,128], index: 8, kind: output, shape index: {2}]
  %s9 = inlined_call_operand.vmem [shape: f32[1,8,128], index: 9, kind: output, shape index: {3}]
  %10 = xla_tuple %s6, %s7, %s8, %s9
  %s11 = sld [smem:[#allocation0]]
  $region58: #{resnext_bottleneck_forward.6} parent=0
    _
  %s13 = ssub.s32 1, %s11
  %s14 = scalar_select 0, %s13, %s11
  // Predicated region
  $region2: #{resnext_bottleneck_forward.6} parent=0 // pred_check
    _
  $region3: #{resnext_bottleneck_forward.6} parent=0 // pred_check_branch
    %16 = sbr.rel (0) target = $region5
  $region4: #{resnext_bottleneck_forward.6} parent=0 // pred_region
    _
  $region5: #{resnext_bottleneck_forward.6} parent=0 // pred_fallthru
    _
  // Predicated region
  $region6: #{resnext_bottleneck_forward.6} parent=0 // pred_check
    _
  $region7: #{resnext_bottleneck_forward.6} parent=0 // pred_check_branch
    %18 = sbr.rel (0) target = $region9
  $region8: #{resnext_bottleneck_forward.6} parent=0 // pred_region
    _
  $region9: #{resnext_bottleneck_forward.6} parent=0 // pred_fallthru
    _
  // Predicated region
  $region10: #{resnext_bottleneck_forward.6} parent=0 // pred_check
    _
  $region11: #{resnext_bottleneck_forward.6} parent=0 // pred_check_branch
    %20 = sbr.rel (0) target = $region13
  $region12: #{resnext_bottleneck_forward.6} parent=0 // pred_region
    _
  $region13: #{resnext_bottleneck_forward.6} parent=0 // pred_fallthru
    _
  // Predicated region
  $region14: #{resnext_bottleneck_forward.6} parent=0 // pred_check
    _
  $region15: #{resnext_bottleneck_forward.6} parent=0 // pred_check_branch
    %22 = sbr.rel (0) target = $region17
  $region16: #{resnext_bottleneck_forward.6} parent=0 // pred_region
    _
  $region17: #{resnext_bottleneck_forward.6} parent=0 // pred_fallthru
    _
  // Predicated region
  $region18: #{resnext_bottleneck_forward.6} parent=0 // pred_check
    _
  $region19: #{resnext_bottleneck_forward.6} parent=0 // pred_check_branch
    %24 = sbr.rel (0) target = $region21
  $region20: #{resnext_bottleneck_forward.6} parent=0 // pred_region
    _
  $region21: #{resnext_bottleneck_forward.6} parent=0 // pred_fallthru
    _
  // Predicated region
  $region22: #{resnext_bottleneck_forward.6} parent=0 // pred_check
    _
  $region23: #{resnext_bottleneck_forward.6} parent=0 // pred_check_branch
    %26 = sbr.rel (0) target = $region25
  $region24: #{resnext_bottleneck_forward.6} parent=0 // pred_region
    _
  $region25: #{resnext_bottleneck_forward.6} parent=0 // pred_fallthru
    _
  %v27 = vld [vmem:[%s0] sm:$0xff]
  %v28 = vld [vmem:[%s0 + $0x8] sm:$0xff]
  %v29 = vld [vmem:[%s0 + $0x10] sm:$0xff]
  %v30 = vld [vmem:[%s0 + $0x18] sm:$0xff]
  %v31 = vld [vmem:[%s0 + $0x20] sm:$0xff]
  %v32 = vld [vmem:[%s0 + $0x28] sm:$0xff]
  %v33 = vld [vmem:[%s0 + $0x30] sm:$0xff]
  %v34 = vld [vmem:[%s0 + $0x38] sm:$0xff]
  %v35 = vld [vmem:[%s0 + $0x40] sm:$0xff]
  %v36 = vld [vmem:[%s0 + $0x48] sm:$0xff]
  %v37 = vld [vmem:[%s0 + $0x50] sm:$0xff]
  %v38 = vld [vmem:[%s0 + $0x58] sm:$0xff]
  %v39 = vld [vmem:[%s0 + $0x60] sm:$0xff]
  %v40 = vld [vmem:[%s0 + $0x68] sm:$0xff]
  %v41 = vld [vmem:[%s0 + $0x70] sm:$0xff]
  %v42 = vld [vmem:[%s0 + $0x78] sm:$0xff]
  %v43 = vld [vmem:[%s0 + $0x80] sm:$0xff]
  %v44 = vld [vmem:[%s0 + $0x88] sm:$0xff]
  %v45 = vld [vmem:[%s0 + $0x90] sm:$0xff]
  %v46 = vld [vmem:[%s0 + $0x98] sm:$0xff]
  %v47 = vld [vmem:[%s0 + $0xa0] sm:$0xff]
  %v48 = vld [vmem:[%s0 + $0xa8] sm:$0xff]
  %v49 = vld [vmem:[%s0 + $0xb0] sm:$0xff]
  %v50 = vld [vmem:[%s0 + $0xb8] sm:$0xff]
  %v51 = vld [vmem:[%s0 + $0xc0] sm:$0xff]
  %v52 = vld [vmem:[%s0 + $0xc8] sm:$0xff]
  %v53 = vld [vmem:[%s0 + $0xd0] sm:$0xff]
  %v54 = vld [vmem:[%s0 + $0xd8] sm:$0xff]
  %v55 = vld [vmem:[%s0 + $0xe0] sm:$0xff]
  %v56 = vld [vmem:[%s0 + $0xe8] sm:$0xff]
  %v57 = vld [vmem:[%s0 + $0xf0] sm:$0xff]
  %v58 = vld [vmem:[%s0 + $0xf8] sm:$0xff]
  %v59 = vld [vmem:[%s0 + $0x100] sm:$0xff]
  %v60 = vld [vmem:[%s0 + $0x108] sm:$0xff]
  %v61 = vld [vmem:[%s0 + $0x110] sm:$0xff]
  %v62 = vld [vmem:[%s0 + $0x118] sm:$0xff]
  %v63 = vld [vmem:[%s0 + $0x120] sm:$0xff]
  %v64 = vld [vmem:[%s0 + $0x128] sm:$0xff]
  %v65 = vld [vmem:[%s0 + $0x130] sm:$0xff]
  %v66 = vld [vmem:[%s0 + $0x138] sm:$0xff]
  %v67 = vld [vmem:[%s0 + $0x140] sm:$0xff]
  %v68 = vld [vmem:[%s0 + $0x148] sm:$0xff]
  %v69 = vld [vmem:[%s0 + $0x150] sm:$0xff]
  %v70 = vld [vmem:[%s0 + $0x158] sm:$0xff]
  %v71 = vld [vmem:[%s0 + $0x160] sm:$0xff]
  %v72 = vld [vmem:[%s0 + $0x168] sm:$0xff]
  %v73 = vld [vmem:[%s0 + $0x170] sm:$0xff]
  %v74 = vld [vmem:[%s0 + $0x178] sm:$0xff]
  %v75 = vld [vmem:[%s0 + $0x180] sm:$0xff]
  %v76 = vld [vmem:[%s0 + $0x188] sm:$0xff]
  %v77 = vld [vmem:[%s0 + $0x190] sm:$0xff]
  %v78 = vld [vmem:[%s0 + $0x198] sm:$0xff]
  %v79 = vld [vmem:[%s0 + $0x1a0] sm:$0xff]
  %v80 = vld [vmem:[%s0 + $0x1a8] sm:$0xff]
  %v81 = vld [vmem:[%s0 + $0x1b0] sm:$0xff]
  %v82 = vld [vmem:[%s0 + $0x1b8] sm:$0xff]
  %v83 = vld [vmem:[%s0 + $0x1c0] sm:$0xff]
  %v84 = vld [vmem:[%s0 + $0x1c8] sm:$0xff]
  %v85 = vld [vmem:[%s0 + $0x1d0] sm:$0xff]
  %v86 = vld [vmem:[%s0 + $0x1d8] sm:$0xff]
  %v87 = vld [vmem:[%s0 + $0x1e0] sm:$0xff]
  %v88 = vld [vmem:[%s0 + $0x1e8] sm:$0xff]
  %v89 = vld [vmem:[%s0 + $0x1f0] sm:$0xff]
  %v90 = vld [vmem:[%s0 + $0x1f8] sm:$0xff]
  %v91 = vld [vmem:[%s1] sm:$0x1]
  %v93 = vperm.slane %v91, 0
  %v95 = vmul.f32 %v27, %v93
  %v96 = vmul.f32 %v28, %v93
  %v97 = vmul.f32 %v29, %v93
  %v98 = vmul.f32 %v30, %v93
  %v99 = vmul.f32 %v31, %v93
  %v100 = vmul.f32 %v32, %v93
  %v101 = vmul.f32 %v33, %v93
  %v102 = vmul.f32 %v34, %v93
  %v103 = vmul.f32 %v35, %v93
  %v104 = vmul.f32 %v36, %v93
  %v105 = vmul.f32 %v37, %v93
  %v106 = vmul.f32 %v38, %v93
  %v107 = vmul.f32 %v39, %v93
  %v108 = vmul.f32 %v40, %v93
  %v109 = vmul.f32 %v41, %v93
  %v110 = vmul.f32 %v42, %v93
  %v111 = vmul.f32 %v43, %v93
  %v112 = vmul.f32 %v44, %v93
  %v113 = vmul.f32 %v45, %v93
  %v114 = vmul.f32 %v46, %v93
  %v115 = vmul.f32 %v47, %v93
  %v116 = vmul.f32 %v48, %v93
  %v117 = vmul.f32 %v49, %v93
  %v118 = vmul.f32 %v50, %v93
  %v119 = vmul.f32 %v51, %v93
  %v120 = vmul.f32 %v52, %v93
  %v121 = vmul.f32 %v53, %v93
  %v122 = vmul.f32 %v54, %v93
  %v123 = vmul.f32 %v55, %v93
  %v124 = vmul.f32 %v56, %v93
  %v125 = vmul.f32 %v57, %v93
  %v126 = vmul.f32 %v58, %v93
  %v127 = vmul.f32 %v59, %v93
  %v128 = vmul.f32 %v60, %v93
  %v129 = vmul.f32 %v61, %v93
  %v130 = vmul.f32 %v62, %v93
  %v131 = vmul.f32 %v63, %v93
  %v132 = vmul.f32 %v64, %v93
  %v133 = vmul.f32 %v65, %v93
  %v134 = vmul.f32 %v66, %v93
  %v135 = vmul.f32 %v67, %v93
  %v136 = vmul.f32 %v68, %v93
  %v137 = vmul.f32 %v69, %v93
  %v138 = vmul.f32 %v70, %v93
  %v139 = vmul.f32 %v71, %v93
  %v140 = vmul.f32 %v72, %v93
  %v141 = vmul.f32 %v73, %v93
  %v142 = vmul.f32 %v74, %v93
  %v143 = vmul.f32 %v75, %v93
  %v144 = vmul.f32 %v76, %v93
  %v145 = vmul.f32 %v77, %v93
  %v146 = vmul.f32 %v78, %v93
  %v147 = vmul.f32 %v79, %v93
  %v148 = vmul.f32 %v80, %v93
  %v149 = vmul.f32 %v81, %v93
  %v150 = vmul.f32 %v82, %v93
  %v151 = vmul.f32 %v83, %v93
  %v152 = vmul.f32 %v84, %v93
  %v153 = vmul.f32 %v85, %v93
  %v154 = vmul.f32 %v86, %v93
  %v155 = vmul.f32 %v87, %v93
  %v156 = vmul.f32 %v88, %v93
  %v157 = vmul.f32 %v89, %v93
  %v158 = vmul.f32 %v90, %v93
  %v159 = vld [vmem:[%s2] sm:$0x1]
  %v161 = vperm.slane %v159, 0
  %v163 = vadd.f32 %v95, %v161
  %v164 = vadd.f32 %v96, %v161
  %v165 = vadd.f32 %v97, %v161
  %v166 = vadd.f32 %v98, %v161
  %v167 = vadd.f32 %v99, %v161
  %v168 = vadd.f32 %v100, %v161
  %v169 = vadd.f32 %v101, %v161
  %v170 = vadd.f32 %v102, %v161
  %v171 = vadd.f32 %v103, %v161
  %v172 = vadd.f32 %v104, %v161
  %v173 = vadd.f32 %v105, %v161
  %v174 = vadd.f32 %v106, %v161
  %v175 = vadd.f32 %v107, %v161
  %v176 = vadd.f32 %v108, %v161
  %v177 = vadd.f32 %v109, %v161
  %v178 = vadd.f32 %v110, %v161
  %v179 = vadd.f32 %v111, %v161
  %v180 = vadd.f32 %v112, %v161
  %v181 = vadd.f32 %v113, %v161
  %v182 = vadd.f32 %v114, %v161
  %v183 = vadd.f32 %v115, %v161
  %v184 = vadd.f32 %v116, %v161
  %v185 = vadd.f32 %v117, %v161
  %v186 = vadd.f32 %v118, %v161
  %v187 = vadd.f32 %v119, %v161
  %v188 = vadd.f32 %v120, %v161
  %v189 = vadd.f32 %v121, %v161
  %v190 = vadd.f32 %v122, %v161
  %v191 = vadd.f32 %v123, %v161
  %v192 = vadd.f32 %v124, %v161
  %v193 = vadd.f32 %v125, %v161
  %v194 = vadd.f32 %v126, %v161
  %v195 = vadd.f32 %v127, %v161
  %v196 = vadd.f32 %v128, %v161
  %v197 = vadd.f32 %v129, %v161
  %v198 = vadd.f32 %v130, %v161
  %v199 = vadd.f32 %v131, %v161
  %v200 = vadd.f32 %v132, %v161
  %v201 = vadd.f32 %v133, %v161
  %v202 = vadd.f32 %v134, %v161
  %v203 = vadd.f32 %v135, %v161
  %v204 = vadd.f32 %v136, %v161
  %v205 = vadd.f32 %v137, %v161
  %v206 = vadd.f32 %v138, %v161
  %v207 = vadd.f32 %v139, %v161
  %v208 = vadd.f32 %v140, %v161
  %v209 = vadd.f32 %v141, %v161
  %v210 = vadd.f32 %v142, %v161
  %v211 = vadd.f32 %v143, %v161
  %v212 = vadd.f32 %v144, %v161
  %v213 = vadd.f32 %v145, %v161
  %v214 = vadd.f32 %v146, %v161
  %v215 = vadd.f32 %v147, %v161
  %v216 = vadd.f32 %v148, %v161
  %v217 = vadd.f32 %v149, %v161
  %v218 = vadd.f32 %v150, %v161
  %v219 = vadd.f32 %v151, %v161
  %v220 = vadd.f32 %v152, %v161
  %v221 = vadd.f32 %v153, %v161
  %v222 = vadd.f32 %v154, %v161
  %v223 = vadd.f32 %v155, %v161
  %v224 = vadd.f32 %v156, %v161
  %v225 = vadd.f32 %v157, %v161
  %v226 = vadd.f32 %v158, %v161
  %v227 = vmax.f32 %v163, 0.0
  %v228 = vmax.f32 %v164, 0.0
  %v229 = vmax.f32 %v165, 0.0
  %v230 = vmax.f32 %v166, 0.0
  %v231 = vmax.f32 %v167, 0.0
  %v232 = vmax.f32 %v168, 0.0
  %v233 = vmax.f32 %v169, 0.0
  %v234 = vmax.f32 %v170, 0.0
  %v235 = vmax.f32 %v171, 0.0
  %v236 = vmax.f32 %v172, 0.0
  %v237 = vmax.f32 %v173, 0.0
  %v238 = vmax.f32 %v174, 0.0
  %v239 = vmax.f32 %v175, 0.0
  %v240 = vmax.f32 %v176, 0.0
  %v241 = vmax.f32 %v177, 0.0
  %v242 = vmax.f32 %v178, 0.0
  %v243 = vmax.f32 %v179, 0.0
  %v244 = vmax.f32 %v180, 0.0
  %v245 = vmax.f32 %v181, 0.0
  %v246 = vmax.f32 %v182, 0.0
  %v247 = vmax.f32 %v183, 0.0
  %v248 = vmax.f32 %v184, 0.0
  %v249 = vmax.f32 %v185, 0.0
  %v250 = vmax.f32 %v186, 0.0
  %v251 = vmax.f32 %v187, 0.0
  %v252 = vmax.f32 %v188, 0.0
  %v253 = vmax.f32 %v189, 0.0
  %v254 = vmax.f32 %v190, 0.0
  %v255 = vmax.f32 %v191, 0.0
  %v256 = vmax.f32 %v192, 0.0
  %v257 = vmax.f32 %v193, 0.0
  %v258 = vmax.f32 %v194, 0.0
  %v259 = vmax.f32 %v195, 0.0
  %v260 = vmax.f32 %v196, 0.0
  %v261 = vmax.f32 %v197, 0.0
  %v262 = vmax.f32 %v198, 0.0
  %v263 = vmax.f32 %v199, 0.0
  %v264 = vmax.f32 %v200, 0.0
  %v265 = vmax.f32 %v201, 0.0
  %v266 = vmax.f32 %v202, 0.0
  %v267 = vmax.f32 %v203, 0.0
  %v268 = vmax.f32 %v204, 0.0
  %v269 = vmax.f32 %v205, 0.0
  %v270 = vmax.f32 %v206, 0.0
  %v271 = vmax.f32 %v207, 0.0
  %v272 = vmax.f32 %v208, 0.0
  %v273 = vmax.f32 %v209, 0.0
  %v274 = vmax.f32 %v210, 0.0
  %v275 = vmax.f32 %v211, 0.0
  %v276 = vmax.f32 %v212, 0.0
  %v277 = vmax.f32 %v213, 0.0
  %v278 = vmax.f32 %v214, 0.0
  %v279 = vmax.f32 %v215, 0.0
  %v280 = vmax.f32 %v216, 0.0
  %v281 = vmax.f32 %v217, 0.0
  %v282 = vmax.f32 %v218, 0.0
  %v283 = vmax.f32 %v219, 0.0
  %v284 = vmax.f32 %v220, 0.0
  %v285 = vmax.f32 %v221, 0.0
  %v286 = vmax.f32 %v222, 0.0
  %v287 = vmax.f32 %v223, 0.0
  %v288 = vmax.f32 %v224, 0.0
  %v289 = vmax.f32 %v225, 0.0
  %v290 = vmax.f32 %v226, 0.0
  %v291 = vld [vmem:[%s3] sm:$0xff]
  %v292 = vld [vmem:[%s3 + $0x8] sm:$0xff]
  %v293 = vld [vmem:[%s3 + $0x10] sm:$0xff]
  %v294 = vld [vmem:[%s3 + $0x18] sm:$0xff]
  %v295 = vld [vmem:[%s3 + $0x20] sm:$0xff]
  %v296 = vld [vmem:[%s3 + $0x28] sm:$0xff]
  %v297 = vld [vmem:[%s3 + $0x30] sm:$0xff]
  %v298 = vld [vmem:[%s3 + $0x38] sm:$0xff]
  %v299 = vld [vmem:[%s3 + $0x40] sm:$0xff]
  %v300 = vld [vmem:[%s3 + $0x48] sm:$0xff]
  %v301 = vld [vmem:[%s3 + $0x50] sm:$0xff]
  %v302 = vld [vmem:[%s3 + $0x58] sm:$0xff]
  %v303 = vld [vmem:[%s3 + $0x60] sm:$0xff]
  %v304 = vld [vmem:[%s3 + $0x68] sm:$0xff]
  %v305 = vld [vmem:[%s3 + $0x70] sm:$0xff]
  %v306 = vld [vmem:[%s3 + $0x78] sm:$0xff]
  %307 = vmatpush.msra.mxu0 %v306
  %308 = vmatpush.msra.mxu0 %v305
  %309 = vmatpush.msra.mxu0 %v304
  %310 = vmatpush.msra.mxu0 %v303
  %311 = vmatpush.msra.mxu0 %v302
  %312 = vmatpush.msra.mxu0 %v301
  %313 = vmatpush.msra.mxu0 %v300
  %314 = vmatpush.msra.mxu0 %v299
  %315 = vmatpush.msra.mxu0 %v298
  %316 = vmatpush.msra.mxu0 %v297
  %317 = vmatpush.msra.mxu0 %v296
  %318 = vmatpush.msra.mxu0 %v295
  %319 = vmatpush.msra.mxu0 %v294
  %320 = vmatpush.msra.mxu0 %v293
  %321 = vmatpush.msra.mxu0 %v292
  %322 = vmatpush.msra.mxu0 %v291
  %323 = vmatmul.f32.gmra.mxu0 %v227
  %v324 = vpop.f32.mrf.mxu0
  %v325 = vadd.f32 0.0, %v324
  %326 = vmatmul.f32.gmra.mxu0 %v228
  %v327 = vpop.f32.mrf.mxu0
  %v328 = vadd.f32 0.0, %v327
  %329 = vmatmul.f32.gmra.mxu0 %v229
  %v330 = vpop.f32.mrf.mxu0
  %v331 = vadd.f32 0.0, %v330
  %332 = vmatmul.f32.gmra.mxu0 %v230
  %v333 = vpop.f32.mrf.mxu0
  %v334 = vadd.f32 0.0, %v333
  %335 = vmatmul.f32.gmra.mxu0 %v231
  %v336 = vpop.f32.mrf.mxu0
  %v337 = vadd.f32 0.0, %v336
  %338 = vmatmul.f32.gmra.mxu0 %v232
  %v339 = vpop.f32.mrf.mxu0
  %v340 = vadd.f32 0.0, %v339
  %341 = vmatmul.f32.gmra.mxu0 %v233
  %v342 = vpop.f32.mrf.mxu0
  %v343 = vadd.f32 0.0, %v342
  %344 = vmatmul.f32.gmra.mxu0 %v234
  %v345 = vpop.f32.mrf.mxu0
  %v346 = vadd.f32 0.0, %v345
  %347 = vmatmul.f32.gmra.mxu0 %v235
  %v348 = vpop.f32.mrf.mxu0
  %v349 = vadd.f32 0.0, %v348
  %350 = vmatmul.f32.gmra.mxu0 %v236
  %v351 = vpop.f32.mrf.mxu0
  %v352 = vadd.f32 0.0, %v351
  %353 = vmatmul.f32.gmra.mxu0 %v237
  %v354 = vpop.f32.mrf.mxu0
  %v355 = vadd.f32 0.0, %v354
  %356 = vmatmul.f32.gmra.mxu0 %v238
  %v357 = vpop.f32.mrf.mxu0
  %v358 = vadd.f32 0.0, %v357
  %359 = vmatmul.f32.gmra.mxu0 %v239
  %v360 = vpop.f32.mrf.mxu0
  %v361 = vadd.f32 0.0, %v360
  %362 = vmatmul.f32.gmra.mxu0 %v240
  %v363 = vpop.f32.mrf.mxu0
  %v364 = vadd.f32 0.0, %v363
  %365 = vmatmul.f32.gmra.mxu0 %v241
  %v366 = vpop.f32.mrf.mxu0
  %v367 = vadd.f32 0.0, %v366
  %368 = vmatmul.f32.gmra.mxu0 %v242
  %v369 = vpop.f32.mrf.mxu0
  %v370 = vadd.f32 0.0, %v369
  %371 = vmatmul.f32.gmra.mxu0 %v243
  %v372 = vpop.f32.mrf.mxu0
  %v373 = vadd.f32 0.0, %v372
  %374 = vmatmul.f32.gmra.mxu0 %v244
  %v375 = vpop.f32.mrf.mxu0
  %v376 = vadd.f32 0.0, %v375
  %377 = vmatmul.f32.gmra.mxu0 %v245
  %v378 = vpop.f32.mrf.mxu0
  %v379 = vadd.f32 0.0, %v378
  %380 = vmatmul.f32.gmra.mxu0 %v246
  %v381 = vpop.f32.mrf.mxu0
  %v382 = vadd.f32 0.0, %v381
  %383 = vmatmul.f32.gmra.mxu0 %v247
  %v384 = vpop.f32.mrf.mxu0
  %v385 = vadd.f32 0.0, %v384
  %386 = vmatmul.f32.gmra.mxu0 %v248
  %v387 = vpop.f32.mrf.mxu0
  %v388 = vadd.f32 0.0, %v387
  %389 = vmatmul.f32.gmra.mxu0 %v249
  %v390 = vpop.f32.mrf.mxu0
  %v391 = vadd.f32 0.0, %v390
  %392 = vmatmul.f32.gmra.mxu0 %v250
  %v393 = vpop.f32.mrf.mxu0
  %v394 = vadd.f32 0.0, %v393
  %395 = vmatmul.f32.gmra.mxu0 %v251
  %v396 = vpop.f32.mrf.mxu0
  %v397 = vadd.f32 0.0, %v396
  %398 = vmatmul.f32.gmra.mxu0 %v252
  %v399 = vpop.f32.mrf.mxu0
  %v400 = vadd.f32 0.0, %v399
  %401 = vmatmul.f32.gmra.mxu0 %v253
  %v402 = vpop.f32.mrf.mxu0
  %v403 = vadd.f32 0.0, %v402
  %404 = vmatmul.f32.gmra.mxu0 %v254
  %v405 = vpop.f32.mrf.mxu0
  %v406 = vadd.f32 0.0, %v405
  %407 = vmatmul.f32.gmra.mxu0 %v255
  %v408 = vpop.f32.mrf.mxu0
  %v409 = vadd.f32 0.0, %v408
  %410 = vmatmul.f32.gmra.mxu0 %v256
  %v411 = vpop.f32.mrf.mxu0
  %v412 = vadd.f32 0.0, %v411
  %413 = vmatmul.f32.gmra.mxu0 %v257
  %v414 = vpop.f32.mrf.mxu0
  %v415 = vadd.f32 0.0, %v414
  %416 = vmatmul.f32.gmra.mxu0 %v258
  %v417 = vpop.f32.mrf.mxu0
  %v418 = vadd.f32 0.0, %v417
  %419 = vmatmul.f32.gmra.mxu0 %v259
  %v420 = vpop.f32.mrf.mxu0
  %v421 = vadd.f32 0.0, %v420
  %422 = vmatmul.f32.gmra.mxu0 %v260
  %v423 = vpop.f32.mrf.mxu0
  %v424 = vadd.f32 0.0, %v423
  %425 = vmatmul.f32.gmra.mxu0 %v261
  %v426 = vpop.f32.mrf.mxu0
  %v427 = vadd.f32 0.0, %v426
  %428 = vmatmul.f32.gmra.mxu0 %v262
  %v429 = vpop.f32.mrf.mxu0
  %v430 = vadd.f32 0.0, %v429
  %431 = vmatmul.f32.gmra.mxu0 %v263
  %v432 = vpop.f32.mrf.mxu0
  %v433 = vadd.f32 0.0, %v432
  %434 = vmatmul.f32.gmra.mxu0 %v264
  %v435 = vpop.f32.mrf.mxu0
  %v436 = vadd.f32 0.0, %v435
  %437 = vmatmul.f32.gmra.mxu0 %v265
  %v438 = vpop.f32.mrf.mxu0
  %v439 = vadd.f32 0.0, %v438
  %440 = vmatmul.f32.gmra.mxu0 %v266
  %v441 = vpop.f32.mrf.mxu0
  %v442 = vadd.f32 0.0, %v441
  %443 = vmatmul.f32.gmra.mxu0 %v267
  %v444 = vpop.f32.mrf.mxu0
  %v445 = vadd.f32 0.0, %v444
  %446 = vmatmul.f32.gmra.mxu0 %v268
  %v447 = vpop.f32.mrf.mxu0
  %v448 = vadd.f32 0.0, %v447
  %449 = vmatmul.f32.gmra.mxu0 %v269
  %v450 = vpop.f32.mrf.mxu0
  %v451 = vadd.f32 0.0, %v450
  %452 = vmatmul.f32.gmra.mxu0 %v270
  %v453 = vpop.f32.mrf.mxu0
  %v454 = vadd.f32 0.0, %v453
  %455 = vmatmul.f32.gmra.mxu0 %v271
  %v456 = vpop.f32.mrf.mxu0
  %v457 = vadd.f32 0.0, %v456
  %458 = vmatmul.f32.gmra.mxu0 %v272
  %v459 = vpop.f32.mrf.mxu0
  %v460 = vadd.f32 0.0, %v459
  %461 = vmatmul.f32.gmra.mxu0 %v273
  %v462 = vpop.f32.mrf.mxu0
  %v463 = vadd.f32 0.0, %v462
  %464 = vmatmul.f32.gmra.mxu0 %v274
  %v465 = vpop.f32.mrf.mxu0
  %v466 = vadd.f32 0.0, %v465
  %467 = vmatmul.f32.gmra.mxu0 %v275
  %v468 = vpop.f32.mrf.mxu0
  %v469 = vadd.f32 0.0, %v468
  %470 = vmatmul.f32.gmra.mxu0 %v276
  %v471 = vpop.f32.mrf.mxu0
  %v472 = vadd.f32 0.0, %v471
  %473 = vmatmul.f32.gmra.mxu0 %v277
  %v474 = vpop.f32.mrf.mxu0
  %v475 = vadd.f32 0.0, %v474
  %476 = vmatmul.f32.gmra.mxu0 %v278
  %v477 = vpop.f32.mrf.mxu0
  %v478 = vadd.f32 0.0, %v477
  %479 = vmatmul.f32.gmra.mxu0 %v279
  %v480 = vpop.f32.mrf.mxu0
  %v481 = vadd.f32 0.0, %v480
  %482 = vmatmul.f32.gmra.mxu0 %v280
  %v483 = vpop.f32.mrf.mxu0
  %v484 = vadd.f32 0.0, %v483
  %485 = vmatmul.f32.gmra.mxu0 %v281
  %v486 = vpop.f32.mrf.mxu0
  %v487 = vadd.f32 0.0, %v486
  %488 = vmatmul.f32.gmra.mxu0 %v282
  %v489 = vpop.f32.mrf.mxu0
  %v490 = vadd.f32 0.0, %v489
  %491 = vmatmul.f32.gmra.mxu0 %v283
  %v492 = vpop.f32.mrf.mxu0
  %v493 = vadd.f32 0.0, %v492
  %494 = vmatmul.f32.gmra.mxu0 %v284
  %v495 = vpop.f32.mrf.mxu0
  %v496 = vadd.f32 0.0, %v495
  %497 = vmatmul.f32.gmra.mxu0 %v285
  %v498 = vpop.f32.mrf.mxu0
  %v499 = vadd.f32 0.0, %v498
  %500 = vmatmul.f32.gmra.mxu0 %v286
  %v501 = vpop.f32.mrf.mxu0
  %v502 = vadd.f32 0.0, %v501
  %503 = vmatmul.f32.gmra.mxu0 %v287
  %v504 = vpop.f32.mrf.mxu0
  %v505 = vadd.f32 0.0, %v504
  %506 = vmatmul.f32.gmra.mxu0 %v288
  %v507 = vpop.f32.mrf.mxu0
  %v508 = vadd.f32 0.0, %v507
  %509 = vmatmul.f32.gmra.mxu0 %v289
  %v510 = vpop.f32.mrf.mxu0
  %v511 = vadd.f32 0.0, %v510
  %512 = vmatmul.f32.gmra.mxu0 %v290
  %v513 = vpop.f32.mrf.mxu0
  %v514 = vadd.f32 0.0, %v513
  %515 = vdwg.mxu0
  %v516 = vld [vmem:[%s4] sm:$0xff]
  %v517 = vld [vmem:[%s4 + $0x8] sm:$0xff]
  %v518 = vld [vmem:[%s4 + $0x10] sm:$0xff]
  %v519 = vld [vmem:[%s4 + $0x18] sm:$0xff]
  %v520 = vld [vmem:[%s4 + $0x20] sm:$0xff]
  %v521 = vld [vmem:[%s4 + $0x28] sm:$0xff]
  %v522 = vld [vmem:[%s4 + $0x30] sm:$0xff]
  %v523 = vld [vmem:[%s4 + $0x38] sm:$0xff]
  %v524 = vld [vmem:[%s4 + $0x40] sm:$0xff]
  %v525 = vld [vmem:[%s4 + $0x48] sm:$0xff]
  %v526 = vld [vmem:[%s4 + $0x50] sm:$0xff]
  %v527 = vld [vmem:[%s4 + $0x58] sm:$0xff]
  %v528 = vld [vmem:[%s4 + $0x60] sm:$0xff]
  %v529 = vld [vmem:[%s4 + $0x68] sm:$0xff]
  %v530 = vld [vmem:[%s4 + $0x70] sm:$0xff]
  %v531 = vld [vmem:[%s4 + $0x78] sm:$0xff]
  %v532 = vld [vmem:[%s4 + $0x80] sm:$0xff]
  %v533 = vld [vmem:[%s4 + $0x88] sm:$0xff]
  %v534 = vld [vmem:[%s4 + $0x90] sm:$0xff]
  %v535 = vld [vmem:[%s4 + $0x98] sm:$0xff]
  %v536 = vld [vmem:[%s4 + $0xa0] sm:$0xff]
  %v537 = vld [vmem:[%s4 + $0xa8] sm:$0xff]
  %v538 = vld [vmem:[%s4 + $0xb0] sm:$0xff]
  %v539 = vld [vmem:[%s4 + $0xb8] sm:$0xff]
  %v540 = vld [vmem:[%s4 + $0xc0] sm:$0xff]
  %v541 = vld [vmem:[%s4 + $0xc8] sm:$0xff]
  %v542 = vld [vmem:[%s4 + $0xd0] sm:$0xff]
  %v543 = vld [vmem:[%s4 + $0xd8] sm:$0xff]
  %v544 = vld [vmem:[%s4 + $0xe0] sm:$0xff]
  %v545 = vld [vmem:[%s4 + $0xe8] sm:$0xff]
  %v546 = vld [vmem:[%s4 + $0xf0] sm:$0xff]
  %v547 = vld [vmem:[%s4 + $0xf8] sm:$0xff]
  %v548 = vld [vmem:[%s4 + $0x100] sm:$0xff]
  %v549 = vld [vmem:[%s4 + $0x108] sm:$0xff]
  %v550 = vld [vmem:[%s4 + $0x110] sm:$0xff]
  %v551 = vld [vmem:[%s4 + $0x118] sm:$0xff]
  %v552 = vld [vmem:[%s4 + $0x120] sm:$0xff]
  %v553 = vld [vmem:[%s4 + $0x128] sm:$0xff]
  %v554 = vld [vmem:[%s4 + $0x130] sm:$0xff]
  %v555 = vld [vmem:[%s4 + $0x138] sm:$0xff]
  %v556 = vld [vmem:[%s4 + $0x140] sm:$0xff]
  %v557 = vld [vmem:[%s4 + $0x148] sm:$0xff]
  %v558 = vld [vmem:[%s4 + $0x150] sm:$0xff]
  %v559 = vld [vmem:[%s4 + $0x158] sm:$0xff]
  %v560 = vld [vmem:[%s4 + $0x160] sm:$0xff]
  %v561 = vld [vmem:[%s4 + $0x168] sm:$0xff]
  %v562 = vld [vmem:[%s4 + $0x170] sm:$0xff]
  %v563 = vld [vmem:[%s4 + $0x178] sm:$0xff]
  %v564 = vld [vmem:[%s4 + $0x180] sm:$0xff]
  %v565 = vld [vmem:[%s4 + $0x188] sm:$0xff]
  %v566 = vld [vmem:[%s4 + $0x190] sm:$0xff]
  %v567 = vld [vmem:[%s4 + $0x198] sm:$0xff]
  %v568 = vld [vmem:[%s4 + $0x1a0] sm:$0xff]
  %v569 = vld [vmem:[%s4 + $0x1a8] sm:$0xff]
  %v570 = vld [vmem:[%s4 + $0x1b0] sm:$0xff]
  %v571 = vld [vmem:[%s4 + $0x1b8] sm:$0xff]
  %v572 = vld [vmem:[%s4 + $0x1c0] sm:$0xff]
  %v573 = vld [vmem:[%s4 + $0x1c8] sm:$0xff]
  %v574 = vld [vmem:[%s4 + $0x1d0] sm:$0xff]
  %v575 = vld [vmem:[%s4 + $0x1d8] sm:$0xff]
  %v576 = vld [vmem:[%s4 + $0x1e0] sm:$0xff]
  %v577 = vld [vmem:[%s4 + $0x1e8] sm:$0xff]
  %v578 = vld [vmem:[%s4 + $0x1f0] sm:$0xff]
  %v579 = vld [vmem:[%s4 + $0x1f8] sm:$0xff]
  %v580 = vld [vmem:[%s5] sm:$0xff]
  %v581 = vld [vmem:[%s5 + $0x8] sm:$0xff]
  %v582 = vld [vmem:[%s5 + $0x10] sm:$0xff]
  %v583 = vld [vmem:[%s5 + $0x18] sm:$0xff]
  %v584 = vld [vmem:[%s5 + $0x20] sm:$0xff]
  %v585 = vld [vmem:[%s5 + $0x28] sm:$0xff]
  %v586 = vld [vmem:[%s5 + $0x30] sm:$0xff]
  %v587 = vld [vmem:[%s5 + $0x38] sm:$0xff]
  %v588 = vld [vmem:[%s5 + $0x40] sm:$0xff]
  %v589 = vld [vmem:[%s5 + $0x48] sm:$0xff]
  %v590 = vld [vmem:[%s5 + $0x50] sm:$0xff]
  %v591 = vld [vmem:[%s5 + $0x58] sm:$0xff]
  %v592 = vld [vmem:[%s5 + $0x60] sm:$0xff]
  %v593 = vld [vmem:[%s5 + $0x68] sm:$0xff]
  %v594 = vld [vmem:[%s5 + $0x70] sm:$0xff]
  %v595 = vld [vmem:[%s5 + $0x78] sm:$0xff]
  %596 = vmatpush.msra.mxu0 %v595
  %597 = vmatpush.msra.mxu0 %v594
  %598 = vmatpush.msra.mxu0 %v593
  %599 = vmatpush.msra.mxu0 %v592
  %600 = vmatpush.msra.mxu0 %v591
  %601 = vmatpush.msra.mxu0 %v590
  %602 = vmatpush.msra.mxu0 %v589
  %603 = vmatpush.msra.mxu0 %v588
  %604 = vmatpush.msra.mxu0 %v587
  %605 = vmatpush.msra.mxu0 %v586
  %606 = vmatpush.msra.mxu0 %v585
  %607 = vmatpush.msra.mxu0 %v584
  %608 = vmatpush.msra.mxu0 %v583
  %609 = vmatpush.msra.mxu0 %v582
  %610 = vmatpush.msra.mxu0 %v581
  %611 = vmatpush.msra.mxu0 %v580
  %612 = vmatmul.f32.gmra.mxu0 %v516
  %v613 = vpop.f32.mrf.mxu0
  %v614 = vadd.f32 0.0, %v613
  %615 = vmatmul.f32.gmra.mxu0 %v517
  %v616 = vpop.f32.mrf.mxu0
  %v617 = vadd.f32 0.0, %v616
  %618 = vmatmul.f32.gmra.mxu0 %v518
  %v619 = vpop.f32.mrf.mxu0
  %v620 = vadd.f32 0.0, %v619
  %621 = vmatmul.f32.gmra.mxu0 %v519
  %v622 = vpop.f32.mrf.mxu0
  %v623 = vadd.f32 0.0, %v622
  %624 = vmatmul.f32.gmra.mxu0 %v520
  %v625 = vpop.f32.mrf.mxu0
  %v626 = vadd.f32 0.0, %v625
  %627 = vmatmul.f32.gmra.mxu0 %v521
  %v628 = vpop.f32.mrf.mxu0
  %v629 = vadd.f32 0.0, %v628
  %630 = vmatmul.f32.gmra.mxu0 %v522
  %v631 = vpop.f32.mrf.mxu0
  %v632 = vadd.f32 0.0, %v631
  %633 = vmatmul.f32.gmra.mxu0 %v523
  %v634 = vpop.f32.mrf.mxu0
  %v635 = vadd.f32 0.0, %v634
  %636 = vmatmul.f32.gmra.mxu0 %v524
  %v637 = vpop.f32.mrf.mxu0
  %v638 = vadd.f32 0.0, %v637
  %639 = vmatmul.f32.gmra.mxu0 %v525
  %v640 = vpop.f32.mrf.mxu0
  %v641 = vadd.f32 0.0, %v640
  %642 = vmatmul.f32.gmra.mxu0 %v526
  %v643 = vpop.f32.mrf.mxu0
  %v644 = vadd.f32 0.0, %v643
  %645 = vmatmul.f32.gmra.mxu0 %v527
  %v646 = vpop.f32.mrf.mxu0
  %v647 = vadd.f32 0.0, %v646
  %648 = vmatmul.f32.gmra.mxu0 %v528
  %v649 = vpop.f32.mrf.mxu0
  %v650 = vadd.f32 0.0, %v649
  %651 = vmatmul.f32.gmra.mxu0 %v529
  %v652 = vpop.f32.mrf.mxu0
  %v653 = vadd.f32 0.0, %v652
  %654 = vmatmul.f32.gmra.mxu0 %v530
  %v655 = vpop.f32.mrf.mxu0
  %v656 = vadd.f32 0.0, %v655
  %657 = vmatmul.f32.gmra.mxu0 %v531
  %v658 = vpop.f32.mrf.mxu0
  %v659 = vadd.f32 0.0, %v658
  %660 = vmatmul.f32.gmra.mxu0 %v532
  %v661 = vpop.f32.mrf.mxu0
  %v662 = vadd.f32 0.0, %v661
  %663 = vmatmul.f32.gmra.mxu0 %v533
  %v664 = vpop.f32.mrf.mxu0
  %v665 = vadd.f32 0.0, %v664
  %666 = vmatmul.f32.gmra.mxu0 %v534
  %v667 = vpop.f32.mrf.mxu0
  %v668 = vadd.f32 0.0, %v667
  %669 = vmatmul.f32.gmra.mxu0 %v535
  %v670 = vpop.f32.mrf.mxu0
  %v671 = vadd.f32 0.0, %v670
  %672 = vmatmul.f32.gmra.mxu0 %v536
  %v673 = vpop.f32.mrf.mxu0
  %v674 = vadd.f32 0.0, %v673
  %675 = vmatmul.f32.gmra.mxu0 %v537
  %v676 = vpop.f32.mrf.mxu0
  %v677 = vadd.f32 0.0, %v676
  %678 = vmatmul.f32.gmra.mxu0 %v538
  %v679 = vpop.f32.mrf.mxu0
  %v680 = vadd.f32 0.0, %v679
  %681 = vmatmul.f32.gmra.mxu0 %v539
  %v682 = vpop.f32.mrf.mxu0
  %v683 = vadd.f32 0.0, %v682
  %684 = vmatmul.f32.gmra.mxu0 %v540
  %v685 = vpop.f32.mrf.mxu0
  %v686 = vadd.f32 0.0, %v685
  %687 = vmatmul.f32.gmra.mxu0 %v541
  %v688 = vpop.f32.mrf.mxu0
  %v689 = vadd.f32 0.0, %v688
  %690 = vmatmul.f32.gmra.mxu0 %v542
  %v691 = vpop.f32.mrf.mxu0
  %v692 = vadd.f32 0.0, %v691
  %693 = vmatmul.f32.gmra.mxu0 %v543
  %v694 = vpop.f32.mrf.mxu0
  %v695 = vadd.f32 0.0, %v694
  %696 = vmatmul.f32.gmra.mxu0 %v544
  %v697 = vpop.f32.mrf.mxu0
  %v698 = vadd.f32 0.0, %v697
  %699 = vmatmul.f32.gmra.mxu0 %v545
  %v700 = vpop.f32.mrf.mxu0
  %v701 = vadd.f32 0.0, %v700
  %702 = vmatmul.f32.gmra.mxu0 %v546
  %v703 = vpop.f32.mrf.mxu0
  %v704 = vadd.f32 0.0, %v703
  %705 = vmatmul.f32.gmra.mxu0 %v547
  %v706 = vpop.f32.mrf.mxu0
  %v707 = vadd.f32 0.0, %v706
  %708 = vmatmul.f32.gmra.mxu0 %v548
  %v709 = vpop.f32.mrf.mxu0
  %v710 = vadd.f32 0.0, %v709
  %711 = vmatmul.f32.gmra.mxu0 %v549
  %v712 = vpop.f32.mrf.mxu0
  %v713 = vadd.f32 0.0, %v712
  %714 = vmatmul.f32.gmra.mxu0 %v550
  %v715 = vpop.f32.mrf.mxu0
  %v716 = vadd.f32 0.0, %v715
  %717 = vmatmul.f32.gmra.mxu0 %v551
  %v718 = vpop.f32.mrf.mxu0
  %v719 = vadd.f32 0.0, %v718
  %720 = vmatmul.f32.gmra.mxu0 %v552
  %v721 = vpop.f32.mrf.mxu0
  %v722 = vadd.f32 0.0, %v721
  %723 = vmatmul.f32.gmra.mxu0 %v553
  %v724 = vpop.f32.mrf.mxu0
  %v725 = vadd.f32 0.0, %v724
  %726 = vmatmul.f32.gmra.mxu0 %v554
  %v727 = vpop.f32.mrf.mxu0
  %v728 = vadd.f32 0.0, %v727
  %729 = vmatmul.f32.gmra.mxu0 %v555
  %v730 = vpop.f32.mrf.mxu0
  %v731 = vadd.f32 0.0, %v730
  %732 = vmatmul.f32.gmra.mxu0 %v556
  %v733 = vpop.f32.mrf.mxu0
  %v734 = vadd.f32 0.0, %v733
  %735 = vmatmul.f32.gmra.mxu0 %v557
  %v736 = vpop.f32.mrf.mxu0
  %v737 = vadd.f32 0.0, %v736
  %738 = vmatmul.f32.gmra.mxu0 %v558
  %v739 = vpop.f32.mrf.mxu0
  %v740 = vadd.f32 0.0, %v739
  %741 = vmatmul.f32.gmra.mxu0 %v559
  %v742 = vpop.f32.mrf.mxu0
  %v743 = vadd.f32 0.0, %v742
  %744 = vmatmul.f32.gmra.mxu0 %v560
  %v745 = vpop.f32.mrf.mxu0
  %v746 = vadd.f32 0.0, %v745
  %747 = vmatmul.f32.gmra.mxu0 %v561
  %v748 = vpop.f32.mrf.mxu0
  %v749 = vadd.f32 0.0, %v748
  %750 = vmatmul.f32.gmra.mxu0 %v562
  %v751 = vpop.f32.mrf.mxu0
  %v752 = vadd.f32 0.0, %v751
  %753 = vmatmul.f32.gmra.mxu0 %v563
  %v754 = vpop.f32.mrf.mxu0
  %v755 = vadd.f32 0.0, %v754
  %756 = vmatmul.f32.gmra.mxu0 %v564
  %v757 = vpop.f32.mrf.mxu0
  %v758 = vadd.f32 0.0, %v757
  %759 = vmatmul.f32.gmra.mxu0 %v565
  %v760 = vpop.f32.mrf.mxu0
  %v761 = vadd.f32 0.0, %v760
  %762 = vmatmul.f32.gmra.mxu0 %v566
  %v763 = vpop.f32.mrf.mxu0
  %v764 = vadd.f32 0.0, %v763
  %765 = vmatmul.f32.gmra.mxu0 %v567
  %v766 = vpop.f32.mrf.mxu0
  %v767 = vadd.f32 0.0, %v766
  %768 = vmatmul.f32.gmra.mxu0 %v568
  %v769 = vpop.f32.mrf.mxu0
  %v770 = vadd.f32 0.0, %v769
  %771 = vmatmul.f32.gmra.mxu0 %v569
  %v772 = vpop.f32.mrf.mxu0
  %v773 = vadd.f32 0.0, %v772
  %774 = vmatmul.f32.gmra.mxu0 %v570
  %v775 = vpop.f32.mrf.mxu0
  %v776 = vadd.f32 0.0, %v775
  %777 = vmatmul.f32.gmra.mxu0 %v571
  %v778 = vpop.f32.mrf.mxu0
  %v779 = vadd.f32 0.0, %v778
  %780 = vmatmul.f32.gmra.mxu0 %v572
  %v781 = vpop.f32.mrf.mxu0
  %v782 = vadd.f32 0.0, %v781
  %783 = vmatmul.f32.gmra.mxu0 %v573
  %v784 = vpop.f32.mrf.mxu0
  %v785 = vadd.f32 0.0, %v784
  %786 = vmatmul.f32.gmra.mxu0 %v574
  %v787 = vpop.f32.mrf.mxu0
  %v788 = vadd.f32 0.0, %v787
  %789 = vmatmul.f32.gmra.mxu0 %v575
  %v790 = vpop.f32.mrf.mxu0
  %v791 = vadd.f32 0.0, %v790
  %792 = vmatmul.f32.gmra.mxu0 %v576
  %v793 = vpop.f32.mrf.mxu0
  %v794 = vadd.f32 0.0, %v793
  %795 = vmatmul.f32.gmra.mxu0 %v577
  %v796 = vpop.f32.mrf.mxu0
  %v797 = vadd.f32 0.0, %v796
  %798 = vmatmul.f32.gmra.mxu0 %v578
  %v799 = vpop.f32.mrf.mxu0
  %v800 = vadd.f32 0.0, %v799
  %801 = vmatmul.f32.gmra.mxu0 %v579
  %v802 = vpop.f32.mrf.mxu0
  %v803 = vadd.f32 0.0, %v802
  %804 = vdwg.mxu0
  %805 = vst [vmem:[%s6] sm:$0xff] %v325
  %806 = vst [vmem:[%s6 + $0x8] sm:$0xff] %v328
  %807 = vst [vmem:[%s6 + $0x10] sm:$0xff] %v331
  %808 = vst [vmem:[%s6 + $0x18] sm:$0xff] %v334
  %809 = vst [vmem:[%s6 + $0x20] sm:$0xff] %v337
  %810 = vst [vmem:[%s6 + $0x28] sm:$0xff] %v340
  %811 = vst [vmem:[%s6 + $0x30] sm:$0xff] %v343
  %812 = vst [vmem:[%s6 + $0x38] sm:$0xff] %v346
  %813 = vst [vmem:[%s6 + $0x40] sm:$0xff] %v349
  %814 = vst [vmem:[%s6 + $0x48] sm:$0xff] %v352
  %815 = vst [vmem:[%s6 + $0x50] sm:$0xff] %v355
  %816 = vst [vmem:[%s6 + $0x58] sm:$0xff] %v358
  %817 = vst [vmem:[%s6 + $0x60] sm:$0xff] %v361
  %818 = vst [vmem:[%s6 + $0x68] sm:$0xff] %v364
  %819 = vst [vmem:[%s6 + $0x70] sm:$0xff] %v367
  %820 = vst [vmem:[%s6 + $0x78] sm:$0xff] %v370
  %821 = vst [vmem:[%s6 + $0x80] sm:$0xff] %v373
  %822 = vst [vmem:[%s6 + $0x88] sm:$0xff] %v376
  %823 = vst [vmem:[%s6 + $0x90] sm:$0xff] %v379
  %824 = vst [vmem:[%s6 + $0x98] sm:$0xff] %v382
  %825 = vst [vmem:[%s6 + $0xa0] sm:$0xff] %v385
  %826 = vst [vmem:[%s6 + $0xa8] sm:$0xff] %v388
  %827 = vst [vmem:[%s6 + $0xb0] sm:$0xff] %v391
  %828 = vst [vmem:[%s6 + $0xb8] sm:$0xff] %v394
  %829 = vst [vmem:[%s6 + $0xc0] sm:$0xff] %v397
  %830 = vst [vmem:[%s6 + $0xc8] sm:$0xff] %v400
  %831 = vst [vmem:[%s6 + $0xd0] sm:$0xff] %v403
  %832 = vst [vmem:[%s6 + $0xd8] sm:$0xff] %v406
  %833 = vst [vmem:[%s6 + $0xe0] sm:$0xff] %v409
  %834 = vst [vmem:[%s6 + $0xe8] sm:$0xff] %v412
  %835 = vst [vmem:[%s6 + $0xf0] sm:$0xff] %v415
  %836 = vst [vmem:[%s6 + $0xf8] sm:$0xff] %v418
  %837 = vst [vmem:[%s6 + $0x100] sm:$0xff] %v421
  %838 = vst [vmem:[%s6 + $0x108] sm:$0xff] %v424
  %839 = vst [vmem:[%s6 + $0x110] sm:$0xff] %v427
  %840 = vst [vmem:[%s6 + $0x118] sm:$0xff] %v430
  %841 = vst [vmem:[%s6 + $0x120] sm:$0xff] %v433
  %842 = vst [vmem:[%s6 + $0x128] sm:$0xff] %v436
  %843 = vst [vmem:[%s6 + $0x130] sm:$0xff] %v439
  %844 = vst [vmem:[%s6 + $0x138] sm:$0xff] %v442
  %845 = vst [vmem:[%s6 + $0x140] sm:$0xff] %v445
  %846 = vst [vmem:[%s6 + $0x148] sm:$0xff] %v448
  %847 = vst [vmem:[%s6 + $0x150] sm:$0xff] %v451
  %848 = vst [vmem:[%s6 + $0x158] sm:$0xff] %v454
  %849 = vst [vmem:[%s6 + $0x160] sm:$0xff] %v457
  %850 = vst [vmem:[%s6 + $0x168] sm:$0xff] %v460
  %851 = vst [vmem:[%s6 + $0x170] sm:$0xff] %v463
  %852 = vst [vmem:[%s6 + $0x178] sm:$0xff] %v466
  %853 = vst [vmem:[%s6 + $0x180] sm:$0xff] %v469
  %854 = vst [vmem:[%s6 + $0x188] sm:$0xff] %v472
  %855 = vst [vmem:[%s6 + $0x190] sm:$0xff] %v475
  %856 = vst [vmem:[%s6 + $0x198] sm:$0xff] %v478
  %857 = vst [vmem:[%s6 + $0x1a0] sm:$0xff] %v481
  %858 = vst [vmem:[%s6 + $0x1a8] sm:$0xff] %v484
  %859 = vst [vmem:[%s6 + $0x1b0] sm:$0xff] %v487
  %860 = vst [vmem:[%s6 + $0x1b8] sm:$0xff] %v490
  %861 = vst [vmem:[%s6 + $0x1c0] sm:$0xff] %v493
  %862 = vst [vmem:[%s6 + $0x1c8] sm:$0xff] %v496
  %863 = vst [vmem:[%s6 + $0x1d0] sm:$0xff] %v499
  %864 = vst [vmem:[%s6 + $0x1d8] sm:$0xff] %v502
  %865 = vst [vmem:[%s6 + $0x1e0] sm:$0xff] %v505
  %866 = vst [vmem:[%s6 + $0x1e8] sm:$0xff] %v508
  %867 = vst [vmem:[%s6 + $0x1f0] sm:$0xff] %v511
  %868 = vst [vmem:[%s6 + $0x1f8] sm:$0xff] %v514
  %869 = vst [vmem:[%s8] sm:$0xff] %v614
  %870 = vst [vmem:[%s8 + $0x8] sm:$0xff] %v617
  %871 = vst [vmem:[%s8 + $0x10] sm:$0xff] %v620
  %872 = vst [vmem:[%s8 + $0x18] sm:$0xff] %v623
  %873 = vst [vmem:[%s8 + $0x20] sm:$0xff] %v626
  %874 = vst [vmem:[%s8 + $0x28] sm:$0xff] %v629
  %875 = vst [vmem:[%s8 + $0x30] sm:$0xff] %v632
  %876 = vst [vmem:[%s8 + $0x38] sm:$0xff] %v635
  %877 = vst [vmem:[%s8 + $0x40] sm:$0xff] %v638
  %878 = vst [vmem:[%s8 + $0x48] sm:$0xff] %v641
  %879 = vst [vmem:[%s8 + $0x50] sm:$0xff] %v644
  %880 = vst [vmem:[%s8 + $0x58] sm:$0xff] %v647
  %881 = vst [vmem:[%s8 + $0x60] sm:$0xff] %v650
  %882 = vst [vmem:[%s8 + $0x68] sm:$0xff] %v653
  %883 = vst [vmem:[%s8 + $0x70] sm:$0xff] %v656
  %884 = vst [vmem:[%s8 + $0x78] sm:$0xff] %v659
  %885 = vst [vmem:[%s8 + $0x80] sm:$0xff] %v662
  %886 = vst [vmem:[%s8 + $0x88] sm:$0xff] %v665
  %887 = vst [vmem:[%s8 + $0x90] sm:$0xff] %v668
  %888 = vst [vmem:[%s8 + $0x98] sm:$0xff] %v671
  %889 = vst [vmem:[%s8 + $0xa0] sm:$0xff] %v674
  %890 = vst [vmem:[%s8 + $0xa8] sm:$0xff] %v677
  %891 = vst [vmem:[%s8 + $0xb0] sm:$0xff] %v680
  %892 = vst [vmem:[%s8 + $0xb8] sm:$0xff] %v683
  %893 = vst [vmem:[%s8 + $0xc0] sm:$0xff] %v686
  %894 = vst [vmem:[%s8 + $0xc8] sm:$0xff] %v689
  %895 = vst [vmem:[%s8 + $0xd0] sm:$0xff] %v692
  %896 = vst [vmem:[%s8 + $0xd8] sm:$0xff] %v695
  %897 = vst [vmem:[%s8 + $0xe0] sm:$0xff] %v698
  %898 = vst [vmem:[%s8 + $0xe8] sm:$0xff] %v701
  %899 = vst [vmem:[%s8 + $0xf0] sm:$0xff] %v704
  %900 = vst [vmem:[%s8 + $0xf8] sm:$0xff] %v707
  %901 = vst [vmem:[%s8 + $0x100] sm:$0xff] %v710
  %902 = vst [vmem:[%s8 + $0x108] sm:$0xff] %v713
  %903 = vst [vmem:[%s8 + $0x110] sm:$0xff] %v716
  %904 = vst [vmem:[%s8 + $0x118] sm:$0xff] %v719
  %905 = vst [vmem:[%s8 + $0x120] sm:$0xff] %v722
  %906 = vst [vmem:[%s8 + $0x128] sm:$0xff] %v725
  %907 = vst [vmem:[%s8 + $0x130] sm:$0xff] %v728
  %908 = vst [vmem:[%s8 + $0x138] sm:$0xff] %v731
  %909 = vst [vmem:[%s8 + $0x140] sm:$0xff] %v734
  %910 = vst [vmem:[%s8 + $0x148] sm:$0xff] %v737
  %911 = vst [vmem:[%s8 + $0x150] sm:$0xff] %v740
  %912 = vst [vmem:[%s8 + $0x158] sm:$0xff] %v743
  %913 = vst [vmem:[%s8 + $0x160] sm:$0xff] %v746
  %914 = vst [vmem:[%s8 + $0x168] sm:$0xff] %v749
  %915 = vst [vmem:[%s8 + $0x170] sm:$0xff] %v752
  %916 = vst [vmem:[%s8 + $0x178] sm:$0xff] %v755
  %917 = vst [vmem:[%s8 + $0x180] sm:$0xff] %v758
  %918 = vst [vmem:[%s8 + $0x188] sm:$0xff] %v761
  %919 = vst [vmem:[%s8 + $0x190] sm:$0xff] %v764
  %920 = vst [vmem:[%s8 + $0x198] sm:$0xff] %v767
  %921 = vst [vmem:[%s8 + $0x1a0] sm:$0xff] %v770
  %922 = vst [vmem:[%s8 + $0x1a8] sm:$0xff] %v773
  %923 = vst [vmem:[%s8 + $0x1b0] sm:$0xff] %v776
  %924 = vst [vmem:[%s8 + $0x1b8] sm:$0xff] %v779
  %925 = vst [vmem:[%s8 + $0x1c0] sm:$0xff] %v782
  %926 = vst [vmem:[%s8 + $0x1c8] sm:$0xff] %v785
  %927 = vst [vmem:[%s8 + $0x1d0] sm:$0xff] %v788
  %928 = vst [vmem:[%s8 + $0x1d8] sm:$0xff] %v791
  %929 = vst [vmem:[%s8 + $0x1e0] sm:$0xff] %v794
  %930 = vst [vmem:[%s8 + $0x1e8] sm:$0xff] %v797
  %931 = vst [vmem:[%s8 + $0x1f0] sm:$0xff] %v800
  %932 = vst [vmem:[%s8 + $0x1f8] sm:$0xff] %v803
  %v933 = vadd.f32 %v325, %v328
  %v934 = vadd.f32 %v933, %v331
  %v935 = vadd.f32 %v934, %v334
  %v936 = vadd.f32 %v935, %v337
  %v937 = vadd.f32 %v936, %v340
  %v938 = vadd.f32 %v937, %v343
  %v939 = vadd.f32 %v938, %v346
  %v940 = vadd.f32 %v939, %v349
  %v941 = vadd.f32 %v940, %v352
  %v942 = vadd.f32 %v941, %v355
  %v943 = vadd.f32 %v942, %v358
  %v944 = vadd.f32 %v943, %v361
  %v945 = vadd.f32 %v944, %v364
  %v946 = vadd.f32 %v945, %v367
  %v947 = vadd.f32 %v946, %v370
  %v948 = vadd.f32 %v947, %v373
  %v949 = vadd.f32 %v948, %v376
  %v950 = vadd.f32 %v949, %v379
  %v951 = vadd.f32 %v950, %v382
  %v952 = vadd.f32 %v951, %v385
  %v953 = vadd.f32 %v952, %v388
  %v954 = vadd.f32 %v953, %v391
  %v955 = vadd.f32 %v954, %v394
  %v956 = vadd.f32 %v955, %v397
  %v957 = vadd.f32 %v956, %v400
  %v958 = vadd.f32 %v957, %v403
  %v959 = vadd.f32 %v958, %v406
  %v960 = vadd.f32 %v959, %v409
  %v961 = vadd.f32 %v960, %v412
  %v962 = vadd.f32 %v961, %v415
  %v963 = vadd.f32 %v962, %v418
  %v964 = vadd.f32 %v963, %v421
  %v965 = vadd.f32 %v964, %v424
  %v966 = vadd.f32 %v965, %v427
  %v967 = vadd.f32 %v966, %v430
  %v968 = vadd.f32 %v967, %v433
  %v969 = vadd.f32 %v968, %v436
  %v970 = vadd.f32 %v969, %v439
  %v971 = vadd.f32 %v970, %v442
  %v972 = vadd.f32 %v971, %v445
  %v973 = vadd.f32 %v972, %v448
  %v974 = vadd.f32 %v973, %v451
  %v975 = vadd.f32 %v974, %v454
  %v976 = vadd.f32 %v975, %v457
  %v977 = vadd.f32 %v976, %v460
  %v978 = vadd.f32 %v977, %v463
  %v979 = vadd.f32 %v978, %v466
  %v980 = vadd.f32 %v979, %v469
  %v981 = vadd.f32 %v980, %v472
  %v982 = vadd.f32 %v981, %v475
  %v983 = vadd.f32 %v982, %v478
  %v984 = vadd.f32 %v983, %v481
  %v985 = vadd.f32 %v984, %v484
  %v986 = vadd.f32 %v985, %v487
  %v987 = vadd.f32 %v986, %v490
  %v988 = vadd.f32 %v987, %v493
  %v989 = vadd.f32 %v988, %v496
  %v990 = vadd.f32 %v989, %v499
  %v991 = vadd.f32 %v990, %v502
  %v992 = vadd.f32 %v991, %v505
  %v993 = vadd.f32 %v992, %v508
  %v994 = vadd.f32 %v993, %v511
  %v995 = vadd.f32 %v994, %v514
  %v996 = vrot.slane %v995, 4
  %v997 = vadd.f32 %v995, %v996
  %v998 = vrot.slane %v997, 2
  %v999 = vadd.f32 %v997, %v998
  %v1000 = vrot.slane %v999, 1
  %v1001 = vadd.f32 %v999, %v1000
  %v1002 = vmul.f32 %v325, %v325
  %v1003 = vmul.f32 %v328, %v328
  %v1004 = vmul.f32 %v331, %v331
  %v1005 = vmul.f32 %v334, %v334
  %v1006 = vmul.f32 %v337, %v337
  %v1007 = vmul.f32 %v340, %v340
  %v1008 = vmul.f32 %v343, %v343
  %v1009 = vmul.f32 %v346, %v346
  %v1010 = vmul.f32 %v349, %v349
  %v1011 = vmul.f32 %v352, %v352
  %v1012 = vmul.f32 %v355, %v355
  %v1013 = vmul.f32 %v358, %v358
  %v1014 = vmul.f32 %v361, %v361
  %v1015 = vmul.f32 %v364, %v364
  %v1016 = vmul.f32 %v367, %v367
  %v1017 = vmul.f32 %v370, %v370
  %v1018 = vmul.f32 %v373, %v373
  %v1019 = vmul.f32 %v376, %v376
  %v1020 = vmul.f32 %v379, %v379
  %v1021 = vmul.f32 %v382, %v382
  %v1022 = vmul.f32 %v385, %v385
  %v1023 = vmul.f32 %v388, %v388
  %v1024 = vmul.f32 %v391, %v391
  %v1025 = vmul.f32 %v394, %v394
  %v1026 = vmul.f32 %v397, %v397
  %v1027 = vmul.f32 %v400, %v400
  %v1028 = vmul.f32 %v403, %v403
  %v1029 = vmul.f32 %v406, %v406
  %v1030 = vmul.f32 %v409, %v409
  %v1031 = vmul.f32 %v412, %v412
  %v1032 = vmul.f32 %v415, %v415
  %v1033 = vmul.f32 %v418, %v418
  %v1034 = vmul.f32 %v421, %v421
  %v1035 = vmul.f32 %v424, %v424
  %v1036 = vmul.f32 %v427, %v427
  %v1037 = vmul.f32 %v430, %v430
  %v1038 = vmul.f32 %v433, %v433
  %v1039 = vmul.f32 %v436, %v436
  %v1040 = vmul.f32 %v439, %v439
  %v1041 = vmul.f32 %v442, %v442
  %v1042 = vmul.f32 %v445, %v445
  %v1043 = vmul.f32 %v448, %v448
  %v1044 = vmul.f32 %v451, %v451
  %v1045 = vmul.f32 %v454, %v454
  %v1046 = vmul.f32 %v457, %v457
  %v1047 = vmul.f32 %v460, %v460
  %v1048 = vmul.f32 %v463, %v463
  %v1049 = vmul.f32 %v466, %v466
  %v1050 = vmul.f32 %v469, %v469
  %v1051 = vmul.f32 %v472, %v472
  %v1052 = vmul.f32 %v475, %v475
  %v1053 = vmul.f32 %v478, %v478
  %v1054 = vmul.f32 %v481, %v481
  %v1055 = vmul.f32 %v484, %v484
  %v1056 = vmul.f32 %v487, %v487
  %v1057 = vmul.f32 %v490, %v490
  %v1058 = vmul.f32 %v493, %v493
  %v1059 = vmul.f32 %v496, %v496
  %v1060 = vmul.f32 %v499, %v499
  %v1061 = vmul.f32 %v502, %v502
  %v1062 = vmul.f32 %v505, %v505
  %v1063 = vmul.f32 %v508, %v508
  %v1064 = vmul.f32 %v511, %v511
  %v1065 = vmul.f32 %v514, %v514
  %v1066 = vadd.f32 %v1002, %v1003
  %v1067 = vadd.f32 %v1066, %v1004
  %v1068 = vadd.f32 %v1067, %v1005
  %v1069 = vadd.f32 %v1068, %v1006
  %v1070 = vadd.f32 %v1069, %v1007
  %v1071 = vadd.f32 %v1070, %v1008
  %v1072 = vadd.f32 %v1071, %v1009
  %v1073 = vadd.f32 %v1072, %v1010
  %v1074 = vadd.f32 %v1073, %v1011
  %v1075 = vadd.f32 %v1074, %v1012
  %v1076 = vadd.f32 %v1075, %v1013
  %v1077 = vadd.f32 %v1076, %v1014
  %v1078 = vadd.f32 %v1077, %v1015
  %v1079 = vadd.f32 %v1078, %v1016
  %v1080 = vadd.f32 %v1079, %v1017
  %v1081 = vadd.f32 %v1080, %v1018
  %v1082 = vadd.f32 %v1081, %v1019
  %v1083 = vadd.f32 %v1082, %v1020
  %v1084 = vadd.f32 %v1083, %v1021
  %v1085 = vadd.f32 %v1084, %v1022
  %v1086 = vadd.f32 %v1085, %v1023
  %v1087 = vadd.f32 %v1086, %v1024
  %v1088 = vadd.f32 %v1087, %v1025
  %v1089 = vadd.f32 %v1088, %v1026
  %v1090 = vadd.f32 %v1089, %v1027
  %v1091 = vadd.f32 %v1090, %v1028
  %v1092 = vadd.f32 %v1091, %v1029
  %v1093 = vadd.f32 %v1092, %v1030
  %v1094 = vadd.f32 %v1093, %v1031
  %v1095 = vadd.f32 %v1094, %v1032
  %v1096 = vadd.f32 %v1095, %v1033
  %v1097 = vadd.f32 %v1096, %v1034
  %v1098 = vadd.f32 %v1097, %v1035
  %v1099 = vadd.f32 %v1098, %v1036
  %v1100 = vadd.f32 %v1099, %v1037
  %v1101 = vadd.f32 %v1100, %v1038
  %v1102 = vadd.f32 %v1101, %v1039
  %v1103 = vadd.f32 %v1102, %v1040
  %v1104 = vadd.f32 %v1103, %v1041
  %v1105 = vadd.f32 %v1104, %v1042
  %v1106 = vadd.f32 %v1105, %v1043
  %v1107 = vadd.f32 %v1106, %v1044
  %v1108 = vadd.f32 %v1107, %v1045
  %v1109 = vadd.f32 %v1108, %v1046
  %v1110 = vadd.f32 %v1109, %v1047
  %v1111 = vadd.f32 %v1110, %v1048
  %v1112 = vadd.f32 %v1111, %v1049
  %v1113 = vadd.f32 %v1112, %v1050
  %v1114 = vadd.f32 %v1113, %v1051
  %v1115 = vadd.f32 %v1114, %v1052
  %v1116 = vadd.f32 %v1115, %v1053
  %v1117 = vadd.f32 %v1116, %v1054
  %v1118 = vadd.f32 %v1117, %v1055
  %v1119 = vadd.f32 %v1118, %v1056
  %v1120 = vadd.f32 %v1119, %v1057
  %v1121 = vadd.f32 %v1120, %v1058
  %v1122 = vadd.f32 %v1121, %v1059
  %v1123 = vadd.f32 %v1122, %v1060
  %v1124 = vadd.f32 %v1123, %v1061
  %v1125 = vadd.f32 %v1124, %v1062
  %v1126 = vadd.f32 %v1125, %v1063
  %v1127 = vadd.f32 %v1126, %v1064
  %v1128 = vadd.f32 %v1127, %v1065
  %v1129 = vrot.slane %v1128, 4
  %v1130 = vadd.f32 %v1128, %v1129
  %v1131 = vrot.slane %v1130, 2
  %v1132 = vadd.f32 %v1130, %v1131
  %v1133 = vrot.slane %v1132, 1
  %v1134 = vadd.f32 %v1132, %v1133
  %v1135 = vlaneseq
  %v1136 = vshrl.u32 %v1135, 7
  %vm1137 = vcmp.eq.s32.totalorder %v1136, 0
  %vm1138 = vcmp.eq.s32.totalorder %v1136, 1
  %v1139 = vsel %vm1138, 1, 0
  %vm1140 = vcmp.eq.s32.totalorder %v1139, 1
  %v1141 = vsel %vm1140, %v1134, 0.0
  %v1142 = vsel %vm1137, 1, 0
  %vm1143 = vcmp.eq.s32.totalorder %v1142, 1
  %v1144 = vsel %vm1143, %v1001, %v1141
  %1145 = vst [vmem:[%s7] sm:$0xff] %v1144
  %v1146 = vadd.f32 %v614, %v617
  %v1147 = vadd.f32 %v1146, %v620
  %v1148 = vadd.f32 %v1147, %v623
  %v1149 = vadd.f32 %v1148, %v626
  %v1150 = vadd.f32 %v1149, %v629
  %v1151 = vadd.f32 %v1150, %v632
  %v1152 = vadd.f32 %v1151, %v635
  %v1153 = vadd.f32 %v1152, %v638
  %v1154 = vadd.f32 %v1153, %v641
  %v1155 = vadd.f32 %v1154, %v644
  %v1156 = vadd.f32 %v1155, %v647
  %v1157 = vadd.f32 %v1156, %v650
  %v1158 = vadd.f32 %v1157, %v653
  %v1159 = vadd.f32 %v1158, %v656
  %v1160 = vadd.f32 %v1159, %v659
  %v1161 = vadd.f32 %v1160, %v662
  %v1162 = vadd.f32 %v1161, %v665
  %v1163 = vadd.f32 %v1162, %v668
  %v1164 = vadd.f32 %v1163, %v671
  %v1165 = vadd.f32 %v1164, %v674
  %v1166 = vadd.f32 %v1165, %v677
  %v1167 = vadd.f32 %v1166, %v680
  %v1168 = vadd.f32 %v1167, %v683
  %v1169 = vadd.f32 %v1168, %v686
  %v1170 = vadd.f32 %v1169, %v689
  %v1171 = vadd.f32 %v1170, %v692
  %v1172 = vadd.f32 %v1171, %v695
  %v1173 = vadd.f32 %v1172, %v698
  %v1174 = vadd.f32 %v1173, %v701
  %v1175 = vadd.f32 %v1174, %v704
  %v1176 = vadd.f32 %v1175, %v707
  %v1177 = vadd.f32 %v1176, %v710
  %v1178 = vadd.f32 %v1177, %v713
  %v1179 = vadd.f32 %v1178, %v716
  %v1180 = vadd.f32 %v1179, %v719
  %v1181 = vadd.f32 %v1180, %v722
  %v1182 = vadd.f32 %v1181, %v725
  %v1183 = vadd.f32 %v1182, %v728
  %v1184 = vadd.f32 %v1183, %v731
  %v1185 = vadd.f32 %v1184, %v734
  %v1186 = vadd.f32 %v1185, %v737
  %v1187 = vadd.f32 %v1186, %v740
  %v1188 = vadd.f32 %v1187, %v743
  %v1189 = vadd.f32 %v1188, %v746
  %v1190 = vadd.f32 %v1189, %v749
  %v1191 = vadd.f32 %v1190, %v752
  %v1192 = vadd.f32 %v1191, %v755
  %v1193 = vadd.f32 %v1192, %v758
  %v1194 = vadd.f32 %v1193, %v761
  %v1195 = vadd.f32 %v1194, %v764
  %v1196 = vadd.f32 %v1195, %v767
  %v1197 = vadd.f32 %v1196, %v770
  %v1198 = vadd.f32 %v1197, %v773
  %v1199 = vadd.f32 %v1198, %v776
  %v1200 = vadd.f32 %v1199, %v779
  %v1201 = vadd.f32 %v1200, %v782
  %v1202 = vadd.f32 %v1201, %v785
  %v1203 = vadd.f32 %v1202, %v788
  %v1204 = vadd.f32 %v1203, %v791
  %v1205 = vadd.f32 %v1204, %v794
  %v1206 = vadd.f32 %v1205, %v797
  %v1207 = vadd.f32 %v1206, %v800
  %v1208 = vadd.f32 %v1207, %v803
  %v1209 = vrot.slane %v1208, 4
  %v1210 = vadd.f32 %v1208, %v1209
  %v1211 = vrot.slane %v1210, 2
  %v1212 = vadd.f32 %v1210, %v1211
  %v1213 = vrot.slane %v1212, 1
  %v1214 = vadd.f32 %v1212, %v1213
  %v1215 = vmul.f32 %v614, %v614
  %v1216 = vmul.f32 %v617, %v617
  %v1217 = vmul.f32 %v620, %v620
  %v1218 = vmul.f32 %v623, %v623
  %v1219 = vmul.f32 %v626, %v626
  %v1220 = vmul.f32 %v629, %v629
  %v1221 = vmul.f32 %v632, %v632
  %v1222 = vmul.f32 %v635, %v635
  %v1223 = vmul.f32 %v638, %v638
  %v1224 = vmul.f32 %v641, %v641
  %v1225 = vmul.f32 %v644, %v644
  %v1226 = vmul.f32 %v647, %v647
  %v1227 = vmul.f32 %v650, %v650
  %v1228 = vmul.f32 %v653, %v653
  %v1229 = vmul.f32 %v656, %v656
  %v1230 = vmul.f32 %v659, %v659
  %v1231 = vmul.f32 %v662, %v662
  %v1232 = vmul.f32 %v665, %v665
  %v1233 = vmul.f32 %v668, %v668
  %v1234 = vmul.f32 %v671, %v671
  %v1235 = vmul.f32 %v674, %v674
  %v1236 = vmul.f32 %v677, %v677
  %v1237 = vmul.f32 %v680, %v680
  %v1238 = vmul.f32 %v683, %v683
  %v1239 = vmul.f32 %v686, %v686
  %v1240 = vmul.f32 %v689, %v689
  %v1241 = vmul.f32 %v692, %v692
  %v1242 = vmul.f32 %v695, %v695
  %v1243 = vmul.f32 %v698, %v698
  %v1244 = vmul.f32 %v701, %v701
  %v1245 = vmul.f32 %v704, %v704
  %v1246 = vmul.f32 %v707, %v707
  %v1247 = vmul.f32 %v710, %v710
  %v1248 = vmul.f32 %v713, %v713
  %v1249 = vmul.f32 %v716, %v716
  %v1250 = vmul.f32 %v719, %v719
  %v1251 = vmul.f32 %v722, %v722
  %v1252 = vmul.f32 %v725, %v725
  %v1253 = vmul.f32 %v728, %v728
  %v1254 = vmul.f32 %v731, %v731
  %v1255 = vmul.f32 %v734, %v734
  %v1256 = vmul.f32 %v737, %v737
  %v1257 = vmul.f32 %v740, %v740
  %v1258 = vmul.f32 %v743, %v743
  %v1259 = vmul.f32 %v746, %v746
  %v1260 = vmul.f32 %v749, %v749
  %v1261 = vmul.f32 %v752, %v752
  %v1262 = vmul.f32 %v755, %v755
  %v1263 = vmul.f32 %v758, %v758
  %v1264 = vmul.f32 %v761, %v761
  %v1265 = vmul.f32 %v764, %v764
  %v1266 = vmul.f32 %v767, %v767
  %v1267 = vmul.f32 %v770, %v770
  %v1268 = vmul.f32 %v773, %v773
  %v1269 = vmul.f32 %v776, %v776
  %v1270 = vmul.f32 %v779, %v779
  %v1271 = vmul.f32 %v782, %v782
  %v1272 = vmul.f32 %v785, %v785
  %v1273 = vmul.f32 %v788, %v788
  %v1274 = vmul.f32 %v791, %v791
  %v1275 = vmul.f32 %v794, %v794
  %v1276 = vmul.f32 %v797, %v797
  %v1277 = vmul.f32 %v800, %v800
  %v1278 = vmul.f32 %v803, %v803
  %v1279 = vadd.f32 %v1215, %v1216
  %v1280 = vadd.f32 %v1279, %v1217
  %v1281 = vadd.f32 %v1280, %v1218
  %v1282 = vadd.f32 %v1281, %v1219
  %v1283 = vadd.f32 %v1282, %v1220
  %v1284 = vadd.f32 %v1283, %v1221
  %v1285 = vadd.f32 %v1284, %v1222
  %v1286 = vadd.f32 %v1285, %v1223
  %v1287 = vadd.f32 %v1286, %v1224
  %v1288 = vadd.f32 %v1287, %v1225
  %v1289 = vadd.f32 %v1288, %v1226
  %v1290 = vadd.f32 %v1289, %v1227
  %v1291 = vadd.f32 %v1290, %v1228
  %v1292 = vadd.f32 %v1291, %v1229
  %v1293 = vadd.f32 %v1292, %v1230
  %v1294 = vadd.f32 %v1293, %v1231
  %v1295 = vadd.f32 %v1294, %v1232
  %v1296 = vadd.f32 %v1295, %v1233
  %v1297 = vadd.f32 %v1296, %v1234
  %v1298 = vadd.f32 %v1297, %v1235
  %v1299 = vadd.f32 %v1298, %v1236
  %v1300 = vadd.f32 %v1299, %v1237
  %v1301 = vadd.f32 %v1300, %v1238
  %v1302 = vadd.f32 %v1301, %v1239
  %v1303 = vadd.f32 %v1302, %v1240
  %v1304 = vadd.f32 %v1303, %v1241
  %v1305 = vadd.f32 %v1304, %v1242
  %v1306 = vadd.f32 %v1305, %v1243
  %v1307 = vadd.f32 %v1306, %v1244
  %v1308 = vadd.f32 %v1307, %v1245
  %v1309 = vadd.f32 %v1308, %v1246
  %v1310 = vadd.f32 %v1309, %v1247
  %v1311 = vadd.f32 %v1310, %v1248
  %v1312 = vadd.f32 %v1311, %v1249
  %v1313 = vadd.f32 %v1312, %v1250
  %v1314 = vadd.f32 %v1313, %v1251
  %v1315 = vadd.f32 %v1314, %v1252
  %v1316 = vadd.f32 %v1315, %v1253
  %v1317 = vadd.f32 %v1316, %v1254
  %v1318 = vadd.f32 %v1317, %v1255
  %v1319 = vadd.f32 %v1318, %v1256
  %v1320 = vadd.f32 %v1319, %v1257
  %v1321 = vadd.f32 %v1320, %v1258
  %v1322 = vadd.f32 %v1321, %v1259
  %v1323 = vadd.f32 %v1322, %v1260
  %v1324 = vadd.f32 %v1323, %v1261
  %v1325 = vadd.f32 %v1324, %v1262
  %v1326 = vadd.f32 %v1325, %v1263
  %v1327 = vadd.f32 %v1326, %v1264
  %v1328 = vadd.f32 %v1327, %v1265
  %v1329 = vadd.f32 %v1328, %v1266
  %v1330 = vadd.f32 %v1329, %v1267
  %v1331 = vadd.f32 %v1330, %v1268
  %v1332 = vadd.f32 %v1331, %v1269
  %v1333 = vadd.f32 %v1332, %v1270
  %v1334 = vadd.f32 %v1333, %v1271
  %v1335 = vadd.f32 %v1334, %v1272
  %v1336 = vadd.f32 %v1335, %v1273
  %v1337 = vadd.f32 %v1336, %v1274
  %v1338 = vadd.f32 %v1337, %v1275
  %v1339 = vadd.f32 %v1338, %v1276
  %v1340 = vadd.f32 %v1339, %v1277
  %v1341 = vadd.f32 %v1340, %v1278
  %v1342 = vrot.slane %v1341, 4
  %v1343 = vadd.f32 %v1341, %v1342
  %v1344 = vrot.slane %v1343, 2
  %v1345 = vadd.f32 %v1343, %v1344
  %v1346 = vrot.slane %v1345, 1
  %v1347 = vadd.f32 %v1345, %v1346
  %v1348 = vsel %vm1140, %v1347, 0.0
  %v1349 = vsel %vm1143, %v1214, %v1348
  %1350 = vst [vmem:[%s9] sm:$0xff] %v1349
  // Predicated region
  $region26: #{resnext_bottleneck_forward.6} parent=0 // pred_check
    _
  $region27: #{resnext_bottleneck_forward.6} parent=0 // pred_check_branch
    %1352 = sbr.rel (0) target = $region29
  $region28: #{resnext_bottleneck_forward.6} parent=0 // pred_region
    _
  $region29: #{resnext_bottleneck_forward.6} parent=0 // pred_fallthru
    _
  // Predicated region
  $region30: #{resnext_bottleneck_forward.6} parent=0 // pred_check
    _
  $region31: #{resnext_bottleneck_forward.6} parent=0 // pred_check_branch
    %1354 = sbr.rel (0) target = $region33
  $region32: #{resnext_bottleneck_forward.6} parent=0 // pred_region
    _
  $region33: #{resnext_bottleneck_forward.6} parent=0 // pred_fallthru
    _
  // Predicated region
  $region34: #{resnext_bottleneck_forward.6} parent=0 // pred_check
    _
  $region35: #{resnext_bottleneck_forward.6} parent=0 // pred_check_branch
    %1356 = sbr.rel (0) target = $region37
  $region36: #{resnext_bottleneck_forward.6} parent=0 // pred_region
    _
  $region37: #{resnext_bottleneck_forward.6} parent=0 // pred_fallthru
    _
  // Predicated region
  $region38: #{resnext_bottleneck_forward.6} parent=0 // pred_check
    _
  $region39: #{resnext_bottleneck_forward.6} parent=0 // pred_check_branch
    %1358 = sbr.rel (0) target = $region41
  $region40: #{resnext_bottleneck_forward.6} parent=0 // pred_region
    _
  $region41: #{resnext_bottleneck_forward.6} parent=0 // pred_fallthru
    _
  // Predicated region
  $region42: #{resnext_bottleneck_forward.6} parent=0 // pred_check
    _
  $region43: #{resnext_bottleneck_forward.6} parent=0 // pred_check_branch
    %1360 = sbr.rel (0) target = $region45
  $region44: #{resnext_bottleneck_forward.6} parent=0 // pred_region
    _
  $region45: #{resnext_bottleneck_forward.6} parent=0 // pred_fallthru
    _
  // Predicated region
  $region46: #{resnext_bottleneck_forward.6} parent=0 // pred_check
    _
  $region47: #{resnext_bottleneck_forward.6} parent=0 // pred_check_branch
    %1362 = sbr.rel (0) target = $region49
  $region48: #{resnext_bottleneck_forward.6} parent=0 // pred_region
    _
  $region49: #{resnext_bottleneck_forward.6} parent=0 // pred_fallthru
    _
  // Predicated region
  $region50: #{resnext_bottleneck_forward.6} parent=0 // pred_check
    _
  $region51: #{resnext_bottleneck_forward.6} parent=0 // pred_check_branch
    %1364 = sbr.rel (0) target = $region53
  $region52: #{resnext_bottleneck_forward.6} parent=0 // pred_region
    _
  $region53: #{resnext_bottleneck_forward.6} parent=0 // pred_fallthru
    _
  // Predicated region
  $region54: #{resnext_bottleneck_forward.6} parent=0 // pred_check
    _
  $region55: #{resnext_bottleneck_forward.6} parent=0 // pred_check_branch
    %1366 = sbr.rel (0) target = $region57
  $region56: #{resnext_bottleneck_forward.6} parent=0 // pred_region
    _
  $region57: #{resnext_bottleneck_forward.6} parent=0 // pred_fallthru
    _

// kernel: resnext_bottleneck_forward.5
$region0: #{resnext_bottleneck_forward.5}
  #allocation0 [shape = 'u32[]', space=smem, size = 0x4, offset = 0x4, fixed_abs, tag = 'smem constant byte address 0x4 - core index']
  #allocation1 [shape = 'u32[72,128]{1,0:T(1,128)}', space=vmem, size = 0x9000, scoped, tag = 'internal scratch']
  #allocation2 [shape = 'f32[18,18,128]{2,1,0:T(8,128)}', space=vmem, size = 0x36000, scoped, tag = 'scratch operand']
  %s0 = inlined_call_operand.vmem [shape: f32[2,16,16,128], index: 0, kind: input, shape index: {}, may-alias: {0,1,2}]
  %s1 = inlined_call_operand.vmem [shape: f32[2,16,16,128], index: 1, kind: input, shape index: {}, may-alias: {0,1,2}]
  %s2 = inlined_call_operand.vmem [shape: f32[2,16,16,128], index: 2, kind: input, shape index: {}, may-alias: {0,1,2}]
  %s3 = inlined_call_operand.vmem [shape: f32[1,128], index: 3, kind: input, shape index: {}]
  %s4 = inlined_call_operand.vmem [shape: f32[1,128], index: 4, kind: input, shape index: {}]
  %s5 = inlined_call_operand.vmem [shape: f32[9,128,128], index: 5, kind: input, shape index: {}]
  %s6 = inlined_call_operand.vmem [shape: f32[2,16,16,128], index: 6, kind: output, shape index: {0}]
  %s7 = inlined_call_operand.vmem [shape: f32[2,8,128], index: 7, kind: output, shape index: {1}]
  %8 = xla_tuple %s6, %s7
  %s9 = sld [smem:[#allocation0]]
  $region65: #{resnext_bottleneck_forward.5} parent=0
    _
  %s11 = ssub.s32 1, %s9
  %s12 = scalar_select 0, %s11, %s9
  loop: start=0, step=1, limit=4
  $region2: #{resnext_bottleneck_forward.5} parent=0 // loop_pre_header
    _
  $region3: #{resnext_bottleneck_forward.5} parent=0 // loop_header
    %s14 = sphi 0, %s18
    %p15 = scmp.ge.s32.totalorder %s14, 4
    %s21 = sphi 0, %s33
    %s22 = sphi 0, %s29
    %s23 = sphi 0, %s21
    %s24 = sphi 0, %s22
    %s25 = sphi 0, %s23
    %s26 = sphi 0, %s24
    %s46 = sphi 0, %s48
    %s49 = sphi 0, %s46
    %s50 = sphi 0, %s49
    %s66 = sphi 0, %s50
    %s74 = sphi 0, %s76
    %s77 = sphi 0, %s74
    %s78 = sphi 0, %s77
    %s94 = sphi 0, %s78
    %s110 = sphi 0, %s112
    %s113 = sphi 0, %s110
    %s114 = sphi 0, %s113
    %s130 = sphi 0, %s114
    %s134 = sphi 0, %s134
    %s136 = sphi 0, %s134
    %s137 = sphi 0, %s136
    %s151 = sphi 0, %s137
    %s155 = sphi 0, %s155
    %s157 = sphi 0, %s155
    %s158 = sphi 0, %s157
    %s172 = sphi 0, %s158
    %s176 = sphi 0, %s176
    %s178 = sphi 0, %s176
    %s179 = sphi 0, %s178
    %s193 = sphi 0, %s179
    %s201 = sphi 0, %s203
    %s204 = sphi 0, %s201
    %s205 = sphi 0, %s204
    %s221 = sphi 0, %s205
    %s229 = sphi 0, %s231
    %s232 = sphi 0, %s229
    %s233 = sphi 0, %s232
    %s249 = sphi 0, %s233
  $region4: #{resnext_bottleneck_forward.5} parent=0 // loop_header_branch
    %17 = sbr.rel (%p15) target = $region8
  $region5: #{resnext_bottleneck_forward.5} parent=0 // loop_body
    %s19 = ssub.s32 %s14, 1
    %s20 = ssub.s32 %s14, 2
    %s27 = sadd.s32 1, %s22
    %p28 = scmp.ge.s32.totalorder %s27, 1
    %s29 = scalar_select %p28, 0, %s27
    %s30 = sadd.s32 1, %s21
    %s31 = scalar_select %p28, %s30, %s21
    %p32 = scmp.ge.s32.totalorder %s31, 2
    %s33 = scalar_select %p32, 0, %s31
    %s34 = smul.u32 %s22, 16
    %s35 = ssub.s32 %s34, 1
    %p36 = scmp.gt.s32.totalorder %s35, 0
    %s37 = scalar_select %p36, %s35, 0
    %s38 = smul.u32 %s29, 16
    %s39 = ssub.s32 %s38, 1
    %p40 = scmp.gt.s32.totalorder %s39, 0
    %s41 = scalar_select %p40, %s39, 0
    %s42 = ssub.s32 %s21, %s33
    %s43 = ssub.s32 %s37, %s41
    %s44 = sor.u32 %s42, %s43
    %p45 = scmp.eq.s32.totalorder %s44, 0
    %s47 = sadd.s32 %s46, 1
    %s48 = scalar_select %p45, %s46, %s47
    %p51 = pneg %p45
    %p52 = scmp.eq.s32.totalorder %s14, 1
    %p53 = por %p51, %p52
    %p54 = scmp.ne.s32.totalorder %s46, %s49
    %p55 = scmp.eq.s32.totalorder %s14, 0
    %p56 = por %p54, %p55
    %p57 = scmp.ne.s32.totalorder %s46, %s49
    %p58 = scmp.eq.s32.totalorder %s19, 1
    %p59 = por %p57, %p58
    %p60 = scmp.ne.s32.totalorder %s49, %s50
    %p61 = scmp.eq.s32.totalorder %s19, 0
    %p62 = por %p60, %p61
    %p63 = scmp.ne.s32.totalorder %s49, %s50
    %p64 = scmp.eq.s32.totalorder %s20, 1
    %p65 = por %p63, %p64
    %p67 = scmp.ne.s32.totalorder %s50, %s66
    %p68 = scmp.eq.s32.totalorder %s20, 0
    %p69 = por %p67, %p68
    %s70 = ssub.s32 %s21, %s33
    %s71 = ssub.s32 %s22, %s29
    %s72 = sor.u32 %s70, %s71
    %p73 = scmp.eq.s32.totalorder %s72, 0
    %s75 = sadd.s32 %s74, 1
    %s76 = scalar_select %p73, %s74, %s75
    %p79 = pneg %p73
    %p80 = scmp.eq.s32.totalorder %s14, 1
    %p81 = por %p79, %p80
    %p82 = scmp.ne.s32.totalorder %s74, %s77
    %p83 = scmp.eq.s32.totalorder %s14, 0
    %p84 = por %p82, %p83
    %p85 = scmp.ne.s32.totalorder %s74, %s77
    %p86 = scmp.eq.s32.totalorder %s19, 1
    %p87 = por %p85, %p86
    %p88 = scmp.ne.s32.totalorder %s77, %s78
    %p89 = scmp.eq.s32.totalorder %s19, 0
    %p90 = por %p88, %p89
    %p91 = scmp.ne.s32.totalorder %s77, %s78
    %p92 = scmp.eq.s32.totalorder %s20, 1
    %p93 = por %p91, %p92
    %p95 = scmp.ne.s32.totalorder %s78, %s94
    %p96 = scmp.eq.s32.totalorder %s20, 0
    %p97 = por %p95, %p96
    %s98 = sadd.s32 %s22, 1
    %s99 = smul.u32 %s98, 16
    %p100 = scmp.lt.s32.totalorder %s99, 15
    %s101 = scalar_select %p100, %s99, 15
    %s102 = sadd.s32 %s29, 1
    %s103 = smul.u32 %s102, 16
    %p104 = scmp.lt.s32.totalorder %s103, 15
    %s105 = scalar_select %p104, %s103, 15
    %s106 = ssub.s32 %s21, %s33
    %s107 = ssub.s32 %s101, %s105
    %s108 = sor.u32 %s106, %s107
    %p109 = scmp.eq.s32.totalorder %s108, 0
    %s111 = sadd.s32 %s110, 1
    %s112 = scalar_select %p109, %s110, %s111
    %p115 = pneg %p109
    %p116 = scmp.eq.s32.totalorder %s14, 1
    %p117 = por %p115, %p116
    %p118 = scmp.ne.s32.totalorder %s110, %s113
    %p119 = scmp.eq.s32.totalorder %s14, 0
    %p120 = por %p118, %p119
    %p121 = scmp.ne.s32.totalorder %s110, %s113
    %p122 = scmp.eq.s32.totalorder %s19, 1
    %p123 = por %p121, %p122
    %p124 = scmp.ne.s32.totalorder %s113, %s114
    %p125 = scmp.eq.s32.totalorder %s19, 0
    %p126 = por %p124, %p125
    %p127 = scmp.ne.s32.totalorder %s113, %s114
    %p128 = scmp.eq.s32.totalorder %s20, 1
    %p129 = por %p127, %p128
    %p131 = scmp.ne.s32.totalorder %s114, %s130
    %p132 = scmp.eq.s32.totalorder %s20, 0
    %p133 = por %p131, %p132
    %s135 = sadd.s32 %s134, 1
    %p138 = scmp.eq.s32.totalorder %s14, 1
    %p139 = scmp.ne.s32.totalorder %s134, %s136
    %p140 = scmp.eq.s32.totalorder %s14, 0
    %p141 = por %p139, %p140
    %p142 = scmp.ne.s32.totalorder %s134, %s136
    %p143 = scmp.eq.s32.totalorder %s19, 1
    %p144 = por %p142, %p143
    %p145 = scmp.ne.s32.totalorder %s136, %s137
    %p146 = scmp.eq.s32.totalorder %s19, 0
    %p147 = por %p145, %p146
    %p148 = scmp.ne.s32.totalorder %s136, %s137
    %p149 = scmp.eq.s32.totalorder %s20, 1
    %p150 = por %p148, %p149
    %p152 = scmp.ne.s32.totalorder %s137, %s151
    %p153 = scmp.eq.s32.totalorder %s20, 0
    %p154 = por %p152, %p153
    %s156 = sadd.s32 %s155, 1
    %p159 = scmp.eq.s32.totalorder %s14, 1
    %p160 = scmp.ne.s32.totalorder %s155, %s157
    %p161 = scmp.eq.s32.totalorder %s14, 0
    %p162 = por %p160, %p161
    %p163 = scmp.ne.s32.totalorder %s155, %s157
    %p164 = scmp.eq.s32.totalorder %s19, 1
    %p165 = por %p163, %p164
    %p166 = scmp.ne.s32.totalorder %s157, %s158
    %p167 = scmp.eq.s32.totalorder %s19, 0
    %p168 = por %p166, %p167
    %p169 = scmp.ne.s32.totalorder %s157, %s158
    %p170 = scmp.eq.s32.totalorder %s20, 1
    %p171 = por %p169, %p170
    %p173 = scmp.ne.s32.totalorder %s158, %s172
    %p174 = scmp.eq.s32.totalorder %s20, 0
    %p175 = por %p173, %p174
    %s177 = sadd.s32 %s176, 1
    %p180 = scmp.eq.s32.totalorder %s14, 1
    %p181 = scmp.ne.s32.totalorder %s176, %s178
    %p182 = scmp.eq.s32.totalorder %s14, 0
    %p183 = por %p181, %p182
    %p184 = scmp.ne.s32.totalorder %s176, %s178
    %p185 = scmp.eq.s32.totalorder %s19, 1
    %p186 = por %p184, %p185
    %p187 = scmp.ne.s32.totalorder %s178, %s179
    %p188 = scmp.eq.s32.totalorder %s19, 0
    %p189 = por %p187, %p188
    %p190 = scmp.ne.s32.totalorder %s178, %s179
    %p191 = scmp.eq.s32.totalorder %s20, 1
    %p192 = por %p190, %p191
    %p194 = scmp.ne.s32.totalorder %s179, %s193
    %p195 = scmp.eq.s32.totalorder %s20, 0
    %p196 = por %p194, %p195
    %s197 = ssub.s32 %s21, %s33
    %s198 = ssub.s32 %s22, %s29
    %s199 = sor.u32 %s197, %s198
    %p200 = scmp.eq.s32.totalorder %s199, 0
    %s202 = sadd.s32 %s201, 1
    %s203 = scalar_select %p200, %s201, %s202
    %p206 = pneg %p200
    %p207 = scmp.eq.s32.totalorder %s14, 1
    %p208 = por %p206, %p207
    %p209 = scmp.ne.s32.totalorder %s201, %s204
    %p210 = scmp.eq.s32.totalorder %s14, 0
    %p211 = por %p209, %p210
    %p212 = scmp.ne.s32.totalorder %s201, %s204
    %p213 = scmp.eq.s32.totalorder %s19, 1
    %p214 = por %p212, %p213
    %p215 = scmp.ne.s32.totalorder %s204, %s205
    %p216 = scmp.eq.s32.totalorder %s19, 0
    %p217 = por %p215, %p216
    %p218 = scmp.ne.s32.totalorder %s204, %s205
    %p219 = scmp.eq.s32.totalorder %s20, 1
    %p220 = por %p218, %p219
    %p222 = scmp.ne.s32.totalorder %s205, %s221
    %p223 = scmp.eq.s32.totalorder %s20, 0
    %p224 = por %p222, %p223
    %s225 = sadd.s32 %s21, %s22
    %s226 = sadd.s32 %s33, %s29
    %s227 = ssub.s32 %s225, %s226
    %p228 = scmp.eq.s32.totalorder %s227, 0
    %s230 = sadd.s32 %s229, 1
    %s231 = scalar_select %p228, %s229, %s230
    %p234 = pneg %p228
    %p235 = scmp.eq.s32.totalorder %s14, 1
    %p236 = por %p234, %p235
    %p237 = scmp.ne.s32.totalorder %s229, %s232
    %p238 = scmp.eq.s32.totalorder %s14, 0
    %p239 = por %p237, %p238
    %p240 = scmp.ne.s32.totalorder %s229, %s232
    %p241 = scmp.eq.s32.totalorder %s19, 1
    %p242 = por %p240, %p241
    %p243 = scmp.ne.s32.totalorder %s232, %s233
    %p244 = scmp.eq.s32.totalorder %s19, 0
    %p245 = por %p243, %p244
    %p246 = scmp.ne.s32.totalorder %s232, %s233
    %p247 = scmp.eq.s32.totalorder %s20, 1
    %p248 = por %p246, %p247
    %p250 = scmp.ne.s32.totalorder %s233, %s249
    %p251 = scmp.eq.s32.totalorder %s20, 0
    %p252 = por %p250, %p251
    %p253 = scmp.le.s32.totalorder 1, %s14
    %p254 = scmp.lt.s32.totalorder %s14, 3
    %p255 = pnand %p253, %p254
    %p256 = pneg %p255
    // Predicated region
    $region9: #{resnext_bottleneck_forward.5} parent=5 // pred_check
      _
    $region10: #{resnext_bottleneck_forward.5} parent=5 // pred_check_branch
      %258 = sbr.rel (%p255) target = $region12
    $region11: #{resnext_bottleneck_forward.5} parent=5 // pred_region
      %s259 = ssub.s32 %s14, 1
      // Predicated region
      $region13: #{resnext_bottleneck_forward.5} parent=11 // pred_check
        %p260 = pneg %p147
      $region14: #{resnext_bottleneck_forward.5} parent=11 // pred_check_branch
        %262 = sbr.rel (%p260) target = $region16
      $region15: #{resnext_bottleneck_forward.5} parent=11 // pred_region
        _
      $region16: #{resnext_bottleneck_forward.5} parent=11 // pred_fallthru
        _
      // Predicated region
      $region17: #{resnext_bottleneck_forward.5} parent=11 // pred_check
        %p263 = pneg %p168
      $region18: #{resnext_bottleneck_forward.5} parent=11 // pred_check_branch
        %265 = sbr.rel (%p263) target = $region20
      $region19: #{resnext_bottleneck_forward.5} parent=11 // pred_region
        _
      $region20: #{resnext_bottleneck_forward.5} parent=11 // pred_fallthru
        _
      // Predicated region
      $region21: #{resnext_bottleneck_forward.5} parent=11 // pred_check
        %p266 = pneg %p189
      $region22: #{resnext_bottleneck_forward.5} parent=11 // pred_check_branch
        %268 = sbr.rel (%p266) target = $region24
      $region23: #{resnext_bottleneck_forward.5} parent=11 // pred_region
        _
      $region24: #{resnext_bottleneck_forward.5} parent=11 // pred_fallthru
        _
    $region12: #{resnext_bottleneck_forward.5} parent=5 // pred_fallthru
      _
    %p269 = scmp.lt.s32.totalorder %s14, 2
    // Predicated region
    $region25: #{resnext_bottleneck_forward.5} parent=5 // pred_check
      %p270 = pneg %p269
    $region26: #{resnext_bottleneck_forward.5} parent=5 // pred_check_branch
      %272 = sbr.rel (%p270) target = $region28
    $region27: #{resnext_bottleneck_forward.5} parent=5 // pred_region
      // Predicated region
      $region29: #{resnext_bottleneck_forward.5} parent=27 // pred_check
        %p273 = pneg %p56
      $region30: #{resnext_bottleneck_forward.5} parent=27 // pred_check_branch
        %275 = sbr.rel (%p273) target = $region32
      $region31: #{resnext_bottleneck_forward.5} parent=27 // pred_region
        %s276 = smul.u32 %s22, 16
        %s277 = ssub.s32 %s276, 1
        %p278 = scmp.gt.s32.totalorder %s277, 0
        %s279 = scalar_select %p278, %s277, 0
        %p280 = scmp.lt.s32.totalorder %s21, 1
        %s281 = scalar_select %p280, %s21, 1
        %p282 = scmp.lt.s32.totalorder %s279, 15
        %s283 = scalar_select %p282, %s279, 15
        %s284 = smul.addr %s283, 2
        %s285 = smul.addr %s281, 32
        %s286 = sadd.s32 %s284, %s285
        %s287 = smul.addr %s286, 8
        %s288 = scalar_lea.vmem %s0, %s287
        %s289 = smul.u32 %s22, 16
        %s290 = ssub.s32 %s289, 1
        %p291 = scmp.gt.s32.totalorder %s290, 0
        %s292 = scalar_select %p291, %s290, 0
      $region32: #{resnext_bottleneck_forward.5} parent=27 // pred_fallthru
        _
      // Predicated region
      $region33: #{resnext_bottleneck_forward.5} parent=27 // pred_check
        %p293 = pneg %p84
      $region34: #{resnext_bottleneck_forward.5} parent=27 // pred_check_branch
        %295 = sbr.rel (%p293) target = $region36
      $region35: #{resnext_bottleneck_forward.5} parent=27 // pred_region
        %s296 = smul.u32 16, %s22
        %p297 = scmp.lt.s32.totalorder %s21, 1
        %s298 = scalar_select %p297, %s21, 1
        %p299 = scmp.lt.s32.totalorder %s296, 15
        %s300 = scalar_select %p299, %s296, 15
        %s301 = smul.addr %s300, 2
        %s302 = smul.addr %s298, 32
        %s303 = sadd.s32 %s301, %s302
        %s304 = smul.addr %s303, 8
        %s305 = scalar_lea.vmem %s1, %s304
        %s306 = smul.u32 16, %s22
      $region36: #{resnext_bottleneck_forward.5} parent=27 // pred_fallthru
        _
      // Predicated region
      $region37: #{resnext_bottleneck_forward.5} parent=27 // pred_check
        %p307 = pneg %p120
      $region38: #{resnext_bottleneck_forward.5} parent=27 // pred_check_branch
        %309 = sbr.rel (%p307) target = $region40
      $region39: #{resnext_bottleneck_forward.5} parent=27 // pred_region
        %s310 = sadd.s32 %s22, 1
        %s311 = smul.u32 %s310, 16
        %p312 = scmp.lt.s32.totalorder %s311, 15
        %s313 = scalar_select %p312, %s311, 15
        %p314 = scmp.lt.s32.totalorder %s21, 1
        %s315 = scalar_select %p314, %s21, 1
        %p316 = scmp.lt.s32.totalorder %s313, 15
        %s317 = scalar_select %p316, %s313, 15
        %s318 = smul.addr %s317, 2
        %s319 = smul.addr %s315, 32
        %s320 = sadd.s32 %s318, %s319
        %s321 = smul.addr %s320, 8
        %s322 = scalar_lea.vmem %s2, %s321
        %s323 = sadd.s32 %s22, 1
        %s324 = smul.u32 %s323, 16
        %p325 = scmp.lt.s32.totalorder %s324, 15
        %s326 = scalar_select %p325, %s324, 15
      $region40: #{resnext_bottleneck_forward.5} parent=27 // pred_fallthru
        _
    $region28: #{resnext_bottleneck_forward.5} parent=5 // pred_fallthru
      _
    %p327 = scmp.le.s32.totalorder 1, %s14
    %p328 = scmp.lt.s32.totalorder %s14, 3
    %p329 = pnand %p327, %p328
    %p330 = pneg %p329
    // Predicated region
    $region41: #{resnext_bottleneck_forward.5} parent=5 // pred_check
      _
    $region42: #{resnext_bottleneck_forward.5} parent=5 // pred_check_branch
      %332 = sbr.rel (%p329) target = $region44
    $region43: #{resnext_bottleneck_forward.5} parent=5 // pred_region
      %s333 = ssub.s32 %s14, 1
      %s334 = smul.u32 %s24, 16
      %s335 = ssub.s32 %s334, 1
      %p336 = scmp.gt.s32.totalorder %s335, 0
      %s337 = scalar_select %p336, %s335, 0
      %p338 = scmp.lt.s32.totalorder %s23, 1
      %s339 = scalar_select %p338, %s23, 1
      %p340 = scmp.lt.s32.totalorder %s337, 15
      %s341 = scalar_select %p340, %s337, 15
      %s342 = smul.addr %s341, 2
      %s343 = smul.addr %s339, 32
      %s344 = sadd.s32 %s342, %s343
      %s345 = smul.addr %s344, 8
      %s346 = scalar_lea.vmem %s0, %s345
      %p347 = pneg %p62
      %p348 = pneg %p59
      %s349 = smul.u32 16, %s24
      %p350 = scmp.lt.s32.totalorder %s23, 1
      %s351 = scalar_select %p350, %s23, 1
      %p352 = scmp.lt.s32.totalorder %s349, 15
      %s353 = scalar_select %p352, %s349, 15
      %s354 = smul.addr %s353, 2
      %s355 = smul.addr %s351, 32
      %s356 = sadd.s32 %s354, %s355
      %s357 = smul.addr %s356, 8
      %s358 = scalar_lea.vmem %s1, %s357
      %p359 = pneg %p90
      %p360 = pneg %p87
      %s361 = sadd.s32 %s24, 1
      %s362 = smul.u32 %s361, 16
      %p363 = scmp.lt.s32.totalorder %s362, 15
      %s364 = scalar_select %p363, %s362, 15
      %p365 = scmp.lt.s32.totalorder %s23, 1
      %s366 = scalar_select %p365, %s23, 1
      %p367 = scmp.lt.s32.totalorder %s364, 15
      %s368 = scalar_select %p367, %s364, 15
      %s369 = smul.addr %s368, 2
      %s370 = smul.addr %s366, 32
      %s371 = sadd.s32 %s369, %s370
      %s372 = smul.addr %s371, 8
      %s373 = scalar_lea.vmem %s2, %s372
      %p374 = pneg %p126
      %p375 = pneg %p123
      %p376 = pneg %p147
      %p377 = pneg %p144
      %p378 = pneg %p168
      %p379 = pneg %p165
      %p380 = pneg %p189
      %p381 = pneg %p186
      %p382 = pneg %p217
      %p383 = pneg %p214
      %s384 = smul.u32 16, %s24
      %p385 = scmp.lt.s32.totalorder %s23, 1
      %s386 = scalar_select %p385, %s23, 1
      %p387 = scmp.lt.s32.totalorder %s384, 15
      %s388 = scalar_select %p387, %s384, 15
      %s389 = smul.addr %s388, 2
      %s390 = smul.addr %s386, 32
      %s391 = sadd.s32 %s389, %s390
      %s392 = smul.addr %s391, 8
      %s393 = scalar_lea.vmem %s6, %s392
      %p394 = pneg %p245
      %p395 = pneg %p242
      %s396 = sadd.s32 %s23, %s24
      %p397 = scmp.lt.s32.totalorder %s396, 1
      %s398 = scalar_select %p397, %s396, 1
      %s399 = smul.addr %s398, 8
      %s400 = scalar_lea.vmem %s7, %s399
      %s401 = smul.u32 %s24, 16
      %s402 = ssub.s32 %s401, 1
      %p403 = scmp.gt.s32.totalorder %s402, 0
      %s404 = scalar_select %p403, %s402, 0
      %p405 = scmp.lt.s32.totalorder %s23, 1
      %s406 = scalar_select %p405, %s23, 1
      %p407 = scmp.lt.s32.totalorder %s404, 15
      %s408 = scalar_select %p407, %s404, 15
      %s409 = smul.addr %s408, 2
      %s410 = smul.addr %s406, 32
      %s411 = sadd.s32 %s409, %s410
      %s412 = smul.addr %s411, 8
      %s413 = scalar_lea.vmem %s0, %s412
      %s414 = smul.u32 %s24, 16
      %s415 = ssub.s32 %s414, 1
      %p416 = scmp.gt.s32.totalorder %s415, 0
      %s417 = scalar_select %p416, %s415, 0
      %s418 = smul.u32 16, %s24
      %p419 = scmp.lt.s32.totalorder %s23, 1
      %s420 = scalar_select %p419, %s23, 1
      %p421 = scmp.lt.s32.totalorder %s418, 15
      %s422 = scalar_select %p421, %s418, 15
      %s423 = smul.addr %s422, 2
      %s424 = smul.addr %s420, 32
      %s425 = sadd.s32 %s423, %s424
      %s426 = smul.addr %s425, 8
      %s427 = scalar_lea.vmem %s1, %s426
      %s428 = smul.u32 16, %s24
      %s429 = sadd.s32 %s24, 1
      %s430 = smul.u32 %s429, 16
      %p431 = scmp.lt.s32.totalorder %s430, 15
      %s432 = scalar_select %p431, %s430, 15
      %p433 = scmp.lt.s32.totalorder %s23, 1
      %s434 = scalar_select %p433, %s23, 1
      %p435 = scmp.lt.s32.totalorder %s432, 15
      %s436 = scalar_select %p435, %s432, 15
      %s437 = smul.addr %s436, 2
      %s438 = smul.addr %s434, 32
      %s439 = sadd.s32 %s437, %s438
      %s440 = smul.addr %s439, 8
      %s441 = scalar_lea.vmem %s2, %s440
      %s442 = sadd.s32 %s24, 1
      %s443 = smul.u32 %s442, 16
      %p444 = scmp.lt.s32.totalorder %s443, 15
      %s445 = scalar_select %p444, %s443, 15
      %s446 = smul.u32 16, %s24
      %p447 = scmp.lt.s32.totalorder %s23, 1
      %s448 = scalar_select %p447, %s23, 1
      %p449 = scmp.lt.s32.totalorder %s446, 15
      %s450 = scalar_select %p449, %s446, 15
      %s451 = smul.addr %s450, 2
      %s452 = smul.addr %s448, 32
      %s453 = sadd.s32 %s451, %s452
      %s454 = smul.addr %s453, 8
      %s455 = scalar_lea.vmem %s6, %s454
      %s456 = smul.u32 16, %s24
      %s457 = sadd.s32 %s23, %s24
      %p458 = scmp.lt.s32.totalorder %s457, 1
      %s459 = scalar_select %p458, %s457, 1
      %s460 = smul.addr %s459, 8
      %s461 = scalar_lea.vmem %s7, %s460
      %s462 = sadd.s32 %s23, %s24
      %v463 = vld [vmem:[%s3] sm:$0x1]
      %v464 = vld [vmem:[%s4] sm:$0x1]
      %v465 = vld [vmem:[%s427] sm:$0xff]
      %v466 = vld [vmem:[%s427 + $0x8] sm:$0xff]
      %v467 = vld [vmem:[%s427 + $0x10] sm:$0xff]
      %v468 = vld [vmem:[%s427 + $0x18] sm:$0xff]
      %v469 = vld [vmem:[%s427 + $0x20] sm:$0xff]
      %v470 = vld [vmem:[%s427 + $0x28] sm:$0xff]
      %v471 = vld [vmem:[%s427 + $0x30] sm:$0xff]
      %v472 = vld [vmem:[%s427 + $0x38] sm:$0xff]
      %v473 = vld [vmem:[%s427 + $0x40] sm:$0xff]
      %v474 = vld [vmem:[%s427 + $0x48] sm:$0xff]
      %v475 = vld [vmem:[%s427 + $0x50] sm:$0xff]
      %v476 = vld [vmem:[%s427 + $0x58] sm:$0xff]
      %v477 = vld [vmem:[%s427 + $0x60] sm:$0xff]
      %v478 = vld [vmem:[%s427 + $0x68] sm:$0xff]
      %v479 = vld [vmem:[%s427 + $0x70] sm:$0xff]
      %v480 = vld [vmem:[%s427 + $0x78] sm:$0xff]
      %v481 = vld [vmem:[%s427 + $0x80] sm:$0xff]
      %v482 = vld [vmem:[%s427 + $0x88] sm:$0xff]
      %v483 = vld [vmem:[%s427 + $0x90] sm:$0xff]
      %v484 = vld [vmem:[%s427 + $0x98] sm:$0xff]
      %v485 = vld [vmem:[%s427 + $0xa0] sm:$0xff]
      %v486 = vld [vmem:[%s427 + $0xa8] sm:$0xff]
      %v487 = vld [vmem:[%s427 + $0xb0] sm:$0xff]
      %v488 = vld [vmem:[%s427 + $0xb8] sm:$0xff]
      %v489 = vld [vmem:[%s427 + $0xc0] sm:$0xff]
      %v490 = vld [vmem:[%s427 + $0xc8] sm:$0xff]
      %v491 = vld [vmem:[%s427 + $0xd0] sm:$0xff]
      %v492 = vld [vmem:[%s427 + $0xd8] sm:$0xff]
      %v493 = vld [vmem:[%s427 + $0xe0] sm:$0xff]
      %v494 = vld [vmem:[%s427 + $0xe8] sm:$0xff]
      %v495 = vld [vmem:[%s427 + $0xf0] sm:$0xff]
      %v496 = vld [vmem:[%s427 + $0xf8] sm:$0xff]
      %v498 = vperm.slane %v463, 0
      %v500 = vmul.f32 %v465, %v498
      %v501 = vmul.f32 %v466, %v498
      %v502 = vmul.f32 %v467, %v498
      %v503 = vmul.f32 %v468, %v498
      %v504 = vmul.f32 %v469, %v498
      %v505 = vmul.f32 %v470, %v498
      %v506 = vmul.f32 %v471, %v498
      %v507 = vmul.f32 %v472, %v498
      %v508 = vmul.f32 %v473, %v498
      %v509 = vmul.f32 %v474, %v498
      %v510 = vmul.f32 %v475, %v498
      %v511 = vmul.f32 %v476, %v498
      %v512 = vmul.f32 %v477, %v498
      %v513 = vmul.f32 %v478, %v498
      %v514 = vmul.f32 %v479, %v498
      %v515 = vmul.f32 %v480, %v498
      %v516 = vmul.f32 %v481, %v498
      %v517 = vmul.f32 %v482, %v498
      %v518 = vmul.f32 %v483, %v498
      %v519 = vmul.f32 %v484, %v498
      %v520 = vmul.f32 %v485, %v498
      %v521 = vmul.f32 %v486, %v498
      %v522 = vmul.f32 %v487, %v498
      %v523 = vmul.f32 %v488, %v498
      %v524 = vmul.f32 %v489, %v498
      %v525 = vmul.f32 %v490, %v498
      %v526 = vmul.f32 %v491, %v498
      %v527 = vmul.f32 %v492, %v498
      %v528 = vmul.f32 %v493, %v498
      %v529 = vmul.f32 %v494, %v498
      %v530 = vmul.f32 %v495, %v498
      %v531 = vmul.f32 %v496, %v498
      %v533 = vperm.slane %v464, 0
      %v535 = vadd.f32 %v500, %v533
      %v536 = vadd.f32 %v501, %v533
      %v537 = vadd.f32 %v502, %v533
      %v538 = vadd.f32 %v503, %v533
      %v539 = vadd.f32 %v504, %v533
      %v540 = vadd.f32 %v505, %v533
      %v541 = vadd.f32 %v506, %v533
      %v542 = vadd.f32 %v507, %v533
      %v543 = vadd.f32 %v508, %v533
      %v544 = vadd.f32 %v509, %v533
      %v545 = vadd.f32 %v510, %v533
      %v546 = vadd.f32 %v511, %v533
      %v547 = vadd.f32 %v512, %v533
      %v548 = vadd.f32 %v513, %v533
      %v549 = vadd.f32 %v514, %v533
      %v550 = vadd.f32 %v515, %v533
      %v551 = vadd.f32 %v516, %v533
      %v552 = vadd.f32 %v517, %v533
      %v553 = vadd.f32 %v518, %v533
      %v554 = vadd.f32 %v519, %v533
      %v555 = vadd.f32 %v520, %v533
      %v556 = vadd.f32 %v521, %v533
      %v557 = vadd.f32 %v522, %v533
      %v558 = vadd.f32 %v523, %v533
      %v559 = vadd.f32 %v524, %v533
      %v560 = vadd.f32 %v525, %v533
      %v561 = vadd.f32 %v526, %v533
      %v562 = vadd.f32 %v527, %v533
      %v563 = vadd.f32 %v528, %v533
      %v564 = vadd.f32 %v529, %v533
      %v565 = vadd.f32 %v530, %v533
      %v566 = vadd.f32 %v531, %v533
      %v567 = vmax.f32 %v535, 0.0
      %v568 = vmax.f32 %v536, 0.0
      %v569 = vmax.f32 %v537, 0.0
      %v570 = vmax.f32 %v538, 0.0
      %v571 = vmax.f32 %v539, 0.0
      %v572 = vmax.f32 %v540, 0.0
      %v573 = vmax.f32 %v541, 0.0
      %v574 = vmax.f32 %v542, 0.0
      %v575 = vmax.f32 %v543, 0.0
      %v576 = vmax.f32 %v544, 0.0
      %v577 = vmax.f32 %v545, 0.0
      %v578 = vmax.f32 %v546, 0.0
      %v579 = vmax.f32 %v547, 0.0
      %v580 = vmax.f32 %v548, 0.0
      %v581 = vmax.f32 %v549, 0.0
      %v582 = vmax.f32 %v550, 0.0
      %v583 = vmax.f32 %v551, 0.0
      %v584 = vmax.f32 %v552, 0.0
      %v585 = vmax.f32 %v553, 0.0
      %v586 = vmax.f32 %v554, 0.0
      %v587 = vmax.f32 %v555, 0.0
      %v588 = vmax.f32 %v556, 0.0
      %v589 = vmax.f32 %v557, 0.0
      %v590 = vmax.f32 %v558, 0.0
      %v591 = vmax.f32 %v559, 0.0
      %v592 = vmax.f32 %v560, 0.0
      %v593 = vmax.f32 %v561, 0.0
      %v594 = vmax.f32 %v562, 0.0
      %v595 = vmax.f32 %v563, 0.0
      %v596 = vmax.f32 %v564, 0.0
      %v597 = vmax.f32 %v565, 0.0
      %v598 = vmax.f32 %v566, 0.0
      %p599 = scmp.gt.s32.totalorder %s24, 0
      %v600 = vld [vmem:[%s413] sm:$0xff]
      %v601 = vld [vmem:[%s413 + $0x8] sm:$0xff]
      %v602 = vmul.f32 %v600, %v498
      %v603 = vmul.f32 %v601, %v498
      %v604 = vadd.f32 %v602, %v533
      %v605 = vadd.f32 %v603, %v533
      %v606 = vmax.f32 %v604, 0.0
      %v607 = vmax.f32 %v605, 0.0
      %s608 = scalar_select %p599, 1, 0
      %v609 = vstv %s608
      %vm610 = vcmp.eq.s32.totalorder %v609, 1
      %v611 = vsel %vm610, %v606, 0.0
      %v612 = vsel %vm610, %v607, 0.0
      %s613 = sadd.s32 %s24, 1
      %s614 = smul.u32 %s613, 16
      %p615 = scmp.lt.s32.totalorder %s614, 16
      %v616 = vld [vmem:[%s441] sm:$0xff]
      %v617 = vld [vmem:[%s441 + $0x8] sm:$0xff]
      %v618 = vmul.f32 %v616, %v498
      %v619 = vmul.f32 %v617, %v498
      %v620 = vadd.f32 %v618, %v533
      %v621 = vadd.f32 %v619, %v533
      %v622 = vmax.f32 %v620, 0.0
      %v623 = vmax.f32 %v621, 0.0
      %s624 = scalar_select %p615, 1, 0
      %v625 = vstv %s624
      %vm626 = vcmp.eq.s32.totalorder %v625, 1
      %v627 = vsel %vm626, %v622, 0.0
      %v628 = vsel %vm626, %v623, 0.0
      %629 = vst [vmem:[#allocation2] sm:$0x1] 0.0
      %630 = vst [vmem:[#allocation2 + $0x18] sm:$0x1] 0.0
      %631 = vst [vmem:[#allocation2 + $0x30] sm:$0x1] 0.0
      %632 = vst [vmem:[#allocation2 + $0x48] sm:$0x1] 0.0
      %633 = vst [vmem:[#allocation2 + $0x60] sm:$0x1] 0.0
      %634 = vst [vmem:[#allocation2 + $0x78] sm:$0x1] 0.0
      %635 = vst [vmem:[#allocation2 + $0x90] sm:$0x1] 0.0
      %636 = vst [vmem:[#allocation2 + $0xa8] sm:$0x1] 0.0
      %637 = vst [vmem:[#allocation2 + $0xc0] sm:$0x1] 0.0
      %638 = vst [vmem:[#allocation2 + $0xd8] sm:$0x1] 0.0
      %639 = vst [vmem:[#allocation2 + $0xf0] sm:$0x1] 0.0
      %640 = vst [vmem:[#allocation2 + $0x108] sm:$0x1] 0.0
      %641 = vst [vmem:[#allocation2 + $0x120] sm:$0x1] 0.0
      %642 = vst [vmem:[#allocation2 + $0x138] sm:$0x1] 0.0
      %643 = vst [vmem:[#allocation2 + $0x150] sm:$0x1] 0.0
      %644 = vst [vmem:[#allocation2 + $0x168] sm:$0x1] 0.0
      %645 = vst [vmem:[#allocation2 + $0x180] sm:$0x1] 0.0
      %646 = vst [vmem:[#allocation2 + $0x198] sm:$0x1] 0.0
      %647 = vst [vmem:[#allocation2 + $0x11] sm:$0x1] 0.0
      %648 = vst [vmem:[#allocation2 + $0x29] sm:$0x1] 0.0
      %649 = vst [vmem:[#allocation2 + $0x41] sm:$0x1] 0.0
      %650 = vst [vmem:[#allocation2 + $0x59] sm:$0x1] 0.0
      %651 = vst [vmem:[#allocation2 + $0x71] sm:$0x1] 0.0
      %652 = vst [vmem:[#allocation2 + $0x89] sm:$0x1] 0.0
      %653 = vst [vmem:[#allocation2 + $0xa1] sm:$0x1] 0.0
      %654 = vst [vmem:[#allocation2 + $0xb9] sm:$0x1] 0.0
      %655 = vst [vmem:[#allocation2 + $0xd1] sm:$0x1] 0.0
      %656 = vst [vmem:[#allocation2 + $0xe9] sm:$0x1] 0.0
      %657 = vst [vmem:[#allocation2 + $0x101] sm:$0x1] 0.0
      %658 = vst [vmem:[#allocation2 + $0x119] sm:$0x1] 0.0
      %659 = vst [vmem:[#allocation2 + $0x131] sm:$0x1] 0.0
      %660 = vst [vmem:[#allocation2 + $0x149] sm:$0x1] 0.0
      %661 = vst [vmem:[#allocation2 + $0x161] sm:$0x1] 0.0
      %662 = vst [vmem:[#allocation2 + $0x179] sm:$0x1] 0.0
      %663 = vst [vmem:[#allocation2 + $0x191] sm:$0x1] 0.0
      %664 = vst [vmem:[#allocation2 + $0x1a9] sm:$0x1] 0.0
      %665 = vst [vmem:[#allocation2 + $0x1] sm:$0xff] %v611
      %666 = vst [vmem:[#allocation2 + $0x9] sm:$0xff] %v612
      %s667 = scalar_lea.vmem [#allocation2], 24
      %668 = vst [vmem:[%s667 + $0x1] sm:$0xff] %v567
      %669 = vst [vmem:[%s667 + $0x9] sm:$0xff] %v568
      %670 = vst [vmem:[%s667 + $0x19] sm:$0xff] %v569
      %671 = vst [vmem:[%s667 + $0x21] sm:$0xff] %v570
      %672 = vst [vmem:[%s667 + $0x31] sm:$0xff] %v571
      %673 = vst [vmem:[%s667 + $0x39] sm:$0xff] %v572
      %674 = vst [vmem:[%s667 + $0x49] sm:$0xff] %v573
      %675 = vst [vmem:[%s667 + $0x51] sm:$0xff] %v574
      %676 = vst [vmem:[%s667 + $0x61] sm:$0xff] %v575
      %677 = vst [vmem:[%s667 + $0x69] sm:$0xff] %v576
      %678 = vst [vmem:[%s667 + $0x79] sm:$0xff] %v577
      %679 = vst [vmem:[%s667 + $0x81] sm:$0xff] %v578
      %680 = vst [vmem:[%s667 + $0x91] sm:$0xff] %v579
      %681 = vst [vmem:[%s667 + $0x99] sm:$0xff] %v580
      %682 = vst [vmem:[%s667 + $0xa9] sm:$0xff] %v581
      %683 = vst [vmem:[%s667 + $0xb1] sm:$0xff] %v582
      %684 = vst [vmem:[%s667 + $0xc1] sm:$0xff] %v583
      %685 = vst [vmem:[%s667 + $0xc9] sm:$0xff] %v584
      %686 = vst [vmem:[%s667 + $0xd9] sm:$0xff] %v585
      %687 = vst [vmem:[%s667 + $0xe1] sm:$0xff] %v586
      %688 = vst [vmem:[%s667 + $0xf1] sm:$0xff] %v587
      %689 = vst [vmem:[%s667 + $0xf9] sm:$0xff] %v588
      %690 = vst [vmem:[%s667 + $0x109] sm:$0xff] %v589
      %691 = vst [vmem:[%s667 + $0x111] sm:$0xff] %v590
      %692 = vst [vmem:[%s667 + $0x121] sm:$0xff] %v591
      %693 = vst [vmem:[%s667 + $0x129] sm:$0xff] %v592
      %694 = vst [vmem:[%s667 + $0x139] sm:$0xff] %v593
      %695 = vst [vmem:[%s667 + $0x141] sm:$0xff] %v594
      %696 = vst [vmem:[%s667 + $0x151] sm:$0xff] %v595
      %697 = vst [vmem:[%s667 + $0x159] sm:$0xff] %v596
      %698 = vst [vmem:[%s667 + $0x169] sm:$0xff] %v597
      %699 = vst [vmem:[%s667 + $0x171] sm:$0xff] %v598
      %s700 = scalar_lea.vmem [#allocation2], 408
      %701 = vst [vmem:[%s700 + $0x1] sm:$0xff] %v627
      %702 = vst [vmem:[%s700 + $0x9] sm:$0xff] %v628
      %v703 = vld [vmem:[#allocation2] sm:$0xff]
      %v704 = vld [vmem:[#allocation2 + $0x8] sm:$0xff]
      %v705 = vld [vmem:[#allocation2 + $0x18] sm:$0xff]
      %v706 = vld [vmem:[#allocation2 + $0x20] sm:$0xff]
      %v707 = vld [vmem:[#allocation2 + $0x30] sm:$0xff]
      %v708 = vld [vmem:[#allocation2 + $0x38] sm:$0xff]
      %v709 = vld [vmem:[#allocation2 + $0x48] sm:$0xff]
      %v710 = vld [vmem:[#allocation2 + $0x50] sm:$0xff]
      %v711 = vld [vmem:[#allocation2 + $0x60] sm:$0xff]
      %v712 = vld [vmem:[#allocation2 + $0x68] sm:$0xff]
      %v713 = vld [vmem:[#allocation2 + $0x78] sm:$0xff]
      %v714 = vld [vmem:[#allocation2 + $0x80] sm:$0xff]
      %v715 = vld [vmem:[#allocation2 + $0x90] sm:$0xff]
      %v716 = vld [vmem:[#allocation2 + $0x98] sm:$0xff]
      %v717 = vld [vmem:[#allocation2 + $0xa8] sm:$0xff]
      %v718 = vld [vmem:[#allocation2 + $0xb0] sm:$0xff]
      %v719 = vld [vmem:[#allocation2 + $0xc0] sm:$0xff]
      %v720 = vld [vmem:[#allocation2 + $0xc8] sm:$0xff]
      %v721 = vld [vmem:[#allocation2 + $0xd8] sm:$0xff]
      %v722 = vld [vmem:[#allocation2 + $0xe0] sm:$0xff]
      %v723 = vld [vmem:[#allocation2 + $0xf0] sm:$0xff]
      %v724 = vld [vmem:[#allocation2 + $0xf8] sm:$0xff]
      %v725 = vld [vmem:[#allocation2 + $0x108] sm:$0xff]
      %v726 = vld [vmem:[#allocation2 + $0x110] sm:$0xff]
      %v727 = vld [vmem:[#allocation2 + $0x120] sm:$0xff]
      %v728 = vld [vmem:[#allocation2 + $0x128] sm:$0xff]
      %v729 = vld [vmem:[#allocation2 + $0x138] sm:$0xff]
      %v730 = vld [vmem:[#allocation2 + $0x140] sm:$0xff]
      %v731 = vld [vmem:[#allocation2 + $0x150] sm:$0xff]
      %v732 = vld [vmem:[#allocation2 + $0x158] sm:$0xff]
      %v733 = vld [vmem:[#allocation2 + $0x168] sm:$0xff]
      %v734 = vld [vmem:[#allocation2 + $0x170] sm:$0xff]
      %v735 = vld [vmem:[%s5] sm:$0xff]
      %v736 = vld [vmem:[%s5 + $0x8] sm:$0xff]
      %v737 = vld [vmem:[%s5 + $0x10] sm:$0xff]
      %v738 = vld [vmem:[%s5 + $0x18] sm:$0xff]
      %v739 = vld [vmem:[%s5 + $0x20] sm:$0xff]
      %v740 = vld [vmem:[%s5 + $0x28] sm:$0xff]
      %v741 = vld [vmem:[%s5 + $0x30] sm:$0xff]
      %v742 = vld [vmem:[%s5 + $0x38] sm:$0xff]
      %v743 = vld [vmem:[%s5 + $0x40] sm:$0xff]
      %v744 = vld [vmem:[%s5 + $0x48] sm:$0xff]
      %v745 = vld [vmem:[%s5 + $0x50] sm:$0xff]
      %v746 = vld [vmem:[%s5 + $0x58] sm:$0xff]
      %v747 = vld [vmem:[%s5 + $0x60] sm:$0xff]
      %v748 = vld [vmem:[%s5 + $0x68] sm:$0xff]
      %v749 = vld [vmem:[%s5 + $0x70] sm:$0xff]
      %v750 = vld [vmem:[%s5 + $0x78] sm:$0xff]
      %v751 = vld [vmem:[#allocation2 + $0x1] sm:$0xff]
      %v752 = vld [vmem:[#allocation2 + $0x9] sm:$0xff]
      %v753 = vld [vmem:[#allocation2 + $0x19] sm:$0xff]
      %v754 = vld [vmem:[#allocation2 + $0x21] sm:$0xff]
      %v755 = vld [vmem:[#allocation2 + $0x31] sm:$0xff]
      %v756 = vld [vmem:[#allocation2 + $0x39] sm:$0xff]
      %v757 = vld [vmem:[#allocation2 + $0x49] sm:$0xff]
      %v758 = vld [vmem:[#allocation2 + $0x51] sm:$0xff]
      %v759 = vld [vmem:[#allocation2 + $0x61] sm:$0xff]
      %v760 = vld [vmem:[#allocation2 + $0x69] sm:$0xff]
      %v761 = vld [vmem:[#allocation2 + $0x79] sm:$0xff]
      %v762 = vld [vmem:[#allocation2 + $0x81] sm:$0xff]
      %v763 = vld [vmem:[#allocation2 + $0x91] sm:$0xff]
      %v764 = vld [vmem:[#allocation2 + $0x99] sm:$0xff]
      %v765 = vld [vmem:[#allocation2 + $0xa9] sm:$0xff]
      %v766 = vld [vmem:[#allocation2 + $0xb1] sm:$0xff]
      %v767 = vld [vmem:[#allocation2 + $0xc1] sm:$0xff]
      %v768 = vld [vmem:[#allocation2 + $0xc9] sm:$0xff]
      %v769 = vld [vmem:[#allocation2 + $0xd9] sm:$0xff]
      %v770 = vld [vmem:[#allocation2 + $0xe1] sm:$0xff]
      %v771 = vld [vmem:[#allocation2 + $0xf1] sm:$0xff]
      %v772 = vld [vmem:[#allocation2 + $0xf9] sm:$0xff]
      %v773 = vld [vmem:[#allocation2 + $0x109] sm:$0xff]
      %v774 = vld [vmem:[#allocation2 + $0x111] sm:$0xff]
      %v775 = vld [vmem:[#allocation2 + $0x121] sm:$0xff]
      %v776 = vld [vmem:[#allocation2 + $0x129] sm:$0xff]
      %v777 = vld [vmem:[#allocation2 + $0x139] sm:$0xff]
      %v778 = vld [vmem:[#allocation2 + $0x141] sm:$0xff]
      %v779 = vld [vmem:[#allocation2 + $0x151] sm:$0xff]
      %v780 = vld [vmem:[#allocation2 + $0x159] sm:$0xff]
      %v781 = vld [vmem:[#allocation2 + $0x169] sm:$0xff]
      %v782 = vld [vmem:[#allocation2 + $0x171] sm:$0xff]
      %s783 = scalar_lea.vmem %s5, 128
      %v784 = vld [vmem:[%s783] sm:$0xff]
      %v785 = vld [vmem:[%s783 + $0x8] sm:$0xff]
      %v786 = vld [vmem:[%s783 + $0x10] sm:$0xff]
      %v787 = vld [vmem:[%s783 + $0x18] sm:$0xff]
      %v788 = vld [vmem:[%s783 + $0x20] sm:$0xff]
      %v789 = vld [vmem:[%s783 + $0x28] sm:$0xff]
      %v790 = vld [vmem:[%s783 + $0x30] sm:$0xff]
      %v791 = vld [vmem:[%s783 + $0x38] sm:$0xff]
      %v792 = vld [vmem:[%s783 + $0x40] sm:$0xff]
      %v793 = vld [vmem:[%s783 + $0x48] sm:$0xff]
      %v794 = vld [vmem:[%s783 + $0x50] sm:$0xff]
      %v795 = vld [vmem:[%s783 + $0x58] sm:$0xff]
      %v796 = vld [vmem:[%s783 + $0x60] sm:$0xff]
      %v797 = vld [vmem:[%s783 + $0x68] sm:$0xff]
      %v798 = vld [vmem:[%s783 + $0x70] sm:$0xff]
      %v799 = vld [vmem:[%s783 + $0x78] sm:$0xff]
      %800 = vmatpush.msra.mxu0 %v799
      %801 = vmatpush.msra.mxu0 %v798
      %802 = vmatpush.msra.mxu0 %v797
      %803 = vmatpush.msra.mxu0 %v796
      %804 = vmatpush.msra.mxu0 %v795
      %805 = vmatpush.msra.mxu0 %v794
      %806 = vmatpush.msra.mxu0 %v793
      %807 = vmatpush.msra.mxu0 %v792
      %808 = vmatpush.msra.mxu0 %v791
      %809 = vmatpush.msra.mxu0 %v790
      %810 = vmatpush.msra.mxu0 %v789
      %811 = vmatpush.msra.mxu0 %v788
      %812 = vmatpush.msra.mxu0 %v787
      %813 = vmatpush.msra.mxu0 %v786
      %814 = vmatpush.msra.mxu0 %v785
      %815 = vmatpush.msra.mxu0 %v784
      %816 = vmatmul.f32.gmra.mxu0 %v751
      %v817 = vpop.f32.mrf.mxu0
      %v818 = vadd.f32 0.0, %v817
      %819 = vmatmul.f32.gmra.mxu0 %v752
      %v820 = vpop.f32.mrf.mxu0
      %v821 = vadd.f32 0.0, %v820
      %822 = vmatmul.f32.gmra.mxu0 %v753
      %v823 = vpop.f32.mrf.mxu0
      %v824 = vadd.f32 0.0, %v823
      %825 = vmatmul.f32.gmra.mxu0 %v754
      %v826 = vpop.f32.mrf.mxu0
      %v827 = vadd.f32 0.0, %v826
      %828 = vmatmul.f32.gmra.mxu0 %v755
      %v829 = vpop.f32.mrf.mxu0
      %v830 = vadd.f32 0.0, %v829
      %831 = vmatmul.f32.gmra.mxu0 %v756
      %v832 = vpop.f32.mrf.mxu0
      %v833 = vadd.f32 0.0, %v832
      %834 = vmatmul.f32.gmra.mxu0 %v757
      %v835 = vpop.f32.mrf.mxu0
      %v836 = vadd.f32 0.0, %v835
      %837 = vmatmul.f32.gmra.mxu0 %v758
      %v838 = vpop.f32.mrf.mxu0
      %v839 = vadd.f32 0.0, %v838
      %840 = vmatmul.f32.gmra.mxu0 %v759
      %v841 = vpop.f32.mrf.mxu0
      %v842 = vadd.f32 0.0, %v841
      %843 = vmatmul.f32.gmra.mxu0 %v760
      %v844 = vpop.f32.mrf.mxu0
      %v845 = vadd.f32 0.0, %v844
      %846 = vmatmul.f32.gmra.mxu0 %v761
      %v847 = vpop.f32.mrf.mxu0
      %v848 = vadd.f32 0.0, %v847
      %849 = vmatmul.f32.gmra.mxu0 %v762
      %v850 = vpop.f32.mrf.mxu0
      %v851 = vadd.f32 0.0, %v850
      %852 = vmatmul.f32.gmra.mxu0 %v763
      %v853 = vpop.f32.mrf.mxu0
      %v854 = vadd.f32 0.0, %v853
      %855 = vmatmul.f32.gmra.mxu0 %v764
      %v856 = vpop.f32.mrf.mxu0
      %v857 = vadd.f32 0.0, %v856
      %858 = vmatmul.f32.gmra.mxu0 %v765
      %v859 = vpop.f32.mrf.mxu0
      %v860 = vadd.f32 0.0, %v859
      %861 = vmatmul.f32.gmra.mxu0 %v766
      %v862 = vpop.f32.mrf.mxu0
      %v863 = vadd.f32 0.0, %v862
      %864 = vmatmul.f32.gmra.mxu0 %v767
      %v865 = vpop.f32.mrf.mxu0
      %v866 = vadd.f32 0.0, %v865
      %867 = vmatmul.f32.gmra.mxu0 %v768
      %v868 = vpop.f32.mrf.mxu0
      %v869 = vadd.f32 0.0, %v868
      %870 = vmatmul.f32.gmra.mxu0 %v769
      %v871 = vpop.f32.mrf.mxu0
      %v872 = vadd.f32 0.0, %v871
      %873 = vmatmul.f32.gmra.mxu0 %v770
      %v874 = vpop.f32.mrf.mxu0
      %v875 = vadd.f32 0.0, %v874
      %876 = vmatmul.f32.gmra.mxu0 %v771
      %v877 = vpop.f32.mrf.mxu0
      %v878 = vadd.f32 0.0, %v877
      %879 = vmatmul.f32.gmra.mxu0 %v772
      %v880 = vpop.f32.mrf.mxu0
      %v881 = vadd.f32 0.0, %v880
      %882 = vmatmul.f32.gmra.mxu0 %v773
      %v883 = vpop.f32.mrf.mxu0
      %v884 = vadd.f32 0.0, %v883
      %885 = vmatmul.f32.gmra.mxu0 %v774
      %v886 = vpop.f32.mrf.mxu0
      %v887 = vadd.f32 0.0, %v886
      %888 = vmatmul.f32.gmra.mxu0 %v775
      %v889 = vpop.f32.mrf.mxu0
      %v890 = vadd.f32 0.0, %v889
      %891 = vmatmul.f32.gmra.mxu0 %v776
      %v892 = vpop.f32.mrf.mxu0
      %v893 = vadd.f32 0.0, %v892
      %894 = vmatmul.f32.gmra.mxu0 %v777
      %v895 = vpop.f32.mrf.mxu0
      %v896 = vadd.f32 0.0, %v895
      %897 = vmatmul.f32.gmra.mxu0 %v778
      %v898 = vpop.f32.mrf.mxu0
      %v899 = vadd.f32 0.0, %v898
      %900 = vmatmul.f32.gmra.mxu0 %v779
      %v901 = vpop.f32.mrf.mxu0
      %v902 = vadd.f32 0.0, %v901
      %903 = vmatmul.f32.gmra.mxu0 %v780
      %v904 = vpop.f32.mrf.mxu0
      %v905 = vadd.f32 0.0, %v904
      %906 = vmatmul.f32.gmra.mxu0 %v781
      %v907 = vpop.f32.mrf.mxu0
      %v908 = vadd.f32 0.0, %v907
      %909 = vmatmul.f32.gmra.mxu0 %v782
      %v910 = vpop.f32.mrf.mxu0
      %v911 = vadd.f32 0.0, %v910
      %912 = vdwg.mxu0
      %913 = vmatpush.msra.mxu0 %v750
      %914 = vmatpush.msra.mxu0 %v749
      %915 = vmatpush.msra.mxu0 %v748
      %916 = vmatpush.msra.mxu0 %v747
      %917 = vmatpush.msra.mxu0 %v746
      %918 = vmatpush.msra.mxu0 %v745
      %919 = vmatpush.msra.mxu0 %v744
      %920 = vmatpush.msra.mxu0 %v743
      %921 = vmatpush.msra.mxu0 %v742
      %922 = vmatpush.msra.mxu0 %v741
      %923 = vmatpush.msra.mxu0 %v740
      %924 = vmatpush.msra.mxu0 %v739
      %925 = vmatpush.msra.mxu0 %v738
      %926 = vmatpush.msra.mxu0 %v737
      %927 = vmatpush.msra.mxu0 %v736
      %928 = vmatpush.msra.mxu0 %v735
      %929 = vmatmul.f32.gmra.mxu0 %v703
      %v930 = vpop.f32.mrf.mxu0
      %v931 = vadd.f32 %v818, %v930
      %932 = vmatmul.f32.gmra.mxu0 %v704
      %v933 = vpop.f32.mrf.mxu0
      %v934 = vadd.f32 %v821, %v933
      %935 = vmatmul.f32.gmra.mxu0 %v705
      %v936 = vpop.f32.mrf.mxu0
      %v937 = vadd.f32 %v824, %v936
      %938 = vmatmul.f32.gmra.mxu0 %v706
      %v939 = vpop.f32.mrf.mxu0
      %v940 = vadd.f32 %v827, %v939
      %941 = vmatmul.f32.gmra.mxu0 %v707
      %v942 = vpop.f32.mrf.mxu0
      %v943 = vadd.f32 %v830, %v942
      %944 = vmatmul.f32.gmra.mxu0 %v708
      %v945 = vpop.f32.mrf.mxu0
      %v946 = vadd.f32 %v833, %v945
      %947 = vmatmul.f32.gmra.mxu0 %v709
      %v948 = vpop.f32.mrf.mxu0
      %v949 = vadd.f32 %v836, %v948
      %950 = vmatmul.f32.gmra.mxu0 %v710
      %v951 = vpop.f32.mrf.mxu0
      %v952 = vadd.f32 %v839, %v951
      %953 = vmatmul.f32.gmra.mxu0 %v711
      %v954 = vpop.f32.mrf.mxu0
      %v955 = vadd.f32 %v842, %v954
      %956 = vmatmul.f32.gmra.mxu0 %v712
      %v957 = vpop.f32.mrf.mxu0
      %v958 = vadd.f32 %v845, %v957
      %959 = vmatmul.f32.gmra.mxu0 %v713
      %v960 = vpop.f32.mrf.mxu0
      %v961 = vadd.f32 %v848, %v960
      %962 = vmatmul.f32.gmra.mxu0 %v714
      %v963 = vpop.f32.mrf.mxu0
      %v964 = vadd.f32 %v851, %v963
      %965 = vmatmul.f32.gmra.mxu0 %v715
      %v966 = vpop.f32.mrf.mxu0
      %v967 = vadd.f32 %v854, %v966
      %968 = vmatmul.f32.gmra.mxu0 %v716
      %v969 = vpop.f32.mrf.mxu0
      %v970 = vadd.f32 %v857, %v969
      %971 = vmatmul.f32.gmra.mxu0 %v717
      %v972 = vpop.f32.mrf.mxu0
      %v973 = vadd.f32 %v860, %v972
      %974 = vmatmul.f32.gmra.mxu0 %v718
      %v975 = vpop.f32.mrf.mxu0
      %v976 = vadd.f32 %v863, %v975
      %977 = vmatmul.f32.gmra.mxu0 %v719
      %v978 = vpop.f32.mrf.mxu0
      %v979 = vadd.f32 %v866, %v978
      %980 = vmatmul.f32.gmra.mxu0 %v720
      %v981 = vpop.f32.mrf.mxu0
      %v982 = vadd.f32 %v869, %v981
      %983 = vmatmul.f32.gmra.mxu0 %v721
      %v984 = vpop.f32.mrf.mxu0
      %v985 = vadd.f32 %v872, %v984
      %986 = vmatmul.f32.gmra.mxu0 %v722
      %v987 = vpop.f32.mrf.mxu0
      %v988 = vadd.f32 %v875, %v987
      %989 = vmatmul.f32.gmra.mxu0 %v723
      %v990 = vpop.f32.mrf.mxu0
      %v991 = vadd.f32 %v878, %v990
      %992 = vmatmul.f32.gmra.mxu0 %v724
      %v993 = vpop.f32.mrf.mxu0
      %v994 = vadd.f32 %v881, %v993
      %995 = vmatmul.f32.gmra.mxu0 %v725
      %v996 = vpop.f32.mrf.mxu0
      %v997 = vadd.f32 %v884, %v996
      %998 = vmatmul.f32.gmra.mxu0 %v726
      %v999 = vpop.f32.mrf.mxu0
      %v1000 = vadd.f32 %v887, %v999
      %1001 = vmatmul.f32.gmra.mxu0 %v727
      %v1002 = vpop.f32.mrf.mxu0
      %v1003 = vadd.f32 %v890, %v1002
      %1004 = vmatmul.f32.gmra.mxu0 %v728
      %v1005 = vpop.f32.mrf.mxu0
      %v1006 = vadd.f32 %v893, %v1005
      %1007 = vmatmul.f32.gmra.mxu0 %v729
      %v1008 = vpop.f32.mrf.mxu0
      %v1009 = vadd.f32 %v896, %v1008
      %1010 = vmatmul.f32.gmra.mxu0 %v730
      %v1011 = vpop.f32.mrf.mxu0
      %v1012 = vadd.f32 %v899, %v1011
      %1013 = vmatmul.f32.gmra.mxu0 %v731
      %v1014 = vpop.f32.mrf.mxu0
      %v1015 = vadd.f32 %v902, %v1014
      %1016 = vmatmul.f32.gmra.mxu0 %v732
      %v1017 = vpop.f32.mrf.mxu0
      %v1018 = vadd.f32 %v905, %v1017
      %1019 = vmatmul.f32.gmra.mxu0 %v733
      %v1020 = vpop.f32.mrf.mxu0
      %v1021 = vadd.f32 %v908, %v1020
      %1022 = vmatmul.f32.gmra.mxu0 %v734
      %v1023 = vpop.f32.mrf.mxu0
      %v1024 = vadd.f32 %v911, %v1023
      %1025 = vdwg.mxu0
      %v1026 = vld [vmem:[#allocation2 + $0x2] sm:$0xff]
      %v1027 = vld [vmem:[#allocation2 + $0xa] sm:$0xff]
      %v1028 = vld [vmem:[#allocation2 + $0x1a] sm:$0xff]
      %v1029 = vld [vmem:[#allocation2 + $0x22] sm:$0xff]
      %v1030 = vld [vmem:[#allocation2 + $0x32] sm:$0xff]
      %v1031 = vld [vmem:[#allocation2 + $0x3a] sm:$0xff]
      %v1032 = vld [vmem:[#allocation2 + $0x4a] sm:$0xff]
      %v1033 = vld [vmem:[#allocation2 + $0x52] sm:$0xff]
      %v1034 = vld [vmem:[#allocation2 + $0x62] sm:$0xff]
      %v1035 = vld [vmem:[#allocation2 + $0x6a] sm:$0xff]
      %v1036 = vld [vmem:[#allocation2 + $0x7a] sm:$0xff]
      %v1037 = vld [vmem:[#allocation2 + $0x82] sm:$0xff]
      %v1038 = vld [vmem:[#allocation2 + $0x92] sm:$0xff]
      %v1039 = vld [vmem:[#allocation2 + $0x9a] sm:$0xff]
      %v1040 = vld [vmem:[#allocation2 + $0xaa] sm:$0xff]
      %v1041 = vld [vmem:[#allocation2 + $0xb2] sm:$0xff]
      %v1042 = vld [vmem:[#allocation2 + $0xc2] sm:$0xff]
      %v1043 = vld [vmem:[#allocation2 + $0xca] sm:$0xff]
      %v1044 = vld [vmem:[#allocation2 + $0xda] sm:$0xff]
      %v1045 = vld [vmem:[#allocation2 + $0xe2] sm:$0xff]
      %v1046 = vld [vmem:[#allocation2 + $0xf2] sm:$0xff]
      %v1047 = vld [vmem:[#allocation2 + $0xfa] sm:$0xff]
      %v1048 = vld [vmem:[#allocation2 + $0x10a] sm:$0xff]
      %v1049 = vld [vmem:[#allocation2 + $0x112] sm:$0xff]
      %v1050 = vld [vmem:[#allocation2 + $0x122] sm:$0xff]
      %v1051 = vld [vmem:[#allocation2 + $0x12a] sm:$0xff]
      %v1052 = vld [vmem:[#allocation2 + $0x13a] sm:$0xff]
      %v1053 = vld [vmem:[#allocation2 + $0x142] sm:$0xff]
      %v1054 = vld [vmem:[#allocation2 + $0x152] sm:$0xff]
      %v1055 = vld [vmem:[#allocation2 + $0x15a] sm:$0xff]
      %v1056 = vld [vmem:[#allocation2 + $0x16a] sm:$0xff]
      %v1057 = vld [vmem:[#allocation2 + $0x172] sm:$0xff]
      %s1058 = scalar_lea.vmem %s5, 256
      %v1059 = vld [vmem:[%s1058] sm:$0xff]
      %v1060 = vld [vmem:[%s1058 + $0x8] sm:$0xff]
      %v1061 = vld [vmem:[%s1058 + $0x10] sm:$0xff]
      %v1062 = vld [vmem:[%s1058 + $0x18] sm:$0xff]
      %v1063 = vld [vmem:[%s1058 + $0x20] sm:$0xff]
      %v1064 = vld [vmem:[%s1058 + $0x28] sm:$0xff]
      %v1065 = vld [vmem:[%s1058 + $0x30] sm:$0xff]
      %v1066 = vld [vmem:[%s1058 + $0x38] sm:$0xff]
      %v1067 = vld [vmem:[%s1058 + $0x40] sm:$0xff]
      %v1068 = vld [vmem:[%s1058 + $0x48] sm:$0xff]
      %v1069 = vld [vmem:[%s1058 + $0x50] sm:$0xff]
      %v1070 = vld [vmem:[%s1058 + $0x58] sm:$0xff]
      %v1071 = vld [vmem:[%s1058 + $0x60] sm:$0xff]
      %v1072 = vld [vmem:[%s1058 + $0x68] sm:$0xff]
      %v1073 = vld [vmem:[%s1058 + $0x70] sm:$0xff]
      %v1074 = vld [vmem:[%s1058 + $0x78] sm:$0xff]
      %1075 = vmatpush.msra.mxu0 %v1074
      %1076 = vmatpush.msra.mxu0 %v1073
      %1077 = vmatpush.msra.mxu0 %v1072
      %1078 = vmatpush.msra.mxu0 %v1071
      %1079 = vmatpush.msra.mxu0 %v1070
      %1080 = vmatpush.msra.mxu0 %v1069
      %1081 = vmatpush.msra.mxu0 %v1068
      %1082 = vmatpush.msra.mxu0 %v1067
      %1083 = vmatpush.msra.mxu0 %v1066
      %1084 = vmatpush.msra.mxu0 %v1065
      %1085 = vmatpush.msra.mxu0 %v1064
      %1086 = vmatpush.msra.mxu0 %v1063
      %1087 = vmatpush.msra.mxu0 %v1062
      %1088 = vmatpush.msra.mxu0 %v1061
      %1089 = vmatpush.msra.mxu0 %v1060
      %1090 = vmatpush.msra.mxu0 %v1059
      %1091 = vmatmul.f32.gmra.mxu0 %v1026
      %v1092 = vpop.f32.mrf.mxu0
      %v1093 = vadd.f32 0.0, %v1092
      %1094 = vmatmul.f32.gmra.mxu0 %v1027
      %v1095 = vpop.f32.mrf.mxu0
      %v1096 = vadd.f32 0.0, %v1095
      %1097 = vmatmul.f32.gmra.mxu0 %v1028
      %v1098 = vpop.f32.mrf.mxu0
      %v1099 = vadd.f32 0.0, %v1098
      %1100 = vmatmul.f32.gmra.mxu0 %v1029
      %v1101 = vpop.f32.mrf.mxu0
      %v1102 = vadd.f32 0.0, %v1101
      %1103 = vmatmul.f32.gmra.mxu0 %v1030
      %v1104 = vpop.f32.mrf.mxu0
      %v1105 = vadd.f32 0.0, %v1104
      %1106 = vmatmul.f32.gmra.mxu0 %v1031
      %v1107 = vpop.f32.mrf.mxu0
      %v1108 = vadd.f32 0.0, %v1107
      %1109 = vmatmul.f32.gmra.mxu0 %v1032
      %v1110 = vpop.f32.mrf.mxu0
      %v1111 = vadd.f32 0.0, %v1110
      %1112 = vmatmul.f32.gmra.mxu0 %v1033
      %v1113 = vpop.f32.mrf.mxu0
      %v1114 = vadd.f32 0.0, %v1113
      %1115 = vmatmul.f32.gmra.mxu0 %v1034
      %v1116 = vpop.f32.mrf.mxu0
      %v1117 = vadd.f32 0.0, %v1116
      %1118 = vmatmul.f32.gmra.mxu0 %v1035
      %v1119 = vpop.f32.mrf.mxu0
      %v1120 = vadd.f32 0.0, %v1119
      %1121 = vmatmul.f32.gmra.mxu0 %v1036
      %v1122 = vpop.f32.mrf.mxu0
      %v1123 = vadd.f32 0.0, %v1122
      %1124 = vmatmul.f32.gmra.mxu0 %v1037
      %v1125 = vpop.f32.mrf.mxu0
      %v1126 = vadd.f32 0.0, %v1125
      %1127 = vmatmul.f32.gmra.mxu0 %v1038
      %v1128 = vpop.f32.mrf.mxu0
      %v1129 = vadd.f32 0.0, %v1128
      %1130 = vmatmul.f32.gmra.mxu0 %v1039
      %v1131 = vpop.f32.mrf.mxu0
      %v1132 = vadd.f32 0.0, %v1131
      %1133 = vmatmul.f32.gmra.mxu0 %v1040
      %v1134 = vpop.f32.mrf.mxu0
      %v1135 = vadd.f32 0.0, %v1134
      %1136 = vmatmul.f32.gmra.mxu0 %v1041
      %v1137 = vpop.f32.mrf.mxu0
      %v1138 = vadd.f32 0.0, %v1137
      %1139 = vmatmul.f32.gmra.mxu0 %v1042
      %v1140 = vpop.f32.mrf.mxu0
      %v1141 = vadd.f32 0.0, %v1140
      %1142 = vmatmul.f32.gmra.mxu0 %v1043
      %v1143 = vpop.f32.mrf.mxu0
      %v1144 = vadd.f32 0.0, %v1143
      %1145 = vmatmul.f32.gmra.mxu0 %v1044
      %v1146 = vpop.f32.mrf.mxu0
      %v1147 = vadd.f32 0.0, %v1146
      %1148 = vmatmul.f32.gmra.mxu0 %v1045
      %v1149 = vpop.f32.mrf.mxu0
      %v1150 = vadd.f32 0.0, %v1149
      %1151 = vmatmul.f32.gmra.mxu0 %v1046
      %v1152 = vpop.f32.mrf.mxu0
      %v1153 = vadd.f32 0.0, %v1152
      %1154 = vmatmul.f32.gmra.mxu0 %v1047
      %v1155 = vpop.f32.mrf.mxu0
      %v1156 = vadd.f32 0.0, %v1155
      %1157 = vmatmul.f32.gmra.mxu0 %v1048
      %v1158 = vpop.f32.mrf.mxu0
      %v1159 = vadd.f32 0.0, %v1158
      %1160 = vmatmul.f32.gmra.mxu0 %v1049
      %v1161 = vpop.f32.mrf.mxu0
      %v1162 = vadd.f32 0.0, %v1161
      %1163 = vmatmul.f32.gmra.mxu0 %v1050
      %v1164 = vpop.f32.mrf.mxu0
      %v1165 = vadd.f32 0.0, %v1164
      %1166 = vmatmul.f32.gmra.mxu0 %v1051
      %v1167 = vpop.f32.mrf.mxu0
      %v1168 = vadd.f32 0.0, %v1167
      %1169 = vmatmul.f32.gmra.mxu0 %v1052
      %v1170 = vpop.f32.mrf.mxu0
      %v1171 = vadd.f32 0.0, %v1170
      %1172 = vmatmul.f32.gmra.mxu0 %v1053
      %v1173 = vpop.f32.mrf.mxu0
      %v1174 = vadd.f32 0.0, %v1173
      %1175 = vmatmul.f32.gmra.mxu0 %v1054
      %v1176 = vpop.f32.mrf.mxu0
      %v1177 = vadd.f32 0.0, %v1176
      %1178 = vmatmul.f32.gmra.mxu0 %v1055
      %v1179 = vpop.f32.mrf.mxu0
      %v1180 = vadd.f32 0.0, %v1179
      %1181 = vmatmul.f32.gmra.mxu0 %v1056
      %v1182 = vpop.f32.mrf.mxu0
      %v1183 = vadd.f32 0.0, %v1182
      %1184 = vmatmul.f32.gmra.mxu0 %v1057
      %v1185 = vpop.f32.mrf.mxu0
      %v1186 = vadd.f32 0.0, %v1185
      %1187 = vdwg.mxu0
      %v1188 = vadd.f32 %v931, %v1093
      %v1189 = vadd.f32 %v934, %v1096
      %v1190 = vadd.f32 %v937, %v1099
      %v1191 = vadd.f32 %v940, %v1102
      %v1192 = vadd.f32 %v943, %v1105
      %v1193 = vadd.f32 %v946, %v1108
      %v1194 = vadd.f32 %v949, %v1111
      %v1195 = vadd.f32 %v952, %v1114
      %v1196 = vadd.f32 %v955, %v1117
      %v1197 = vadd.f32 %v958, %v1120
      %v1198 = vadd.f32 %v961, %v1123
      %v1199 = vadd.f32 %v964, %v1126
      %v1200 = vadd.f32 %v967, %v1129
      %v1201 = vadd.f32 %v970, %v1132
      %v1202 = vadd.f32 %v973, %v1135
      %v1203 = vadd.f32 %v976, %v1138
      %v1204 = vadd.f32 %v979, %v1141
      %v1205 = vadd.f32 %v982, %v1144
      %v1206 = vadd.f32 %v985, %v1147
      %v1207 = vadd.f32 %v988, %v1150
      %v1208 = vadd.f32 %v991, %v1153
      %v1209 = vadd.f32 %v994, %v1156
      %v1210 = vadd.f32 %v997, %v1159
      %v1211 = vadd.f32 %v1000, %v1162
      %v1212 = vadd.f32 %v1003, %v1165
      %v1213 = vadd.f32 %v1006, %v1168
      %v1214 = vadd.f32 %v1009, %v1171
      %v1215 = vadd.f32 %v1012, %v1174
      %v1216 = vadd.f32 %v1015, %v1177
      %v1217 = vadd.f32 %v1018, %v1180
      %v1218 = vadd.f32 %v1021, %v1183
      %v1219 = vadd.f32 %v1024, %v1186
      %v1220 = vld [vmem:[%s667] sm:$0xff]
      %v1221 = vld [vmem:[%s667 + $0x8] sm:$0xff]
      %v1222 = vld [vmem:[%s667 + $0x18] sm:$0xff]
      %v1223 = vld [vmem:[%s667 + $0x20] sm:$0xff]
      %v1224 = vld [vmem:[%s667 + $0x30] sm:$0xff]
      %v1225 = vld [vmem:[%s667 + $0x38] sm:$0xff]
      %v1226 = vld [vmem:[%s667 + $0x48] sm:$0xff]
      %v1227 = vld [vmem:[%s667 + $0x50] sm:$0xff]
      %v1228 = vld [vmem:[%s667 + $0x60] sm:$0xff]
      %v1229 = vld [vmem:[%s667 + $0x68] sm:$0xff]
      %v1230 = vld [vmem:[%s667 + $0x78] sm:$0xff]
      %v1231 = vld [vmem:[%s667 + $0x80] sm:$0xff]
      %v1232 = vld [vmem:[%s667 + $0x90] sm:$0xff]
      %v1233 = vld [vmem:[%s667 + $0x98] sm:$0xff]
      %v1234 = vld [vmem:[%s667 + $0xa8] sm:$0xff]
      %v1235 = vld [vmem:[%s667 + $0xb0] sm:$0xff]
      %v1236 = vld [vmem:[%s667 + $0xc0] sm:$0xff]
      %v1237 = vld [vmem:[%s667 + $0xc8] sm:$0xff]
      %v1238 = vld [vmem:[%s667 + $0xd8] sm:$0xff]
      %v1239 = vld [vmem:[%s667 + $0xe0] sm:$0xff]
      %v1240 = vld [vmem:[%s667 + $0xf0] sm:$0xff]
      %v1241 = vld [vmem:[%s667 + $0xf8] sm:$0xff]
      %v1242 = vld [vmem:[%s667 + $0x108] sm:$0xff]
      %v1243 = vld [vmem:[%s667 + $0x110] sm:$0xff]
      %v1244 = vld [vmem:[%s667 + $0x120] sm:$0xff]
      %v1245 = vld [vmem:[%s667 + $0x128] sm:$0xff]
      %v1246 = vld [vmem:[%s667 + $0x138] sm:$0xff]
      %v1247 = vld [vmem:[%s667 + $0x140] sm:$0xff]
      %v1248 = vld [vmem:[%s667 + $0x150] sm:$0xff]
      %v1249 = vld [vmem:[%s667 + $0x158] sm:$0xff]
      %v1250 = vld [vmem:[%s667 + $0x168] sm:$0xff]
      %v1251 = vld [vmem:[%s667 + $0x170] sm:$0xff]
      %s1252 = scalar_lea.vmem %s5, 384
      %v1253 = vld [vmem:[%s1252] sm:$0xff]
      %v1254 = vld [vmem:[%s1252 + $0x8] sm:$0xff]
      %v1255 = vld [vmem:[%s1252 + $0x10] sm:$0xff]
      %v1256 = vld [vmem:[%s1252 + $0x18] sm:$0xff]
      %v1257 = vld [vmem:[%s1252 + $0x20] sm:$0xff]
      %v1258 = vld [vmem:[%s1252 + $0x28] sm:$0xff]
      %v1259 = vld [vmem:[%s1252 + $0x30] sm:$0xff]
      %v1260 = vld [vmem:[%s1252 + $0x38] sm:$0xff]
      %v1261 = vld [vmem:[%s1252 + $0x40] sm:$0xff]
      %v1262 = vld [vmem:[%s1252 + $0x48] sm:$0xff]
      %v1263 = vld [vmem:[%s1252 + $0x50] sm:$0xff]
      %v1264 = vld [vmem:[%s1252 + $0x58] sm:$0xff]
      %v1265 = vld [vmem:[%s1252 + $0x60] sm:$0xff]
      %v1266 = vld [vmem:[%s1252 + $0x68] sm:$0xff]
      %v1267 = vld [vmem:[%s1252 + $0x70] sm:$0xff]
      %v1268 = vld [vmem:[%s1252 + $0x78] sm:$0xff]
      %1269 = vmatpush.msra.mxu0 %v1268
      %1270 = vmatpush.msra.mxu0 %v1267
      %1271 = vmatpush.msra.mxu0 %v1266
      %1272 = vmatpush.msra.mxu0 %v1265
      %1273 = vmatpush.msra.mxu0 %v1264
      %1274 = vmatpush.msra.mxu0 %v1263
      %1275 = vmatpush.msra.mxu0 %v1262
      %1276 = vmatpush.msra.mxu0 %v1261
      %1277 = vmatpush.msra.mxu0 %v1260
      %1278 = vmatpush.msra.mxu0 %v1259
      %1279 = vmatpush.msra.mxu0 %v1258
      %1280 = vmatpush.msra.mxu0 %v1257
      %1281 = vmatpush.msra.mxu0 %v1256
      %1282 = vmatpush.msra.mxu0 %v1255
      %1283 = vmatpush.msra.mxu0 %v1254
      %1284 = vmatpush.msra.mxu0 %v1253
      %1285 = vmatmul.f32.gmra.mxu0 %v1220
      %v1286 = vpop.f32.mrf.mxu0
      %v1287 = vadd.f32 0.0, %v1286
      %1288 = vmatmul.f32.gmra.mxu0 %v1221
      %v1289 = vpop.f32.mrf.mxu0
      %v1290 = vadd.f32 0.0, %v1289
      %1291 = vmatmul.f32.gmra.mxu0 %v1222
      %v1292 = vpop.f32.mrf.mxu0
      %v1293 = vadd.f32 0.0, %v1292
      %1294 = vmatmul.f32.gmra.mxu0 %v1223
      %v1295 = vpop.f32.mrf.mxu0
      %v1296 = vadd.f32 0.0, %v1295
      %1297 = vmatmul.f32.gmra.mxu0 %v1224
      %v1298 = vpop.f32.mrf.mxu0
      %v1299 = vadd.f32 0.0, %v1298
      %1300 = vmatmul.f32.gmra.mxu0 %v1225
      %v1301 = vpop.f32.mrf.mxu0
      %v1302 = vadd.f32 0.0, %v1301
      %1303 = vmatmul.f32.gmra.mxu0 %v1226
      %v1304 = vpop.f32.mrf.mxu0
      %v1305 = vadd.f32 0.0, %v1304
      %1306 = vmatmul.f32.gmra.mxu0 %v1227
      %v1307 = vpop.f32.mrf.mxu0
      %v1308 = vadd.f32 0.0, %v1307
      %1309 = vmatmul.f32.gmra.mxu0 %v1228
      %v1310 = vpop.f32.mrf.mxu0
      %v1311 = vadd.f32 0.0, %v1310
      %1312 = vmatmul.f32.gmra.mxu0 %v1229
      %v1313 = vpop.f32.mrf.mxu0
      %v1314 = vadd.f32 0.0, %v1313
      %1315 = vmatmul.f32.gmra.mxu0 %v1230
      %v1316 = vpop.f32.mrf.mxu0
      %v1317 = vadd.f32 0.0, %v1316
      %1318 = vmatmul.f32.gmra.mxu0 %v1231
      %v1319 = vpop.f32.mrf.mxu0
      %v1320 = vadd.f32 0.0, %v1319
      %1321 = vmatmul.f32.gmra.mxu0 %v1232
      %v1322 = vpop.f32.mrf.mxu0
      %v1323 = vadd.f32 0.0, %v1322
      %1324 = vmatmul.f32.gmra.mxu0 %v1233
      %v1325 = vpop.f32.mrf.mxu0
      %v1326 = vadd.f32 0.0, %v1325
      %1327 = vmatmul.f32.gmra.mxu0 %v1234
      %v1328 = vpop.f32.mrf.mxu0
      %v1329 = vadd.f32 0.0, %v1328
      %1330 = vmatmul.f32.gmra.mxu0 %v1235
      %v1331 = vpop.f32.mrf.mxu0
      %v1332 = vadd.f32 0.0, %v1331
      %1333 = vmatmul.f32.gmra.mxu0 %v1236
      %v1334 = vpop.f32.mrf.mxu0
      %v1335 = vadd.f32 0.0, %v1334
      %1336 = vmatmul.f32.gmra.mxu0 %v1237
      %v1337 = vpop.f32.mrf.mxu0
      %v1338 = vadd.f32 0.0, %v1337
      %1339 = vmatmul.f32.gmra.mxu0 %v1238
      %v1340 = vpop.f32.mrf.mxu0
      %v1341 = vadd.f32 0.0, %v1340
      %1342 = vmatmul.f32.gmra.mxu0 %v1239
      %v1343 = vpop.f32.mrf.mxu0
      %v1344 = vadd.f32 0.0, %v1343
      %1345 = vmatmul.f32.gmra.mxu0 %v1240
      %v1346 = vpop.f32.mrf.mxu0
      %v1347 = vadd.f32 0.0, %v1346
      %1348 = vmatmul.f32.gmra.mxu0 %v1241
      %v1349 = vpop.f32.mrf.mxu0
      %v1350 = vadd.f32 0.0, %v1349
      %1351 = vmatmul.f32.gmra.mxu0 %v1242
      %v1352 = vpop.f32.mrf.mxu0
      %v1353 = vadd.f32 0.0, %v1352
      %1354 = vmatmul.f32.gmra.mxu0 %v1243
      %v1355 = vpop.f32.mrf.mxu0
      %v1356 = vadd.f32 0.0, %v1355
      %1357 = vmatmul.f32.gmra.mxu0 %v1244
      %v1358 = vpop.f32.mrf.mxu0
      %v1359 = vadd.f32 0.0, %v1358
      %1360 = vmatmul.f32.gmra.mxu0 %v1245
      %v1361 = vpop.f32.mrf.mxu0
      %v1362 = vadd.f32 0.0, %v1361
      %1363 = vmatmul.f32.gmra.mxu0 %v1246
      %v1364 = vpop.f32.mrf.mxu0
      %v1365 = vadd.f32 0.0, %v1364
      %1366 = vmatmul.f32.gmra.mxu0 %v1247
      %v1367 = vpop.f32.mrf.mxu0
      %v1368 = vadd.f32 0.0, %v1367
      %1369 = vmatmul.f32.gmra.mxu0 %v1248
      %v1370 = vpop.f32.mrf.mxu0
      %v1371 = vadd.f32 0.0, %v1370
      %1372 = vmatmul.f32.gmra.mxu0 %v1249
      %v1373 = vpop.f32.mrf.mxu0
      %v1374 = vadd.f32 0.0, %v1373
      %1375 = vmatmul.f32.gmra.mxu0 %v1250
      %v1376 = vpop.f32.mrf.mxu0
      %v1377 = vadd.f32 0.0, %v1376
      %1378 = vmatmul.f32.gmra.mxu0 %v1251
      %v1379 = vpop.f32.mrf.mxu0
      %v1380 = vadd.f32 0.0, %v1379
      %1381 = vdwg.mxu0
      %v1382 = vadd.f32 %v1188, %v1287
      %v1383 = vadd.f32 %v1189, %v1290
      %v1384 = vadd.f32 %v1190, %v1293
      %v1385 = vadd.f32 %v1191, %v1296
      %v1386 = vadd.f32 %v1192, %v1299
      %v1387 = vadd.f32 %v1193, %v1302
      %v1388 = vadd.f32 %v1194, %v1305
      %v1389 = vadd.f32 %v1195, %v1308
      %v1390 = vadd.f32 %v1196, %v1311
      %v1391 = vadd.f32 %v1197, %v1314
      %v1392 = vadd.f32 %v1198, %v1317
      %v1393 = vadd.f32 %v1199, %v1320
      %v1394 = vadd.f32 %v1200, %v1323
      %v1395 = vadd.f32 %v1201, %v1326
      %v1396 = vadd.f32 %v1202, %v1329
      %v1397 = vadd.f32 %v1203, %v1332
      %v1398 = vadd.f32 %v1204, %v1335
      %v1399 = vadd.f32 %v1205, %v1338
      %v1400 = vadd.f32 %v1206, %v1341
      %v1401 = vadd.f32 %v1207, %v1344
      %v1402 = vadd.f32 %v1208, %v1347
      %v1403 = vadd.f32 %v1209, %v1350
      %v1404 = vadd.f32 %v1210, %v1353
      %v1405 = vadd.f32 %v1211, %v1356
      %v1406 = vadd.f32 %v1212, %v1359
      %v1407 = vadd.f32 %v1213, %v1362
      %v1408 = vadd.f32 %v1214, %v1365
      %v1409 = vadd.f32 %v1215, %v1368
      %v1410 = vadd.f32 %v1216, %v1371
      %v1411 = vadd.f32 %v1217, %v1374
      %v1412 = vadd.f32 %v1218, %v1377
      %v1413 = vadd.f32 %v1219, %v1380
      %v1414 = vld [vmem:[%s667 + $0x1] sm:$0xff]
      %v1415 = vld [vmem:[%s667 + $0x9] sm:$0xff]
      %v1416 = vld [vmem:[%s667 + $0x19] sm:$0xff]
      %v1417 = vld [vmem:[%s667 + $0x21] sm:$0xff]
      %v1418 = vld [vmem:[%s667 + $0x31] sm:$0xff]
      %v1419 = vld [vmem:[%s667 + $0x39] sm:$0xff]
      %v1420 = vld [vmem:[%s667 + $0x49] sm:$0xff]
      %v1421 = vld [vmem:[%s667 + $0x51] sm:$0xff]
      %v1422 = vld [vmem:[%s667 + $0x61] sm:$0xff]
      %v1423 = vld [vmem:[%s667 + $0x69] sm:$0xff]
      %v1424 = vld [vmem:[%s667 + $0x79] sm:$0xff]
      %v1425 = vld [vmem:[%s667 + $0x81] sm:$0xff]
      %v1426 = vld [vmem:[%s667 + $0x91] sm:$0xff]
      %v1427 = vld [vmem:[%s667 + $0x99] sm:$0xff]
      %v1428 = vld [vmem:[%s667 + $0xa9] sm:$0xff]
      %v1429 = vld [vmem:[%s667 + $0xb1] sm:$0xff]
      %v1430 = vld [vmem:[%s667 + $0xc1] sm:$0xff]
      %v1431 = vld [vmem:[%s667 + $0xc9] sm:$0xff]
      %v1432 = vld [vmem:[%s667 + $0xd9] sm:$0xff]
      %v1433 = vld [vmem:[%s667 + $0xe1] sm:$0xff]
      %v1434 = vld [vmem:[%s667 + $0xf1] sm:$0xff]
      %v1435 = vld [vmem:[%s667 + $0xf9] sm:$0xff]
      %v1436 = vld [vmem:[%s667 + $0x109] sm:$0xff]
      %v1437 = vld [vmem:[%s667 + $0x111] sm:$0xff]
      %v1438 = vld [vmem:[%s667 + $0x121] sm:$0xff]
      %v1439 = vld [vmem:[%s667 + $0x129] sm:$0xff]
      %v1440 = vld [vmem:[%s667 + $0x139] sm:$0xff]
      %v1441 = vld [vmem:[%s667 + $0x141] sm:$0xff]
      %v1442 = vld [vmem:[%s667 + $0x151] sm:$0xff]
      %v1443 = vld [vmem:[%s667 + $0x159] sm:$0xff]
      %v1444 = vld [vmem:[%s667 + $0x169] sm:$0xff]
      %v1445 = vld [vmem:[%s667 + $0x171] sm:$0xff]
      %s1446 = scalar_lea.vmem %s5, 512
      %v1447 = vld [vmem:[%s1446] sm:$0xff]
      %v1448 = vld [vmem:[%s1446 + $0x8] sm:$0xff]
      %v1449 = vld [vmem:[%s1446 + $0x10] sm:$0xff]
      %v1450 = vld [vmem:[%s1446 + $0x18] sm:$0xff]
      %v1451 = vld [vmem:[%s1446 + $0x20] sm:$0xff]
      %v1452 = vld [vmem:[%s1446 + $0x28] sm:$0xff]
      %v1453 = vld [vmem:[%s1446 + $0x30] sm:$0xff]
      %v1454 = vld [vmem:[%s1446 + $0x38] sm:$0xff]
      %v1455 = vld [vmem:[%s1446 + $0x40] sm:$0xff]
      %v1456 = vld [vmem:[%s1446 + $0x48] sm:$0xff]
      %v1457 = vld [vmem:[%s1446 + $0x50] sm:$0xff]
      %v1458 = vld [vmem:[%s1446 + $0x58] sm:$0xff]
      %v1459 = vld [vmem:[%s1446 + $0x60] sm:$0xff]
      %v1460 = vld [vmem:[%s1446 + $0x68] sm:$0xff]
      %v1461 = vld [vmem:[%s1446 + $0x70] sm:$0xff]
      %v1462 = vld [vmem:[%s1446 + $0x78] sm:$0xff]
      %1463 = vmatpush.msra.mxu0 %v1462
      %1464 = vmatpush.msra.mxu0 %v1461
      %1465 = vmatpush.msra.mxu0 %v1460
      %1466 = vmatpush.msra.mxu0 %v1459
      %1467 = vmatpush.msra.mxu0 %v1458
      %1468 = vmatpush.msra.mxu0 %v1457
      %1469 = vmatpush.msra.mxu0 %v1456
      %1470 = vmatpush.msra.mxu0 %v1455
      %1471 = vmatpush.msra.mxu0 %v1454
      %1472 = vmatpush.msra.mxu0 %v1453
      %1473 = vmatpush.msra.mxu0 %v1452
      %1474 = vmatpush.msra.mxu0 %v1451
      %1475 = vmatpush.msra.mxu0 %v1450
      %1476 = vmatpush.msra.mxu0 %v1449
      %1477 = vmatpush.msra.mxu0 %v1448
      %1478 = vmatpush.msra.mxu0 %v1447
      %1479 = vmatmul.f32.gmra.mxu0 %v1414
      %v1480 = vpop.f32.mrf.mxu0
      %v1481 = vadd.f32 0.0, %v1480
      %1482 = vmatmul.f32.gmra.mxu0 %v1415
      %v1483 = vpop.f32.mrf.mxu0
      %v1484 = vadd.f32 0.0, %v1483
      %1485 = vmatmul.f32.gmra.mxu0 %v1416
      %v1486 = vpop.f32.mrf.mxu0
      %v1487 = vadd.f32 0.0, %v1486
      %1488 = vmatmul.f32.gmra.mxu0 %v1417
      %v1489 = vpop.f32.mrf.mxu0
      %v1490 = vadd.f32 0.0, %v1489
      %1491 = vmatmul.f32.gmra.mxu0 %v1418
      %v1492 = vpop.f32.mrf.mxu0
      %v1493 = vadd.f32 0.0, %v1492
      %1494 = vmatmul.f32.gmra.mxu0 %v1419
      %v1495 = vpop.f32.mrf.mxu0
      %v1496 = vadd.f32 0.0, %v1495
      %1497 = vmatmul.f32.gmra.mxu0 %v1420
      %v1498 = vpop.f32.mrf.mxu0
      %v1499 = vadd.f32 0.0, %v1498
      %1500 = vmatmul.f32.gmra.mxu0 %v1421
      %v1501 = vpop.f32.mrf.mxu0
      %v1502 = vadd.f32 0.0, %v1501
      %1503 = vmatmul.f32.gmra.mxu0 %v1422
      %v1504 = vpop.f32.mrf.mxu0
      %v1505 = vadd.f32 0.0, %v1504
      %1506 = vmatmul.f32.gmra.mxu0 %v1423
      %v1507 = vpop.f32.mrf.mxu0
      %v1508 = vadd.f32 0.0, %v1507
      %1509 = vmatmul.f32.gmra.mxu0 %v1424
      %v1510 = vpop.f32.mrf.mxu0
      %v1511 = vadd.f32 0.0, %v1510
      %1512 = vmatmul.f32.gmra.mxu0 %v1425
      %v1513 = vpop.f32.mrf.mxu0
      %v1514 = vadd.f32 0.0, %v1513
      %1515 = vmatmul.f32.gmra.mxu0 %v1426
      %v1516 = vpop.f32.mrf.mxu0
      %v1517 = vadd.f32 0.0, %v1516
      %1518 = vmatmul.f32.gmra.mxu0 %v1427
      %v1519 = vpop.f32.mrf.mxu0
      %v1520 = vadd.f32 0.0, %v1519
      %1521 = vmatmul.f32.gmra.mxu0 %v1428
      %v1522 = vpop.f32.mrf.mxu0
      %v1523 = vadd.f32 0.0, %v1522
      %1524 = vmatmul.f32.gmra.mxu0 %v1429
      %v1525 = vpop.f32.mrf.mxu0
      %v1526 = vadd.f32 0.0, %v1525
      %1527 = vmatmul.f32.gmra.mxu0 %v1430
      %v1528 = vpop.f32.mrf.mxu0
      %v1529 = vadd.f32 0.0, %v1528
      %1530 = vmatmul.f32.gmra.mxu0 %v1431
      %v1531 = vpop.f32.mrf.mxu0
      %v1532 = vadd.f32 0.0, %v1531
      %1533 = vmatmul.f32.gmra.mxu0 %v1432
      %v1534 = vpop.f32.mrf.mxu0
      %v1535 = vadd.f32 0.0, %v1534
      %1536 = vmatmul.f32.gmra.mxu0 %v1433
      %v1537 = vpop.f32.mrf.mxu0
      %v1538 = vadd.f32 0.0, %v1537
      %1539 = vmatmul.f32.gmra.mxu0 %v1434
      %v1540 = vpop.f32.mrf.mxu0
      %v1541 = vadd.f32 0.0, %v1540
      %1542 = vmatmul.f32.gmra.mxu0 %v1435
      %v1543 = vpop.f32.mrf.mxu0
      %v1544 = vadd.f32 0.0, %v1543
      %1545 = vmatmul.f32.gmra.mxu0 %v1436
      %v1546 = vpop.f32.mrf.mxu0
      %v1547 = vadd.f32 0.0, %v1546
      %1548 = vmatmul.f32.gmra.mxu0 %v1437
      %v1549 = vpop.f32.mrf.mxu0
      %v1550 = vadd.f32 0.0, %v1549
      %1551 = vmatmul.f32.gmra.mxu0 %v1438
      %v1552 = vpop.f32.mrf.mxu0
      %v1553 = vadd.f32 0.0, %v1552
      %1554 = vmatmul.f32.gmra.mxu0 %v1439
      %v1555 = vpop.f32.mrf.mxu0
      %v1556 = vadd.f32 0.0, %v1555
      %1557 = vmatmul.f32.gmra.mxu0 %v1440
      %v1558 = vpop.f32.mrf.mxu0
      %v1559 = vadd.f32 0.0, %v1558
      %1560 = vmatmul.f32.gmra.mxu0 %v1441
      %v1561 = vpop.f32.mrf.mxu0
      %v1562 = vadd.f32 0.0, %v1561
      %1563 = vmatmul.f32.gmra.mxu0 %v1442
      %v1564 = vpop.f32.mrf.mxu0
      %v1565 = vadd.f32 0.0, %v1564
      %1566 = vmatmul.f32.gmra.mxu0 %v1443
      %v1567 = vpop.f32.mrf.mxu0
      %v1568 = vadd.f32 0.0, %v1567
      %1569 = vmatmul.f32.gmra.mxu0 %v1444
      %v1570 = vpop.f32.mrf.mxu0
      %v1571 = vadd.f32 0.0, %v1570
      %1572 = vmatmul.f32.gmra.mxu0 %v1445
      %v1573 = vpop.f32.mrf.mxu0
      %v1574 = vadd.f32 0.0, %v1573
      %1575 = vdwg.mxu0
      %v1576 = vadd.f32 %v1382, %v1481
      %v1577 = vadd.f32 %v1383, %v1484
      %v1578 = vadd.f32 %v1384, %v1487
      %v1579 = vadd.f32 %v1385, %v1490
      %v1580 = vadd.f32 %v1386, %v1493
      %v1581 = vadd.f32 %v1387, %v1496
      %v1582 = vadd.f32 %v1388, %v1499
      %v1583 = vadd.f32 %v1389, %v1502
      %v1584 = vadd.f32 %v1390, %v1505
      %v1585 = vadd.f32 %v1391, %v1508
      %v1586 = vadd.f32 %v1392, %v1511
      %v1587 = vadd.f32 %v1393, %v1514
      %v1588 = vadd.f32 %v1394, %v1517
      %v1589 = vadd.f32 %v1395, %v1520
      %v1590 = vadd.f32 %v1396, %v1523
      %v1591 = vadd.f32 %v1397, %v1526
      %v1592 = vadd.f32 %v1398, %v1529
      %v1593 = vadd.f32 %v1399, %v1532
      %v1594 = vadd.f32 %v1400, %v1535
      %v1595 = vadd.f32 %v1401, %v1538
      %v1596 = vadd.f32 %v1402, %v1541
      %v1597 = vadd.f32 %v1403, %v1544
      %v1598 = vadd.f32 %v1404, %v1547
      %v1599 = vadd.f32 %v1405, %v1550
      %v1600 = vadd.f32 %v1406, %v1553
      %v1601 = vadd.f32 %v1407, %v1556
      %v1602 = vadd.f32 %v1408, %v1559
      %v1603 = vadd.f32 %v1409, %v1562
      %v1604 = vadd.f32 %v1410, %v1565
      %v1605 = vadd.f32 %v1411, %v1568
      %v1606 = vadd.f32 %v1412, %v1571
      %v1607 = vadd.f32 %v1413, %v1574
      %v1608 = vld [vmem:[%s667 + $0x2] sm:$0xff]
      %v1609 = vld [vmem:[%s667 + $0xa] sm:$0xff]
      %v1610 = vld [vmem:[%s667 + $0x1a] sm:$0xff]
      %v1611 = vld [vmem:[%s667 + $0x22] sm:$0xff]
      %v1612 = vld [vmem:[%s667 + $0x32] sm:$0xff]
      %v1613 = vld [vmem:[%s667 + $0x3a] sm:$0xff]
      %v1614 = vld [vmem:[%s667 + $0x4a] sm:$0xff]
      %v1615 = vld [vmem:[%s667 + $0x52] sm:$0xff]
      %v1616 = vld [vmem:[%s667 + $0x62] sm:$0xff]
      %v1617 = vld [vmem:[%s667 + $0x6a] sm:$0xff]
      %v1618 = vld [vmem:[%s667 + $0x7a] sm:$0xff]
      %v1619 = vld [vmem:[%s667 + $0x82] sm:$0xff]
      %v1620 = vld [vmem:[%s667 + $0x92] sm:$0xff]
      %v1621 = vld [vmem:[%s667 + $0x9a] sm:$0xff]
      %v1622 = vld [vmem:[%s667 + $0xaa] sm:$0xff]
      %v1623 = vld [vmem:[%s667 + $0xb2] sm:$0xff]
      %v1624 = vld [vmem:[%s667 + $0xc2] sm:$0xff]
      %v1625 = vld [vmem:[%s667 + $0xca] sm:$0xff]
      %v1626 = vld [vmem:[%s667 + $0xda] sm:$0xff]
      %v1627 = vld [vmem:[%s667 + $0xe2] sm:$0xff]
      %v1628 = vld [vmem:[%s667 + $0xf2] sm:$0xff]
      %v1629 = vld [vmem:[%s667 + $0xfa] sm:$0xff]
      %v1630 = vld [vmem:[%s667 + $0x10a] sm:$0xff]
      %v1631 = vld [vmem:[%s667 + $0x112] sm:$0xff]
      %v1632 = vld [vmem:[%s667 + $0x122] sm:$0xff]
      %v1633 = vld [vmem:[%s667 + $0x12a] sm:$0xff]
      %v1634 = vld [vmem:[%s667 + $0x13a] sm:$0xff]
      %v1635 = vld [vmem:[%s667 + $0x142] sm:$0xff]
      %v1636 = vld [vmem:[%s667 + $0x152] sm:$0xff]
      %v1637 = vld [vmem:[%s667 + $0x15a] sm:$0xff]
      %v1638 = vld [vmem:[%s667 + $0x16a] sm:$0xff]
      %v1639 = vld [vmem:[%s667 + $0x172] sm:$0xff]
      %s1640 = scalar_lea.vmem %s5, 640
      %v1641 = vld [vmem:[%s1640] sm:$0xff]
      %v1642 = vld [vmem:[%s1640 + $0x8] sm:$0xff]
      %v1643 = vld [vmem:[%s1640 + $0x10] sm:$0xff]
      %v1644 = vld [vmem:[%s1640 + $0x18] sm:$0xff]
      %v1645 = vld [vmem:[%s1640 + $0x20] sm:$0xff]
      %v1646 = vld [vmem:[%s1640 + $0x28] sm:$0xff]
      %v1647 = vld [vmem:[%s1640 + $0x30] sm:$0xff]
      %v1648 = vld [vmem:[%s1640 + $0x38] sm:$0xff]
      %v1649 = vld [vmem:[%s1640 + $0x40] sm:$0xff]
      %v1650 = vld [vmem:[%s1640 + $0x48] sm:$0xff]
      %v1651 = vld [vmem:[%s1640 + $0x50] sm:$0xff]
      %v1652 = vld [vmem:[%s1640 + $0x58] sm:$0xff]
      %v1653 = vld [vmem:[%s1640 + $0x60] sm:$0xff]
      %v1654 = vld [vmem:[%s1640 + $0x68] sm:$0xff]
      %v1655 = vld [vmem:[%s1640 + $0x70] sm:$0xff]
      %v1656 = vld [vmem:[%s1640 + $0x78] sm:$0xff]
      %1657 = vmatpush.msra.mxu0 %v1656
      %1658 = vmatpush.msra.mxu0 %v1655
      %1659 = vmatpush.msra.mxu0 %v1654
      %1660 = vmatpush.msra.mxu0 %v1653
      %1661 = vmatpush.msra.mxu0 %v1652
      %1662 = vmatpush.msra.mxu0 %v1651
      %1663 = vmatpush.msra.mxu0 %v1650
      %1664 = vmatpush.msra.mxu0 %v1649
      %1665 = vmatpush.msra.mxu0 %v1648
      %1666 = vmatpush.msra.mxu0 %v1647
      %1667 = vmatpush.msra.mxu0 %v1646
      %1668 = vmatpush.msra.mxu0 %v1645
      %1669 = vmatpush.msra.mxu0 %v1644
      %1670 = vmatpush.msra.mxu0 %v1643
      %1671 = vmatpush.msra.mxu0 %v1642
      %1672 = vmatpush.msra.mxu0 %v1641
      %1673 = vmatmul.f32.gmra.mxu0 %v1608
      %v1674 = vpop.f32.mrf.mxu0
      %v1675 = vadd.f32 0.0, %v1674
      %1676 = vmatmul.f32.gmra.mxu0 %v1609
      %v1677 = vpop.f32.mrf.mxu0
      %v1678 = vadd.f32 0.0, %v1677
      %1679 = vmatmul.f32.gmra.mxu0 %v1610
      %v1680 = vpop.f32.mrf.mxu0
      %v1681 = vadd.f32 0.0, %v1680
      %1682 = vmatmul.f32.gmra.mxu0 %v1611
      %v1683 = vpop.f32.mrf.mxu0
      %v1684 = vadd.f32 0.0, %v1683
      %1685 = vmatmul.f32.gmra.mxu0 %v1612
      %v1686 = vpop.f32.mrf.mxu0
      %v1687 = vadd.f32 0.0, %v1686
      %1688 = vmatmul.f32.gmra.mxu0 %v1613
      %v1689 = vpop.f32.mrf.mxu0
      %v1690 = vadd.f32 0.0, %v1689
      %1691 = vmatmul.f32.gmra.mxu0 %v1614
      %v1692 = vpop.f32.mrf.mxu0
      %v1693 = vadd.f32 0.0, %v1692
      %1694 = vmatmul.f32.gmra.mxu0 %v1615
      %v1695 = vpop.f32.mrf.mxu0
      %v1696 = vadd.f32 0.0, %v1695
      %1697 = vmatmul.f32.gmra.mxu0 %v1616
      %v1698 = vpop.f32.mrf.mxu0
      %v1699 = vadd.f32 0.0, %v1698
      %1700 = vmatmul.f32.gmra.mxu0 %v1617
      %v1701 = vpop.f32.mrf.mxu0
      %v1702 = vadd.f32 0.0, %v1701
      %1703 = vmatmul.f32.gmra.mxu0 %v1618
      %v1704 = vpop.f32.mrf.mxu0
      %v1705 = vadd.f32 0.0, %v1704
      %1706 = vmatmul.f32.gmra.mxu0 %v1619
      %v1707 = vpop.f32.mrf.mxu0
      %v1708 = vadd.f32 0.0, %v1707
      %1709 = vmatmul.f32.gmra.mxu0 %v1620
      %v1710 = vpop.f32.mrf.mxu0
      %v1711 = vadd.f32 0.0, %v1710
      %1712 = vmatmul.f32.gmra.mxu0 %v1621
      %v1713 = vpop.f32.mrf.mxu0
      %v1714 = vadd.f32 0.0, %v1713
      %1715 = vmatmul.f32.gmra.mxu0 %v1622
      %v1716 = vpop.f32.mrf.mxu0
      %v1717 = vadd.f32 0.0, %v1716
      %1718 = vmatmul.f32.gmra.mxu0 %v1623
      %v1719 = vpop.f32.mrf.mxu0
      %v1720 = vadd.f32 0.0, %v1719
      %1721 = vmatmul.f32.gmra.mxu0 %v1624
      %v1722 = vpop.f32.mrf.mxu0
      %v1723 = vadd.f32 0.0, %v1722
      %1724 = vmatmul.f32.gmra.mxu0 %v1625
      %v1725 = vpop.f32.mrf.mxu0
      %v1726 = vadd.f32 0.0, %v1725
      %1727 = vmatmul.f32.gmra.mxu0 %v1626
      %v1728 = vpop.f32.mrf.mxu0
      %v1729 = vadd.f32 0.0, %v1728
      %1730 = vmatmul.f32.gmra.mxu0 %v1627
      %v1731 = vpop.f32.mrf.mxu0
      %v1732 = vadd.f32 0.0, %v1731
      %1733 = vmatmul.f32.gmra.mxu0 %v1628
      %v1734 = vpop.f32.mrf.mxu0
      %v1735 = vadd.f32 0.0, %v1734
      %1736 = vmatmul.f32.gmra.mxu0 %v1629
      %v1737 = vpop.f32.mrf.mxu0
      %v1738 = vadd.f32 0.0, %v1737
      %1739 = vmatmul.f32.gmra.mxu0 %v1630
      %v1740 = vpop.f32.mrf.mxu0
      %v1741 = vadd.f32 0.0, %v1740
      %1742 = vmatmul.f32.gmra.mxu0 %v1631
      %v1743 = vpop.f32.mrf.mxu0
      %v1744 = vadd.f32 0.0, %v1743
      %1745 = vmatmul.f32.gmra.mxu0 %v1632
      %v1746 = vpop.f32.mrf.mxu0
      %v1747 = vadd.f32 0.0, %v1746
      %1748 = vmatmul.f32.gmra.mxu0 %v1633
      %v1749 = vpop.f32.mrf.mxu0
      %v1750 = vadd.f32 0.0, %v1749
      %1751 = vmatmul.f32.gmra.mxu0 %v1634
      %v1752 = vpop.f32.mrf.mxu0
      %v1753 = vadd.f32 0.0, %v1752
      %1754 = vmatmul.f32.gmra.mxu0 %v1635
      %v1755 = vpop.f32.mrf.mxu0
      %v1756 = vadd.f32 0.0, %v1755
      %1757 = vmatmul.f32.gmra.mxu0 %v1636
      %v1758 = vpop.f32.mrf.mxu0
      %v1759 = vadd.f32 0.0, %v1758
      %1760 = vmatmul.f32.gmra.mxu0 %v1637
      %v1761 = vpop.f32.mrf.mxu0
      %v1762 = vadd.f32 0.0, %v1761
      %1763 = vmatmul.f32.gmra.mxu0 %v1638
      %v1764 = vpop.f32.mrf.mxu0
      %v1765 = vadd.f32 0.0, %v1764
      %1766 = vmatmul.f32.gmra.mxu0 %v1639
      %v1767 = vpop.f32.mrf.mxu0
      %v1768 = vadd.f32 0.0, %v1767
      %1769 = vdwg.mxu0
      %v1770 = vadd.f32 %v1576, %v1675
      %v1771 = vadd.f32 %v1577, %v1678
      %v1772 = vadd.f32 %v1578, %v1681
      %v1773 = vadd.f32 %v1579, %v1684
      %v1774 = vadd.f32 %v1580, %v1687
      %v1775 = vadd.f32 %v1581, %v1690
      %v1776 = vadd.f32 %v1582, %v1693
      %v1777 = vadd.f32 %v1583, %v1696
      %v1778 = vadd.f32 %v1584, %v1699
      %v1779 = vadd.f32 %v1585, %v1702
      %v1780 = vadd.f32 %v1586, %v1705
      %v1781 = vadd.f32 %v1587, %v1708
      %v1782 = vadd.f32 %v1588, %v1711
      %v1783 = vadd.f32 %v1589, %v1714
      %v1784 = vadd.f32 %v1590, %v1717
      %v1785 = vadd.f32 %v1591, %v1720
      %v1786 = vadd.f32 %v1592, %v1723
      %v1787 = vadd.f32 %v1593, %v1726
      %v1788 = vadd.f32 %v1594, %v1729
      %v1789 = vadd.f32 %v1595, %v1732
      %v1790 = vadd.f32 %v1596, %v1735
      %v1791 = vadd.f32 %v1597, %v1738
      %v1792 = vadd.f32 %v1598, %v1741
      %v1793 = vadd.f32 %v1599, %v1744
      %v1794 = vadd.f32 %v1600, %v1747
      %v1795 = vadd.f32 %v1601, %v1750
      %v1796 = vadd.f32 %v1602, %v1753
      %v1797 = vadd.f32 %v1603, %v1756
      %v1798 = vadd.f32 %v1604, %v1759
      %v1799 = vadd.f32 %v1605, %v1762
      %v1800 = vadd.f32 %v1606, %v1765
      %v1801 = vadd.f32 %v1607, %v1768
      %s1802 = scalar_lea.vmem [#allocation2], 48
      %v1803 = vld [vmem:[%s1802] sm:$0xff]
      %v1804 = vld [vmem:[%s1802 + $0x8] sm:$0xff]
      %v1805 = vld [vmem:[%s1802 + $0x18] sm:$0xff]
      %v1806 = vld [vmem:[%s1802 + $0x20] sm:$0xff]
      %v1807 = vld [vmem:[%s1802 + $0x30] sm:$0xff]
      %v1808 = vld [vmem:[%s1802 + $0x38] sm:$0xff]
      %v1809 = vld [vmem:[%s1802 + $0x48] sm:$0xff]
      %v1810 = vld [vmem:[%s1802 + $0x50] sm:$0xff]
      %v1811 = vld [vmem:[%s1802 + $0x60] sm:$0xff]
      %v1812 = vld [vmem:[%s1802 + $0x68] sm:$0xff]
      %v1813 = vld [vmem:[%s1802 + $0x78] sm:$0xff]
      %v1814 = vld [vmem:[%s1802 + $0x80] sm:$0xff]
      %v1815 = vld [vmem:[%s1802 + $0x90] sm:$0xff]
      %v1816 = vld [vmem:[%s1802 + $0x98] sm:$0xff]
      %v1817 = vld [vmem:[%s1802 + $0xa8] sm:$0xff]
      %v1818 = vld [vmem:[%s1802 + $0xb0] sm:$0xff]
      %v1819 = vld [vmem:[%s1802 + $0xc0] sm:$0xff]
      %v1820 = vld [vmem:[%s1802 + $0xc8] sm:$0xff]
      %v1821 = vld [vmem:[%s1802 + $0xd8] sm:$0xff]
      %v1822 = vld [vmem:[%s1802 + $0xe0] sm:$0xff]
      %v1823 = vld [vmem:[%s1802 + $0xf0] sm:$0xff]
      %v1824 = vld [vmem:[%s1802 + $0xf8] sm:$0xff]
      %v1825 = vld [vmem:[%s1802 + $0x108] sm:$0xff]
      %v1826 = vld [vmem:[%s1802 + $0x110] sm:$0xff]
      %v1827 = vld [vmem:[%s1802 + $0x120] sm:$0xff]
      %v1828 = vld [vmem:[%s1802 + $0x128] sm:$0xff]
      %v1829 = vld [vmem:[%s1802 + $0x138] sm:$0xff]
      %v1830 = vld [vmem:[%s1802 + $0x140] sm:$0xff]
      %v1831 = vld [vmem:[%s1802 + $0x150] sm:$0xff]
      %v1832 = vld [vmem:[%s1802 + $0x158] sm:$0xff]
      %v1833 = vld [vmem:[%s1802 + $0x168] sm:$0xff]
      %v1834 = vld [vmem:[%s1802 + $0x170] sm:$0xff]
      %s1835 = scalar_lea.vmem %s5, 768
      %v1836 = vld [vmem:[%s1835] sm:$0xff]
      %v1837 = vld [vmem:[%s1835 + $0x8] sm:$0xff]
      %v1838 = vld [vmem:[%s1835 + $0x10] sm:$0xff]
      %v1839 = vld [vmem:[%s1835 + $0x18] sm:$0xff]
      %v1840 = vld [vmem:[%s1835 + $0x20] sm:$0xff]
      %v1841 = vld [vmem:[%s1835 + $0x28] sm:$0xff]
      %v1842 = vld [vmem:[%s1835 + $0x30] sm:$0xff]
      %v1843 = vld [vmem:[%s1835 + $0x38] sm:$0xff]
      %v1844 = vld [vmem:[%s1835 + $0x40] sm:$0xff]
      %v1845 = vld [vmem:[%s1835 + $0x48] sm:$0xff]
      %v1846 = vld [vmem:[%s1835 + $0x50] sm:$0xff]
      %v1847 = vld [vmem:[%s1835 + $0x58] sm:$0xff]
      %v1848 = vld [vmem:[%s1835 + $0x60] sm:$0xff]
      %v1849 = vld [vmem:[%s1835 + $0x68] sm:$0xff]
      %v1850 = vld [vmem:[%s1835 + $0x70] sm:$0xff]
      %v1851 = vld [vmem:[%s1835 + $0x78] sm:$0xff]
      %1852 = vmatpush.msra.mxu0 %v1851
      %1853 = vmatpush.msra.mxu0 %v1850
      %1854 = vmatpush.msra.mxu0 %v1849
      %1855 = vmatpush.msra.mxu0 %v1848
      %1856 = vmatpush.msra.mxu0 %v1847
      %1857 = vmatpush.msra.mxu0 %v1846
      %1858 = vmatpush.msra.mxu0 %v1845
      %1859 = vmatpush.msra.mxu0 %v1844
      %1860 = vmatpush.msra.mxu0 %v1843
      %1861 = vmatpush.msra.mxu0 %v1842
      %1862 = vmatpush.msra.mxu0 %v1841
      %1863 = vmatpush.msra.mxu0 %v1840
      %1864 = vmatpush.msra.mxu0 %v1839
      %1865 = vmatpush.msra.mxu0 %v1838
      %1866 = vmatpush.msra.mxu0 %v1837
      %1867 = vmatpush.msra.mxu0 %v1836
      %1868 = vmatmul.f32.gmra.mxu0 %v1803
      %v1869 = vpop.f32.mrf.mxu0
      %v1870 = vadd.f32 0.0, %v1869
      %1871 = vmatmul.f32.gmra.mxu0 %v1804
      %v1872 = vpop.f32.mrf.mxu0
      %v1873 = vadd.f32 0.0, %v1872
      %1874 = vmatmul.f32.gmra.mxu0 %v1805
      %v1875 = vpop.f32.mrf.mxu0
      %v1876 = vadd.f32 0.0, %v1875
      %1877 = vmatmul.f32.gmra.mxu0 %v1806
      %v1878 = vpop.f32.mrf.mxu0
      %v1879 = vadd.f32 0.0, %v1878
      %1880 = vmatmul.f32.gmra.mxu0 %v1807
      %v1881 = vpop.f32.mrf.mxu0
      %v1882 = vadd.f32 0.0, %v1881
      %1883 = vmatmul.f32.gmra.mxu0 %v1808
      %v1884 = vpop.f32.mrf.mxu0
      %v1885 = vadd.f32 0.0, %v1884
      %1886 = vmatmul.f32.gmra.mxu0 %v1809
      %v1887 = vpop.f32.mrf.mxu0
      %v1888 = vadd.f32 0.0, %v1887
      %1889 = vmatmul.f32.gmra.mxu0 %v1810
      %v1890 = vpop.f32.mrf.mxu0
      %v1891 = vadd.f32 0.0, %v1890
      %1892 = vmatmul.f32.gmra.mxu0 %v1811
      %v1893 = vpop.f32.mrf.mxu0
      %v1894 = vadd.f32 0.0, %v1893
      %1895 = vmatmul.f32.gmra.mxu0 %v1812
      %v1896 = vpop.f32.mrf.mxu0
      %v1897 = vadd.f32 0.0, %v1896
      %1898 = vmatmul.f32.gmra.mxu0 %v1813
      %v1899 = vpop.f32.mrf.mxu0
      %v1900 = vadd.f32 0.0, %v1899
      %1901 = vmatmul.f32.gmra.mxu0 %v1814
      %v1902 = vpop.f32.mrf.mxu0
      %v1903 = vadd.f32 0.0, %v1902
      %1904 = vmatmul.f32.gmra.mxu0 %v1815
      %v1905 = vpop.f32.mrf.mxu0
      %v1906 = vadd.f32 0.0, %v1905
      %1907 = vmatmul.f32.gmra.mxu0 %v1816
      %v1908 = vpop.f32.mrf.mxu0
      %v1909 = vadd.f32 0.0, %v1908
      %1910 = vmatmul.f32.gmra.mxu0 %v1817
      %v1911 = vpop.f32.mrf.mxu0
      %v1912 = vadd.f32 0.0, %v1911
      %1913 = vmatmul.f32.gmra.mxu0 %v1818
      %v1914 = vpop.f32.mrf.mxu0
      %v1915 = vadd.f32 0.0, %v1914
      %1916 = vmatmul.f32.gmra.mxu0 %v1819
      %v1917 = vpop.f32.mrf.mxu0
      %v1918 = vadd.f32 0.0, %v1917
      %1919 = vmatmul.f32.gmra.mxu0 %v1820
      %v1920 = vpop.f32.mrf.mxu0
      %v1921 = vadd.f32 0.0, %v1920
      %1922 = vmatmul.f32.gmra.mxu0 %v1821
      %v1923 = vpop.f32.mrf.mxu0
      %v1924 = vadd.f32 0.0, %v1923
      %1925 = vmatmul.f32.gmra.mxu0 %v1822
      %v1926 = vpop.f32.mrf.mxu0
      %v1927 = vadd.f32 0.0, %v1926
      %1928 = vmatmul.f32.gmra.mxu0 %v1823
      %v1929 = vpop.f32.mrf.mxu0
      %v1930 = vadd.f32 0.0, %v1929
      %1931 = vmatmul.f32.gmra.mxu0 %v1824
      %v1932 = vpop.f32.mrf.mxu0
      %v1933 = vadd.f32 0.0, %v1932
      %1934 = vmatmul.f32.gmra.mxu0 %v1825
      %v1935 = vpop.f32.mrf.mxu0
      %v1936 = vadd.f32 0.0, %v1935
      %1937 = vmatmul.f32.gmra.mxu0 %v1826
      %v1938 = vpop.f32.mrf.mxu0
      %v1939 = vadd.f32 0.0, %v1938
      %1940 = vmatmul.f32.gmra.mxu0 %v1827
      %v1941 = vpop.f32.mrf.mxu0
      %v1942 = vadd.f32 0.0, %v1941
      %1943 = vmatmul.f32.gmra.mxu0 %v1828
      %v1944 = vpop.f32.mrf.mxu0
      %v1945 = vadd.f32 0.0, %v1944
      %1946 = vmatmul.f32.gmra.mxu0 %v1829
      %v1947 = vpop.f32.mrf.mxu0
      %v1948 = vadd.f32 0.0, %v1947
      %1949 = vmatmul.f32.gmra.mxu0 %v1830
      %v1950 = vpop.f32.mrf.mxu0
      %v1951 = vadd.f32 0.0, %v1950
      %1952 = vmatmul.f32.gmra.mxu0 %v1831
      %v1953 = vpop.f32.mrf.mxu0
      %v1954 = vadd.f32 0.0, %v1953
      %1955 = vmatmul.f32.gmra.mxu0 %v1832
      %v1956 = vpop.f32.mrf.mxu0
      %v1957 = vadd.f32 0.0, %v1956
      %1958 = vmatmul.f32.gmra.mxu0 %v1833
      %v1959 = vpop.f32.mrf.mxu0
      %v1960 = vadd.f32 0.0, %v1959
      %1961 = vmatmul.f32.gmra.mxu0 %v1834
      %v1962 = vpop.f32.mrf.mxu0
      %v1963 = vadd.f32 0.0, %v1962
      %1964 = vdwg.mxu0
      %v1965 = vadd.f32 %v1770, %v1870
      %v1966 = vadd.f32 %v1771, %v1873
      %v1967 = vadd.f32 %v1772, %v1876
      %v1968 = vadd.f32 %v1773, %v1879
      %v1969 = vadd.f32 %v1774, %v1882
      %v1970 = vadd.f32 %v1775, %v1885
      %v1971 = vadd.f32 %v1776, %v1888
      %v1972 = vadd.f32 %v1777, %v1891
      %v1973 = vadd.f32 %v1778, %v1894
      %v1974 = vadd.f32 %v1779, %v1897
      %v1975 = vadd.f32 %v1780, %v1900
      %v1976 = vadd.f32 %v1781, %v1903
      %v1977 = vadd.f32 %v1782, %v1906
      %v1978 = vadd.f32 %v1783, %v1909
      %v1979 = vadd.f32 %v1784, %v1912
      %v1980 = vadd.f32 %v1785, %v1915
      %v1981 = vadd.f32 %v1786, %v1918
      %v1982 = vadd.f32 %v1787, %v1921
      %v1983 = vadd.f32 %v1788, %v1924
      %v1984 = vadd.f32 %v1789, %v1927
      %v1985 = vadd.f32 %v1790, %v1930
      %v1986 = vadd.f32 %v1791, %v1933
      %v1987 = vadd.f32 %v1792, %v1936
      %v1988 = vadd.f32 %v1793, %v1939
      %v1989 = vadd.f32 %v1794, %v1942
      %v1990 = vadd.f32 %v1795, %v1945
      %v1991 = vadd.f32 %v1796, %v1948
      %v1992 = vadd.f32 %v1797, %v1951
      %v1993 = vadd.f32 %v1798, %v1954
      %v1994 = vadd.f32 %v1799, %v1957
      %v1995 = vadd.f32 %v1800, %v1960
      %v1996 = vadd.f32 %v1801, %v1963
      %v1997 = vld [vmem:[%s1802 + $0x1] sm:$0xff]
      %v1998 = vld [vmem:[%s1802 + $0x9] sm:$0xff]
      %v1999 = vld [vmem:[%s1802 + $0x19] sm:$0xff]
      %v2000 = vld [vmem:[%s1802 + $0x21] sm:$0xff]
      %v2001 = vld [vmem:[%s1802 + $0x31] sm:$0xff]
      %v2002 = vld [vmem:[%s1802 + $0x39] sm:$0xff]
      %v2003 = vld [vmem:[%s1802 + $0x49] sm:$0xff]
      %v2004 = vld [vmem:[%s1802 + $0x51] sm:$0xff]
      %v2005 = vld [vmem:[%s1802 + $0x61] sm:$0xff]
      %v2006 = vld [vmem:[%s1802 + $0x69] sm:$0xff]
      %v2007 = vld [vmem:[%s1802 + $0x79] sm:$0xff]
      %v2008 = vld [vmem:[%s1802 + $0x81] sm:$0xff]
      %v2009 = vld [vmem:[%s1802 + $0x91] sm:$0xff]
      %v2010 = vld [vmem:[%s1802 + $0x99] sm:$0xff]
      %v2011 = vld [vmem:[%s1802 + $0xa9] sm:$0xff]
      %v2012 = vld [vmem:[%s1802 + $0xb1] sm:$0xff]
      %v2013 = vld [vmem:[%s1802 + $0xc1] sm:$0xff]
      %v2014 = vld [vmem:[%s1802 + $0xc9] sm:$0xff]
      %v2015 = vld [vmem:[%s1802 + $0xd9] sm:$0xff]
      %v2016 = vld [vmem:[%s1802 + $0xe1] sm:$0xff]
      %v2017 = vld [vmem:[%s1802 + $0xf1] sm:$0xff]
      %v2018 = vld [vmem:[%s1802 + $0xf9] sm:$0xff]
      %v2019 = vld [vmem:[%s1802 + $0x109] sm:$0xff]
      %v2020 = vld [vmem:[%s1802 + $0x111] sm:$0xff]
      %v2021 = vld [vmem:[%s1802 + $0x121] sm:$0xff]
      %v2022 = vld [vmem:[%s1802 + $0x129] sm:$0xff]
      %v2023 = vld [vmem:[%s1802 + $0x139] sm:$0xff]
      %v2024 = vld [vmem:[%s1802 + $0x141] sm:$0xff]
      %v2025 = vld [vmem:[%s1802 + $0x151] sm:$0xff]
      %v2026 = vld [vmem:[%s1802 + $0x159] sm:$0xff]
      %v2027 = vld [vmem:[%s1802 + $0x169] sm:$0xff]
      %v2028 = vld [vmem:[%s1802 + $0x171] sm:$0xff]
      %s2029 = scalar_lea.vmem %s5, 896
      %v2030 = vld [vmem:[%s2029] sm:$0xff]
      %v2031 = vld [vmem:[%s2029 + $0x8] sm:$0xff]
      %v2032 = vld [vmem:[%s2029 + $0x10] sm:$0xff]
      %v2033 = vld [vmem:[%s2029 + $0x18] sm:$0xff]
      %v2034 = vld [vmem:[%s2029 + $0x20] sm:$0xff]
      %v2035 = vld [vmem:[%s2029 + $0x28] sm:$0xff]
      %v2036 = vld [vmem:[%s2029 + $0x30] sm:$0xff]
      %v2037 = vld [vmem:[%s2029 + $0x38] sm:$0xff]
      %v2038 = vld [vmem:[%s2029 + $0x40] sm:$0xff]
      %v2039 = vld [vmem:[%s2029 + $0x48] sm:$0xff]
      %v2040 = vld [vmem:[%s2029 + $0x50] sm:$0xff]
      %v2041 = vld [vmem:[%s2029 + $0x58] sm:$0xff]
      %v2042 = vld [vmem:[%s2029 + $0x60] sm:$0xff]
      %v2043 = vld [vmem:[%s2029 + $0x68] sm:$0xff]
      %v2044 = vld [vmem:[%s2029 + $0x70] sm:$0xff]
      %v2045 = vld [vmem:[%s2029 + $0x78] sm:$0xff]
      %2046 = vmatpush.msra.mxu0 %v2045
      %2047 = vmatpush.msra.mxu0 %v2044
      %2048 = vmatpush.msra.mxu0 %v2043
      %2049 = vmatpush.msra.mxu0 %v2042
      %2050 = vmatpush.msra.mxu0 %v2041
      %2051 = vmatpush.msra.mxu0 %v2040
      %2052 = vmatpush.msra.mxu0 %v2039
      %2053 = vmatpush.msra.mxu0 %v2038
      %2054 = vmatpush.msra.mxu0 %v2037
      %2055 = vmatpush.msra.mxu0 %v2036
      %2056 = vmatpush.msra.mxu0 %v2035
      %2057 = vmatpush.msra.mxu0 %v2034
      %2058 = vmatpush.msra.mxu0 %v2033
      %2059 = vmatpush.msra.mxu0 %v2032
      %2060 = vmatpush.msra.mxu0 %v2031
      %2061 = vmatpush.msra.mxu0 %v2030
      %2062 = vmatmul.f32.gmra.mxu0 %v1997
      %v2063 = vpop.f32.mrf.mxu0
      %v2064 = vadd.f32 0.0, %v2063
      %2065 = vmatmul.f32.gmra.mxu0 %v1998
      %v2066 = vpop.f32.mrf.mxu0
      %v2067 = vadd.f32 0.0, %v2066
      %2068 = vmatmul.f32.gmra.mxu0 %v1999
      %v2069 = vpop.f32.mrf.mxu0
      %v2070 = vadd.f32 0.0, %v2069
      %2071 = vmatmul.f32.gmra.mxu0 %v2000
      %v2072 = vpop.f32.mrf.mxu0
      %v2073 = vadd.f32 0.0, %v2072
      %2074 = vmatmul.f32.gmra.mxu0 %v2001
      %v2075 = vpop.f32.mrf.mxu0
      %v2076 = vadd.f32 0.0, %v2075
      %2077 = vmatmul.f32.gmra.mxu0 %v2002
      %v2078 = vpop.f32.mrf.mxu0
      %v2079 = vadd.f32 0.0, %v2078
      %2080 = vmatmul.f32.gmra.mxu0 %v2003
      %v2081 = vpop.f32.mrf.mxu0
      %v2082 = vadd.f32 0.0, %v2081
      %2083 = vmatmul.f32.gmra.mxu0 %v2004
      %v2084 = vpop.f32.mrf.mxu0
      %v2085 = vadd.f32 0.0, %v2084
      %2086 = vmatmul.f32.gmra.mxu0 %v2005
      %v2087 = vpop.f32.mrf.mxu0
      %v2088 = vadd.f32 0.0, %v2087
      %2089 = vmatmul.f32.gmra.mxu0 %v2006
      %v2090 = vpop.f32.mrf.mxu0
      %v2091 = vadd.f32 0.0, %v2090
      %2092 = vmatmul.f32.gmra.mxu0 %v2007
      %v2093 = vpop.f32.mrf.mxu0
      %v2094 = vadd.f32 0.0, %v2093
      %2095 = vmatmul.f32.gmra.mxu0 %v2008
      %v2096 = vpop.f32.mrf.mxu0
      %v2097 = vadd.f32 0.0, %v2096
      %2098 = vmatmul.f32.gmra.mxu0 %v2009
      %v2099 = vpop.f32.mrf.mxu0
      %v2100 = vadd.f32 0.0, %v2099
      %2101 = vmatmul.f32.gmra.mxu0 %v2010
      %v2102 = vpop.f32.mrf.mxu0
      %v2103 = vadd.f32 0.0, %v2102
      %2104 = vmatmul.f32.gmra.mxu0 %v2011
      %v2105 = vpop.f32.mrf.mxu0
      %v2106 = vadd.f32 0.0, %v2105
      %2107 = vmatmul.f32.gmra.mxu0 %v2012
      %v2108 = vpop.f32.mrf.mxu0
      %v2109 = vadd.f32 0.0, %v2108
      %2110 = vmatmul.f32.gmra.mxu0 %v2013
      %v2111 = vpop.f32.mrf.mxu0
      %v2112 = vadd.f32 0.0, %v2111
      %2113 = vmatmul.f32.gmra.mxu0 %v2014
      %v2114 = vpop.f32.mrf.mxu0
      %v2115 = vadd.f32 0.0, %v2114
      %2116 = vmatmul.f32.gmra.mxu0 %v2015
      %v2117 = vpop.f32.mrf.mxu0
      %v2118 = vadd.f32 0.0, %v2117
      %2119 = vmatmul.f32.gmra.mxu0 %v2016
      %v2120 = vpop.f32.mrf.mxu0
      %v2121 = vadd.f32 0.0, %v2120
      %2122 = vmatmul.f32.gmra.mxu0 %v2017
      %v2123 = vpop.f32.mrf.mxu0
      %v2124 = vadd.f32 0.0, %v2123
      %2125 = vmatmul.f32.gmra.mxu0 %v2018
      %v2126 = vpop.f32.mrf.mxu0
      %v2127 = vadd.f32 0.0, %v2126
      %2128 = vmatmul.f32.gmra.mxu0 %v2019
      %v2129 = vpop.f32.mrf.mxu0
      %v2130 = vadd.f32 0.0, %v2129
      %2131 = vmatmul.f32.gmra.mxu0 %v2020
      %v2132 = vpop.f32.mrf.mxu0
      %v2133 = vadd.f32 0.0, %v2132
      %2134 = vmatmul.f32.gmra.mxu0 %v2021
      %v2135 = vpop.f32.mrf.mxu0
      %v2136 = vadd.f32 0.0, %v2135
      %2137 = vmatmul.f32.gmra.mxu0 %v2022
      %v2138 = vpop.f32.mrf.mxu0
      %v2139 = vadd.f32 0.0, %v2138
      %2140 = vmatmul.f32.gmra.mxu0 %v2023
      %v2141 = vpop.f32.mrf.mxu0
      %v2142 = vadd.f32 0.0, %v2141
      %2143 = vmatmul.f32.gmra.mxu0 %v2024
      %v2144 = vpop.f32.mrf.mxu0
      %v2145 = vadd.f32 0.0, %v2144
      %2146 = vmatmul.f32.gmra.mxu0 %v2025
      %v2147 = vpop.f32.mrf.mxu0
      %v2148 = vadd.f32 0.0, %v2147
      %2149 = vmatmul.f32.gmra.mxu0 %v2026
      %v2150 = vpop.f32.mrf.mxu0
      %v2151 = vadd.f32 0.0, %v2150
      %2152 = vmatmul.f32.gmra.mxu0 %v2027
      %v2153 = vpop.f32.mrf.mxu0
      %v2154 = vadd.f32 0.0, %v2153
      %2155 = vmatmul.f32.gmra.mxu0 %v2028
      %v2156 = vpop.f32.mrf.mxu0
      %v2157 = vadd.f32 0.0, %v2156
      %2158 = vdwg.mxu0
      %v2159 = vadd.f32 %v1965, %v2064
      %v2160 = vadd.f32 %v1966, %v2067
      %v2161 = vadd.f32 %v1967, %v2070
      %v2162 = vadd.f32 %v1968, %v2073
      %v2163 = vadd.f32 %v1969, %v2076
      %v2164 = vadd.f32 %v1970, %v2079
      %v2165 = vadd.f32 %v1971, %v2082
      %v2166 = vadd.f32 %v1972, %v2085
      %v2167 = vadd.f32 %v1973, %v2088
      %v2168 = vadd.f32 %v1974, %v2091
      %v2169 = vadd.f32 %v1975, %v2094
      %v2170 = vadd.f32 %v1976, %v2097
      %v2171 = vadd.f32 %v1977, %v2100
      %v2172 = vadd.f32 %v1978, %v2103
      %v2173 = vadd.f32 %v1979, %v2106
      %v2174 = vadd.f32 %v1980, %v2109
      %v2175 = vadd.f32 %v1981, %v2112
      %v2176 = vadd.f32 %v1982, %v2115
      %v2177 = vadd.f32 %v1983, %v2118
      %v2178 = vadd.f32 %v1984, %v2121
      %v2179 = vadd.f32 %v1985, %v2124
      %v2180 = vadd.f32 %v1986, %v2127
      %v2181 = vadd.f32 %v1987, %v2130
      %v2182 = vadd.f32 %v1988, %v2133
      %v2183 = vadd.f32 %v1989, %v2136
      %v2184 = vadd.f32 %v1990, %v2139
      %v2185 = vadd.f32 %v1991, %v2142
      %v2186 = vadd.f32 %v1992, %v2145
      %v2187 = vadd.f32 %v1993, %v2148
      %v2188 = vadd.f32 %v1994, %v2151
      %v2189 = vadd.f32 %v1995, %v2154
      %v2190 = vadd.f32 %v1996, %v2157
      %v2191 = vld [vmem:[%s1802 + $0x2] sm:$0xff]
      %v2192 = vld [vmem:[%s1802 + $0xa] sm:$0xff]
      %v2193 = vld [vmem:[%s1802 + $0x1a] sm:$0xff]
      %v2194 = vld [vmem:[%s1802 + $0x22] sm:$0xff]
      %v2195 = vld [vmem:[%s1802 + $0x32] sm:$0xff]
      %v2196 = vld [vmem:[%s1802 + $0x3a] sm:$0xff]
      %v2197 = vld [vmem:[%s1802 + $0x4a] sm:$0xff]
      %v2198 = vld [vmem:[%s1802 + $0x52] sm:$0xff]
      %v2199 = vld [vmem:[%s1802 + $0x62] sm:$0xff]
      %v2200 = vld [vmem:[%s1802 + $0x6a] sm:$0xff]
      %v2201 = vld [vmem:[%s1802 + $0x7a] sm:$0xff]
      %v2202 = vld [vmem:[%s1802 + $0x82] sm:$0xff]
      %v2203 = vld [vmem:[%s1802 + $0x92] sm:$0xff]
      %v2204 = vld [vmem:[%s1802 + $0x9a] sm:$0xff]
      %v2205 = vld [vmem:[%s1802 + $0xaa] sm:$0xff]
      %v2206 = vld [vmem:[%s1802 + $0xb2] sm:$0xff]
      %v2207 = vld [vmem:[%s1802 + $0xc2] sm:$0xff]
      %v2208 = vld [vmem:[%s1802 + $0xca] sm:$0xff]
      %v2209 = vld [vmem:[%s1802 + $0xda] sm:$0xff]
      %v2210 = vld [vmem:[%s1802 + $0xe2] sm:$0xff]
      %v2211 = vld [vmem:[%s1802 + $0xf2] sm:$0xff]
      %v2212 = vld [vmem:[%s1802 + $0xfa] sm:$0xff]
      %v2213 = vld [vmem:[%s1802 + $0x10a] sm:$0xff]
      %v2214 = vld [vmem:[%s1802 + $0x112] sm:$0xff]
      %v2215 = vld [vmem:[%s1802 + $0x122] sm:$0xff]
      %v2216 = vld [vmem:[%s1802 + $0x12a] sm:$0xff]
      %v2217 = vld [vmem:[%s1802 + $0x13a] sm:$0xff]
      %v2218 = vld [vmem:[%s1802 + $0x142] sm:$0xff]
      %v2219 = vld [vmem:[%s1802 + $0x152] sm:$0xff]
      %v2220 = vld [vmem:[%s1802 + $0x15a] sm:$0xff]
      %v2221 = vld [vmem:[%s1802 + $0x16a] sm:$0xff]
      %v2222 = vld [vmem:[%s1802 + $0x172] sm:$0xff]
      %s2223 = scalar_lea.vmem %s5, 1024
      %v2224 = vld [vmem:[%s2223] sm:$0xff]
      %v2225 = vld [vmem:[%s2223 + $0x8] sm:$0xff]
      %v2226 = vld [vmem:[%s2223 + $0x10] sm:$0xff]
      %v2227 = vld [vmem:[%s2223 + $0x18] sm:$0xff]
      %v2228 = vld [vmem:[%s2223 + $0x20] sm:$0xff]
      %v2229 = vld [vmem:[%s2223 + $0x28] sm:$0xff]
      %v2230 = vld [vmem:[%s2223 + $0x30] sm:$0xff]
      %v2231 = vld [vmem:[%s2223 + $0x38] sm:$0xff]
      %v2232 = vld [vmem:[%s2223 + $0x40] sm:$0xff]
      %v2233 = vld [vmem:[%s2223 + $0x48] sm:$0xff]
      %v2234 = vld [vmem:[%s2223 + $0x50] sm:$0xff]
      %v2235 = vld [vmem:[%s2223 + $0x58] sm:$0xff]
      %v2236 = vld [vmem:[%s2223 + $0x60] sm:$0xff]
      %v2237 = vld [vmem:[%s2223 + $0x68] sm:$0xff]
      %v2238 = vld [vmem:[%s2223 + $0x70] sm:$0xff]
      %v2239 = vld [vmem:[%s2223 + $0x78] sm:$0xff]
      %2240 = vmatpush.msra.mxu0 %v2239
      %2241 = vmatpush.msra.mxu0 %v2238
      %2242 = vmatpush.msra.mxu0 %v2237
      %2243 = vmatpush.msra.mxu0 %v2236
      %2244 = vmatpush.msra.mxu0 %v2235
      %2245 = vmatpush.msra.mxu0 %v2234
      %2246 = vmatpush.msra.mxu0 %v2233
      %2247 = vmatpush.msra.mxu0 %v2232
      %2248 = vmatpush.msra.mxu0 %v2231
      %2249 = vmatpush.msra.mxu0 %v2230
      %2250 = vmatpush.msra.mxu0 %v2229
      %2251 = vmatpush.msra.mxu0 %v2228
      %2252 = vmatpush.msra.mxu0 %v2227
      %2253 = vmatpush.msra.mxu0 %v2226
      %2254 = vmatpush.msra.mxu0 %v2225
      %2255 = vmatpush.msra.mxu0 %v2224
      %2256 = vmatmul.f32.gmra.mxu0 %v2191
      %v2257 = vpop.f32.mrf.mxu0
      %v2258 = vadd.f32 0.0, %v2257
      %2259 = vmatmul.f32.gmra.mxu0 %v2192
      %v2260 = vpop.f32.mrf.mxu0
      %v2261 = vadd.f32 0.0, %v2260
      %2262 = vmatmul.f32.gmra.mxu0 %v2193
      %v2263 = vpop.f32.mrf.mxu0
      %v2264 = vadd.f32 0.0, %v2263
      %2265 = vmatmul.f32.gmra.mxu0 %v2194
      %v2266 = vpop.f32.mrf.mxu0
      %v2267 = vadd.f32 0.0, %v2266
      %2268 = vmatmul.f32.gmra.mxu0 %v2195
      %v2269 = vpop.f32.mrf.mxu0
      %v2270 = vadd.f32 0.0, %v2269
      %2271 = vmatmul.f32.gmra.mxu0 %v2196
      %v2272 = vpop.f32.mrf.mxu0
      %v2273 = vadd.f32 0.0, %v2272
      %2274 = vmatmul.f32.gmra.mxu0 %v2197
      %v2275 = vpop.f32.mrf.mxu0
      %v2276 = vadd.f32 0.0, %v2275
      %2277 = vmatmul.f32.gmra.mxu0 %v2198
      %v2278 = vpop.f32.mrf.mxu0
      %v2279 = vadd.f32 0.0, %v2278
      %2280 = vmatmul.f32.gmra.mxu0 %v2199
      %v2281 = vpop.f32.mrf.mxu0
      %v2282 = vadd.f32 0.0, %v2281
      %2283 = vmatmul.f32.gmra.mxu0 %v2200
      %v2284 = vpop.f32.mrf.mxu0
      %v2285 = vadd.f32 0.0, %v2284
      %2286 = vmatmul.f32.gmra.mxu0 %v2201
      %v2287 = vpop.f32.mrf.mxu0
      %v2288 = vadd.f32 0.0, %v2287
      %2289 = vmatmul.f32.gmra.mxu0 %v2202
      %v2290 = vpop.f32.mrf.mxu0
      %v2291 = vadd.f32 0.0, %v2290
      %2292 = vmatmul.f32.gmra.mxu0 %v2203
      %v2293 = vpop.f32.mrf.mxu0
      %v2294 = vadd.f32 0.0, %v2293
      %2295 = vmatmul.f32.gmra.mxu0 %v2204
      %v2296 = vpop.f32.mrf.mxu0
      %v2297 = vadd.f32 0.0, %v2296
      %2298 = vmatmul.f32.gmra.mxu0 %v2205
      %v2299 = vpop.f32.mrf.mxu0
      %v2300 = vadd.f32 0.0, %v2299
      %2301 = vmatmul.f32.gmra.mxu0 %v2206
      %v2302 = vpop.f32.mrf.mxu0
      %v2303 = vadd.f32 0.0, %v2302
      %2304 = vmatmul.f32.gmra.mxu0 %v2207
      %v2305 = vpop.f32.mrf.mxu0
      %v2306 = vadd.f32 0.0, %v2305
      %2307 = vmatmul.f32.gmra.mxu0 %v2208
      %v2308 = vpop.f32.mrf.mxu0
      %v2309 = vadd.f32 0.0, %v2308
      %2310 = vmatmul.f32.gmra.mxu0 %v2209
      %v2311 = vpop.f32.mrf.mxu0
      %v2312 = vadd.f32 0.0, %v2311
      %2313 = vmatmul.f32.gmra.mxu0 %v2210
      %v2314 = vpop.f32.mrf.mxu0
      %v2315 = vadd.f32 0.0, %v2314
      %2316 = vmatmul.f32.gmra.mxu0 %v2211
      %v2317 = vpop.f32.mrf.mxu0
      %v2318 = vadd.f32 0.0, %v2317
      %2319 = vmatmul.f32.gmra.mxu0 %v2212
      %v2320 = vpop.f32.mrf.mxu0
      %v2321 = vadd.f32 0.0, %v2320
      %2322 = vmatmul.f32.gmra.mxu0 %v2213
      %v2323 = vpop.f32.mrf.mxu0
      %v2324 = vadd.f32 0.0, %v2323
      %2325 = vmatmul.f32.gmra.mxu0 %v2214
      %v2326 = vpop.f32.mrf.mxu0
      %v2327 = vadd.f32 0.0, %v2326
      %2328 = vmatmul.f32.gmra.mxu0 %v2215
      %v2329 = vpop.f32.mrf.mxu0
      %v2330 = vadd.f32 0.0, %v2329
      %2331 = vmatmul.f32.gmra.mxu0 %v2216
      %v2332 = vpop.f32.mrf.mxu0
      %v2333 = vadd.f32 0.0, %v2332
      %2334 = vmatmul.f32.gmra.mxu0 %v2217
      %v2335 = vpop.f32.mrf.mxu0
      %v2336 = vadd.f32 0.0, %v2335
      %2337 = vmatmul.f32.gmra.mxu0 %v2218
      %v2338 = vpop.f32.mrf.mxu0
      %v2339 = vadd.f32 0.0, %v2338
      %2340 = vmatmul.f32.gmra.mxu0 %v2219
      %v2341 = vpop.f32.mrf.mxu0
      %v2342 = vadd.f32 0.0, %v2341
      %2343 = vmatmul.f32.gmra.mxu0 %v2220
      %v2344 = vpop.f32.mrf.mxu0
      %v2345 = vadd.f32 0.0, %v2344
      %2346 = vmatmul.f32.gmra.mxu0 %v2221
      %v2347 = vpop.f32.mrf.mxu0
      %v2348 = vadd.f32 0.0, %v2347
      %2349 = vmatmul.f32.gmra.mxu0 %v2222
      %v2350 = vpop.f32.mrf.mxu0
      %v2351 = vadd.f32 0.0, %v2350
      %2352 = vdwg.mxu0
      %v2353 = vadd.f32 %v2159, %v2258
      %v2354 = vadd.f32 %v2160, %v2261
      %v2355 = vadd.f32 %v2161, %v2264
      %v2356 = vadd.f32 %v2162, %v2267
      %v2357 = vadd.f32 %v2163, %v2270
      %v2358 = vadd.f32 %v2164, %v2273
      %v2359 = vadd.f32 %v2165, %v2276
      %v2360 = vadd.f32 %v2166, %v2279
      %v2361 = vadd.f32 %v2167, %v2282
      %v2362 = vadd.f32 %v2168, %v2285
      %v2363 = vadd.f32 %v2169, %v2288
      %v2364 = vadd.f32 %v2170, %v2291
      %v2365 = vadd.f32 %v2171, %v2294
      %v2366 = vadd.f32 %v2172, %v2297
      %v2367 = vadd.f32 %v2173, %v2300
      %v2368 = vadd.f32 %v2174, %v2303
      %v2369 = vadd.f32 %v2175, %v2306
      %v2370 = vadd.f32 %v2176, %v2309
      %v2371 = vadd.f32 %v2177, %v2312
      %v2372 = vadd.f32 %v2178, %v2315
      %v2373 = vadd.f32 %v2179, %v2318
      %v2374 = vadd.f32 %v2180, %v2321
      %v2375 = vadd.f32 %v2181, %v2324
      %v2376 = vadd.f32 %v2182, %v2327
      %v2377 = vadd.f32 %v2183, %v2330
      %v2378 = vadd.f32 %v2184, %v2333
      %v2379 = vadd.f32 %v2185, %v2336
      %v2380 = vadd.f32 %v2186, %v2339
      %v2381 = vadd.f32 %v2187, %v2342
      %v2382 = vadd.f32 %v2188, %v2345
      %v2383 = vadd.f32 %v2189, %v2348
      %v2384 = vadd.f32 %v2190, %v2351
      %2385 = vst [vmem:[%s455] sm:$0xff] %v2353
      %2386 = vst [vmem:[%s455 + $0x8] sm:$0xff] %v2354
      %2387 = vst [vmem:[%s455 + $0x10] sm:$0xff] %v2355
      %2388 = vst [vmem:[%s455 + $0x18] sm:$0xff] %v2356
      %2389 = vst [vmem:[%s455 + $0x20] sm:$0xff] %v2357
      %2390 = vst [vmem:[%s455 + $0x28] sm:$0xff] %v2358
      %2391 = vst [vmem:[%s455 + $0x30] sm:$0xff] %v2359
      %2392 = vst [vmem:[%s455 + $0x38] sm:$0xff] %v2360
      %2393 = vst [vmem:[%s455 + $0x40] sm:$0xff] %v2361
      %2394 = vst [vmem:[%s455 + $0x48] sm:$0xff] %v2362
      %2395 = vst [vmem:[%s455 + $0x50] sm:$0xff] %v2363
      %2396 = vst [vmem:[%s455 + $0x58] sm:$0xff] %v2364
      %2397 = vst [vmem:[%s455 + $0x60] sm:$0xff] %v2365
      %2398 = vst [vmem:[%s455 + $0x68] sm:$0xff] %v2366
      %2399 = vst [vmem:[%s455 + $0x70] sm:$0xff] %v2367
      %2400 = vst [vmem:[%s455 + $0x78] sm:$0xff] %v2368
      %2401 = vst [vmem:[%s455 + $0x80] sm:$0xff] %v2369
      %2402 = vst [vmem:[%s455 + $0x88] sm:$0xff] %v2370
      %2403 = vst [vmem:[%s455 + $0x90] sm:$0xff] %v2371
      %2404 = vst [vmem:[%s455 + $0x98] sm:$0xff] %v2372
      %2405 = vst [vmem:[%s455 + $0xa0] sm:$0xff] %v2373
      %2406 = vst [vmem:[%s455 + $0xa8] sm:$0xff] %v2374
      %2407 = vst [vmem:[%s455 + $0xb0] sm:$0xff] %v2375
      %2408 = vst [vmem:[%s455 + $0xb8] sm:$0xff] %v2376
      %2409 = vst [vmem:[%s455 + $0xc0] sm:$0xff] %v2377
      %2410 = vst [vmem:[%s455 + $0xc8] sm:$0xff] %v2378
      %2411 = vst [vmem:[%s455 + $0xd0] sm:$0xff] %v2379
      %2412 = vst [vmem:[%s455 + $0xd8] sm:$0xff] %v2380
      %2413 = vst [vmem:[%s455 + $0xe0] sm:$0xff] %v2381
      %2414 = vst [vmem:[%s455 + $0xe8] sm:$0xff] %v2382
      %2415 = vst [vmem:[%s455 + $0xf0] sm:$0xff] %v2383
      %2416 = vst [vmem:[%s455 + $0xf8] sm:$0xff] %v2384
      %v2417 = vadd.f32 %v2353, %v2354
      %v2418 = vadd.f32 %v2417, %v2355
      %v2419 = vadd.f32 %v2418, %v2356
      %v2420 = vadd.f32 %v2419, %v2357
      %v2421 = vadd.f32 %v2420, %v2358
      %v2422 = vadd.f32 %v2421, %v2359
      %v2423 = vadd.f32 %v2422, %v2360
      %v2424 = vadd.f32 %v2423, %v2361
      %v2425 = vadd.f32 %v2424, %v2362
      %v2426 = vadd.f32 %v2425, %v2363
      %v2427 = vadd.f32 %v2426, %v2364
      %v2428 = vadd.f32 %v2427, %v2365
      %v2429 = vadd.f32 %v2428, %v2366
      %v2430 = vadd.f32 %v2429, %v2367
      %v2431 = vadd.f32 %v2430, %v2368
      %v2432 = vadd.f32 %v2431, %v2369
      %v2433 = vadd.f32 %v2432, %v2370
      %v2434 = vadd.f32 %v2433, %v2371
      %v2435 = vadd.f32 %v2434, %v2372
      %v2436 = vadd.f32 %v2435, %v2373
      %v2437 = vadd.f32 %v2436, %v2374
      %v2438 = vadd.f32 %v2437, %v2375
      %v2439 = vadd.f32 %v2438, %v2376
      %v2440 = vadd.f32 %v2439, %v2377
      %v2441 = vadd.f32 %v2440, %v2378
      %v2442 = vadd.f32 %v2441, %v2379
      %v2443 = vadd.f32 %v2442, %v2380
      %v2444 = vadd.f32 %v2443, %v2381
      %v2445 = vadd.f32 %v2444, %v2382
      %v2446 = vadd.f32 %v2445, %v2383
      %v2447 = vadd.f32 %v2446, %v2384
      %v2448 = vrot.slane %v2447, 4
      %v2449 = vadd.f32 %v2447, %v2448
      %v2450 = vrot.slane %v2449, 2
      %v2451 = vadd.f32 %v2449, %v2450
      %v2452 = vrot.slane %v2451, 1
      %v2453 = vadd.f32 %v2451, %v2452
      %v2454 = vmul.f32 %v2353, %v2353
      %v2455 = vmul.f32 %v2354, %v2354
      %v2456 = vmul.f32 %v2355, %v2355
      %v2457 = vmul.f32 %v2356, %v2356
      %v2458 = vmul.f32 %v2357, %v2357
      %v2459 = vmul.f32 %v2358, %v2358
      %v2460 = vmul.f32 %v2359, %v2359
      %v2461 = vmul.f32 %v2360, %v2360
      %v2462 = vmul.f32 %v2361, %v2361
      %v2463 = vmul.f32 %v2362, %v2362
      %v2464 = vmul.f32 %v2363, %v2363
      %v2465 = vmul.f32 %v2364, %v2364
      %v2466 = vmul.f32 %v2365, %v2365
      %v2467 = vmul.f32 %v2366, %v2366
      %v2468 = vmul.f32 %v2367, %v2367
      %v2469 = vmul.f32 %v2368, %v2368
      %v2470 = vmul.f32 %v2369, %v2369
      %v2471 = vmul.f32 %v2370, %v2370
      %v2472 = vmul.f32 %v2371, %v2371
      %v2473 = vmul.f32 %v2372, %v2372
      %v2474 = vmul.f32 %v2373, %v2373
      %v2475 = vmul.f32 %v2374, %v2374
      %v2476 = vmul.f32 %v2375, %v2375
      %v2477 = vmul.f32 %v2376, %v2376
      %v2478 = vmul.f32 %v2377, %v2377
      %v2479 = vmul.f32 %v2378, %v2378
      %v2480 = vmul.f32 %v2379, %v2379
      %v2481 = vmul.f32 %v2380, %v2380
      %v2482 = vmul.f32 %v2381, %v2381
      %v2483 = vmul.f32 %v2382, %v2382
      %v2484 = vmul.f32 %v2383, %v2383
      %v2485 = vmul.f32 %v2384, %v2384
      %v2486 = vadd.f32 %v2454, %v2455
      %v2487 = vadd.f32 %v2486, %v2456
      %v2488 = vadd.f32 %v2487, %v2457
      %v2489 = vadd.f32 %v2488, %v2458
      %v2490 = vadd.f32 %v2489, %v2459
      %v2491 = vadd.f32 %v2490, %v2460
      %v2492 = vadd.f32 %v2491, %v2461
      %v2493 = vadd.f32 %v2492, %v2462
      %v2494 = vadd.f32 %v2493, %v2463
      %v2495 = vadd.f32 %v2494, %v2464
      %v2496 = vadd.f32 %v2495, %v2465
      %v2497 = vadd.f32 %v2496, %v2466
      %v2498 = vadd.f32 %v2497, %v2467
      %v2499 = vadd.f32 %v2498, %v2468
      %v2500 = vadd.f32 %v2499, %v2469
      %v2501 = vadd.f32 %v2500, %v2470
      %v2502 = vadd.f32 %v2501, %v2471
      %v2503 = vadd.f32 %v2502, %v2472
      %v2504 = vadd.f32 %v2503, %v2473
      %v2505 = vadd.f32 %v2504, %v2474
      %v2506 = vadd.f32 %v2505, %v2475
      %v2507 = vadd.f32 %v2506, %v2476
      %v2508 = vadd.f32 %v2507, %v2477
      %v2509 = vadd.f32 %v2508, %v2478
      %v2510 = vadd.f32 %v2509, %v2479
      %v2511 = vadd.f32 %v2510, %v2480
      %v2512 = vadd.f32 %v2511, %v2481
      %v2513 = vadd.f32 %v2512, %v2482
      %v2514 = vadd.f32 %v2513, %v2483
      %v2515 = vadd.f32 %v2514, %v2484
      %v2516 = vadd.f32 %v2515, %v2485
      %v2517 = vrot.slane %v2516, 4
      %v2518 = vadd.f32 %v2516, %v2517
      %v2519 = vrot.slane %v2518, 2
      %v2520 = vadd.f32 %v2518, %v2519
      %v2521 = vrot.slane %v2520, 1
      %v2522 = vadd.f32 %v2520, %v2521
      %v2523 = vlaneseq
      %v2524 = vshrl.u32 %v2523, 7
      %vm2525 = vcmp.eq.s32.totalorder %v2524, 0
      %vm2526 = vcmp.eq.s32.totalorder %v2524, 1
      %v2527 = vsel %vm2526, 1, 0
      %vm2528 = vcmp.eq.s32.totalorder %v2527, 1
      %v2529 = vsel %vm2528, %v2522, 0.0
      %v2530 = vsel %vm2525, 1, 0
      %vm2531 = vcmp.eq.s32.totalorder %v2530, 1
      %v2532 = vsel %vm2531, %v2453, %v2529
      %2533 = vst [vmem:[%s461] sm:$0xff] %v2532
      %s2534 = smul.u32 16, %s24
      %p2535 = scmp.lt.s32.totalorder %s23, 1
      %s2536 = scalar_select %p2535, %s23, 1
      %p2537 = scmp.lt.s32.totalorder %s2534, 15
      %s2538 = scalar_select %p2537, %s2534, 15
      %s2539 = smul.addr %s2538, 2
      %s2540 = smul.addr %s2536, 32
      %s2541 = sadd.s32 %s2539, %s2540
      %s2542 = smul.addr %s2541, 8
      %s2543 = scalar_lea.vmem %s6, %s2542
      %s2544 = sadd.s32 %s23, %s24
      %p2545 = scmp.lt.s32.totalorder %s2544, 1
      %s2546 = scalar_select %p2545, %s2544, 1
      %s2547 = smul.addr %s2546, 8
      %s2548 = scalar_lea.vmem %s7, %s2547
      // Predicated region
      $region45: #{resnext_bottleneck_forward.5} parent=43 // pred_check
        %p2549 = pneg %p214
      $region46: #{resnext_bottleneck_forward.5} parent=43 // pred_check_branch
        %2551 = sbr.rel (%p2549) target = $region48
      $region47: #{resnext_bottleneck_forward.5} parent=43 // pred_region
        %s2552 = smul.u32 16, %s24
      $region48: #{resnext_bottleneck_forward.5} parent=43 // pred_fallthru
        _
      // Predicated region
      $region49: #{resnext_bottleneck_forward.5} parent=43 // pred_check
        %p2553 = pneg %p242
      $region50: #{resnext_bottleneck_forward.5} parent=43 // pred_check_branch
        %2555 = sbr.rel (%p2553) target = $region52
      $region51: #{resnext_bottleneck_forward.5} parent=43 // pred_region
        %s2556 = sadd.s32 %s23, %s24
      $region52: #{resnext_bottleneck_forward.5} parent=43 // pred_fallthru
        _
    $region44: #{resnext_bottleneck_forward.5} parent=5 // pred_fallthru
      _
    %p2557 = scmp.le.s32.totalorder 2, %s14
    // Predicated region
    $region53: #{resnext_bottleneck_forward.5} parent=5 // pred_check
      %p2558 = pneg %p2557
    $region54: #{resnext_bottleneck_forward.5} parent=5 // pred_check_branch
      %2560 = sbr.rel (%p2558) target = $region56
    $region55: #{resnext_bottleneck_forward.5} parent=5 // pred_region
      %s2561 = ssub.s32 %s14, 2
      // Predicated region
      $region57: #{resnext_bottleneck_forward.5} parent=55 // pred_check
        %p2562 = pneg %p220
      $region58: #{resnext_bottleneck_forward.5} parent=55 // pred_check_branch
        %2564 = sbr.rel (%p2562) target = $region60
      $region59: #{resnext_bottleneck_forward.5} parent=55 // pred_region
        %s2565 = smul.u32 16, %s26
        %p2566 = scmp.lt.s32.totalorder %s25, 1
        %s2567 = scalar_select %p2566, %s25, 1
        %p2568 = scmp.lt.s32.totalorder %s2565, 15
        %s2569 = scalar_select %p2568, %s2565, 15
        %s2570 = smul.addr %s2569, 2
        %s2571 = smul.addr %s2567, 32
        %s2572 = sadd.s32 %s2570, %s2571
        %s2573 = smul.addr %s2572, 8
        %s2574 = scalar_lea.vmem %s6, %s2573
      $region60: #{resnext_bottleneck_forward.5} parent=55 // pred_fallthru
        _
      // Predicated region
      $region61: #{resnext_bottleneck_forward.5} parent=55 // pred_check
        %p2575 = pneg %p248
      $region62: #{resnext_bottleneck_forward.5} parent=55 // pred_check_branch
        %2577 = sbr.rel (%p2575) target = $region64
      $region63: #{resnext_bottleneck_forward.5} parent=55 // pred_region
        %s2578 = sadd.s32 %s25, %s26
        %p2579 = scmp.lt.s32.totalorder %s2578, 1
        %s2580 = scalar_select %p2579, %s2578, 1
        %s2581 = smul.addr %s2580, 8
        %s2582 = scalar_lea.vmem %s7, %s2581
      $region64: #{resnext_bottleneck_forward.5} parent=55 // pred_fallthru
        _
    $region56: #{resnext_bottleneck_forward.5} parent=5 // pred_fallthru
      _
  $region6: #{resnext_bottleneck_forward.5} parent=0 // loop_footer
    %s18 = sadd.s32 1, %s14
  $region7: #{resnext_bottleneck_forward.5} parent=0 // loop_footer_branch
    %13 = sbr.rel target = $region3
  $region8: #{resnext_bottleneck_forward.5} parent=0 // loop_exit
    _

</llo_original>
